<compile_context>
chip_gen: v7x
topology: tpu7x:2x2x1
jax: 0.10.0
libtpu: 0.0.40
codegen_flags: <defaults>
</compile_context>

<pallas_src>
import jax
import jax.numpy as jnp
from jax import lax
from jax.experimental import pallas as pl
from jax.experimental.pallas import tpu as pltpu

VMEM_SPEC = pl.BlockSpec(memory_space=pltpu.MemorySpace.VMEM)

GRID = 7        # image is 7x7x3
VOCAB = 13
EMB = 8
GRU_H = 32


# ------------------------------ fused kernel -------------------------------

def _fused_forward_kernel(
        img_ref, ids_ref,
        c1w_ref, c1b_ref, c2w_ref, c2b_ref, c3w_ref, c3b_ref,
        emb_ref, wih_f_ref, wih_b_ref, bin_f_ref, bin_b_ref,
        whh_f_ref, whh_b_ref, bhhn_f_ref, bhhn_b_ref,
        w1img_ref, w1frm_ref, b1_ref, w2_ref, b2_ref, w3_ref, b3_ref,
        out_ref,
        a1_ref, a2_ref, a3_ref, gif_ref, gib_ref):
    B = out_ref.shape[0]
    NB = GRID * GRID * B            # rows of the full 7x7 grid (pos-major, batch-minor)
    LB = ids_ref.shape[0]           # L * B   (t-major, batch-minor)
    L = LB // B

    # ---------------- image embedder: 3 convs as shift-and-matmul -----------
    # row(b, h, w) = (h*7 + w)*B + b ; a conv tap (kh, kw) is the constant row
    # shift (kh*7 + kw)*B.  Rows at invalid (border) positions are garbage but
    # are never read by any valid consumer; input pad rows are zero.
    def conv(in_ref, w_ref, b_ref, ksize, out_ch):
        acc = jnp.zeros((NB, out_ch), jnp.float32)
        for kh in range(ksize):
            for kw in range(ksize):
                d = (kh * GRID + kw) * B
                acc = acc + jnp.dot(in_ref[pl.ds(d, NB), :],
                                    w_ref[kh * ksize + kw],
                                    preferred_element_type=jnp.float32)
        return jnp.maximum(acc + b_ref[...], 0.0)

    a1_ref[...] = jnp.zeros_like(a1_ref)                       # zero the shift pad rows
    a1_ref[pl.ds(0, NB), :] = conv(img_ref, c1w_ref, c1b_ref, 3, 16)
    a2_ref[...] = jnp.zeros_like(a2_ref)
    a2_ref[pl.ds(0, NB), :] = conv(a1_ref, c2w_ref, c2b_ref, 3, 32)
    a3_ref[...] = conv(a2_ref, c3w_ref, c3b_ref, 2, 32)

    # ------------- ltl embedder + bidirectional GRU (layer 0) ---------------
    # one-hot @ table reproduces nn.Embedding(13, 8, padding_idx=0): row 0 of
    # the table is zero.  All input-side work is hoisted out of the time scan.
    onehot = (ids_ref[...] == lax.broadcasted_iota(jnp.int32, (LB, VOCAB), 1)
              ).astype(jnp.float32)                                    # (L*B, 13)
    emb_flat = jnp.dot(onehot, emb_ref[...],
                       preferred_element_type=jnp.float32)             # (L*B, 8)
    gif_ref[...] = jnp.dot(emb_flat, wih_f_ref[...],
                           preferred_element_type=jnp.float32) + bin_f_ref[...]
    gib_ref[...] = jnp.dot(emb_flat, wih_b_ref[...],
                           preferred_element_type=jnp.float32) + bin_b_ref[...]

    whh_f = whh_f_ref[...]
    whh_b = whh_b_ref[...]
    bhhn_f = bhhn_f_ref[...]
    bhhn_b = bhhn_b_ref[...]

    def gru_step(h, gi, whh, bhh_n):
        # torch gate order (r, z, n); b_hr / b_hz are pre-folded into gi.
        gh = jnp.dot(h, whh, preferred_element_type=jnp.float32)       # (B, 96)
        r = jax.nn.sigmoid(gi[:, 0:GRU_H] + gh[:, 0:GRU_H])
        z = jax.nn.sigmoid(gi[:, GRU_H:2 * GRU_H] + gh[:, GRU_H:2 * GRU_H])
        n = jnp.tanh(gi[:, 2 * GRU_H:] + r * (gh[:, 2 * GRU_H:] + bhh_n))
        return (1.0 - z) * n + z * h

    h_f = jnp.zeros((B, GRU_H), jnp.float32)
    for t in range(L):                          # forward direction
        h_f = gru_step(h_f, gif_ref[pl.ds(t * B, B), :], whh_f, bhhn_f)
    h_b = jnp.zeros((B, GRU_H), jnp.float32)
    for t in range(L - 1, -1, -1):              # backward direction
        h_b = gru_step(h_b, gib_ref[pl.ds(t * B, B), :], whh_b, bhhn_b)

    # -------------- policy & value heads, fused pi|vf in 128 lanes ----------
    # layer 1: the NCHW flatten of the conv output is folded into per-position
    # weight blocks; composed_state = [image(128) | h_f(32) | h_b(32)].
    acc = jnp.dot(h_f, w1frm_ref[0:GRU_H, :], preferred_element_type=jnp.float32)
    acc = acc + jnp.dot(h_b, w1frm_ref[GRU_H:2 * GRU_H, :],
                        preferred_element_type=jnp.float32)
    for p in range(4):                          # conv3 output positions (h, w) in {0,1}^2
        pos = (p // 2) * GRID + (p % 2)
        acc = acc + jnp.dot(a3_ref[pl.ds(pos * B, B), :], w1img_ref[p],
                            preferred_element_type=jnp.float32)
    h1 = jnp.maximum(acc + b1_ref[...], 0.0)                            # (B, 128)
    h2 = jnp.maximum(jnp.dot(h1, w2_ref[...],
                             preferred_element_type=jnp.float32) + b2_ref[...], 0.0)
    out_ref[...] = jnp.dot(h2, w3_ref[...],
                           preferred_element_type=jnp.float32) + b3_ref[...]


# ------------------------------- JAX wrapper --------------------------------

@jax.jit
def custom_network_forward(features, kp):
    B = features.shape[0]
    L = features.shape[1] - 148
    NB = GRID * GRID * B
    R = NB + 16 * B                  # room for the largest conv shift (3x3 kernel)

    # torch: features[:, :147].reshape(B,7,7,3).permute(0,3,1,2) -> NCHW convs.
    # here: flatten to rows on the 7x7 grid (position-major, batch-minor) so
    # the in-kernel conv windows become constant row shifts; zero-pad shift room.
    img_rows = jnp.transpose(features[:, :147].reshape(B, 49, 3), (1, 0, 2)).reshape(NB, 3)
    img_rows = jnp.pad(img_rows, ((0, R - NB), (0, 0)))
    _direction = features[:, 147]                        # unused (as in the torch forward)
    ids = jnp.transpose(features[:, 148:].astype(jnp.int32), (1, 0)).reshape(L * B, 1)

    out = pl.pallas_call(
        _fused_forward_kernel,
        out_shape=jax.ShapeDtypeStruct((B, 128), jnp.float32),
        in_specs=[VMEM_SPEC] * 24,
        out_specs=VMEM_SPEC,
        scratch_shapes=[
            pltpu.VMEM((R, 16), jnp.float32),       # conv1 activation (full grid + pad)
            pltpu.VMEM((R, 32), jnp.float32),       # conv2 activation (full grid + pad)
            pltpu.VMEM((NB, 32), jnp.float32),      # conv3 activation (full grid)
            pltpu.VMEM((L * B, 96), jnp.float32),   # fwd input-side GRU gates
            pltpu.VMEM((L * B, 96), jnp.float32),   # bwd input-side GRU gates
        ],
    )(img_rows, ids,
      kp["conv1_w"], kp["conv1_b"], kp["conv2_w"], kp["conv2_b"],
      kp["conv3_w"], kp["conv3_b"],
      kp["emb"],
      kp["gru_wih_f"], kp["gru_wih_b"], kp["gru_bin_f"], kp["gru_bin_b"],
      kp["gru_whh_f"], kp["gru_whh_b"], kp["gru_bhhn_f"], kp["gru_bhhn_b"],
      kp["w1_img"], kp["w1_frm"], kp["b1"], kp["w2"], kp["b2"], kp["w3"], kp["b3"])

    return out[:, :64], out[:, 64:]             # latent_pi, latent_vf


# --------------------------- parameter handling -----------------------------

def init_torch_params(key):
    """Random parameters in the PyTorch module's native layouts."""
    ks = iter(jax.random.split(key, 64))

    def nrm(shape, scale=0.1):
        return jax.random.normal(next(ks), shape, jnp.float32) * scale

    p = {}
    p["conv1_w"] = nrm((16, 3, 3, 3));  p["conv1_b"] = nrm((16,))
    p["conv2_w"] = nrm((32, 16, 3, 3)); p["conv2_b"] = nrm((32,))
    p["conv3_w"] = nrm((32, 32, 2, 2)); p["conv3_b"] = nrm((32,))
    p["emb"] = nrm((VOCAB, EMB)).at[0].set(0.0)          # padding_idx=0
    for suf in ("", "_reverse"):                          # GRU layer 0 only (h[:-2])
        p[f"gru_weight_ih_l0{suf}"] = nrm((3 * GRU_H, EMB))
        p[f"gru_weight_hh_l0{suf}"] = nrm((3 * GRU_H, GRU_H))
        p[f"gru_bias_ih_l0{suf}"] = nrm((3 * GRU_H,))
        p[f"gru_bias_hh_l0{suf}"] = nrm((3 * GRU_H,))
    for h in ("pi", "vf"):
        p[f"{h}_w1"] = nrm((64, 192)); p[f"{h}_b1"] = nrm((64,))
        p[f"{h}_w2"] = nrm((64, 64));  p[f"{h}_b2"] = nrm((64,))
        p[f"{h}_w3"] = nrm((64, 64));  p[f"{h}_b3"] = nrm((64,))
    return p


def pack_params(tp):
    """Repack torch-layout parameters into the fused kernel's layouts."""
    kp = {}
    # convs: (O, C, KH, KW) -> (KH*KW, C, O) per-tap matrices; bias -> (1, O)
    for name in ("conv1", "conv2", "conv3"):
        w = tp[f"{name}_w"]
        O, C, KH, KW = w.shape
        kp[f"{name}_w"] = jnp.transpose(w, (2, 3, 1, 0)).reshape(KH * KW, C, O)
        kp[f"{name}_b"] = tp[f"{name}_b"].reshape(1, O)
    kp["emb"] = tp["emb"]
    # GRU layer 0 (fwd / bwd): fuse the 3 gates, pre-sum b_hr/b_hz into the
    # input-side bias (the n-gate recurrent bias must stay separate).
    H = GRU_H
    for d, suf in (("f", ""), ("b", "_reverse")):
        wih = tp[f"gru_weight_ih_l0{suf}"]       # (3H, E), gate order r|z|n
        whh = tp[f"gru_weight_hh_l0{suf}"]       # (3H, H)
        bih = tp[f"gru_bias_ih_l0{suf}"]
        bhh = tp[f"gru_bias_hh_l0{suf}"]
        kp[f"gru_wih_{d}"] = wih.T               # (E, 3H)
        kp[f"gru_whh_{d}"] = whh.T               # (H, 3H)
        kp[f"gru_bin_{d}"] = jnp.concatenate(
            [bih[0:H] + bhh[0:H], bih[H:2 * H] + bhh[H:2 * H], bih[2 * H:3 * H]]
        ).reshape(1, 3 * H)
        kp[f"gru_bhhn_{d}"] = bhh[2 * H:3 * H].reshape(1, H)
    # heads: torch Linear weight is (out, in); pre-transpose and pack pi|vf
    # side by side (pi -> cols 0:64, vf -> 64:128).  The NCHW flatten order
    # (input index = c*4 + h*2 + w) is folded into per-position weight blocks.
    pi1, vf1 = tp["pi_w1"].T, tp["vf_w1"].T      # (192, 64)
    kp["w1_img"] = jnp.stack(
        [jnp.concatenate([pi1[p:128:4, :], vf1[p:128:4, :]], axis=1)
         for p in range(4)])                     # (4, 32, 128); p = h*2 + w
    kp["w1_frm"] = jnp.concatenate([pi1[128:, :], vf1[128:, :]], axis=1)  # (64, 128)
    kp["b1"] = jnp.concatenate([tp["pi_b1"], tp["vf_b1"]]).reshape(1, 128)

    def blockdiag(a, b):
        z = jnp.zeros((64, 64), jnp.float32)
        return jnp.block([[a, z], [z, b]])

    kp["w2"] = blockdiag(tp["pi_w2"].T, tp["vf_w2"].T)
    kp["b2"] = jnp.concatenate([tp["pi_b2"], tp["vf_b2"]]).reshape(1, 128)
    kp["w3"] = blockdiag(tp["pi_w3"].T, tp["vf_w3"].T)
    kp["b3"] = jnp.concatenate([tp["pi_b3"], tp["vf_b3"]]).reshape(1, 128)
    return kp


# ----------------------------------- main ------------------------------------

if __name__ == "__main__":
    B, L = 2, 8     # features = 147 image floats + 1 direction + L formula tokens
    key = jax.random.PRNGKey(0)
    k_img, k_dir, k_formula = jax.random.split(key, 3)
    img_part = jax.random.uniform(k_img, (B, 147), jnp.float32)
    dir_part = jax.random.uniform(k_dir, (B, 1), jnp.float32) * 3.0
    formula_part = jax.random.randint(k_formula, (B, L), 0, VOCAB).astype(jnp.float32)
    features = jnp.concatenate([img_part, dir_part, formula_part], axis=1)   # (B, 156)

    tparams = init_torch_params(jax.random.PRNGKey(42))
    kparams = pack_params(tparams)

    latent_pi, latent_vf = custom_network_forward(features, kparams)
    jax.block_until_ready((latent_pi, latent_vf))

    assert latent_pi.shape == (B, 64) and latent_vf.shape == (B, 64)
    assert latent_pi.dtype == jnp.float32 and latent_vf.dtype == jnp.float32
    print("KERNEL_OK")
</pallas_src>

<mosaic_0001>
module attributes {stable_mosaic.version = 11 : i64} {
  func.func @_fused_forward_kernel(%arg0: memref<130x3xf32, #tpu.memory_space<vmem>>, %arg1: memref<16x1xi32, #tpu.memory_space<vmem>>, %arg2: memref<9x3x16xf32, #tpu.memory_space<vmem>>, %arg3: memref<1x16xf32, #tpu.memory_space<vmem>>, %arg4: memref<9x16x32xf32, #tpu.memory_space<vmem>>, %arg5: memref<1x32xf32, #tpu.memory_space<vmem>>, %arg6: memref<4x32x32xf32, #tpu.memory_space<vmem>>, %arg7: memref<1x32xf32, #tpu.memory_space<vmem>>, %arg8: memref<13x8xf32, #tpu.memory_space<vmem>>, %arg9: memref<8x96xf32, #tpu.memory_space<vmem>>, %arg10: memref<8x96xf32, #tpu.memory_space<vmem>>, %arg11: memref<1x96xf32, #tpu.memory_space<vmem>>, %arg12: memref<1x96xf32, #tpu.memory_space<vmem>>, %arg13: memref<32x96xf32, #tpu.memory_space<vmem>>, %arg14: memref<32x96xf32, #tpu.memory_space<vmem>>, %arg15: memref<1x32xf32, #tpu.memory_space<vmem>>, %arg16: memref<1x32xf32, #tpu.memory_space<vmem>>, %arg17: memref<4x32x128xf32, #tpu.memory_space<vmem>>, %arg18: memref<64x128xf32, #tpu.memory_space<vmem>>, %arg19: memref<1x128xf32, #tpu.memory_space<vmem>>, %arg20: memref<128x128xf32, #tpu.memory_space<vmem>>, %arg21: memref<1x128xf32, #tpu.memory_space<vmem>>, %arg22: memref<128x128xf32, #tpu.memory_space<vmem>>, %arg23: memref<1x128xf32, #tpu.memory_space<vmem>>, %arg24: memref<2x128xf32, #tpu.memory_space<vmem>>, %arg25: memref<130x16xf32, #tpu.memory_space<vmem>>, %arg26: memref<130x32xf32, #tpu.memory_space<vmem>>, %arg27: memref<98x32xf32, #tpu.memory_space<vmem>>, %arg28: memref<16x96xf32, #tpu.memory_space<vmem>>, %arg29: memref<16x96xf32, #tpu.memory_space<vmem>>) attributes {dimension_semantics = [], scalar_prefetch = 0 : i64, scratch_operands = 5 : i64, tpu.core_type = #tpu.core_type<tc>} {
    %cst = arith.constant 0.000000e+00 : f32
    %0 = vector.broadcast %cst : f32 to vector<130x16xf32>
    %c0 = arith.constant 0 : index
    %c0_0 = arith.constant 0 : index
    %1 = vector.load %arg25[%c0, %c0_0] : memref<130x16xf32, #tpu.memory_space<vmem>>, vector<130x16xf32>
    tpu.vector_store %arg25[%c0, %c0_0], %0 {strides = array<i32>} : memref<130x16xf32, #tpu.memory_space<vmem>>, vector<130x16xf32>,
    %cst_1 = arith.constant 0.000000e+00 : f32
    %2 = vector.broadcast %cst_1 : f32 to vector<98x16xf32>
    %c0_2 = arith.constant 0 : index
    %c0_3 = arith.constant 0 : index
    %3 = vector.load %arg0[%c0_2, %c0_3] : memref<130x3xf32, #tpu.memory_space<vmem>>, vector<98x3xf32>
    %c0_4 = arith.constant 0 : index
    %c0_5 = arith.constant 0 : index
    %c0_6 = arith.constant 0 : index
    %4 = vector.load %arg2[%c0_4, %c0_5, %c0_6] : memref<9x3x16xf32, #tpu.memory_space<vmem>>, vector<1x3x16xf32>
    %5 = vector.shape_cast %4 : vector<1x3x16xf32> to vector<3x16xf32>
    %cst_7 = arith.constant dense<0.000000e+00> : vector<98x16xf32>
    %6 = tpu.matmul %3, %5, %cst_7 {dimension_numbers = #tpu.dot_dimension_numbers<[1], [0], [0], [1], [0, 0, 1, 1], [], []>} : vector<98x3xf32>, vector<3x16xf32>, vector<98x16xf32> -> vector<98x16xf32>
    %7 = arith.addf %2, %6 : vector<98x16xf32>
    %c2 = arith.constant 2 : index
    %c0_8 = arith.constant 0 : index
    %8 = vector.load %arg0[%c2, %c0_8] : memref<130x3xf32, #tpu.memory_space<vmem>>, vector<98x3xf32>
    %c1 = arith.constant 1 : index
    %c0_9 = arith.constant 0 : index
    %c0_10 = arith.constant 0 : index
    %9 = vector.load %arg2[%c1, %c0_9, %c0_10] : memref<9x3x16xf32, #tpu.memory_space<vmem>>, vector<1x3x16xf32>
    %10 = vector.shape_cast %9 : vector<1x3x16xf32> to vector<3x16xf32>
    %cst_11 = arith.constant dense<0.000000e+00> : vector<98x16xf32>
    %11 = tpu.matmul %8, %10, %cst_11 {dimension_numbers = #tpu.dot_dimension_numbers<[1], [0], [0], [1], [0, 0, 1, 1], [], []>} : vector<98x3xf32>, vector<3x16xf32>, vector<98x16xf32> -> vector<98x16xf32>
    %12 = arith.addf %7, %11 : vector<98x16xf32>
    %c4 = arith.constant 4 : index
    %c0_12 = arith.constant 0 : index
    %13 = vector.load %arg0[%c4, %c0_12] : memref<130x3xf32, #tpu.memory_space<vmem>>, vector<98x3xf32>
    %c2_13 = arith.constant 2 : index
    %c0_14 = arith.constant 0 : index
    %c0_15 = arith.constant 0 : index
    %14 = vector.load %arg2[%c2_13, %c0_14, %c0_15] : memref<9x3x16xf32, #tpu.memory_space<vmem>>, vector<1x3x16xf32>
    %15 = vector.shape_cast %14 : vector<1x3x16xf32> to vector<3x16xf32>
    %cst_16 = arith.constant dense<0.000000e+00> : vector<98x16xf32>
    %16 = tpu.matmul %13, %15, %cst_16 {dimension_numbers = #tpu.dot_dimension_numbers<[1], [0], [0], [1], [0, 0, 1, 1], [], []>} : vector<98x3xf32>, vector<3x16xf32>, vector<98x16xf32> -> vector<98x16xf32>
    %17 = arith.addf %12, %16 : vector<98x16xf32>
    %c14 = arith.constant 14 : index
    %c0_17 = arith.constant 0 : index
    %18 = vector.load %arg0[%c14, %c0_17] : memref<130x3xf32, #tpu.memory_space<vmem>>, vector<98x3xf32>
    %c3 = arith.constant 3 : index
    %c0_18 = arith.constant 0 : index
    %c0_19 = arith.constant 0 : index
    %19 = vector.load %arg2[%c3, %c0_18, %c0_19] : memref<9x3x16xf32, #tpu.memory_space<vmem>>, vector<1x3x16xf32>
    %20 = vector.shape_cast %19 : vector<1x3x16xf32> to vector<3x16xf32>
    %cst_20 = arith.constant dense<0.000000e+00> : vector<98x16xf32>
    %21 = tpu.matmul %18, %20, %cst_20 {dimension_numbers = #tpu.dot_dimension_numbers<[1], [0], [0], [1], [0, 0, 1, 1], [], []>} : vector<98x3xf32>, vector<3x16xf32>, vector<98x16xf32> -> vector<98x16xf32>
    %22 = arith.addf %17, %21 : vector<98x16xf32>
    %c16 = arith.constant 16 : index
    %c0_21 = arith.constant 0 : index
    %23 = vector.load %arg0[%c16, %c0_21] : memref<130x3xf32, #tpu.memory_space<vmem>>, vector<98x3xf32>
    %c4_22 = arith.constant 4 : index
    %c0_23 = arith.constant 0 : index
    %c0_24 = arith.constant 0 : index
    %24 = vector.load %arg2[%c4_22, %c0_23, %c0_24] : memref<9x3x16xf32, #tpu.memory_space<vmem>>, vector<1x3x16xf32>
    %25 = vector.shape_cast %24 : vector<1x3x16xf32> to vector<3x16xf32>
    %cst_25 = arith.constant dense<0.000000e+00> : vector<98x16xf32>
    %26 = tpu.matmul %23, %25, %cst_25 {dimension_numbers = #tpu.dot_dimension_numbers<[1], [0], [0], [1], [0, 0, 1, 1], [], []>} : vector<98x3xf32>, vector<3x16xf32>, vector<98x16xf32> -> vector<98x16xf32>
    %27 = arith.addf %22, %26 : vector<98x16xf32>
    %c18 = arith.constant 18 : index
    %c0_26 = arith.constant 0 : index
    %28 = vector.load %arg0[%c18, %c0_26] : memref<130x3xf32, #tpu.memory_space<vmem>>, vector<98x3xf32>
    %c5 = arith.constant 5 : index
    %c0_27 = arith.constant 0 : index
    %c0_28 = arith.constant 0 : index
    %29 = vector.load %arg2[%c5, %c0_27, %c0_28] : memref<9x3x16xf32, #tpu.memory_space<vmem>>, vector<1x3x16xf32>
    %30 = vector.shape_cast %29 : vector<1x3x16xf32> to vector<3x16xf32>
    %cst_29 = arith.constant dense<0.000000e+00> : vector<98x16xf32>
    %31 = tpu.matmul %28, %30, %cst_29 {dimension_numbers = #tpu.dot_dimension_numbers<[1], [0], [0], [1], [0, 0, 1, 1], [], []>} : vector<98x3xf32>, vector<3x16xf32>, vector<98x16xf32> -> vector<98x16xf32>
    %32 = arith.addf %27, %31 : vector<98x16xf32>
    %c28 = arith.constant 28 : index
    %c0_30 = arith.constant 0 : index
    %33 = vector.load %arg0[%c28, %c0_30] : memref<130x3xf32, #tpu.memory_space<vmem>>, vector<98x3xf32>
    %c6 = arith.constant 6 : index
    %c0_31 = arith.constant 0 : index
    %c0_32 = arith.constant 0 : index
    %34 = vector.load %arg2[%c6, %c0_31, %c0_32] : memref<9x3x16xf32, #tpu.memory_space<vmem>>, vector<1x3x16xf32>
    %35 = vector.shape_cast %34 : vector<1x3x16xf32> to vector<3x16xf32>
    %cst_33 = arith.constant dense<0.000000e+00> : vector<98x16xf32>
    %36 = tpu.matmul %33, %35, %cst_33 {dimension_numbers = #tpu.dot_dimension_numbers<[1], [0], [0], [1], [0, 0, 1, 1], [], []>} : vector<98x3xf32>, vector<3x16xf32>, vector<98x16xf32> -> vector<98x16xf32>
    %37 = arith.addf %32, %36 : vector<98x16xf32>
    %c30 = arith.constant 30 : index
    %c0_34 = arith.constant 0 : index
    %38 = vector.load %arg0[%c30, %c0_34] : memref<130x3xf32, #tpu.memory_space<vmem>>, vector<98x3xf32>
    %c7 = arith.constant 7 : index
    %c0_35 = arith.constant 0 : index
    %c0_36 = arith.constant 0 : index
    %39 = vector.load %arg2[%c7, %c0_35, %c0_36] : memref<9x3x16xf32, #tpu.memory_space<vmem>>, vector<1x3x16xf32>
    %40 = vector.shape_cast %39 : vector<1x3x16xf32> to vector<3x16xf32>
    %cst_37 = arith.constant dense<0.000000e+00> : vector<98x16xf32>
    %41 = tpu.matmul %38, %40, %cst_37 {dimension_numbers = #tpu.dot_dimension_numbers<[1], [0], [0], [1], [0, 0, 1, 1], [], []>} : vector<98x3xf32>, vector<3x16xf32>, vector<98x16xf32> -> vector<98x16xf32>
    %42 = arith.addf %37, %41 : vector<98x16xf32>
    %c32 = arith.constant 32 : index
    %c0_38 = arith.constant 0 : index
    %43 = vector.load %arg0[%c32, %c0_38] : memref<130x3xf32, #tpu.memory_space<vmem>>, vector<98x3xf32>
    %c8 = arith.constant 8 : index
    %c0_39 = arith.constant 0 : index
    %c0_40 = arith.constant 0 : index
    %44 = vector.load %arg2[%c8, %c0_39, %c0_40] : memref<9x3x16xf32, #tpu.memory_space<vmem>>, vector<1x3x16xf32>
    %45 = vector.shape_cast %44 : vector<1x3x16xf32> to vector<3x16xf32>
    %cst_41 = arith.constant dense<0.000000e+00> : vector<98x16xf32>
    %46 = tpu.matmul %43, %45, %cst_41 {dimension_numbers = #tpu.dot_dimension_numbers<[1], [0], [0], [1], [0, 0, 1, 1], [], []>} : vector<98x3xf32>, vector<3x16xf32>, vector<98x16xf32> -> vector<98x16xf32>
    %47 = arith.addf %42, %46 : vector<98x16xf32>
    %c0_42 = arith.constant 0 : index
    %c0_43 = arith.constant 0 : index
    %48 = vector.load %arg3[%c0_42, %c0_43] : memref<1x16xf32, #tpu.memory_space<vmem>>, vector<1x16xf32>
    %49 = vector.broadcast %48 : vector<1x16xf32> to vector<98x16xf32>
    %50 = arith.addf %47, %49 : vector<98x16xf32>
    %cst_44 = arith.constant 0.000000e+00 : f32
    %51 = vector.broadcast %cst_44 : f32 to vector<98x16xf32>
    %52 = arith.maximumf %50, %51 : vector<98x16xf32>
    %c0_45 = arith.constant 0 : index
    %c0_46 = arith.constant 0 : index
    %53 = vector.load %arg25[%c0_45, %c0_46] : memref<130x16xf32, #tpu.memory_space<vmem>>, vector<98x16xf32>
    tpu.vector_store %arg25[%c0_45, %c0_46], %52 {strides = array<i32>} : memref<130x16xf32, #tpu.memory_space<vmem>>, vector<98x16xf32>,
    %cst_47 = arith.constant 0.000000e+00 : f32
    %54 = vector.broadcast %cst_47 : f32 to vector<130x32xf32>
    %c0_48 = arith.constant 0 : index
    %c0_49 = arith.constant 0 : index
    %55 = vector.load %arg26[%c0_48, %c0_49] : memref<130x32xf32, #tpu.memory_space<vmem>>, vector<130x32xf32>
    tpu.vector_store %arg26[%c0_48, %c0_49], %54 {strides = array<i32>} : memref<130x32xf32, #tpu.memory_space<vmem>>, vector<130x32xf32>,
    %cst_50 = arith.constant 0.000000e+00 : f32
    %56 = vector.broadcast %cst_50 : f32 to vector<98x32xf32>
    %c0_51 = arith.constant 0 : index
    %c0_52 = arith.constant 0 : index
    %57 = vector.load %arg25[%c0_51, %c0_52] : memref<130x16xf32, #tpu.memory_space<vmem>>, vector<98x16xf32>
    %c0_53 = arith.constant 0 : index
    %c0_54 = arith.constant 0 : index
    %c0_55 = arith.constant 0 : index
    %58 = vector.load %arg4[%c0_53, %c0_54, %c0_55] : memref<9x16x32xf32, #tpu.memory_space<vmem>>, vector<1x16x32xf32>
    %59 = vector.shape_cast %58 : vector<1x16x32xf32> to vector<16x32xf32>
    %cst_56 = arith.constant dense<0.000000e+00> : vector<98x32xf32>
    %60 = tpu.matmul %57, %59, %cst_56 {dimension_numbers = #tpu.dot_dimension_numbers<[1], [0], [0], [1], [0, 0, 1, 1], [], []>} : vector<98x16xf32>, vector<16x32xf32>, vector<98x32xf32> -> vector<98x32xf32>
    %61 = arith.addf %56, %60 : vector<98x32xf32>
    %c2_57 = arith.constant 2 : index
    %c0_58 = arith.constant 0 : index
    %62 = vector.load %arg25[%c2_57, %c0_58] : memref<130x16xf32, #tpu.memory_space<vmem>>, vector<98x16xf32>
    %c1_59 = arith.constant 1 : index
    %c0_60 = arith.constant 0 : index
    %c0_61 = arith.constant 0 : index
    %63 = vector.load %arg4[%c1_59, %c0_60, %c0_61] : memref<9x16x32xf32, #tpu.memory_space<vmem>>, vector<1x16x32xf32>
    %64 = vector.shape_cast %63 : vector<1x16x32xf32> to vector<16x32xf32>
    %cst_62 = arith.constant dense<0.000000e+00> : vector<98x32xf32>
    %65 = tpu.matmul %62, %64, %cst_62 {dimension_numbers = #tpu.dot_dimension_numbers<[1], [0], [0], [1], [0, 0, 1, 1], [], []>} : vector<98x16xf32>, vector<16x32xf32>, vector<98x32xf32> -> vector<98x32xf32>
    %66 = arith.addf %61, %65 : vector<98x32xf32>
    %c4_63 = arith.constant 4 : index
    %c0_64 = arith.constant 0 : index
    %67 = vector.load %arg25[%c4_63, %c0_64] : memref<130x16xf32, #tpu.memory_space<vmem>>, vector<98x16xf32>
    %c2_65 = arith.constant 2 : index
    %c0_66 = arith.constant 0 : index
    %c0_67 = arith.constant 0 : index
    %68 = vector.load %arg4[%c2_65, %c0_66, %c0_67] : memref<9x16x32xf32, #tpu.memory_space<vmem>>, vector<1x16x32xf32>
    %69 = vector.shape_cast %68 : vector<1x16x32xf32> to vector<16x32xf32>
    %cst_68 = arith.constant dense<0.000000e+00> : vector<98x32xf32>
    %70 = tpu.matmul %67, %69, %cst_68 {dimension_numbers = #tpu.dot_dimension_numbers<[1], [0], [0], [1], [0, 0, 1, 1], [], []>} : vector<98x16xf32>, vector<16x32xf32>, vector<98x32xf32> -> vector<98x32xf32>
    %71 = arith.addf %66, %70 : vector<98x32xf32>
    %c14_69 = arith.constant 14 : index
    %c0_70 = arith.constant 0 : index
    %72 = vector.load %arg25[%c14_69, %c0_70] : memref<130x16xf32, #tpu.memory_space<vmem>>, vector<98x16xf32>
    %c3_71 = arith.constant 3 : index
    %c0_72 = arith.constant 0 : index
    %c0_73 = arith.constant 0 : index
    %73 = vector.load %arg4[%c3_71, %c0_72, %c0_73] : memref<9x16x32xf32, #tpu.memory_space<vmem>>, vector<1x16x32xf32>
    %74 = vector.shape_cast %73 : vector<1x16x32xf32> to vector<16x32xf32>
    %cst_74 = arith.constant dense<0.000000e+00> : vector<98x32xf32>
    %75 = tpu.matmul %72, %74, %cst_74 {dimension_numbers = #tpu.dot_dimension_numbers<[1], [0], [0], [1], [0, 0, 1, 1], [], []>} : vector<98x16xf32>, vector<16x32xf32>, vector<98x32xf32> -> vector<98x32xf32>
    %76 = arith.addf %71, %75 : vector<98x32xf32>
    %c16_75 = arith.constant 16 : index
    %c0_76 = arith.constant 0 : index
    %77 = vector.load %arg25[%c16_75, %c0_76] : memref<130x16xf32, #tpu.memory_space<vmem>>, vector<98x16xf32>
    %c4_77 = arith.constant 4 : index
    %c0_78 = arith.constant 0 : index
    %c0_79 = arith.constant 0 : index
    %78 = vector.load %arg4[%c4_77, %c0_78, %c0_79] : memref<9x16x32xf32, #tpu.memory_space<vmem>>, vector<1x16x32xf32>
    %79 = vector.shape_cast %78 : vector<1x16x32xf32> to vector<16x32xf32>
    %cst_80 = arith.constant dense<0.000000e+00> : vector<98x32xf32>
    %80 = tpu.matmul %77, %79, %cst_80 {dimension_numbers = #tpu.dot_dimension_numbers<[1], [0], [0], [1], [0, 0, 1, 1], [], []>} : vector<98x16xf32>, vector<16x32xf32>, vector<98x32xf32> -> vector<98x32xf32>
    %81 = arith.addf %76, %80 : vector<98x32xf32>
    %c18_81 = arith.constant 18 : index
    %c0_82 = arith.constant 0 : index
    %82 = vector.load %arg25[%c18_81, %c0_82] : memref<130x16xf32, #tpu.memory_space<vmem>>, vector<98x16xf32>
    %c5_83 = arith.constant 5 : index
    %c0_84 = arith.constant 0 : index
    %c0_85 = arith.constant 0 : index
    %83 = vector.load %arg4[%c5_83, %c0_84, %c0_85] : memref<9x16x32xf32, #tpu.memory_space<vmem>>, vector<1x16x32xf32>
    %84 = vector.shape_cast %83 : vector<1x16x32xf32> to vector<16x32xf32>
    %cst_86 = arith.constant dense<0.000000e+00> : vector<98x32xf32>
    %85 = tpu.matmul %82, %84, %cst_86 {dimension_numbers = #tpu.dot_dimension_numbers<[1], [0], [0], [1], [0, 0, 1, 1], [], []>} : vector<98x16xf32>, vector<16x32xf32>, vector<98x32xf32> -> vector<98x32xf32>
    %86 = arith.addf %81, %85 : vector<98x32xf32>
    %c28_87 = arith.constant 28 : index
    %c0_88 = arith.constant 0 : index
    %87 = vector.load %arg25[%c28_87, %c0_88] : memref<130x16xf32, #tpu.memory_space<vmem>>, vector<98x16xf32>
    %c6_89 = arith.constant 6 : index
    %c0_90 = arith.constant 0 : index
    %c0_91 = arith.constant 0 : index
    %88 = vector.load %arg4[%c6_89, %c0_90, %c0_91] : memref<9x16x32xf32, #tpu.memory_space<vmem>>, vector<1x16x32xf32>
    %89 = vector.shape_cast %88 : vector<1x16x32xf32> to vector<16x32xf32>
    %cst_92 = arith.constant dense<0.000000e+00> : vector<98x32xf32>
    %90 = tpu.matmul %87, %89, %cst_92 {dimension_numbers = #tpu.dot_dimension_numbers<[1], [0], [0], [1], [0, 0, 1, 1], [], []>} : vector<98x16xf32>, vector<16x32xf32>, vector<98x32xf32> -> vector<98x32xf32>
    %91 = arith.addf %86, %90 : vector<98x32xf32>
    %c30_93 = arith.constant 30 : index
    %c0_94 = arith.constant 0 : index
    %92 = vector.load %arg25[%c30_93, %c0_94] : memref<130x16xf32, #tpu.memory_space<vmem>>, vector<98x16xf32>
    %c7_95 = arith.constant 7 : index
    %c0_96 = arith.constant 0 : index
    %c0_97 = arith.constant 0 : index
    %93 = vector.load %arg4[%c7_95, %c0_96, %c0_97] : memref<9x16x32xf32, #tpu.memory_space<vmem>>, vector<1x16x32xf32>
    %94 = vector.shape_cast %93 : vector<1x16x32xf32> to vector<16x32xf32>
    %cst_98 = arith.constant dense<0.000000e+00> : vector<98x32xf32>
    %95 = tpu.matmul %92, %94, %cst_98 {dimension_numbers = #tpu.dot_dimension_numbers<[1], [0], [0], [1], [0, 0, 1, 1], [], []>} : vector<98x16xf32>, vector<16x32xf32>, vector<98x32xf32> -> vector<98x32xf32>
    %96 = arith.addf %91, %95 : vector<98x32xf32>
    %c32_99 = arith.constant 32 : index
    %c0_100 = arith.constant 0 : index
    %97 = vector.load %arg25[%c32_99, %c0_100] : memref<130x16xf32, #tpu.memory_space<vmem>>, vector<98x16xf32>
    %c8_101 = arith.constant 8 : index
    %c0_102 = arith.constant 0 : index
    %c0_103 = arith.constant 0 : index
    %98 = vector.load %arg4[%c8_101, %c0_102, %c0_103] : memref<9x16x32xf32, #tpu.memory_space<vmem>>, vector<1x16x32xf32>
    %99 = vector.shape_cast %98 : vector<1x16x32xf32> to vector<16x32xf32>
    %cst_104 = arith.constant dense<0.000000e+00> : vector<98x32xf32>
    %100 = tpu.matmul %97, %99, %cst_104 {dimension_numbers = #tpu.dot_dimension_numbers<[1], [0], [0], [1], [0, 0, 1, 1], [], []>} : vector<98x16xf32>, vector<16x32xf32>, vector<98x32xf32> -> vector<98x32xf32>
    %101 = arith.addf %96, %100 : vector<98x32xf32>
    %c0_105 = arith.constant 0 : index
    %c0_106 = arith.constant 0 : index
    %102 = vector.load %arg5[%c0_105, %c0_106] : memref<1x32xf32, #tpu.memory_space<vmem>>, vector<1x32xf32>
    %103 = vector.broadcast %102 : vector<1x32xf32> to vector<98x32xf32>
    %104 = arith.addf %101, %103 : vector<98x32xf32>
    %cst_107 = arith.constant 0.000000e+00 : f32
    %105 = vector.broadcast %cst_107 : f32 to vector<98x32xf32>
    %106 = arith.maximumf %104, %105 : vector<98x32xf32>
    %c0_108 = arith.constant 0 : index
    %c0_109 = arith.constant 0 : index
    %107 = vector.load %arg26[%c0_108, %c0_109] : memref<130x32xf32, #tpu.memory_space<vmem>>, vector<98x32xf32>
    tpu.vector_store %arg26[%c0_108, %c0_109], %106 {strides = array<i32>} : memref<130x32xf32, #tpu.memory_space<vmem>>, vector<98x32xf32>,
    %cst_110 = arith.constant 0.000000e+00 : f32
    %108 = vector.broadcast %cst_110 : f32 to vector<98x32xf32>
    %c0_111 = arith.constant 0 : index
    %c0_112 = arith.constant 0 : index
    %109 = vector.load %arg26[%c0_111, %c0_112] : memref<130x32xf32, #tpu.memory_space<vmem>>, vector<98x32xf32>
    %c0_113 = arith.constant 0 : index
    %c0_114 = arith.constant 0 : index
    %c0_115 = arith.constant 0 : index
    %110 = vector.load %arg6[%c0_113, %c0_114, %c0_115] : memref<4x32x32xf32, #tpu.memory_space<vmem>>, vector<1x32x32xf32>
    %111 = vector.shape_cast %110 : vector<1x32x32xf32> to vector<32x32xf32>
    %cst_116 = arith.constant dense<0.000000e+00> : vector<98x32xf32>
    %112 = tpu.matmul %109, %111, %cst_116 {dimension_numbers = #tpu.dot_dimension_numbers<[1], [0], [0], [1], [0, 0, 1, 1], [], []>} : vector<98x32xf32>, vector<32x32xf32>, vector<98x32xf32> -> vector<98x32xf32>
    %113 = arith.addf %108, %112 : vector<98x32xf32>
    %c2_117 = arith.constant 2 : index
    %c0_118 = arith.constant 0 : index
    %114 = vector.load %arg26[%c2_117, %c0_118] : memref<130x32xf32, #tpu.memory_space<vmem>>, vector<98x32xf32>
    %c1_119 = arith.constant 1 : index
    %c0_120 = arith.constant 0 : index
    %c0_121 = arith.constant 0 : index
    %115 = vector.load %arg6[%c1_119, %c0_120, %c0_121] : memref<4x32x32xf32, #tpu.memory_space<vmem>>, vector<1x32x32xf32>
    %116 = vector.shape_cast %115 : vector<1x32x32xf32> to vector<32x32xf32>
    %cst_122 = arith.constant dense<0.000000e+00> : vector<98x32xf32>
    %117 = tpu.matmul %114, %116, %cst_122 {dimension_numbers = #tpu.dot_dimension_numbers<[1], [0], [0], [1], [0, 0, 1, 1], [], []>} : vector<98x32xf32>, vector<32x32xf32>, vector<98x32xf32> -> vector<98x32xf32>
    %118 = arith.addf %113, %117 : vector<98x32xf32>
    %c14_123 = arith.constant 14 : index
    %c0_124 = arith.constant 0 : index
    %119 = vector.load %arg26[%c14_123, %c0_124] : memref<130x32xf32, #tpu.memory_space<vmem>>, vector<98x32xf32>
    %c2_125 = arith.constant 2 : index
    %c0_126 = arith.constant 0 : index
    %c0_127 = arith.constant 0 : index
    %120 = vector.load %arg6[%c2_125, %c0_126, %c0_127] : memref<4x32x32xf32, #tpu.memory_space<vmem>>, vector<1x32x32xf32>
    %121 = vector.shape_cast %120 : vector<1x32x32xf32> to vector<32x32xf32>
    %cst_128 = arith.constant dense<0.000000e+00> : vector<98x32xf32>
    %122 = tpu.matmul %119, %121, %cst_128 {dimension_numbers = #tpu.dot_dimension_numbers<[1], [0], [0], [1], [0, 0, 1, 1], [], []>} : vector<98x32xf32>, vector<32x32xf32>, vector<98x32xf32> -> vector<98x32xf32>
    %123 = arith.addf %118, %122 : vector<98x32xf32>
    %c16_129 = arith.constant 16 : index
    %c0_130 = arith.constant 0 : index
    %124 = vector.load %arg26[%c16_129, %c0_130] : memref<130x32xf32, #tpu.memory_space<vmem>>, vector<98x32xf32>
    %c3_131 = arith.constant 3 : index
    %c0_132 = arith.constant 0 : index
    %c0_133 = arith.constant 0 : index
    %125 = vector.load %arg6[%c3_131, %c0_132, %c0_133] : memref<4x32x32xf32, #tpu.memory_space<vmem>>, vector<1x32x32xf32>
    %126 = vector.shape_cast %125 : vector<1x32x32xf32> to vector<32x32xf32>
    %cst_134 = arith.constant dense<0.000000e+00> : vector<98x32xf32>
    %127 = tpu.matmul %124, %126, %cst_134 {dimension_numbers = #tpu.dot_dimension_numbers<[1], [0], [0], [1], [0, 0, 1, 1], [], []>} : vector<98x32xf32>, vector<32x32xf32>, vector<98x32xf32> -> vector<98x32xf32>
    %128 = arith.addf %123, %127 : vector<98x32xf32>
    %c0_135 = arith.constant 0 : index
    %c0_136 = arith.constant 0 : index
    %129 = vector.load %arg7[%c0_135, %c0_136] : memref<1x32xf32, #tpu.memory_space<vmem>>, vector<1x32xf32>
    %130 = vector.broadcast %129 : vector<1x32xf32> to vector<98x32xf32>
    %131 = arith.addf %128, %130 : vector<98x32xf32>
    %cst_137 = arith.constant 0.000000e+00 : f32
    %132 = vector.broadcast %cst_137 : f32 to vector<98x32xf32>
    %133 = arith.maximumf %131, %132 : vector<98x32xf32>
    %c0_138 = arith.constant 0 : index
    %c0_139 = arith.constant 0 : index
    %134 = vector.load %arg27[%c0_138, %c0_139] : memref<98x32xf32, #tpu.memory_space<vmem>>, vector<98x32xf32>
    tpu.vector_store %arg27[%c0_138, %c0_139], %133 {strides = array<i32>} : memref<98x32xf32, #tpu.memory_space<vmem>>, vector<98x32xf32>,
    %c0_140 = arith.constant 0 : index
    %c0_141 = arith.constant 0 : index
    %135 = vector.load %arg1[%c0_140, %c0_141] : memref<16x1xi32, #tpu.memory_space<vmem>>, vector<16x1xi32>
    %136 = tpu.iota {dimensions = array<i32: 1>} : vector<16x13xi32>
    %137 = vector.broadcast %135 : vector<16x1xi32> to vector<16x13xi32>
    %138 = arith.cmpi eq, %137, %136 : vector<16x13xi32>
    %139 = arith.extui %138 : vector<16x13xi1> to vector<16x13xi32>
    %140 = arith.sitofp %139 : vector<16x13xi32> to vector<16x13xf32>
    %c0_142 = arith.constant 0 : index
    %c0_143 = arith.constant 0 : index
    %141 = vector.load %arg8[%c0_142, %c0_143] : memref<13x8xf32, #tpu.memory_space<vmem>>, vector<13x8xf32>
    %cst_144 = arith.constant dense<0.000000e+00> : vector<16x8xf32>
    %142 = tpu.matmul %140, %141, %cst_144 {dimension_numbers = #tpu.dot_dimension_numbers<[1], [0], [0], [1], [0, 0, 1, 1], [], []>} : vector<16x13xf32>, vector<13x8xf32>, vector<16x8xf32> -> vector<16x8xf32>
    %c0_145 = arith.constant 0 : index
    %c0_146 = arith.constant 0 : index
    %143 = vector.load %arg9[%c0_145, %c0_146] : memref<8x96xf32, #tpu.memory_space<vmem>>, vector<8x96xf32>
    %cst_147 = arith.constant dense<0.000000e+00> : vector<16x96xf32>
    %144 = tpu.matmul %142, %143, %cst_147 {dimension_numbers = #tpu.dot_dimension_numbers<[1], [0], [0], [1], [0, 0, 1, 1], [], []>} : vector<16x8xf32>, vector<8x96xf32>, vector<16x96xf32> -> vector<16x96xf32>
    %c0_148 = arith.constant 0 : index
    %c0_149 = arith.constant 0 : index
    %145 = vector.load %arg11[%c0_148, %c0_149] : memref<1x96xf32, #tpu.memory_space<vmem>>, vector<1x96xf32>
    %146 = vector.broadcast %145 : vector<1x96xf32> to vector<16x96xf32>
    %147 = arith.addf %144, %146 : vector<16x96xf32>
    %c0_150 = arith.constant 0 : index
    %c0_151 = arith.constant 0 : index
    %148 = vector.load %arg28[%c0_150, %c0_151] : memref<16x96xf32, #tpu.memory_space<vmem>>, vector<16x96xf32>
    tpu.vector_store %arg28[%c0_150, %c0_151], %147 {strides = array<i32>} : memref<16x96xf32, #tpu.memory_space<vmem>>, vector<16x96xf32>,
    %c0_152 = arith.constant 0 : index
    %c0_153 = arith.constant 0 : index
    %149 = vector.load %arg10[%c0_152, %c0_153] : memref<8x96xf32, #tpu.memory_space<vmem>>, vector<8x96xf32>
    %cst_154 = arith.constant dense<0.000000e+00> : vector<16x96xf32>
    %150 = tpu.matmul %142, %149, %cst_154 {dimension_numbers = #tpu.dot_dimension_numbers<[1], [0], [0], [1], [0, 0, 1, 1], [], []>} : vector<16x8xf32>, vector<8x96xf32>, vector<16x96xf32> -> vector<16x96xf32>
    %c0_155 = arith.constant 0 : index
    %c0_156 = arith.constant 0 : index
    %151 = vector.load %arg12[%c0_155, %c0_156] : memref<1x96xf32, #tpu.memory_space<vmem>>, vector<1x96xf32>
    %152 = vector.broadcast %151 : vector<1x96xf32> to vector<16x96xf32>
    %153 = arith.addf %150, %152 : vector<16x96xf32>
    %c0_157 = arith.constant 0 : index
    %c0_158 = arith.constant 0 : index
    %154 = vector.load %arg29[%c0_157, %c0_158] : memref<16x96xf32, #tpu.memory_space<vmem>>, vector<16x96xf32>
    tpu.vector_store %arg29[%c0_157, %c0_158], %153 {strides = array<i32>} : memref<16x96xf32, #tpu.memory_space<vmem>>, vector<16x96xf32>,
    %c0_159 = arith.constant 0 : index
    %c0_160 = arith.constant 0 : index
    %155 = vector.load %arg13[%c0_159, %c0_160] : memref<32x96xf32, #tpu.memory_space<vmem>>, vector<32x96xf32>
    %c0_161 = arith.constant 0 : index
    %c0_162 = arith.constant 0 : index
    %156 = vector.load %arg14[%c0_161, %c0_162] : memref<32x96xf32, #tpu.memory_space<vmem>>, vector<32x96xf32>
    %c0_163 = arith.constant 0 : index
    %c0_164 = arith.constant 0 : index
    %157 = vector.load %arg15[%c0_163, %c0_164] : memref<1x32xf32, #tpu.memory_space<vmem>>, vector<1x32xf32>
    %c0_165 = arith.constant 0 : index
    %c0_166 = arith.constant 0 : index
    %158 = vector.load %arg16[%c0_165, %c0_166] : memref<1x32xf32, #tpu.memory_space<vmem>>, vector<1x32xf32>
    %cst_167 = arith.constant 0.000000e+00 : f32
    %159 = vector.broadcast %cst_167 : f32 to vector<2x32xf32>
    %c0_168 = arith.constant 0 : index
    %c0_169 = arith.constant 0 : index
    %160 = vector.load %arg28[%c0_168, %c0_169] : memref<16x96xf32, #tpu.memory_space<vmem>>, vector<2x96xf32>
    %cst_170 = arith.constant dense<0.000000e+00> : vector<2x96xf32>
    %161 = tpu.matmul %159, %155, %cst_170 {dimension_numbers = #tpu.dot_dimension_numbers<[1], [0], [0], [1], [0, 0, 1, 1], [], []>} : vector<2x32xf32>, vector<32x96xf32>, vector<2x96xf32> -> vector<2x96xf32>
    %162 = vector.extract_strided_slice %160 {offsets = [0, 0], sizes = [2, 32], strides = [1, 1]} : vector<2x96xf32> to vector<2x32xf32>
    %163 = vector.extract_strided_slice %161 {offsets = [0, 0], sizes = [2, 32], strides = [1, 1]} : vector<2x96xf32> to vector<2x32xf32>
    %164 = arith.addf %162, %163 : vector<2x32xf32>
    %165 = arith.negf %164 : vector<2x32xf32>
    %166 = math.exp %165 : vector<2x32xf32>
    %cst_171 = arith.constant 1.000000e+00 : f32
    %167 = vector.broadcast %cst_171 : f32 to vector<2x32xf32>
    %168 = arith.addf %167, %166 : vector<2x32xf32>
    %169 = arith.divf %167, %168 : vector<2x32xf32>
    %170 = vector.extract_strided_slice %160 {offsets = [0, 32], sizes = [2, 32], strides = [1, 1]} : vector<2x96xf32> to vector<2x32xf32>
    %171 = vector.extract_strided_slice %161 {offsets = [0, 32], sizes = [2, 32], strides = [1, 1]} : vector<2x96xf32> to vector<2x32xf32>
    %172 = arith.addf %170, %171 : vector<2x32xf32>
    %173 = arith.negf %172 : vector<2x32xf32>
    %174 = math.exp %173 : vector<2x32xf32>
    %cst_172 = arith.constant 1.000000e+00 : f32
    %175 = vector.broadcast %cst_172 : f32 to vector<2x32xf32>
    %176 = arith.addf %175, %174 : vector<2x32xf32>
    %177 = arith.divf %175, %176 : vector<2x32xf32>
    %178 = vector.extract_strided_slice %160 {offsets = [0, 64], sizes = [2, 32], strides = [1, 1]} : vector<2x96xf32> to vector<2x32xf32>
    %179 = vector.extract_strided_slice %161 {offsets = [0, 64], sizes = [2, 32], strides = [1, 1]} : vector<2x96xf32> to vector<2x32xf32>
    %180 = vector.broadcast %157 : vector<1x32xf32> to vector<2x32xf32>
    %181 = arith.addf %179, %180 : vector<2x32xf32>
    %182 = arith.mulf %169, %181 : vector<2x32xf32>
    %183 = arith.addf %178, %182 : vector<2x32xf32>
    %184 = math.tanh %183 : vector<2x32xf32>
    %cst_173 = arith.constant 1.000000e+00 : f32
    %185 = vector.broadcast %cst_173 : f32 to vector<2x32xf32>
    %186 = arith.subf %185, %177 : vector<2x32xf32>
    %187 = arith.mulf %186, %184 : vector<2x32xf32>
    %188 = arith.mulf %177, %159 : vector<2x32xf32>
    %189 = arith.addf %187, %188 : vector<2x32xf32>
    %c2_174 = arith.constant 2 : index
    %c0_175 = arith.constant 0 : index
    %190 = vector.load %arg28[%c2_174, %c0_175] : memref<16x96xf32, #tpu.memory_space<vmem>>, vector<2x96xf32>
    %cst_176 = arith.constant dense<0.000000e+00> : vector<2x96xf32>
    %191 = tpu.matmul %189, %155, %cst_176 {dimension_numbers = #tpu.dot_dimension_numbers<[1], [0], [0], [1], [0, 0, 1, 1], [], []>} : vector<2x32xf32>, vector<32x96xf32>, vector<2x96xf32> -> vector<2x96xf32>
    %192 = vector.extract_strided_slice %190 {offsets = [0, 0], sizes = [2, 32], strides = [1, 1]} : vector<2x96xf32> to vector<2x32xf32>
    %193 = vector.extract_strided_slice %191 {offsets = [0, 0], sizes = [2, 32], strides = [1, 1]} : vector<2x96xf32> to vector<2x32xf32>
    %194 = arith.addf %192, %193 : vector<2x32xf32>
    %195 = arith.negf %194 : vector<2x32xf32>
    %196 = math.exp %195 : vector<2x32xf32>
    %cst_177 = arith.constant 1.000000e+00 : f32
    %197 = vector.broadcast %cst_177 : f32 to vector<2x32xf32>
    %198 = arith.addf %197, %196 : vector<2x32xf32>
    %199 = arith.divf %197, %198 : vector<2x32xf32>
    %200 = vector.extract_strided_slice %190 {offsets = [0, 32], sizes = [2, 32], strides = [1, 1]} : vector<2x96xf32> to vector<2x32xf32>
    %201 = vector.extract_strided_slice %191 {offsets = [0, 32], sizes = [2, 32], strides = [1, 1]} : vector<2x96xf32> to vector<2x32xf32>
    %202 = arith.addf %200, %201 : vector<2x32xf32>
    %203 = arith.negf %202 : vector<2x32xf32>
    %204 = math.exp %203 : vector<2x32xf32>
    %cst_178 = arith.constant 1.000000e+00 : f32
    %205 = vector.broadcast %cst_178 : f32 to vector<2x32xf32>
    %206 = arith.addf %205, %204 : vector<2x32xf32>
    %207 = arith.divf %205, %206 : vector<2x32xf32>
    %208 = vector.extract_strided_slice %190 {offsets = [0, 64], sizes = [2, 32], strides = [1, 1]} : vector<2x96xf32> to vector<2x32xf32>
    %209 = vector.extract_strided_slice %191 {offsets = [0, 64], sizes = [2, 32], strides = [1, 1]} : vector<2x96xf32> to vector<2x32xf32>
    %210 = vector.broadcast %157 : vector<1x32xf32> to vector<2x32xf32>
    %211 = arith.addf %209, %210 : vector<2x32xf32>
    %212 = arith.mulf %199, %211 : vector<2x32xf32>
    %213 = arith.addf %208, %212 : vector<2x32xf32>
    %214 = math.tanh %213 : vector<2x32xf32>
    %cst_179 = arith.constant 1.000000e+00 : f32
    %215 = vector.broadcast %cst_179 : f32 to vector<2x32xf32>
    %216 = arith.subf %215, %207 : vector<2x32xf32>
    %217 = arith.mulf %216, %214 : vector<2x32xf32>
    %218 = arith.mulf %207, %189 : vector<2x32xf32>
    %219 = arith.addf %217, %218 : vector<2x32xf32>
    %c4_180 = arith.constant 4 : index
    %c0_181 = arith.constant 0 : index
    %220 = vector.load %arg28[%c4_180, %c0_181] : memref<16x96xf32, #tpu.memory_space<vmem>>, vector<2x96xf32>
    %cst_182 = arith.constant dense<0.000000e+00> : vector<2x96xf32>
    %221 = tpu.matmul %219, %155, %cst_182 {dimension_numbers = #tpu.dot_dimension_numbers<[1], [0], [0], [1], [0, 0, 1, 1], [], []>} : vector<2x32xf32>, vector<32x96xf32>, vector<2x96xf32> -> vector<2x96xf32>
    %222 = vector.extract_strided_slice %220 {offsets = [0, 0], sizes = [2, 32], strides = [1, 1]} : vector<2x96xf32> to vector<2x32xf32>
    %223 = vector.extract_strided_slice %221 {offsets = [0, 0], sizes = [2, 32], strides = [1, 1]} : vector<2x96xf32> to vector<2x32xf32>
    %224 = arith.addf %222, %223 : vector<2x32xf32>
    %225 = arith.negf %224 : vector<2x32xf32>
    %226 = math.exp %225 : vector<2x32xf32>
    %cst_183 = arith.constant 1.000000e+00 : f32
    %227 = vector.broadcast %cst_183 : f32 to vector<2x32xf32>
    %228 = arith.addf %227, %226 : vector<2x32xf32>
    %229 = arith.divf %227, %228 : vector<2x32xf32>
    %230 = vector.extract_strided_slice %220 {offsets = [0, 32], sizes = [2, 32], strides = [1, 1]} : vector<2x96xf32> to vector<2x32xf32>
    %231 = vector.extract_strided_slice %221 {offsets = [0, 32], sizes = [2, 32], strides = [1, 1]} : vector<2x96xf32> to vector<2x32xf32>
    %232 = arith.addf %230, %231 : vector<2x32xf32>
    %233 = arith.negf %232 : vector<2x32xf32>
    %234 = math.exp %233 : vector<2x32xf32>
    %cst_184 = arith.constant 1.000000e+00 : f32
    %235 = vector.broadcast %cst_184 : f32 to vector<2x32xf32>
    %236 = arith.addf %235, %234 : vector<2x32xf32>
    %237 = arith.divf %235, %236 : vector<2x32xf32>
    %238 = vector.extract_strided_slice %220 {offsets = [0, 64], sizes = [2, 32], strides = [1, 1]} : vector<2x96xf32> to vector<2x32xf32>
    %239 = vector.extract_strided_slice %221 {offsets = [0, 64], sizes = [2, 32], strides = [1, 1]} : vector<2x96xf32> to vector<2x32xf32>
    %240 = vector.broadcast %157 : vector<1x32xf32> to vector<2x32xf32>
    %241 = arith.addf %239, %240 : vector<2x32xf32>
    %242 = arith.mulf %229, %241 : vector<2x32xf32>
    %243 = arith.addf %238, %242 : vector<2x32xf32>
    %244 = math.tanh %243 : vector<2x32xf32>
    %cst_185 = arith.constant 1.000000e+00 : f32
    %245 = vector.broadcast %cst_185 : f32 to vector<2x32xf32>
    %246 = arith.subf %245, %237 : vector<2x32xf32>
    %247 = arith.mulf %246, %244 : vector<2x32xf32>
    %248 = arith.mulf %237, %219 : vector<2x32xf32>
    %249 = arith.addf %247, %248 : vector<2x32xf32>
    %c6_186 = arith.constant 6 : index
    %c0_187 = arith.constant 0 : index
    %250 = vector.load %arg28[%c6_186, %c0_187] : memref<16x96xf32, #tpu.memory_space<vmem>>, vector<2x96xf32>
    %cst_188 = arith.constant dense<0.000000e+00> : vector<2x96xf32>
    %251 = tpu.matmul %249, %155, %cst_188 {dimension_numbers = #tpu.dot_dimension_numbers<[1], [0], [0], [1], [0, 0, 1, 1], [], []>} : vector<2x32xf32>, vector<32x96xf32>, vector<2x96xf32> -> vector<2x96xf32>
    %252 = vector.extract_strided_slice %250 {offsets = [0, 0], sizes = [2, 32], strides = [1, 1]} : vector<2x96xf32> to vector<2x32xf32>
    %253 = vector.extract_strided_slice %251 {offsets = [0, 0], sizes = [2, 32], strides = [1, 1]} : vector<2x96xf32> to vector<2x32xf32>
    %254 = arith.addf %252, %253 : vector<2x32xf32>
    %255 = arith.negf %254 : vector<2x32xf32>
    %256 = math.exp %255 : vector<2x32xf32>
    %cst_189 = arith.constant 1.000000e+00 : f32
    %257 = vector.broadcast %cst_189 : f32 to vector<2x32xf32>
    %258 = arith.addf %257, %256 : vector<2x32xf32>
    %259 = arith.divf %257, %258 : vector<2x32xf32>
    %260 = vector.extract_strided_slice %250 {offsets = [0, 32], sizes = [2, 32], strides = [1, 1]} : vector<2x96xf32> to vector<2x32xf32>
    %261 = vector.extract_strided_slice %251 {offsets = [0, 32], sizes = [2, 32], strides = [1, 1]} : vector<2x96xf32> to vector<2x32xf32>
    %262 = arith.addf %260, %261 : vector<2x32xf32>
    %263 = arith.negf %262 : vector<2x32xf32>
    %264 = math.exp %263 : vector<2x32xf32>
    %cst_190 = arith.constant 1.000000e+00 : f32
    %265 = vector.broadcast %cst_190 : f32 to vector<2x32xf32>
    %266 = arith.addf %265, %264 : vector<2x32xf32>
    %267 = arith.divf %265, %266 : vector<2x32xf32>
    %268 = vector.extract_strided_slice %250 {offsets = [0, 64], sizes = [2, 32], strides = [1, 1]} : vector<2x96xf32> to vector<2x32xf32>
    %269 = vector.extract_strided_slice %251 {offsets = [0, 64], sizes = [2, 32], strides = [1, 1]} : vector<2x96xf32> to vector<2x32xf32>
    %270 = vector.broadcast %157 : vector<1x32xf32> to vector<2x32xf32>
    %271 = arith.addf %269, %270 : vector<2x32xf32>
    %272 = arith.mulf %259, %271 : vector<2x32xf32>
    %273 = arith.addf %268, %272 : vector<2x32xf32>
    %274 = math.tanh %273 : vector<2x32xf32>
    %cst_191 = arith.constant 1.000000e+00 : f32
    %275 = vector.broadcast %cst_191 : f32 to vector<2x32xf32>
    %276 = arith.subf %275, %267 : vector<2x32xf32>
    %277 = arith.mulf %276, %274 : vector<2x32xf32>
    %278 = arith.mulf %267, %249 : vector<2x32xf32>
    %279 = arith.addf %277, %278 : vector<2x32xf32>
    %c8_192 = arith.constant 8 : index
    %c0_193 = arith.constant 0 : index
    %280 = vector.load %arg28[%c8_192, %c0_193] : memref<16x96xf32, #tpu.memory_space<vmem>>, vector<2x96xf32>
    %cst_194 = arith.constant dense<0.000000e+00> : vector<2x96xf32>
    %281 = tpu.matmul %279, %155, %cst_194 {dimension_numbers = #tpu.dot_dimension_numbers<[1], [0], [0], [1], [0, 0, 1, 1], [], []>} : vector<2x32xf32>, vector<32x96xf32>, vector<2x96xf32> -> vector<2x96xf32>
    %282 = vector.extract_strided_slice %280 {offsets = [0, 0], sizes = [2, 32], strides = [1, 1]} : vector<2x96xf32> to vector<2x32xf32>
    %283 = vector.extract_strided_slice %281 {offsets = [0, 0], sizes = [2, 32], strides = [1, 1]} : vector<2x96xf32> to vector<2x32xf32>
    %284 = arith.addf %282, %283 : vector<2x32xf32>
    %285 = arith.negf %284 : vector<2x32xf32>
    %286 = math.exp %285 : vector<2x32xf32>
    %cst_195 = arith.constant 1.000000e+00 : f32
    %287 = vector.broadcast %cst_195 : f32 to vector<2x32xf32>
    %288 = arith.addf %287, %286 : vector<2x32xf32>
    %289 = arith.divf %287, %288 : vector<2x32xf32>
    %290 = vector.extract_strided_slice %280 {offsets = [0, 32], sizes = [2, 32], strides = [1, 1]} : vector<2x96xf32> to vector<2x32xf32>
    %291 = vector.extract_strided_slice %281 {offsets = [0, 32], sizes = [2, 32], strides = [1, 1]} : vector<2x96xf32> to vector<2x32xf32>
    %292 = arith.addf %290, %291 : vector<2x32xf32>
    %293 = arith.negf %292 : vector<2x32xf32>
    %294 = math.exp %293 : vector<2x32xf32>
    %cst_196 = arith.constant 1.000000e+00 : f32
    %295 = vector.broadcast %cst_196 : f32 to vector<2x32xf32>
    %296 = arith.addf %295, %294 : vector<2x32xf32>
    %297 = arith.divf %295, %296 : vector<2x32xf32>
    %298 = vector.extract_strided_slice %280 {offsets = [0, 64], sizes = [2, 32], strides = [1, 1]} : vector<2x96xf32> to vector<2x32xf32>
    %299 = vector.extract_strided_slice %281 {offsets = [0, 64], sizes = [2, 32], strides = [1, 1]} : vector<2x96xf32> to vector<2x32xf32>
    %300 = vector.broadcast %157 : vector<1x32xf32> to vector<2x32xf32>
    %301 = arith.addf %299, %300 : vector<2x32xf32>
    %302 = arith.mulf %289, %301 : vector<2x32xf32>
    %303 = arith.addf %298, %302 : vector<2x32xf32>
    %304 = math.tanh %303 : vector<2x32xf32>
    %cst_197 = arith.constant 1.000000e+00 : f32
    %305 = vector.broadcast %cst_197 : f32 to vector<2x32xf32>
    %306 = arith.subf %305, %297 : vector<2x32xf32>
    %307 = arith.mulf %306, %304 : vector<2x32xf32>
    %308 = arith.mulf %297, %279 : vector<2x32xf32>
    %309 = arith.addf %307, %308 : vector<2x32xf32>
    %c10 = arith.constant 10 : index
    %c0_198 = arith.constant 0 : index
    %310 = vector.load %arg28[%c10, %c0_198] : memref<16x96xf32, #tpu.memory_space<vmem>>, vector<2x96xf32>
    %cst_199 = arith.constant dense<0.000000e+00> : vector<2x96xf32>
    %311 = tpu.matmul %309, %155, %cst_199 {dimension_numbers = #tpu.dot_dimension_numbers<[1], [0], [0], [1], [0, 0, 1, 1], [], []>} : vector<2x32xf32>, vector<32x96xf32>, vector<2x96xf32> -> vector<2x96xf32>
    %312 = vector.extract_strided_slice %310 {offsets = [0, 0], sizes = [2, 32], strides = [1, 1]} : vector<2x96xf32> to vector<2x32xf32>
    %313 = vector.extract_strided_slice %311 {offsets = [0, 0], sizes = [2, 32], strides = [1, 1]} : vector<2x96xf32> to vector<2x32xf32>
    %314 = arith.addf %312, %313 : vector<2x32xf32>
    %315 = arith.negf %314 : vector<2x32xf32>
    %316 = math.exp %315 : vector<2x32xf32>
    %cst_200 = arith.constant 1.000000e+00 : f32
    %317 = vector.broadcast %cst_200 : f32 to vector<2x32xf32>
    %318 = arith.addf %317, %316 : vector<2x32xf32>
    %319 = arith.divf %317, %318 : vector<2x32xf32>
    %320 = vector.extract_strided_slice %310 {offsets = [0, 32], sizes = [2, 32], strides = [1, 1]} : vector<2x96xf32> to vector<2x32xf32>
    %321 = vector.extract_strided_slice %311 {offsets = [0, 32], sizes = [2, 32], strides = [1, 1]} : vector<2x96xf32> to vector<2x32xf32>
    %322 = arith.addf %320, %321 : vector<2x32xf32>
    %323 = arith.negf %322 : vector<2x32xf32>
    %324 = math.exp %323 : vector<2x32xf32>
    %cst_201 = arith.constant 1.000000e+00 : f32
    %325 = vector.broadcast %cst_201 : f32 to vector<2x32xf32>
    %326 = arith.addf %325, %324 : vector<2x32xf32>
    %327 = arith.divf %325, %326 : vector<2x32xf32>
    %328 = vector.extract_strided_slice %310 {offsets = [0, 64], sizes = [2, 32], strides = [1, 1]} : vector<2x96xf32> to vector<2x32xf32>
    %329 = vector.extract_strided_slice %311 {offsets = [0, 64], sizes = [2, 32], strides = [1, 1]} : vector<2x96xf32> to vector<2x32xf32>
    %330 = vector.broadcast %157 : vector<1x32xf32> to vector<2x32xf32>
    %331 = arith.addf %329, %330 : vector<2x32xf32>
    %332 = arith.mulf %319, %331 : vector<2x32xf32>
    %333 = arith.addf %328, %332 : vector<2x32xf32>
    %334 = math.tanh %333 : vector<2x32xf32>
    %cst_202 = arith.constant 1.000000e+00 : f32
    %335 = vector.broadcast %cst_202 : f32 to vector<2x32xf32>
    %336 = arith.subf %335, %327 : vector<2x32xf32>
    %337 = arith.mulf %336, %334 : vector<2x32xf32>
    %338 = arith.mulf %327, %309 : vector<2x32xf32>
    %339 = arith.addf %337, %338 : vector<2x32xf32>
    %c12 = arith.constant 12 : index
    %c0_203 = arith.constant 0 : index
    %340 = vector.load %arg28[%c12, %c0_203] : memref<16x96xf32, #tpu.memory_space<vmem>>, vector<2x96xf32>
    %cst_204 = arith.constant dense<0.000000e+00> : vector<2x96xf32>
    %341 = tpu.matmul %339, %155, %cst_204 {dimension_numbers = #tpu.dot_dimension_numbers<[1], [0], [0], [1], [0, 0, 1, 1], [], []>} : vector<2x32xf32>, vector<32x96xf32>, vector<2x96xf32> -> vector<2x96xf32>
    %342 = vector.extract_strided_slice %340 {offsets = [0, 0], sizes = [2, 32], strides = [1, 1]} : vector<2x96xf32> to vector<2x32xf32>
    %343 = vector.extract_strided_slice %341 {offsets = [0, 0], sizes = [2, 32], strides = [1, 1]} : vector<2x96xf32> to vector<2x32xf32>
    %344 = arith.addf %342, %343 : vector<2x32xf32>
    %345 = arith.negf %344 : vector<2x32xf32>
    %346 = math.exp %345 : vector<2x32xf32>
    %cst_205 = arith.constant 1.000000e+00 : f32
    %347 = vector.broadcast %cst_205 : f32 to vector<2x32xf32>
    %348 = arith.addf %347, %346 : vector<2x32xf32>
    %349 = arith.divf %347, %348 : vector<2x32xf32>
    %350 = vector.extract_strided_slice %340 {offsets = [0, 32], sizes = [2, 32], strides = [1, 1]} : vector<2x96xf32> to vector<2x32xf32>
    %351 = vector.extract_strided_slice %341 {offsets = [0, 32], sizes = [2, 32], strides = [1, 1]} : vector<2x96xf32> to vector<2x32xf32>
    %352 = arith.addf %350, %351 : vector<2x32xf32>
    %353 = arith.negf %352 : vector<2x32xf32>
    %354 = math.exp %353 : vector<2x32xf32>
    %cst_206 = arith.constant 1.000000e+00 : f32
    %355 = vector.broadcast %cst_206 : f32 to vector<2x32xf32>
    %356 = arith.addf %355, %354 : vector<2x32xf32>
    %357 = arith.divf %355, %356 : vector<2x32xf32>
    %358 = vector.extract_strided_slice %340 {offsets = [0, 64], sizes = [2, 32], strides = [1, 1]} : vector<2x96xf32> to vector<2x32xf32>
    %359 = vector.extract_strided_slice %341 {offsets = [0, 64], sizes = [2, 32], strides = [1, 1]} : vector<2x96xf32> to vector<2x32xf32>
    %360 = vector.broadcast %157 : vector<1x32xf32> to vector<2x32xf32>
    %361 = arith.addf %359, %360 : vector<2x32xf32>
    %362 = arith.mulf %349, %361 : vector<2x32xf32>
    %363 = arith.addf %358, %362 : vector<2x32xf32>
    %364 = math.tanh %363 : vector<2x32xf32>
    %cst_207 = arith.constant 1.000000e+00 : f32
    %365 = vector.broadcast %cst_207 : f32 to vector<2x32xf32>
    %366 = arith.subf %365, %357 : vector<2x32xf32>
    %367 = arith.mulf %366, %364 : vector<2x32xf32>
    %368 = arith.mulf %357, %339 : vector<2x32xf32>
    %369 = arith.addf %367, %368 : vector<2x32xf32>
    %c14_208 = arith.constant 14 : index
    %c0_209 = arith.constant 0 : index
    %370 = vector.load %arg28[%c14_208, %c0_209] : memref<16x96xf32, #tpu.memory_space<vmem>>, vector<2x96xf32>
    %cst_210 = arith.constant dense<0.000000e+00> : vector<2x96xf32>
    %371 = tpu.matmul %369, %155, %cst_210 {dimension_numbers = #tpu.dot_dimension_numbers<[1], [0], [0], [1], [0, 0, 1, 1], [], []>} : vector<2x32xf32>, vector<32x96xf32>, vector<2x96xf32> -> vector<2x96xf32>
    %372 = vector.extract_strided_slice %370 {offsets = [0, 0], sizes = [2, 32], strides = [1, 1]} : vector<2x96xf32> to vector<2x32xf32>
    %373 = vector.extract_strided_slice %371 {offsets = [0, 0], sizes = [2, 32], strides = [1, 1]} : vector<2x96xf32> to vector<2x32xf32>
    %374 = arith.addf %372, %373 : vector<2x32xf32>
    %375 = arith.negf %374 : vector<2x32xf32>
    %376 = math.exp %375 : vector<2x32xf32>
    %cst_211 = arith.constant 1.000000e+00 : f32
    %377 = vector.broadcast %cst_211 : f32 to vector<2x32xf32>
    %378 = arith.addf %377, %376 : vector<2x32xf32>
    %379 = arith.divf %377, %378 : vector<2x32xf32>
    %380 = vector.extract_strided_slice %370 {offsets = [0, 32], sizes = [2, 32], strides = [1, 1]} : vector<2x96xf32> to vector<2x32xf32>
    %381 = vector.extract_strided_slice %371 {offsets = [0, 32], sizes = [2, 32], strides = [1, 1]} : vector<2x96xf32> to vector<2x32xf32>
    %382 = arith.addf %380, %381 : vector<2x32xf32>
    %383 = arith.negf %382 : vector<2x32xf32>
    %384 = math.exp %383 : vector<2x32xf32>
    %cst_212 = arith.constant 1.000000e+00 : f32
    %385 = vector.broadcast %cst_212 : f32 to vector<2x32xf32>
    %386 = arith.addf %385, %384 : vector<2x32xf32>
    %387 = arith.divf %385, %386 : vector<2x32xf32>
    %388 = vector.extract_strided_slice %370 {offsets = [0, 64], sizes = [2, 32], strides = [1, 1]} : vector<2x96xf32> to vector<2x32xf32>
    %389 = vector.extract_strided_slice %371 {offsets = [0, 64], sizes = [2, 32], strides = [1, 1]} : vector<2x96xf32> to vector<2x32xf32>
    %390 = vector.broadcast %157 : vector<1x32xf32> to vector<2x32xf32>
    %391 = arith.addf %389, %390 : vector<2x32xf32>
    %392 = arith.mulf %379, %391 : vector<2x32xf32>
    %393 = arith.addf %388, %392 : vector<2x32xf32>
    %394 = math.tanh %393 : vector<2x32xf32>
    %cst_213 = arith.constant 1.000000e+00 : f32
    %395 = vector.broadcast %cst_213 : f32 to vector<2x32xf32>
    %396 = arith.subf %395, %387 : vector<2x32xf32>
    %397 = arith.mulf %396, %394 : vector<2x32xf32>
    %398 = arith.mulf %387, %369 : vector<2x32xf32>
    %399 = arith.addf %397, %398 : vector<2x32xf32>
    %cst_214 = arith.constant 0.000000e+00 : f32
    %400 = vector.broadcast %cst_214 : f32 to vector<2x32xf32>
    %c14_215 = arith.constant 14 : index
    %c0_216 = arith.constant 0 : index
    %401 = vector.load %arg29[%c14_215, %c0_216] : memref<16x96xf32, #tpu.memory_space<vmem>>, vector<2x96xf32>
    %cst_217 = arith.constant dense<0.000000e+00> : vector<2x96xf32>
    %402 = tpu.matmul %400, %156, %cst_217 {dimension_numbers = #tpu.dot_dimension_numbers<[1], [0], [0], [1], [0, 0, 1, 1], [], []>} : vector<2x32xf32>, vector<32x96xf32>, vector<2x96xf32> -> vector<2x96xf32>
    %403 = vector.extract_strided_slice %401 {offsets = [0, 0], sizes = [2, 32], strides = [1, 1]} : vector<2x96xf32> to vector<2x32xf32>
    %404 = vector.extract_strided_slice %402 {offsets = [0, 0], sizes = [2, 32], strides = [1, 1]} : vector<2x96xf32> to vector<2x32xf32>
    %405 = arith.addf %403, %404 : vector<2x32xf32>
    %406 = arith.negf %405 : vector<2x32xf32>
    %407 = math.exp %406 : vector<2x32xf32>
    %cst_218 = arith.constant 1.000000e+00 : f32
    %408 = vector.broadcast %cst_218 : f32 to vector<2x32xf32>
    %409 = arith.addf %408, %407 : vector<2x32xf32>
    %410 = arith.divf %408, %409 : vector<2x32xf32>
    %411 = vector.extract_strided_slice %401 {offsets = [0, 32], sizes = [2, 32], strides = [1, 1]} : vector<2x96xf32> to vector<2x32xf32>
    %412 = vector.extract_strided_slice %402 {offsets = [0, 32], sizes = [2, 32], strides = [1, 1]} : vector<2x96xf32> to vector<2x32xf32>
    %413 = arith.addf %411, %412 : vector<2x32xf32>
    %414 = arith.negf %413 : vector<2x32xf32>
    %415 = math.exp %414 : vector<2x32xf32>
    %cst_219 = arith.constant 1.000000e+00 : f32
    %416 = vector.broadcast %cst_219 : f32 to vector<2x32xf32>
    %417 = arith.addf %416, %415 : vector<2x32xf32>
    %418 = arith.divf %416, %417 : vector<2x32xf32>
    %419 = vector.extract_strided_slice %401 {offsets = [0, 64], sizes = [2, 32], strides = [1, 1]} : vector<2x96xf32> to vector<2x32xf32>
    %420 = vector.extract_strided_slice %402 {offsets = [0, 64], sizes = [2, 32], strides = [1, 1]} : vector<2x96xf32> to vector<2x32xf32>
    %421 = vector.broadcast %158 : vector<1x32xf32> to vector<2x32xf32>
    %422 = arith.addf %420, %421 : vector<2x32xf32>
    %423 = arith.mulf %410, %422 : vector<2x32xf32>
    %424 = arith.addf %419, %423 : vector<2x32xf32>
    %425 = math.tanh %424 : vector<2x32xf32>
    %cst_220 = arith.constant 1.000000e+00 : f32
    %426 = vector.broadcast %cst_220 : f32 to vector<2x32xf32>
    %427 = arith.subf %426, %418 : vector<2x32xf32>
    %428 = arith.mulf %427, %425 : vector<2x32xf32>
    %429 = arith.mulf %418, %400 : vector<2x32xf32>
    %430 = arith.addf %428, %429 : vector<2x32xf32>
    %c12_221 = arith.constant 12 : index
    %c0_222 = arith.constant 0 : index
    %431 = vector.load %arg29[%c12_221, %c0_222] : memref<16x96xf32, #tpu.memory_space<vmem>>, vector<2x96xf32>
    %cst_223 = arith.constant dense<0.000000e+00> : vector<2x96xf32>
    %432 = tpu.matmul %430, %156, %cst_223 {dimension_numbers = #tpu.dot_dimension_numbers<[1], [0], [0], [1], [0, 0, 1, 1], [], []>} : vector<2x32xf32>, vector<32x96xf32>, vector<2x96xf32> -> vector<2x96xf32>
    %433 = vector.extract_strided_slice %431 {offsets = [0, 0], sizes = [2, 32], strides = [1, 1]} : vector<2x96xf32> to vector<2x32xf32>
    %434 = vector.extract_strided_slice %432 {offsets = [0, 0], sizes = [2, 32], strides = [1, 1]} : vector<2x96xf32> to vector<2x32xf32>
    %435 = arith.addf %433, %434 : vector<2x32xf32>
    %436 = arith.negf %435 : vector<2x32xf32>
    %437 = math.exp %436 : vector<2x32xf32>
    %cst_224 = arith.constant 1.000000e+00 : f32
    %438 = vector.broadcast %cst_224 : f32 to vector<2x32xf32>
    %439 = arith.addf %438, %437 : vector<2x32xf32>
    %440 = arith.divf %438, %439 : vector<2x32xf32>
    %441 = vector.extract_strided_slice %431 {offsets = [0, 32], sizes = [2, 32], strides = [1, 1]} : vector<2x96xf32> to vector<2x32xf32>
    %442 = vector.extract_strided_slice %432 {offsets = [0, 32], sizes = [2, 32], strides = [1, 1]} : vector<2x96xf32> to vector<2x32xf32>
    %443 = arith.addf %441, %442 : vector<2x32xf32>
    %444 = arith.negf %443 : vector<2x32xf32>
    %445 = math.exp %444 : vector<2x32xf32>
    %cst_225 = arith.constant 1.000000e+00 : f32
    %446 = vector.broadcast %cst_225 : f32 to vector<2x32xf32>
    %447 = arith.addf %446, %445 : vector<2x32xf32>
    %448 = arith.divf %446, %447 : vector<2x32xf32>
    %449 = vector.extract_strided_slice %431 {offsets = [0, 64], sizes = [2, 32], strides = [1, 1]} : vector<2x96xf32> to vector<2x32xf32>
    %450 = vector.extract_strided_slice %432 {offsets = [0, 64], sizes = [2, 32], strides = [1, 1]} : vector<2x96xf32> to vector<2x32xf32>
    %451 = vector.broadcast %158 : vector<1x32xf32> to vector<2x32xf32>
    %452 = arith.addf %450, %451 : vector<2x32xf32>
    %453 = arith.mulf %440, %452 : vector<2x32xf32>
    %454 = arith.addf %449, %453 : vector<2x32xf32>
    %455 = math.tanh %454 : vector<2x32xf32>
    %cst_226 = arith.constant 1.000000e+00 : f32
    %456 = vector.broadcast %cst_226 : f32 to vector<2x32xf32>
    %457 = arith.subf %456, %448 : vector<2x32xf32>
    %458 = arith.mulf %457, %455 : vector<2x32xf32>
    %459 = arith.mulf %448, %430 : vector<2x32xf32>
    %460 = arith.addf %458, %459 : vector<2x32xf32>
    %c10_227 = arith.constant 10 : index
    %c0_228 = arith.constant 0 : index
    %461 = vector.load %arg29[%c10_227, %c0_228] : memref<16x96xf32, #tpu.memory_space<vmem>>, vector<2x96xf32>
    %cst_229 = arith.constant dense<0.000000e+00> : vector<2x96xf32>
    %462 = tpu.matmul %460, %156, %cst_229 {dimension_numbers = #tpu.dot_dimension_numbers<[1], [0], [0], [1], [0, 0, 1, 1], [], []>} : vector<2x32xf32>, vector<32x96xf32>, vector<2x96xf32> -> vector<2x96xf32>
    %463 = vector.extract_strided_slice %461 {offsets = [0, 0], sizes = [2, 32], strides = [1, 1]} : vector<2x96xf32> to vector<2x32xf32>
    %464 = vector.extract_strided_slice %462 {offsets = [0, 0], sizes = [2, 32], strides = [1, 1]} : vector<2x96xf32> to vector<2x32xf32>
    %465 = arith.addf %463, %464 : vector<2x32xf32>
    %466 = arith.negf %465 : vector<2x32xf32>
    %467 = math.exp %466 : vector<2x32xf32>
    %cst_230 = arith.constant 1.000000e+00 : f32
    %468 = vector.broadcast %cst_230 : f32 to vector<2x32xf32>
    %469 = arith.addf %468, %467 : vector<2x32xf32>
    %470 = arith.divf %468, %469 : vector<2x32xf32>
    %471 = vector.extract_strided_slice %461 {offsets = [0, 32], sizes = [2, 32], strides = [1, 1]} : vector<2x96xf32> to vector<2x32xf32>
    %472 = vector.extract_strided_slice %462 {offsets = [0, 32], sizes = [2, 32], strides = [1, 1]} : vector<2x96xf32> to vector<2x32xf32>
    %473 = arith.addf %471, %472 : vector<2x32xf32>
    %474 = arith.negf %473 : vector<2x32xf32>
    %475 = math.exp %474 : vector<2x32xf32>
    %cst_231 = arith.constant 1.000000e+00 : f32
    %476 = vector.broadcast %cst_231 : f32 to vector<2x32xf32>
    %477 = arith.addf %476, %475 : vector<2x32xf32>
    %478 = arith.divf %476, %477 : vector<2x32xf32>
    %479 = vector.extract_strided_slice %461 {offsets = [0, 64], sizes = [2, 32], strides = [1, 1]} : vector<2x96xf32> to vector<2x32xf32>
    %480 = vector.extract_strided_slice %462 {offsets = [0, 64], sizes = [2, 32], strides = [1, 1]} : vector<2x96xf32> to vector<2x32xf32>
    %481 = vector.broadcast %158 : vector<1x32xf32> to vector<2x32xf32>
    %482 = arith.addf %480, %481 : vector<2x32xf32>
    %483 = arith.mulf %470, %482 : vector<2x32xf32>
    %484 = arith.addf %479, %483 : vector<2x32xf32>
    %485 = math.tanh %484 : vector<2x32xf32>
    %cst_232 = arith.constant 1.000000e+00 : f32
    %486 = vector.broadcast %cst_232 : f32 to vector<2x32xf32>
    %487 = arith.subf %486, %478 : vector<2x32xf32>
    %488 = arith.mulf %487, %485 : vector<2x32xf32>
    %489 = arith.mulf %478, %460 : vector<2x32xf32>
    %490 = arith.addf %488, %489 : vector<2x32xf32>
    %c8_233 = arith.constant 8 : index
    %c0_234 = arith.constant 0 : index
    %491 = vector.load %arg29[%c8_233, %c0_234] : memref<16x96xf32, #tpu.memory_space<vmem>>, vector<2x96xf32>
    %cst_235 = arith.constant dense<0.000000e+00> : vector<2x96xf32>
    %492 = tpu.matmul %490, %156, %cst_235 {dimension_numbers = #tpu.dot_dimension_numbers<[1], [0], [0], [1], [0, 0, 1, 1], [], []>} : vector<2x32xf32>, vector<32x96xf32>, vector<2x96xf32> -> vector<2x96xf32>
    %493 = vector.extract_strided_slice %491 {offsets = [0, 0], sizes = [2, 32], strides = [1, 1]} : vector<2x96xf32> to vector<2x32xf32>
    %494 = vector.extract_strided_slice %492 {offsets = [0, 0], sizes = [2, 32], strides = [1, 1]} : vector<2x96xf32> to vector<2x32xf32>
    %495 = arith.addf %493, %494 : vector<2x32xf32>
    %496 = arith.negf %495 : vector<2x32xf32>
    %497 = math.exp %496 : vector<2x32xf32>
    %cst_236 = arith.constant 1.000000e+00 : f32
    %498 = vector.broadcast %cst_236 : f32 to vector<2x32xf32>
    %499 = arith.addf %498, %497 : vector<2x32xf32>
    %500 = arith.divf %498, %499 : vector<2x32xf32>
    %501 = vector.extract_strided_slice %491 {offsets = [0, 32], sizes = [2, 32], strides = [1, 1]} : vector<2x96xf32> to vector<2x32xf32>
    %502 = vector.extract_strided_slice %492 {offsets = [0, 32], sizes = [2, 32], strides = [1, 1]} : vector<2x96xf32> to vector<2x32xf32>
    %503 = arith.addf %501, %502 : vector<2x32xf32>
    %504 = arith.negf %503 : vector<2x32xf32>
    %505 = math.exp %504 : vector<2x32xf32>
    %cst_237 = arith.constant 1.000000e+00 : f32
    %506 = vector.broadcast %cst_237 : f32 to vector<2x32xf32>
    %507 = arith.addf %506, %505 : vector<2x32xf32>
    %508 = arith.divf %506, %507 : vector<2x32xf32>
    %509 = vector.extract_strided_slice %491 {offsets = [0, 64], sizes = [2, 32], strides = [1, 1]} : vector<2x96xf32> to vector<2x32xf32>
    %510 = vector.extract_strided_slice %492 {offsets = [0, 64], sizes = [2, 32], strides = [1, 1]} : vector<2x96xf32> to vector<2x32xf32>
    %511 = vector.broadcast %158 : vector<1x32xf32> to vector<2x32xf32>
    %512 = arith.addf %510, %511 : vector<2x32xf32>
    %513 = arith.mulf %500, %512 : vector<2x32xf32>
    %514 = arith.addf %509, %513 : vector<2x32xf32>
    %515 = math.tanh %514 : vector<2x32xf32>
    %cst_238 = arith.constant 1.000000e+00 : f32
    %516 = vector.broadcast %cst_238 : f32 to vector<2x32xf32>
    %517 = arith.subf %516, %508 : vector<2x32xf32>
    %518 = arith.mulf %517, %515 : vector<2x32xf32>
    %519 = arith.mulf %508, %490 : vector<2x32xf32>
    %520 = arith.addf %518, %519 : vector<2x32xf32>
    %c6_239 = arith.constant 6 : index
    %c0_240 = arith.constant 0 : index
    %521 = vector.load %arg29[%c6_239, %c0_240] : memref<16x96xf32, #tpu.memory_space<vmem>>, vector<2x96xf32>
    %cst_241 = arith.constant dense<0.000000e+00> : vector<2x96xf32>
    %522 = tpu.matmul %520, %156, %cst_241 {dimension_numbers = #tpu.dot_dimension_numbers<[1], [0], [0], [1], [0, 0, 1, 1], [], []>} : vector<2x32xf32>, vector<32x96xf32>, vector<2x96xf32> -> vector<2x96xf32>
    %523 = vector.extract_strided_slice %521 {offsets = [0, 0], sizes = [2, 32], strides = [1, 1]} : vector<2x96xf32> to vector<2x32xf32>
    %524 = vector.extract_strided_slice %522 {offsets = [0, 0], sizes = [2, 32], strides = [1, 1]} : vector<2x96xf32> to vector<2x32xf32>
    %525 = arith.addf %523, %524 : vector<2x32xf32>
    %526 = arith.negf %525 : vector<2x32xf32>
    %527 = math.exp %526 : vector<2x32xf32>
    %cst_242 = arith.constant 1.000000e+00 : f32
    %528 = vector.broadcast %cst_242 : f32 to vector<2x32xf32>
    %529 = arith.addf %528, %527 : vector<2x32xf32>
    %530 = arith.divf %528, %529 : vector<2x32xf32>
    %531 = vector.extract_strided_slice %521 {offsets = [0, 32], sizes = [2, 32], strides = [1, 1]} : vector<2x96xf32> to vector<2x32xf32>
    %532 = vector.extract_strided_slice %522 {offsets = [0, 32], sizes = [2, 32], strides = [1, 1]} : vector<2x96xf32> to vector<2x32xf32>
    %533 = arith.addf %531, %532 : vector<2x32xf32>
    %534 = arith.negf %533 : vector<2x32xf32>
    %535 = math.exp %534 : vector<2x32xf32>
    %cst_243 = arith.constant 1.000000e+00 : f32
    %536 = vector.broadcast %cst_243 : f32 to vector<2x32xf32>
    %537 = arith.addf %536, %535 : vector<2x32xf32>
    %538 = arith.divf %536, %537 : vector<2x32xf32>
    %539 = vector.extract_strided_slice %521 {offsets = [0, 64], sizes = [2, 32], strides = [1, 1]} : vector<2x96xf32> to vector<2x32xf32>
    %540 = vector.extract_strided_slice %522 {offsets = [0, 64], sizes = [2, 32], strides = [1, 1]} : vector<2x96xf32> to vector<2x32xf32>
    %541 = vector.broadcast %158 : vector<1x32xf32> to vector<2x32xf32>
    %542 = arith.addf %540, %541 : vector<2x32xf32>
    %543 = arith.mulf %530, %542 : vector<2x32xf32>
    %544 = arith.addf %539, %543 : vector<2x32xf32>
    %545 = math.tanh %544 : vector<2x32xf32>
    %cst_244 = arith.constant 1.000000e+00 : f32
    %546 = vector.broadcast %cst_244 : f32 to vector<2x32xf32>
    %547 = arith.subf %546, %538 : vector<2x32xf32>
    %548 = arith.mulf %547, %545 : vector<2x32xf32>
    %549 = arith.mulf %538, %520 : vector<2x32xf32>
    %550 = arith.addf %548, %549 : vector<2x32xf32>
    %c4_245 = arith.constant 4 : index
    %c0_246 = arith.constant 0 : index
    %551 = vector.load %arg29[%c4_245, %c0_246] : memref<16x96xf32, #tpu.memory_space<vmem>>, vector<2x96xf32>
    %cst_247 = arith.constant dense<0.000000e+00> : vector<2x96xf32>
    %552 = tpu.matmul %550, %156, %cst_247 {dimension_numbers = #tpu.dot_dimension_numbers<[1], [0], [0], [1], [0, 0, 1, 1], [], []>} : vector<2x32xf32>, vector<32x96xf32>, vector<2x96xf32> -> vector<2x96xf32>
    %553 = vector.extract_strided_slice %551 {offsets = [0, 0], sizes = [2, 32], strides = [1, 1]} : vector<2x96xf32> to vector<2x32xf32>
    %554 = vector.extract_strided_slice %552 {offsets = [0, 0], sizes = [2, 32], strides = [1, 1]} : vector<2x96xf32> to vector<2x32xf32>
    %555 = arith.addf %553, %554 : vector<2x32xf32>
    %556 = arith.negf %555 : vector<2x32xf32>
    %557 = math.exp %556 : vector<2x32xf32>
    %cst_248 = arith.constant 1.000000e+00 : f32
    %558 = vector.broadcast %cst_248 : f32 to vector<2x32xf32>
    %559 = arith.addf %558, %557 : vector<2x32xf32>
    %560 = arith.divf %558, %559 : vector<2x32xf32>
    %561 = vector.extract_strided_slice %551 {offsets = [0, 32], sizes = [2, 32], strides = [1, 1]} : vector<2x96xf32> to vector<2x32xf32>
    %562 = vector.extract_strided_slice %552 {offsets = [0, 32], sizes = [2, 32], strides = [1, 1]} : vector<2x96xf32> to vector<2x32xf32>
    %563 = arith.addf %561, %562 : vector<2x32xf32>
    %564 = arith.negf %563 : vector<2x32xf32>
    %565 = math.exp %564 : vector<2x32xf32>
    %cst_249 = arith.constant 1.000000e+00 : f32
    %566 = vector.broadcast %cst_249 : f32 to vector<2x32xf32>
    %567 = arith.addf %566, %565 : vector<2x32xf32>
    %568 = arith.divf %566, %567 : vector<2x32xf32>
    %569 = vector.extract_strided_slice %551 {offsets = [0, 64], sizes = [2, 32], strides = [1, 1]} : vector<2x96xf32> to vector<2x32xf32>
    %570 = vector.extract_strided_slice %552 {offsets = [0, 64], sizes = [2, 32], strides = [1, 1]} : vector<2x96xf32> to vector<2x32xf32>
    %571 = vector.broadcast %158 : vector<1x32xf32> to vector<2x32xf32>
    %572 = arith.addf %570, %571 : vector<2x32xf32>
    %573 = arith.mulf %560, %572 : vector<2x32xf32>
    %574 = arith.addf %569, %573 : vector<2x32xf32>
    %575 = math.tanh %574 : vector<2x32xf32>
    %cst_250 = arith.constant 1.000000e+00 : f32
    %576 = vector.broadcast %cst_250 : f32 to vector<2x32xf32>
    %577 = arith.subf %576, %568 : vector<2x32xf32>
    %578 = arith.mulf %577, %575 : vector<2x32xf32>
    %579 = arith.mulf %568, %550 : vector<2x32xf32>
    %580 = arith.addf %578, %579 : vector<2x32xf32>
    %c2_251 = arith.constant 2 : index
    %c0_252 = arith.constant 0 : index
    %581 = vector.load %arg29[%c2_251, %c0_252] : memref<16x96xf32, #tpu.memory_space<vmem>>, vector<2x96xf32>
    %cst_253 = arith.constant dense<0.000000e+00> : vector<2x96xf32>
    %582 = tpu.matmul %580, %156, %cst_253 {dimension_numbers = #tpu.dot_dimension_numbers<[1], [0], [0], [1], [0, 0, 1, 1], [], []>} : vector<2x32xf32>, vector<32x96xf32>, vector<2x96xf32> -> vector<2x96xf32>
    %583 = vector.extract_strided_slice %581 {offsets = [0, 0], sizes = [2, 32], strides = [1, 1]} : vector<2x96xf32> to vector<2x32xf32>
    %584 = vector.extract_strided_slice %582 {offsets = [0, 0], sizes = [2, 32], strides = [1, 1]} : vector<2x96xf32> to vector<2x32xf32>
    %585 = arith.addf %583, %584 : vector<2x32xf32>
    %586 = arith.negf %585 : vector<2x32xf32>
    %587 = math.exp %586 : vector<2x32xf32>
    %cst_254 = arith.constant 1.000000e+00 : f32
    %588 = vector.broadcast %cst_254 : f32 to vector<2x32xf32>
    %589 = arith.addf %588, %587 : vector<2x32xf32>
    %590 = arith.divf %588, %589 : vector<2x32xf32>
    %591 = vector.extract_strided_slice %581 {offsets = [0, 32], sizes = [2, 32], strides = [1, 1]} : vector<2x96xf32> to vector<2x32xf32>
    %592 = vector.extract_strided_slice %582 {offsets = [0, 32], sizes = [2, 32], strides = [1, 1]} : vector<2x96xf32> to vector<2x32xf32>
    %593 = arith.addf %591, %592 : vector<2x32xf32>
    %594 = arith.negf %593 : vector<2x32xf32>
    %595 = math.exp %594 : vector<2x32xf32>
    %cst_255 = arith.constant 1.000000e+00 : f32
    %596 = vector.broadcast %cst_255 : f32 to vector<2x32xf32>
    %597 = arith.addf %596, %595 : vector<2x32xf32>
    %598 = arith.divf %596, %597 : vector<2x32xf32>
    %599 = vector.extract_strided_slice %581 {offsets = [0, 64], sizes = [2, 32], strides = [1, 1]} : vector<2x96xf32> to vector<2x32xf32>
    %600 = vector.extract_strided_slice %582 {offsets = [0, 64], sizes = [2, 32], strides = [1, 1]} : vector<2x96xf32> to vector<2x32xf32>
    %601 = vector.broadcast %158 : vector<1x32xf32> to vector<2x32xf32>
    %602 = arith.addf %600, %601 : vector<2x32xf32>
    %603 = arith.mulf %590, %602 : vector<2x32xf32>
    %604 = arith.addf %599, %603 : vector<2x32xf32>
    %605 = math.tanh %604 : vector<2x32xf32>
    %cst_256 = arith.constant 1.000000e+00 : f32
    %606 = vector.broadcast %cst_256 : f32 to vector<2x32xf32>
    %607 = arith.subf %606, %598 : vector<2x32xf32>
    %608 = arith.mulf %607, %605 : vector<2x32xf32>
    %609 = arith.mulf %598, %580 : vector<2x32xf32>
    %610 = arith.addf %608, %609 : vector<2x32xf32>
    %c0_257 = arith.constant 0 : index
    %c0_258 = arith.constant 0 : index
    %611 = vector.load %arg29[%c0_257, %c0_258] : memref<16x96xf32, #tpu.memory_space<vmem>>, vector<2x96xf32>
    %cst_259 = arith.constant dense<0.000000e+00> : vector<2x96xf32>
    %612 = tpu.matmul %610, %156, %cst_259 {dimension_numbers = #tpu.dot_dimension_numbers<[1], [0], [0], [1], [0, 0, 1, 1], [], []>} : vector<2x32xf32>, vector<32x96xf32>, vector<2x96xf32> -> vector<2x96xf32>
    %613 = vector.extract_strided_slice %611 {offsets = [0, 0], sizes = [2, 32], strides = [1, 1]} : vector<2x96xf32> to vector<2x32xf32>
    %614 = vector.extract_strided_slice %612 {offsets = [0, 0], sizes = [2, 32], strides = [1, 1]} : vector<2x96xf32> to vector<2x32xf32>
    %615 = arith.addf %613, %614 : vector<2x32xf32>
    %616 = arith.negf %615 : vector<2x32xf32>
    %617 = math.exp %616 : vector<2x32xf32>
    %cst_260 = arith.constant 1.000000e+00 : f32
    %618 = vector.broadcast %cst_260 : f32 to vector<2x32xf32>
    %619 = arith.addf %618, %617 : vector<2x32xf32>
    %620 = arith.divf %618, %619 : vector<2x32xf32>
    %621 = vector.extract_strided_slice %611 {offsets = [0, 32], sizes = [2, 32], strides = [1, 1]} : vector<2x96xf32> to vector<2x32xf32>
    %622 = vector.extract_strided_slice %612 {offsets = [0, 32], sizes = [2, 32], strides = [1, 1]} : vector<2x96xf32> to vector<2x32xf32>
    %623 = arith.addf %621, %622 : vector<2x32xf32>
    %624 = arith.negf %623 : vector<2x32xf32>
    %625 = math.exp %624 : vector<2x32xf32>
    %cst_261 = arith.constant 1.000000e+00 : f32
    %626 = vector.broadcast %cst_261 : f32 to vector<2x32xf32>
    %627 = arith.addf %626, %625 : vector<2x32xf32>
    %628 = arith.divf %626, %627 : vector<2x32xf32>
    %629 = vector.extract_strided_slice %611 {offsets = [0, 64], sizes = [2, 32], strides = [1, 1]} : vector<2x96xf32> to vector<2x32xf32>
    %630 = vector.extract_strided_slice %612 {offsets = [0, 64], sizes = [2, 32], strides = [1, 1]} : vector<2x96xf32> to vector<2x32xf32>
    %631 = vector.broadcast %158 : vector<1x32xf32> to vector<2x32xf32>
    %632 = arith.addf %630, %631 : vector<2x32xf32>
    %633 = arith.mulf %620, %632 : vector<2x32xf32>
    %634 = arith.addf %629, %633 : vector<2x32xf32>
    %635 = math.tanh %634 : vector<2x32xf32>
    %cst_262 = arith.constant 1.000000e+00 : f32
    %636 = vector.broadcast %cst_262 : f32 to vector<2x32xf32>
    %637 = arith.subf %636, %628 : vector<2x32xf32>
    %638 = arith.mulf %637, %635 : vector<2x32xf32>
    %639 = arith.mulf %628, %610 : vector<2x32xf32>
    %640 = arith.addf %638, %639 : vector<2x32xf32>
    %c0_263 = arith.constant 0 : index
    %c0_264 = arith.constant 0 : index
    %641 = vector.load %arg18[%c0_263, %c0_264] : memref<64x128xf32, #tpu.memory_space<vmem>>, vector<32x128xf32>
    %cst_265 = arith.constant dense<0.000000e+00> : vector<2x128xf32>
    %642 = tpu.matmul %399, %641, %cst_265 {dimension_numbers = #tpu.dot_dimension_numbers<[1], [0], [0], [1], [0, 0, 1, 1], [], []>} : vector<2x32xf32>, vector<32x128xf32>, vector<2x128xf32> -> vector<2x128xf32>
    %c32_266 = arith.constant 32 : index
    %c0_267 = arith.constant 0 : index
    %643 = vector.load %arg18[%c32_266, %c0_267] : memref<64x128xf32, #tpu.memory_space<vmem>>, vector<32x128xf32>
    %cst_268 = arith.constant dense<0.000000e+00> : vector<2x128xf32>
    %644 = tpu.matmul %640, %643, %cst_268 {dimension_numbers = #tpu.dot_dimension_numbers<[1], [0], [0], [1], [0, 0, 1, 1], [], []>} : vector<2x32xf32>, vector<32x128xf32>, vector<2x128xf32> -> vector<2x128xf32>
    %645 = arith.addf %642, %644 : vector<2x128xf32>
    %c0_269 = arith.constant 0 : index
    %c0_270 = arith.constant 0 : index
    %646 = vector.load %arg27[%c0_269, %c0_270] : memref<98x32xf32, #tpu.memory_space<vmem>>, vector<2x32xf32>
    %c0_271 = arith.constant 0 : index
    %c0_272 = arith.constant 0 : index
    %c0_273 = arith.constant 0 : index
    %647 = vector.load %arg17[%c0_271, %c0_272, %c0_273] : memref<4x32x128xf32, #tpu.memory_space<vmem>>, vector<1x32x128xf32>
    %648 = vector.shape_cast %647 : vector<1x32x128xf32> to vector<32x128xf32>
    %cst_274 = arith.constant dense<0.000000e+00> : vector<2x128xf32>
    %649 = tpu.matmul %646, %648, %cst_274 {dimension_numbers = #tpu.dot_dimension_numbers<[1], [0], [0], [1], [0, 0, 1, 1], [], []>} : vector<2x32xf32>, vector<32x128xf32>, vector<2x128xf32> -> vector<2x128xf32>
    %650 = arith.addf %645, %649 : vector<2x128xf32>
    %c2_275 = arith.constant 2 : index
    %c0_276 = arith.constant 0 : index
    %651 = vector.load %arg27[%c2_275, %c0_276] : memref<98x32xf32, #tpu.memory_space<vmem>>, vector<2x32xf32>
    %c1_277 = arith.constant 1 : index
    %c0_278 = arith.constant 0 : index
    %c0_279 = arith.constant 0 : index
    %652 = vector.load %arg17[%c1_277, %c0_278, %c0_279] : memref<4x32x128xf32, #tpu.memory_space<vmem>>, vector<1x32x128xf32>
    %653 = vector.shape_cast %652 : vector<1x32x128xf32> to vector<32x128xf32>
    %cst_280 = arith.constant dense<0.000000e+00> : vector<2x128xf32>
    %654 = tpu.matmul %651, %653, %cst_280 {dimension_numbers = #tpu.dot_dimension_numbers<[1], [0], [0], [1], [0, 0, 1, 1], [], []>} : vector<2x32xf32>, vector<32x128xf32>, vector<2x128xf32> -> vector<2x128xf32>
    %655 = arith.addf %650, %654 : vector<2x128xf32>
    %c14_281 = arith.constant 14 : index
    %c0_282 = arith.constant 0 : index
    %656 = vector.load %arg27[%c14_281, %c0_282] : memref<98x32xf32, #tpu.memory_space<vmem>>, vector<2x32xf32>
    %c2_283 = arith.constant 2 : index
    %c0_284 = arith.constant 0 : index
    %c0_285 = arith.constant 0 : index
    %657 = vector.load %arg17[%c2_283, %c0_284, %c0_285] : memref<4x32x128xf32, #tpu.memory_space<vmem>>, vector<1x32x128xf32>
    %658 = vector.shape_cast %657 : vector<1x32x128xf32> to vector<32x128xf32>
    %cst_286 = arith.constant dense<0.000000e+00> : vector<2x128xf32>
    %659 = tpu.matmul %656, %658, %cst_286 {dimension_numbers = #tpu.dot_dimension_numbers<[1], [0], [0], [1], [0, 0, 1, 1], [], []>} : vector<2x32xf32>, vector<32x128xf32>, vector<2x128xf32> -> vector<2x128xf32>
    %660 = arith.addf %655, %659 : vector<2x128xf32>
    %c16_287 = arith.constant 16 : index
    %c0_288 = arith.constant 0 : index
    %661 = vector.load %arg27[%c16_287, %c0_288] : memref<98x32xf32, #tpu.memory_space<vmem>>, vector<2x32xf32>
    %c3_289 = arith.constant 3 : index
    %c0_290 = arith.constant 0 : index
    %c0_291 = arith.constant 0 : index
    %662 = vector.load %arg17[%c3_289, %c0_290, %c0_291] : memref<4x32x128xf32, #tpu.memory_space<vmem>>, vector<1x32x128xf32>
    %663 = vector.shape_cast %662 : vector<1x32x128xf32> to vector<32x128xf32>
    %cst_292 = arith.constant dense<0.000000e+00> : vector<2x128xf32>
    %664 = tpu.matmul %661, %663, %cst_292 {dimension_numbers = #tpu.dot_dimension_numbers<[1], [0], [0], [1], [0, 0, 1, 1], [], []>} : vector<2x32xf32>, vector<32x128xf32>, vector<2x128xf32> -> vector<2x128xf32>
    %665 = arith.addf %660, %664 : vector<2x128xf32>
    %c0_293 = arith.constant 0 : index
    %c0_294 = arith.constant 0 : index
    %666 = vector.load %arg19[%c0_293, %c0_294] : memref<1x128xf32, #tpu.memory_space<vmem>>, vector<1x128xf32>
    %667 = vector.broadcast %666 : vector<1x128xf32> to vector<2x128xf32>
    %668 = arith.addf %665, %667 : vector<2x128xf32>
    %cst_295 = arith.constant 0.000000e+00 : f32
    %669 = vector.broadcast %cst_295 : f32 to vector<2x128xf32>
    %670 = arith.maximumf %668, %669 : vector<2x128xf32>
    %c0_296 = arith.constant 0 : index
    %c0_297 = arith.constant 0 : index
    %671 = vector.load %arg20[%c0_296, %c0_297] : memref<128x128xf32, #tpu.memory_space<vmem>>, vector<128x128xf32>
    %cst_298 = arith.constant dense<0.000000e+00> : vector<2x128xf32>
    %672 = tpu.matmul %670, %671, %cst_298 {dimension_numbers = #tpu.dot_dimension_numbers<[1], [0], [0], [1], [0, 0, 1, 1], [], []>} : vector<2x128xf32>, vector<128x128xf32>, vector<2x128xf32> -> vector<2x128xf32>
    %c0_299 = arith.constant 0 : index
    %c0_300 = arith.constant 0 : index
    %673 = vector.load %arg21[%c0_299, %c0_300] : memref<1x128xf32, #tpu.memory_space<vmem>>, vector<1x128xf32>
    %674 = vector.broadcast %673 : vector<1x128xf32> to vector<2x128xf32>
    %675 = arith.addf %672, %674 : vector<2x128xf32>
    %cst_301 = arith.constant 0.000000e+00 : f32
    %676 = vector.broadcast %cst_301 : f32 to vector<2x128xf32>
    %677 = arith.maximumf %675, %676 : vector<2x128xf32>
    %c0_302 = arith.constant 0 : index
    %c0_303 = arith.constant 0 : index
    %678 = vector.load %arg22[%c0_302, %c0_303] : memref<128x128xf32, #tpu.memory_space<vmem>>, vector<128x128xf32>
    %cst_304 = arith.constant dense<0.000000e+00> : vector<2x128xf32>
    %679 = tpu.matmul %677, %678, %cst_304 {dimension_numbers = #tpu.dot_dimension_numbers<[1], [0], [0], [1], [0, 0, 1, 1], [], []>} : vector<2x128xf32>, vector<128x128xf32>, vector<2x128xf32> -> vector<2x128xf32>
    %c0_305 = arith.constant 0 : index
    %c0_306 = arith.constant 0 : index
    %680 = vector.load %arg23[%c0_305, %c0_306] : memref<1x128xf32, #tpu.memory_space<vmem>>, vector<1x128xf32>
    %681 = vector.broadcast %680 : vector<1x128xf32> to vector<2x128xf32>
    %682 = arith.addf %679, %681 : vector<2x128xf32>
    %c0_307 = arith.constant 0 : index
    %c0_308 = arith.constant 0 : index
    %683 = vector.load %arg24[%c0_307, %c0_308] : memref<2x128xf32, #tpu.memory_space<vmem>>, vector<2x128xf32>
    tpu.vector_store %arg24[%c0_307, %c0_308], %682 {strides = array<i32>} : memref<2x128xf32, #tpu.memory_space<vmem>>, vector<2x128xf32>,
    return
  }
}

</mosaic_0001>

<llo_original>
// kernel: custom_network_forward.1
$region0: #{custom_network_forward.1}
  #allocation0 [shape = 'u32[]', space=smem, size = 0x4, offset = 0x4, fixed_abs, tag = 'smem constant byte address 0x4 - core index']
  #allocation1 [shape = 'u32[144,128]{1,0:T(1,128)}', space=vmem, size = 0x12000, scoped, tag = 'internal scratch']
  #allocation2 [shape = 'f32[130,16]{1,0:T(8,128)}', space=vmem, size = 0x11000, scoped, tag = 'scratch operand']
  #allocation3 [shape = 'f32[130,32]{1,0:T(8,128)}', space=vmem, size = 0x11000, scoped, tag = 'scratch operand']
  #allocation4 [shape = 'f32[98,32]{1,0:T(8,128)}', space=vmem, size = 0xd000, scoped, tag = 'scratch operand']
  #allocation5 [shape = 'f32[16,96]{1,0:T(8,128)}', space=vmem, size = 0x2000, scoped, tag = 'scratch operand']
  #allocation6 [shape = 'f32[16,96]{1,0:T(8,128)}', space=vmem, size = 0x2000, scoped, tag = 'scratch operand']
  %s0 = inlined_call_operand.vmem [shape: f32[130,3], index: 0, kind: input, shape index: {}]
  %s1 = inlined_call_operand.vmem [shape: s32[16,1], index: 1, kind: input, shape index: {}]
  %s2 = inlined_call_operand.vmem [shape: f32[9,3,16], index: 2, kind: input, shape index: {}]
  %s3 = inlined_call_operand.vmem [shape: f32[1,16], index: 3, kind: input, shape index: {}]
  %s4 = inlined_call_operand.vmem [shape: f32[9,16,32], index: 4, kind: input, shape index: {}]
  %s5 = inlined_call_operand.vmem [shape: f32[1,32], index: 5, kind: input, shape index: {}]
  %s6 = inlined_call_operand.vmem [shape: f32[4,32,32], index: 6, kind: input, shape index: {}]
  %s7 = inlined_call_operand.vmem [shape: f32[1,32], index: 7, kind: input, shape index: {}]
  %s8 = inlined_call_operand.vmem [shape: f32[13,8], index: 8, kind: input, shape index: {}]
  %s9 = inlined_call_operand.vmem [shape: f32[8,96], index: 9, kind: input, shape index: {}]
  %s10 = inlined_call_operand.vmem [shape: f32[8,96], index: 10, kind: input, shape index: {}]
  %s11 = inlined_call_operand.vmem [shape: f32[1,96], index: 11, kind: input, shape index: {}]
  %s12 = inlined_call_operand.vmem [shape: f32[1,96], index: 12, kind: input, shape index: {}]
  %s13 = inlined_call_operand.vmem [shape: f32[32,96], index: 13, kind: input, shape index: {}]
  %s14 = inlined_call_operand.vmem [shape: f32[32,96], index: 14, kind: input, shape index: {}]
  %s15 = inlined_call_operand.vmem [shape: f32[1,32], index: 15, kind: input, shape index: {}]
  %s16 = inlined_call_operand.vmem [shape: f32[1,32], index: 16, kind: input, shape index: {}]
  %s17 = inlined_call_operand.vmem [shape: f32[4,32,128], index: 17, kind: input, shape index: {}]
  %s18 = inlined_call_operand.vmem [shape: f32[64,128], index: 18, kind: input, shape index: {}]
  %s19 = inlined_call_operand.vmem [shape: f32[1,128], index: 19, kind: input, shape index: {}]
  %s20 = inlined_call_operand.vmem [shape: f32[128,128], index: 20, kind: input, shape index: {}]
  %s21 = inlined_call_operand.vmem [shape: f32[1,128], index: 21, kind: input, shape index: {}]
  %s22 = inlined_call_operand.vmem [shape: f32[128,128], index: 22, kind: input, shape index: {}]
  %s23 = inlined_call_operand.vmem [shape: f32[1,128], index: 23, kind: input, shape index: {}]
  %s24 = inlined_call_operand.vmem [shape: f32[2,128], index: 24, kind: output, shape index: {}]
  %s25 = sld [smem:[#allocation0]]
  $region106: #{custom_network_forward.1} parent=0
    _
  %s27 = ssub.s32 1, %s25
  %s28 = scalar_select 0, %s27, %s25
  // Predicated region
  $region2: #{custom_network_forward.1} parent=0 // pred_check
    _
  $region3: #{custom_network_forward.1} parent=0 // pred_check_branch
    %30 = sbr.rel (0) target = $region5
  $region4: #{custom_network_forward.1} parent=0 // pred_region
    _
  $region5: #{custom_network_forward.1} parent=0 // pred_fallthru
    _
  // Predicated region
  $region6: #{custom_network_forward.1} parent=0 // pred_check
    _
  $region7: #{custom_network_forward.1} parent=0 // pred_check_branch
    %32 = sbr.rel (0) target = $region9
  $region8: #{custom_network_forward.1} parent=0 // pred_region
    _
  $region9: #{custom_network_forward.1} parent=0 // pred_fallthru
    _
  // Predicated region
  $region10: #{custom_network_forward.1} parent=0 // pred_check
    _
  $region11: #{custom_network_forward.1} parent=0 // pred_check_branch
    %34 = sbr.rel (0) target = $region13
  $region12: #{custom_network_forward.1} parent=0 // pred_region
    _
  $region13: #{custom_network_forward.1} parent=0 // pred_fallthru
    _
  // Predicated region
  $region14: #{custom_network_forward.1} parent=0 // pred_check
    _
  $region15: #{custom_network_forward.1} parent=0 // pred_check_branch
    %36 = sbr.rel (0) target = $region17
  $region16: #{custom_network_forward.1} parent=0 // pred_region
    _
  $region17: #{custom_network_forward.1} parent=0 // pred_fallthru
    _
  // Predicated region
  $region18: #{custom_network_forward.1} parent=0 // pred_check
    _
  $region19: #{custom_network_forward.1} parent=0 // pred_check_branch
    %38 = sbr.rel (0) target = $region21
  $region20: #{custom_network_forward.1} parent=0 // pred_region
    _
  $region21: #{custom_network_forward.1} parent=0 // pred_fallthru
    _
  // Predicated region
  $region22: #{custom_network_forward.1} parent=0 // pred_check
    _
  $region23: #{custom_network_forward.1} parent=0 // pred_check_branch
    %40 = sbr.rel (0) target = $region25
  $region24: #{custom_network_forward.1} parent=0 // pred_region
    _
  $region25: #{custom_network_forward.1} parent=0 // pred_fallthru
    _
  // Predicated region
  $region26: #{custom_network_forward.1} parent=0 // pred_check
    _
  $region27: #{custom_network_forward.1} parent=0 // pred_check_branch
    %42 = sbr.rel (0) target = $region29
  $region28: #{custom_network_forward.1} parent=0 // pred_region
    _
  $region29: #{custom_network_forward.1} parent=0 // pred_fallthru
    _
  // Predicated region
  $region30: #{custom_network_forward.1} parent=0 // pred_check
    _
  $region31: #{custom_network_forward.1} parent=0 // pred_check_branch
    %44 = sbr.rel (0) target = $region33
  $region32: #{custom_network_forward.1} parent=0 // pred_region
    _
  $region33: #{custom_network_forward.1} parent=0 // pred_fallthru
    _
  // Predicated region
  $region34: #{custom_network_forward.1} parent=0 // pred_check
    _
  $region35: #{custom_network_forward.1} parent=0 // pred_check_branch
    %46 = sbr.rel (0) target = $region37
  $region36: #{custom_network_forward.1} parent=0 // pred_region
    _
  $region37: #{custom_network_forward.1} parent=0 // pred_fallthru
    _
  // Predicated region
  $region38: #{custom_network_forward.1} parent=0 // pred_check
    _
  $region39: #{custom_network_forward.1} parent=0 // pred_check_branch
    %48 = sbr.rel (0) target = $region41
  $region40: #{custom_network_forward.1} parent=0 // pred_region
    _
  $region41: #{custom_network_forward.1} parent=0 // pred_fallthru
    _
  // Predicated region
  $region42: #{custom_network_forward.1} parent=0 // pred_check
    _
  $region43: #{custom_network_forward.1} parent=0 // pred_check_branch
    %50 = sbr.rel (0) target = $region45
  $region44: #{custom_network_forward.1} parent=0 // pred_region
    _
  $region45: #{custom_network_forward.1} parent=0 // pred_fallthru
    _
  // Predicated region
  $region46: #{custom_network_forward.1} parent=0 // pred_check
    _
  $region47: #{custom_network_forward.1} parent=0 // pred_check_branch
    %52 = sbr.rel (0) target = $region49
  $region48: #{custom_network_forward.1} parent=0 // pred_region
    _
  $region49: #{custom_network_forward.1} parent=0 // pred_fallthru
    _
  // Predicated region
  $region50: #{custom_network_forward.1} parent=0 // pred_check
    _
  $region51: #{custom_network_forward.1} parent=0 // pred_check_branch
    %54 = sbr.rel (0) target = $region53
  $region52: #{custom_network_forward.1} parent=0 // pred_region
    _
  $region53: #{custom_network_forward.1} parent=0 // pred_fallthru
    _
  // Predicated region
  $region54: #{custom_network_forward.1} parent=0 // pred_check
    _
  $region55: #{custom_network_forward.1} parent=0 // pred_check_branch
    %56 = sbr.rel (0) target = $region57
  $region56: #{custom_network_forward.1} parent=0 // pred_region
    _
  $region57: #{custom_network_forward.1} parent=0 // pred_fallthru
    _
  // Predicated region
  $region58: #{custom_network_forward.1} parent=0 // pred_check
    _
  $region59: #{custom_network_forward.1} parent=0 // pred_check_branch
    %58 = sbr.rel (0) target = $region61
  $region60: #{custom_network_forward.1} parent=0 // pred_region
    _
  $region61: #{custom_network_forward.1} parent=0 // pred_fallthru
    _
  // Predicated region
  $region62: #{custom_network_forward.1} parent=0 // pred_check
    _
  $region63: #{custom_network_forward.1} parent=0 // pred_check_branch
    %60 = sbr.rel (0) target = $region65
  $region64: #{custom_network_forward.1} parent=0 // pred_region
    _
  $region65: #{custom_network_forward.1} parent=0 // pred_fallthru
    _
  // Predicated region
  $region66: #{custom_network_forward.1} parent=0 // pred_check
    _
  $region67: #{custom_network_forward.1} parent=0 // pred_check_branch
    %62 = sbr.rel (0) target = $region69
  $region68: #{custom_network_forward.1} parent=0 // pred_region
    _
  $region69: #{custom_network_forward.1} parent=0 // pred_fallthru
    _
  // Predicated region
  $region70: #{custom_network_forward.1} parent=0 // pred_check
    _
  $region71: #{custom_network_forward.1} parent=0 // pred_check_branch
    %64 = sbr.rel (0) target = $region73
  $region72: #{custom_network_forward.1} parent=0 // pred_region
    _
  $region73: #{custom_network_forward.1} parent=0 // pred_fallthru
    _
  // Predicated region
  $region74: #{custom_network_forward.1} parent=0 // pred_check
    _
  $region75: #{custom_network_forward.1} parent=0 // pred_check_branch
    %66 = sbr.rel (0) target = $region77
  $region76: #{custom_network_forward.1} parent=0 // pred_region
    _
  $region77: #{custom_network_forward.1} parent=0 // pred_fallthru
    _
  // Predicated region
  $region78: #{custom_network_forward.1} parent=0 // pred_check
    _
  $region79: #{custom_network_forward.1} parent=0 // pred_check_branch
    %68 = sbr.rel (0) target = $region81
  $region80: #{custom_network_forward.1} parent=0 // pred_region
    _
  $region81: #{custom_network_forward.1} parent=0 // pred_fallthru
    _
  // Predicated region
  $region82: #{custom_network_forward.1} parent=0 // pred_check
    _
  $region83: #{custom_network_forward.1} parent=0 // pred_check_branch
    %70 = sbr.rel (0) target = $region85
  $region84: #{custom_network_forward.1} parent=0 // pred_region
    _
  $region85: #{custom_network_forward.1} parent=0 // pred_fallthru
    _
  // Predicated region
  $region86: #{custom_network_forward.1} parent=0 // pred_check
    _
  $region87: #{custom_network_forward.1} parent=0 // pred_check_branch
    %72 = sbr.rel (0) target = $region89
  $region88: #{custom_network_forward.1} parent=0 // pred_region
    _
  $region89: #{custom_network_forward.1} parent=0 // pred_fallthru
    _
  // Predicated region
  $region90: #{custom_network_forward.1} parent=0 // pred_check
    _
  $region91: #{custom_network_forward.1} parent=0 // pred_check_branch
    %74 = sbr.rel (0) target = $region93
  $region92: #{custom_network_forward.1} parent=0 // pred_region
    _
  $region93: #{custom_network_forward.1} parent=0 // pred_fallthru
    _
  // Predicated region
  $region94: #{custom_network_forward.1} parent=0 // pred_check
    _
  $region95: #{custom_network_forward.1} parent=0 // pred_check_branch
    %76 = sbr.rel (0) target = $region97
  $region96: #{custom_network_forward.1} parent=0 // pred_region
    _
  $region97: #{custom_network_forward.1} parent=0 // pred_fallthru
    _
  %vm77 = vcmask 130048
  %78 = vst.msk [vmem:[#allocation2] sm:$0xff] %vm77, 0.0
  %79 = vst.msk [vmem:[#allocation2 + $0x8] sm:$0xff] %vm77, 0.0
  %80 = vst.msk [vmem:[#allocation2 + $0x10] sm:$0xff] %vm77, 0.0
  %81 = vst.msk [vmem:[#allocation2 + $0x18] sm:$0xff] %vm77, 0.0
  %82 = vst.msk [vmem:[#allocation2 + $0x20] sm:$0xff] %vm77, 0.0
  %83 = vst.msk [vmem:[#allocation2 + $0x28] sm:$0xff] %vm77, 0.0
  %84 = vst.msk [vmem:[#allocation2 + $0x30] sm:$0xff] %vm77, 0.0
  %85 = vst.msk [vmem:[#allocation2 + $0x38] sm:$0xff] %vm77, 0.0
  %86 = vst.msk [vmem:[#allocation2 + $0x40] sm:$0xff] %vm77, 0.0
  %87 = vst.msk [vmem:[#allocation2 + $0x48] sm:$0xff] %vm77, 0.0
  %88 = vst.msk [vmem:[#allocation2 + $0x50] sm:$0xff] %vm77, 0.0
  %89 = vst.msk [vmem:[#allocation2 + $0x58] sm:$0xff] %vm77, 0.0
  %90 = vst.msk [vmem:[#allocation2 + $0x60] sm:$0xff] %vm77, 0.0
  %91 = vst.msk [vmem:[#allocation2 + $0x68] sm:$0xff] %vm77, 0.0
  %92 = vst.msk [vmem:[#allocation2 + $0x70] sm:$0xff] %vm77, 0.0
  %93 = vst.msk [vmem:[#allocation2 + $0x78] sm:$0xff] %vm77, 0.0
  %vm94 = vcmask 123904
  %95 = vst.msk [vmem:[#allocation2 + $0x80] sm:$0x3] %vm94, 0.0
  %v96 = vld [vmem:[%s0] sm:$0xff]
  %v97 = vld [vmem:[%s0 + $0x8] sm:$0xff]
  %v98 = vld [vmem:[%s0 + $0x10] sm:$0xff]
  %v99 = vld [vmem:[%s0 + $0x18] sm:$0xff]
  %v100 = vld [vmem:[%s0 + $0x20] sm:$0xff]
  %v101 = vld [vmem:[%s0 + $0x28] sm:$0xff]
  %v102 = vld [vmem:[%s0 + $0x30] sm:$0xff]
  %v103 = vld [vmem:[%s0 + $0x38] sm:$0xff]
  %v104 = vld [vmem:[%s0 + $0x40] sm:$0xff]
  %v105 = vld [vmem:[%s0 + $0x48] sm:$0xff]
  %v106 = vld [vmem:[%s0 + $0x50] sm:$0xff]
  %v107 = vld [vmem:[%s0 + $0x58] sm:$0xff]
  %v108 = vld [vmem:[%s0 + $0x60] sm:$0x3]
  %v109 = vld [vmem:[%s2] sm:$0x7]
  %v110 = vld [vmem:[%s0 + $0x2] sm:$0xff]
  %v111 = vld [vmem:[%s0 + $0xa] sm:$0xff]
  %v112 = vld [vmem:[%s0 + $0x12] sm:$0xff]
  %v113 = vld [vmem:[%s0 + $0x1a] sm:$0xff]
  %v114 = vld [vmem:[%s0 + $0x22] sm:$0xff]
  %v115 = vld [vmem:[%s0 + $0x2a] sm:$0xff]
  %v116 = vld [vmem:[%s0 + $0x32] sm:$0xff]
  %v117 = vld [vmem:[%s0 + $0x3a] sm:$0xff]
  %v118 = vld [vmem:[%s0 + $0x42] sm:$0xff]
  %v119 = vld [vmem:[%s0 + $0x4a] sm:$0xff]
  %v120 = vld [vmem:[%s0 + $0x52] sm:$0xff]
  %v121 = vld [vmem:[%s0 + $0x5a] sm:$0xff]
  %v122 = vld [vmem:[%s0 + $0x62] sm:$0x3]
  %s123 = scalar_lea.vmem %s2, 4
  %v124 = vld [vmem:[%s123] sm:$0x7]
  %vm125 = vcmask 23552
  %v127 = vsel %vm125, %v110, 0
  %v130 = vsel %vm125, %v111, 0
  %v133 = vsel %vm125, %v112, 0
  %v136 = vsel %vm125, %v113, 0
  %v139 = vsel %vm125, %v114, 0
  %v142 = vsel %vm125, %v115, 0
  %v145 = vsel %vm125, %v116, 0
  %v148 = vsel %vm125, %v117, 0
  %v151 = vsel %vm125, %v118, 0
  %v154 = vsel %vm125, %v119, 0
  %v157 = vsel %vm125, %v120, 0
  %v160 = vsel %vm125, %v121, 0
  %v163 = vsel %vm125, %v122, 0
  %vm165 = vcmask 1042432
  %v167 = vsel %vm165, %v124, 0
  %169 = vmatprep.subr.mxu0 0.0
  %170 = vmatpush1.msra.mxu0 %v167
  %171 = vmatprep.subr.mxu0 0.0
  %172 = vmatpush1.msra.mxu0 0.0
  %173 = vmatprep.subr.mxu0 0.0
  %174 = vmatpush1.msra.mxu0 0.0
  %175 = vmatprep.subr.mxu0 0.0
  %176 = vmatpush1.msra.mxu0 0.0
  %177 = vmatprep.subr.mxu0 0.0
  %178 = vmatpush1.msra.mxu0 0.0
  %179 = vmatprep.subr.mxu0 0.0
  %180 = vmatpush1.msra.mxu0 0.0
  %181 = vmatprep.subr.mxu0 0.0
  %182 = vmatpush1.msra.mxu0 0.0
  %183 = vmatprep.subr.mxu0 0.0
  %184 = vmatpush1.msra.mxu0 0.0
  %185 = vmatprep.subr.mxu0 0.0
  %186 = vmatpush1.msra.mxu0 0.0
  %187 = vmatprep.subr.mxu0 0.0
  %188 = vmatpush1.msra.mxu0 0.0
  %189 = vmatprep.subr.mxu0 0.0
  %190 = vmatpush1.msra.mxu0 0.0
  %191 = vmatprep.subr.mxu0 0.0
  %192 = vmatpush1.msra.mxu0 0.0
  %193 = vmatprep.subr.mxu0 0.0
  %194 = vmatpush1.msra.mxu0 0.0
  %195 = vmatprep.subr.mxu0 0.0
  %196 = vmatpush1.msra.mxu0 0.0
  %197 = vmatprep.subr.mxu0 0.0
  %198 = vmatpush1.msra.mxu0 0.0
  %199 = vmatprep.subr.mxu0 0.0
  %200 = vmatpush1.msra.mxu0 0.0
  %201 = vmatprep.subr.mxu0 0.0
  %202 = vmatpush1.msra.mxu0 0.0
  %203 = vmatprep.subr.mxu0 0.0
  %204 = vmatpush1.msra.mxu0 0.0
  %205 = vmatprep.subr.mxu0 0.0
  %206 = vmatpush1.msra.mxu0 0.0
  %207 = vmatprep.subr.mxu0 0.0
  %208 = vmatpush1.msra.mxu0 0.0
  %209 = vmatprep.subr.mxu0 0.0
  %210 = vmatpush1.msra.mxu0 0.0
  %211 = vmatprep.subr.mxu0 0.0
  %212 = vmatpush1.msra.mxu0 0.0
  %213 = vmatprep.subr.mxu0 0.0
  %214 = vmatpush1.msra.mxu0 0.0
  %215 = vmatprep.subr.mxu0 0.0
  %216 = vmatpush1.msra.mxu0 0.0
  %217 = vmatprep.subr.mxu0 0.0
  %218 = vmatpush1.msra.mxu0 0.0
  %219 = vmatprep.subr.mxu0 0.0
  %220 = vmatpush1.msra.mxu0 0.0
  %221 = vmatprep.subr.mxu0 0.0
  %222 = vmatpush1.msra.mxu0 0.0
  %223 = vmatprep.subr.mxu0 0.0
  %224 = vmatpush1.msra.mxu0 0.0
  %225 = vmatprep.subr.mxu0 0.0
  %226 = vmatpush1.msra.mxu0 0.0
  %227 = vmatprep.subr.mxu0 0.0
  %228 = vmatpush1.msra.mxu0 0.0
  %229 = vmatprep.subr.mxu0 0.0
  %230 = vmatpush1.msra.mxu0 0.0
  %231 = vmatprep.subr.mxu0 0.0
  %232 = vmatpush1.msra.mxu0 0.0
  %233 = vmatprep.mubr.f32.mxu0 0.0
  %234 = vmatmul.mubr.f32.gmra.mrb[0].mxu0 %v127
  %v235 = vpop.f32.mrb[0].mxu0
  %v236 = vadd.f32 0.0, %v235
  %v237 = vpop.f32.mrb[0].mxu0
  %238 = vmatprep.mubr.f32.mxu0 0.0
  %239 = vmatmul.mubr.f32.gmra.mrb[0].mxu0 %v130
  %v240 = vpop.f32.mrb[0].mxu0
  %v241 = vadd.f32 0.0, %v240
  %v242 = vpop.f32.mrb[0].mxu0
  %243 = vmatprep.mubr.f32.mxu0 0.0
  %244 = vmatmul.mubr.f32.gmra.mrb[0].mxu0 %v133
  %v245 = vpop.f32.mrb[0].mxu0
  %v246 = vadd.f32 0.0, %v245
  %v247 = vpop.f32.mrb[0].mxu0
  %248 = vmatprep.mubr.f32.mxu0 0.0
  %249 = vmatmul.mubr.f32.gmra.mrb[0].mxu0 %v136
  %v250 = vpop.f32.mrb[0].mxu0
  %v251 = vadd.f32 0.0, %v250
  %v252 = vpop.f32.mrb[0].mxu0
  %253 = vmatprep.mubr.f32.mxu0 0.0
  %254 = vmatmul.mubr.f32.gmra.mrb[0].mxu0 %v139
  %v255 = vpop.f32.mrb[0].mxu0
  %v256 = vadd.f32 0.0, %v255
  %v257 = vpop.f32.mrb[0].mxu0
  %258 = vmatprep.mubr.f32.mxu0 0.0
  %259 = vmatmul.mubr.f32.gmra.mrb[0].mxu0 %v142
  %v260 = vpop.f32.mrb[0].mxu0
  %v261 = vadd.f32 0.0, %v260
  %v262 = vpop.f32.mrb[0].mxu0
  %263 = vmatprep.mubr.f32.mxu0 0.0
  %264 = vmatmul.mubr.f32.gmra.mrb[0].mxu0 %v145
  %v265 = vpop.f32.mrb[0].mxu0
  %v266 = vadd.f32 0.0, %v265
  %v267 = vpop.f32.mrb[0].mxu0
  %268 = vmatprep.mubr.f32.mxu0 0.0
  %269 = vmatmul.mubr.f32.gmra.mrb[0].mxu0 %v148
  %v270 = vpop.f32.mrb[0].mxu0
  %v271 = vadd.f32 0.0, %v270
  %v272 = vpop.f32.mrb[0].mxu0
  %273 = vmatprep.mubr.f32.mxu0 0.0
  %274 = vmatmul.mubr.f32.gmra.mrb[0].mxu0 %v151
  %v275 = vpop.f32.mrb[0].mxu0
  %v276 = vadd.f32 0.0, %v275
  %v277 = vpop.f32.mrb[0].mxu0
  %278 = vmatprep.mubr.f32.mxu0 0.0
  %279 = vmatmul.mubr.f32.gmra.mrb[0].mxu0 %v154
  %v280 = vpop.f32.mrb[0].mxu0
  %v281 = vadd.f32 0.0, %v280
  %v282 = vpop.f32.mrb[0].mxu0
  %283 = vmatprep.mubr.f32.mxu0 0.0
  %284 = vmatmul.mubr.f32.gmra.mrb[0].mxu0 %v157
  %v285 = vpop.f32.mrb[0].mxu0
  %v286 = vadd.f32 0.0, %v285
  %v287 = vpop.f32.mrb[0].mxu0
  %288 = vmatprep.mubr.f32.mxu0 0.0
  %289 = vmatmul.mubr.f32.gmra.mrb[0].mxu0 %v160
  %v290 = vpop.f32.mrb[0].mxu0
  %v291 = vadd.f32 0.0, %v290
  %v292 = vpop.f32.mrb[0].mxu0
  %293 = vmatprep.mubr.f32.mxu0 0.0
  %294 = vmatmul.mubr.f32.gmra.mrb[0].mxu0 %v163
  %v295 = vpop.f32.mrb[0].mxu0
  %v296 = vadd.f32 0.0, %v295
  %v297 = vpop.f32.mrb[0].mxu0
  %298 = vdwg.mxu0
  %v300 = vsel %vm125, %v96, 0
  %v303 = vsel %vm125, %v97, 0
  %v306 = vsel %vm125, %v98, 0
  %v309 = vsel %vm125, %v99, 0
  %v312 = vsel %vm125, %v100, 0
  %v315 = vsel %vm125, %v101, 0
  %v318 = vsel %vm125, %v102, 0
  %v321 = vsel %vm125, %v103, 0
  %v324 = vsel %vm125, %v104, 0
  %v327 = vsel %vm125, %v105, 0
  %v330 = vsel %vm125, %v106, 0
  %v333 = vsel %vm125, %v107, 0
  %v336 = vsel %vm125, %v108, 0
  %v339 = vsel %vm165, %v109, 0
  %341 = vmatprep.subr.mxu0 0.0
  %342 = vmatpush1.msra.mxu0 %v339
  %343 = vmatprep.subr.mxu0 0.0
  %344 = vmatpush1.msra.mxu0 0.0
  %345 = vmatprep.subr.mxu0 0.0
  %346 = vmatpush1.msra.mxu0 0.0
  %347 = vmatprep.subr.mxu0 0.0
  %348 = vmatpush1.msra.mxu0 0.0
  %349 = vmatprep.subr.mxu0 0.0
  %350 = vmatpush1.msra.mxu0 0.0
  %351 = vmatprep.subr.mxu0 0.0
  %352 = vmatpush1.msra.mxu0 0.0
  %353 = vmatprep.subr.mxu0 0.0
  %354 = vmatpush1.msra.mxu0 0.0
  %355 = vmatprep.subr.mxu0 0.0
  %356 = vmatpush1.msra.mxu0 0.0
  %357 = vmatprep.subr.mxu0 0.0
  %358 = vmatpush1.msra.mxu0 0.0
  %359 = vmatprep.subr.mxu0 0.0
  %360 = vmatpush1.msra.mxu0 0.0
  %361 = vmatprep.subr.mxu0 0.0
  %362 = vmatpush1.msra.mxu0 0.0
  %363 = vmatprep.subr.mxu0 0.0
  %364 = vmatpush1.msra.mxu0 0.0
  %365 = vmatprep.subr.mxu0 0.0
  %366 = vmatpush1.msra.mxu0 0.0
  %367 = vmatprep.subr.mxu0 0.0
  %368 = vmatpush1.msra.mxu0 0.0
  %369 = vmatprep.subr.mxu0 0.0
  %370 = vmatpush1.msra.mxu0 0.0
  %371 = vmatprep.subr.mxu0 0.0
  %372 = vmatpush1.msra.mxu0 0.0
  %373 = vmatprep.subr.mxu0 0.0
  %374 = vmatpush1.msra.mxu0 0.0
  %375 = vmatprep.subr.mxu0 0.0
  %376 = vmatpush1.msra.mxu0 0.0
  %377 = vmatprep.subr.mxu0 0.0
  %378 = vmatpush1.msra.mxu0 0.0
  %379 = vmatprep.subr.mxu0 0.0
  %380 = vmatpush1.msra.mxu0 0.0
  %381 = vmatprep.subr.mxu0 0.0
  %382 = vmatpush1.msra.mxu0 0.0
  %383 = vmatprep.subr.mxu0 0.0
  %384 = vmatpush1.msra.mxu0 0.0
  %385 = vmatprep.subr.mxu0 0.0
  %386 = vmatpush1.msra.mxu0 0.0
  %387 = vmatprep.subr.mxu0 0.0
  %388 = vmatpush1.msra.mxu0 0.0
  %389 = vmatprep.subr.mxu0 0.0
  %390 = vmatpush1.msra.mxu0 0.0
  %391 = vmatprep.subr.mxu0 0.0
  %392 = vmatpush1.msra.mxu0 0.0
  %393 = vmatprep.subr.mxu0 0.0
  %394 = vmatpush1.msra.mxu0 0.0
  %395 = vmatprep.subr.mxu0 0.0
  %396 = vmatpush1.msra.mxu0 0.0
  %397 = vmatprep.subr.mxu0 0.0
  %398 = vmatpush1.msra.mxu0 0.0
  %399 = vmatprep.subr.mxu0 0.0
  %400 = vmatpush1.msra.mxu0 0.0
  %401 = vmatprep.subr.mxu0 0.0
  %402 = vmatpush1.msra.mxu0 0.0
  %403 = vmatprep.subr.mxu0 0.0
  %404 = vmatpush1.msra.mxu0 0.0
  %405 = vmatprep.mubr.f32.mxu0 0.0
  %406 = vmatmul.mubr.f32.gmra.mrb[0].mxu0 %v300
  %v407 = vpop.f32.mrb[0].mxu0
  %v408 = vadd.f32 %v236, %v407
  %v409 = vpop.f32.mrb[0].mxu0
  %410 = vmatprep.mubr.f32.mxu0 0.0
  %411 = vmatmul.mubr.f32.gmra.mrb[0].mxu0 %v303
  %v412 = vpop.f32.mrb[0].mxu0
  %v413 = vadd.f32 %v241, %v412
  %v414 = vpop.f32.mrb[0].mxu0
  %415 = vmatprep.mubr.f32.mxu0 0.0
  %416 = vmatmul.mubr.f32.gmra.mrb[0].mxu0 %v306
  %v417 = vpop.f32.mrb[0].mxu0
  %v418 = vadd.f32 %v246, %v417
  %v419 = vpop.f32.mrb[0].mxu0
  %420 = vmatprep.mubr.f32.mxu0 0.0
  %421 = vmatmul.mubr.f32.gmra.mrb[0].mxu0 %v309
  %v422 = vpop.f32.mrb[0].mxu0
  %v423 = vadd.f32 %v251, %v422
  %v424 = vpop.f32.mrb[0].mxu0
  %425 = vmatprep.mubr.f32.mxu0 0.0
  %426 = vmatmul.mubr.f32.gmra.mrb[0].mxu0 %v312
  %v427 = vpop.f32.mrb[0].mxu0
  %v428 = vadd.f32 %v256, %v427
  %v429 = vpop.f32.mrb[0].mxu0
  %430 = vmatprep.mubr.f32.mxu0 0.0
  %431 = vmatmul.mubr.f32.gmra.mrb[0].mxu0 %v315
  %v432 = vpop.f32.mrb[0].mxu0
  %v433 = vadd.f32 %v261, %v432
  %v434 = vpop.f32.mrb[0].mxu0
  %435 = vmatprep.mubr.f32.mxu0 0.0
  %436 = vmatmul.mubr.f32.gmra.mrb[0].mxu0 %v318
  %v437 = vpop.f32.mrb[0].mxu0
  %v438 = vadd.f32 %v266, %v437
  %v439 = vpop.f32.mrb[0].mxu0
  %440 = vmatprep.mubr.f32.mxu0 0.0
  %441 = vmatmul.mubr.f32.gmra.mrb[0].mxu0 %v321
  %v442 = vpop.f32.mrb[0].mxu0
  %v443 = vadd.f32 %v271, %v442
  %v444 = vpop.f32.mrb[0].mxu0
  %445 = vmatprep.mubr.f32.mxu0 0.0
  %446 = vmatmul.mubr.f32.gmra.mrb[0].mxu0 %v324
  %v447 = vpop.f32.mrb[0].mxu0
  %v448 = vadd.f32 %v276, %v447
  %v449 = vpop.f32.mrb[0].mxu0
  %450 = vmatprep.mubr.f32.mxu0 0.0
  %451 = vmatmul.mubr.f32.gmra.mrb[0].mxu0 %v327
  %v452 = vpop.f32.mrb[0].mxu0
  %v453 = vadd.f32 %v281, %v452
  %v454 = vpop.f32.mrb[0].mxu0
  %455 = vmatprep.mubr.f32.mxu0 0.0
  %456 = vmatmul.mubr.f32.gmra.mrb[0].mxu0 %v330
  %v457 = vpop.f32.mrb[0].mxu0
  %v458 = vadd.f32 %v286, %v457
  %v459 = vpop.f32.mrb[0].mxu0
  %460 = vmatprep.mubr.f32.mxu0 0.0
  %461 = vmatmul.mubr.f32.gmra.mrb[0].mxu0 %v333
  %v462 = vpop.f32.mrb[0].mxu0
  %v463 = vadd.f32 %v291, %v462
  %v464 = vpop.f32.mrb[0].mxu0
  %465 = vmatprep.mubr.f32.mxu0 0.0
  %466 = vmatmul.mubr.f32.gmra.mrb[0].mxu0 %v336
  %v467 = vpop.f32.mrb[0].mxu0
  %v468 = vadd.f32 %v296, %v467
  %v469 = vpop.f32.mrb[0].mxu0
  %470 = vdwg.mxu0
  %v471 = vld [vmem:[%s0 + $0x4] sm:$0xff]
  %v472 = vld [vmem:[%s0 + $0xc] sm:$0xff]
  %v473 = vld [vmem:[%s0 + $0x14] sm:$0xff]
  %v474 = vld [vmem:[%s0 + $0x1c] sm:$0xff]
  %v475 = vld [vmem:[%s0 + $0x24] sm:$0xff]
  %v476 = vld [vmem:[%s0 + $0x2c] sm:$0xff]
  %v477 = vld [vmem:[%s0 + $0x34] sm:$0xff]
  %v478 = vld [vmem:[%s0 + $0x3c] sm:$0xff]
  %v479 = vld [vmem:[%s0 + $0x44] sm:$0xff]
  %v480 = vld [vmem:[%s0 + $0x4c] sm:$0xff]
  %v481 = vld [vmem:[%s0 + $0x54] sm:$0xff]
  %v482 = vld [vmem:[%s0 + $0x5c] sm:$0xff]
  %v483 = vld [vmem:[%s0 + $0x64] sm:$0x3]
  %s484 = scalar_lea.vmem %s2, 8
  %v485 = vld [vmem:[%s484] sm:$0x7]
  %v487 = vsel %vm125, %v471, 0
  %v490 = vsel %vm125, %v472, 0
  %v493 = vsel %vm125, %v473, 0
  %v496 = vsel %vm125, %v474, 0
  %v499 = vsel %vm125, %v475, 0
  %v502 = vsel %vm125, %v476, 0
  %v505 = vsel %vm125, %v477, 0
  %v508 = vsel %vm125, %v478, 0
  %v511 = vsel %vm125, %v479, 0
  %v514 = vsel %vm125, %v480, 0
  %v517 = vsel %vm125, %v481, 0
  %v520 = vsel %vm125, %v482, 0
  %v523 = vsel %vm125, %v483, 0
  %v526 = vsel %vm165, %v485, 0
  %528 = vmatprep.subr.mxu0 0.0
  %529 = vmatpush1.msra.mxu0 %v526
  %530 = vmatprep.subr.mxu0 0.0
  %531 = vmatpush1.msra.mxu0 0.0
  %532 = vmatprep.subr.mxu0 0.0
  %533 = vmatpush1.msra.mxu0 0.0
  %534 = vmatprep.subr.mxu0 0.0
  %535 = vmatpush1.msra.mxu0 0.0
  %536 = vmatprep.subr.mxu0 0.0
  %537 = vmatpush1.msra.mxu0 0.0
  %538 = vmatprep.subr.mxu0 0.0
  %539 = vmatpush1.msra.mxu0 0.0
  %540 = vmatprep.subr.mxu0 0.0
  %541 = vmatpush1.msra.mxu0 0.0
  %542 = vmatprep.subr.mxu0 0.0
  %543 = vmatpush1.msra.mxu0 0.0
  %544 = vmatprep.subr.mxu0 0.0
  %545 = vmatpush1.msra.mxu0 0.0
  %546 = vmatprep.subr.mxu0 0.0
  %547 = vmatpush1.msra.mxu0 0.0
  %548 = vmatprep.subr.mxu0 0.0
  %549 = vmatpush1.msra.mxu0 0.0
  %550 = vmatprep.subr.mxu0 0.0
  %551 = vmatpush1.msra.mxu0 0.0
  %552 = vmatprep.subr.mxu0 0.0
  %553 = vmatpush1.msra.mxu0 0.0
  %554 = vmatprep.subr.mxu0 0.0
  %555 = vmatpush1.msra.mxu0 0.0
  %556 = vmatprep.subr.mxu0 0.0
  %557 = vmatpush1.msra.mxu0 0.0
  %558 = vmatprep.subr.mxu0 0.0
  %559 = vmatpush1.msra.mxu0 0.0
  %560 = vmatprep.subr.mxu0 0.0
  %561 = vmatpush1.msra.mxu0 0.0
  %562 = vmatprep.subr.mxu0 0.0
  %563 = vmatpush1.msra.mxu0 0.0
  %564 = vmatprep.subr.mxu0 0.0
  %565 = vmatpush1.msra.mxu0 0.0
  %566 = vmatprep.subr.mxu0 0.0
  %567 = vmatpush1.msra.mxu0 0.0
  %568 = vmatprep.subr.mxu0 0.0
  %569 = vmatpush1.msra.mxu0 0.0
  %570 = vmatprep.subr.mxu0 0.0
  %571 = vmatpush1.msra.mxu0 0.0
  %572 = vmatprep.subr.mxu0 0.0
  %573 = vmatpush1.msra.mxu0 0.0
  %574 = vmatprep.subr.mxu0 0.0
  %575 = vmatpush1.msra.mxu0 0.0
  %576 = vmatprep.subr.mxu0 0.0
  %577 = vmatpush1.msra.mxu0 0.0
  %578 = vmatprep.subr.mxu0 0.0
  %579 = vmatpush1.msra.mxu0 0.0
  %580 = vmatprep.subr.mxu0 0.0
  %581 = vmatpush1.msra.mxu0 0.0
  %582 = vmatprep.subr.mxu0 0.0
  %583 = vmatpush1.msra.mxu0 0.0
  %584 = vmatprep.subr.mxu0 0.0
  %585 = vmatpush1.msra.mxu0 0.0
  %586 = vmatprep.subr.mxu0 0.0
  %587 = vmatpush1.msra.mxu0 0.0
  %588 = vmatprep.subr.mxu0 0.0
  %589 = vmatpush1.msra.mxu0 0.0
  %590 = vmatprep.subr.mxu0 0.0
  %591 = vmatpush1.msra.mxu0 0.0
  %592 = vmatprep.mubr.f32.mxu0 0.0
  %593 = vmatmul.mubr.f32.gmra.mrb[0].mxu0 %v487
  %v594 = vpop.f32.mrb[0].mxu0
  %v595 = vadd.f32 0.0, %v594
  %v596 = vpop.f32.mrb[0].mxu0
  %597 = vmatprep.mubr.f32.mxu0 0.0
  %598 = vmatmul.mubr.f32.gmra.mrb[0].mxu0 %v490
  %v599 = vpop.f32.mrb[0].mxu0
  %v600 = vadd.f32 0.0, %v599
  %v601 = vpop.f32.mrb[0].mxu0
  %602 = vmatprep.mubr.f32.mxu0 0.0
  %603 = vmatmul.mubr.f32.gmra.mrb[0].mxu0 %v493
  %v604 = vpop.f32.mrb[0].mxu0
  %v605 = vadd.f32 0.0, %v604
  %v606 = vpop.f32.mrb[0].mxu0
  %607 = vmatprep.mubr.f32.mxu0 0.0
  %608 = vmatmul.mubr.f32.gmra.mrb[0].mxu0 %v496
  %v609 = vpop.f32.mrb[0].mxu0
  %v610 = vadd.f32 0.0, %v609
  %v611 = vpop.f32.mrb[0].mxu0
  %612 = vmatprep.mubr.f32.mxu0 0.0
  %613 = vmatmul.mubr.f32.gmra.mrb[0].mxu0 %v499
  %v614 = vpop.f32.mrb[0].mxu0
  %v615 = vadd.f32 0.0, %v614
  %v616 = vpop.f32.mrb[0].mxu0
  %617 = vmatprep.mubr.f32.mxu0 0.0
  %618 = vmatmul.mubr.f32.gmra.mrb[0].mxu0 %v502
  %v619 = vpop.f32.mrb[0].mxu0
  %v620 = vadd.f32 0.0, %v619
  %v621 = vpop.f32.mrb[0].mxu0
  %622 = vmatprep.mubr.f32.mxu0 0.0
  %623 = vmatmul.mubr.f32.gmra.mrb[0].mxu0 %v505
  %v624 = vpop.f32.mrb[0].mxu0
  %v625 = vadd.f32 0.0, %v624
  %v626 = vpop.f32.mrb[0].mxu0
  %627 = vmatprep.mubr.f32.mxu0 0.0
  %628 = vmatmul.mubr.f32.gmra.mrb[0].mxu0 %v508
  %v629 = vpop.f32.mrb[0].mxu0
  %v630 = vadd.f32 0.0, %v629
  %v631 = vpop.f32.mrb[0].mxu0
  %632 = vmatprep.mubr.f32.mxu0 0.0
  %633 = vmatmul.mubr.f32.gmra.mrb[0].mxu0 %v511
  %v634 = vpop.f32.mrb[0].mxu0
  %v635 = vadd.f32 0.0, %v634
  %v636 = vpop.f32.mrb[0].mxu0
  %637 = vmatprep.mubr.f32.mxu0 0.0
  %638 = vmatmul.mubr.f32.gmra.mrb[0].mxu0 %v514
  %v639 = vpop.f32.mrb[0].mxu0
  %v640 = vadd.f32 0.0, %v639
  %v641 = vpop.f32.mrb[0].mxu0
  %642 = vmatprep.mubr.f32.mxu0 0.0
  %643 = vmatmul.mubr.f32.gmra.mrb[0].mxu0 %v517
  %v644 = vpop.f32.mrb[0].mxu0
  %v645 = vadd.f32 0.0, %v644
  %v646 = vpop.f32.mrb[0].mxu0
  %647 = vmatprep.mubr.f32.mxu0 0.0
  %648 = vmatmul.mubr.f32.gmra.mrb[0].mxu0 %v520
  %v649 = vpop.f32.mrb[0].mxu0
  %v650 = vadd.f32 0.0, %v649
  %v651 = vpop.f32.mrb[0].mxu0
  %652 = vmatprep.mubr.f32.mxu0 0.0
  %653 = vmatmul.mubr.f32.gmra.mrb[0].mxu0 %v523
  %v654 = vpop.f32.mrb[0].mxu0
  %v655 = vadd.f32 0.0, %v654
  %v656 = vpop.f32.mrb[0].mxu0
  %657 = vdwg.mxu0
  %v658 = vadd.f32 %v408, %v595
  %v659 = vadd.f32 %v413, %v600
  %v660 = vadd.f32 %v418, %v605
  %v661 = vadd.f32 %v423, %v610
  %v662 = vadd.f32 %v428, %v615
  %v663 = vadd.f32 %v433, %v620
  %v664 = vadd.f32 %v438, %v625
  %v665 = vadd.f32 %v443, %v630
  %v666 = vadd.f32 %v448, %v635
  %v667 = vadd.f32 %v453, %v640
  %v668 = vadd.f32 %v458, %v645
  %v669 = vadd.f32 %v463, %v650
  %v670 = vadd.f32 %v468, %v655
  %v671 = vld [vmem:[%s0 + $0xe] sm:$0xff]
  %v672 = vld [vmem:[%s0 + $0x16] sm:$0xff]
  %v673 = vld [vmem:[%s0 + $0x1e] sm:$0xff]
  %v674 = vld [vmem:[%s0 + $0x26] sm:$0xff]
  %v675 = vld [vmem:[%s0 + $0x2e] sm:$0xff]
  %v676 = vld [vmem:[%s0 + $0x36] sm:$0xff]
  %v677 = vld [vmem:[%s0 + $0x3e] sm:$0xff]
  %v678 = vld [vmem:[%s0 + $0x46] sm:$0xff]
  %v679 = vld [vmem:[%s0 + $0x4e] sm:$0xff]
  %v680 = vld [vmem:[%s0 + $0x56] sm:$0xff]
  %v681 = vld [vmem:[%s0 + $0x5e] sm:$0xff]
  %v682 = vld [vmem:[%s0 + $0x66] sm:$0xff]
  %v683 = vld [vmem:[%s0 + $0x6e] sm:$0x3]
  %s684 = scalar_lea.vmem %s2, 12
  %v685 = vld [vmem:[%s684] sm:$0x7]
  %v687 = vsel %vm125, %v671, 0
  %v690 = vsel %vm125, %v672, 0
  %v693 = vsel %vm125, %v673, 0
  %v696 = vsel %vm125, %v674, 0
  %v699 = vsel %vm125, %v675, 0
  %v702 = vsel %vm125, %v676, 0
  %v705 = vsel %vm125, %v677, 0
  %v708 = vsel %vm125, %v678, 0
  %v711 = vsel %vm125, %v679, 0
  %v714 = vsel %vm125, %v680, 0
  %v717 = vsel %vm125, %v681, 0
  %v720 = vsel %vm125, %v682, 0
  %v723 = vsel %vm125, %v683, 0
  %v726 = vsel %vm165, %v685, 0
  %728 = vmatprep.subr.mxu0 0.0
  %729 = vmatpush1.msra.mxu0 %v726
  %730 = vmatprep.subr.mxu0 0.0
  %731 = vmatpush1.msra.mxu0 0.0
  %732 = vmatprep.subr.mxu0 0.0
  %733 = vmatpush1.msra.mxu0 0.0
  %734 = vmatprep.subr.mxu0 0.0
  %735 = vmatpush1.msra.mxu0 0.0
  %736 = vmatprep.subr.mxu0 0.0
  %737 = vmatpush1.msra.mxu0 0.0
  %738 = vmatprep.subr.mxu0 0.0
  %739 = vmatpush1.msra.mxu0 0.0
  %740 = vmatprep.subr.mxu0 0.0
  %741 = vmatpush1.msra.mxu0 0.0
  %742 = vmatprep.subr.mxu0 0.0
  %743 = vmatpush1.msra.mxu0 0.0
  %744 = vmatprep.subr.mxu0 0.0
  %745 = vmatpush1.msra.mxu0 0.0
  %746 = vmatprep.subr.mxu0 0.0
  %747 = vmatpush1.msra.mxu0 0.0
  %748 = vmatprep.subr.mxu0 0.0
  %749 = vmatpush1.msra.mxu0 0.0
  %750 = vmatprep.subr.mxu0 0.0
  %751 = vmatpush1.msra.mxu0 0.0
  %752 = vmatprep.subr.mxu0 0.0
  %753 = vmatpush1.msra.mxu0 0.0
  %754 = vmatprep.subr.mxu0 0.0
  %755 = vmatpush1.msra.mxu0 0.0
  %756 = vmatprep.subr.mxu0 0.0
  %757 = vmatpush1.msra.mxu0 0.0
  %758 = vmatprep.subr.mxu0 0.0
  %759 = vmatpush1.msra.mxu0 0.0
  %760 = vmatprep.subr.mxu0 0.0
  %761 = vmatpush1.msra.mxu0 0.0
  %762 = vmatprep.subr.mxu0 0.0
  %763 = vmatpush1.msra.mxu0 0.0
  %764 = vmatprep.subr.mxu0 0.0
  %765 = vmatpush1.msra.mxu0 0.0
  %766 = vmatprep.subr.mxu0 0.0
  %767 = vmatpush1.msra.mxu0 0.0
  %768 = vmatprep.subr.mxu0 0.0
  %769 = vmatpush1.msra.mxu0 0.0
  %770 = vmatprep.subr.mxu0 0.0
  %771 = vmatpush1.msra.mxu0 0.0
  %772 = vmatprep.subr.mxu0 0.0
  %773 = vmatpush1.msra.mxu0 0.0
  %774 = vmatprep.subr.mxu0 0.0
  %775 = vmatpush1.msra.mxu0 0.0
  %776 = vmatprep.subr.mxu0 0.0
  %777 = vmatpush1.msra.mxu0 0.0
  %778 = vmatprep.subr.mxu0 0.0
  %779 = vmatpush1.msra.mxu0 0.0
  %780 = vmatprep.subr.mxu0 0.0
  %781 = vmatpush1.msra.mxu0 0.0
  %782 = vmatprep.subr.mxu0 0.0
  %783 = vmatpush1.msra.mxu0 0.0
  %784 = vmatprep.subr.mxu0 0.0
  %785 = vmatpush1.msra.mxu0 0.0
  %786 = vmatprep.subr.mxu0 0.0
  %787 = vmatpush1.msra.mxu0 0.0
  %788 = vmatprep.subr.mxu0 0.0
  %789 = vmatpush1.msra.mxu0 0.0
  %790 = vmatprep.subr.mxu0 0.0
  %791 = vmatpush1.msra.mxu0 0.0
  %792 = vmatprep.mubr.f32.mxu0 0.0
  %793 = vmatmul.mubr.f32.gmra.mrb[0].mxu0 %v687
  %v794 = vpop.f32.mrb[0].mxu0
  %v795 = vadd.f32 0.0, %v794
  %v796 = vpop.f32.mrb[0].mxu0
  %797 = vmatprep.mubr.f32.mxu0 0.0
  %798 = vmatmul.mubr.f32.gmra.mrb[0].mxu0 %v690
  %v799 = vpop.f32.mrb[0].mxu0
  %v800 = vadd.f32 0.0, %v799
  %v801 = vpop.f32.mrb[0].mxu0
  %802 = vmatprep.mubr.f32.mxu0 0.0
  %803 = vmatmul.mubr.f32.gmra.mrb[0].mxu0 %v693
  %v804 = vpop.f32.mrb[0].mxu0
  %v805 = vadd.f32 0.0, %v804
  %v806 = vpop.f32.mrb[0].mxu0
  %807 = vmatprep.mubr.f32.mxu0 0.0
  %808 = vmatmul.mubr.f32.gmra.mrb[0].mxu0 %v696
  %v809 = vpop.f32.mrb[0].mxu0
  %v810 = vadd.f32 0.0, %v809
  %v811 = vpop.f32.mrb[0].mxu0
  %812 = vmatprep.mubr.f32.mxu0 0.0
  %813 = vmatmul.mubr.f32.gmra.mrb[0].mxu0 %v699
  %v814 = vpop.f32.mrb[0].mxu0
  %v815 = vadd.f32 0.0, %v814
  %v816 = vpop.f32.mrb[0].mxu0
  %817 = vmatprep.mubr.f32.mxu0 0.0
  %818 = vmatmul.mubr.f32.gmra.mrb[0].mxu0 %v702
  %v819 = vpop.f32.mrb[0].mxu0
  %v820 = vadd.f32 0.0, %v819
  %v821 = vpop.f32.mrb[0].mxu0
  %822 = vmatprep.mubr.f32.mxu0 0.0
  %823 = vmatmul.mubr.f32.gmra.mrb[0].mxu0 %v705
  %v824 = vpop.f32.mrb[0].mxu0
  %v825 = vadd.f32 0.0, %v824
  %v826 = vpop.f32.mrb[0].mxu0
  %827 = vmatprep.mubr.f32.mxu0 0.0
  %828 = vmatmul.mubr.f32.gmra.mrb[0].mxu0 %v708
  %v829 = vpop.f32.mrb[0].mxu0
  %v830 = vadd.f32 0.0, %v829
  %v831 = vpop.f32.mrb[0].mxu0
  %832 = vmatprep.mubr.f32.mxu0 0.0
  %833 = vmatmul.mubr.f32.gmra.mrb[0].mxu0 %v711
  %v834 = vpop.f32.mrb[0].mxu0
  %v835 = vadd.f32 0.0, %v834
  %v836 = vpop.f32.mrb[0].mxu0
  %837 = vmatprep.mubr.f32.mxu0 0.0
  %838 = vmatmul.mubr.f32.gmra.mrb[0].mxu0 %v714
  %v839 = vpop.f32.mrb[0].mxu0
  %v840 = vadd.f32 0.0, %v839
  %v841 = vpop.f32.mrb[0].mxu0
  %842 = vmatprep.mubr.f32.mxu0 0.0
  %843 = vmatmul.mubr.f32.gmra.mrb[0].mxu0 %v717
  %v844 = vpop.f32.mrb[0].mxu0
  %v845 = vadd.f32 0.0, %v844
  %v846 = vpop.f32.mrb[0].mxu0
  %847 = vmatprep.mubr.f32.mxu0 0.0
  %848 = vmatmul.mubr.f32.gmra.mrb[0].mxu0 %v720
  %v849 = vpop.f32.mrb[0].mxu0
  %v850 = vadd.f32 0.0, %v849
  %v851 = vpop.f32.mrb[0].mxu0
  %852 = vmatprep.mubr.f32.mxu0 0.0
  %853 = vmatmul.mubr.f32.gmra.mrb[0].mxu0 %v723
  %v854 = vpop.f32.mrb[0].mxu0
  %v855 = vadd.f32 0.0, %v854
  %v856 = vpop.f32.mrb[0].mxu0
  %857 = vdwg.mxu0
  %v858 = vadd.f32 %v658, %v795
  %v859 = vadd.f32 %v659, %v800
  %v860 = vadd.f32 %v660, %v805
  %v861 = vadd.f32 %v661, %v810
  %v862 = vadd.f32 %v662, %v815
  %v863 = vadd.f32 %v663, %v820
  %v864 = vadd.f32 %v664, %v825
  %v865 = vadd.f32 %v665, %v830
  %v866 = vadd.f32 %v666, %v835
  %v867 = vadd.f32 %v667, %v840
  %v868 = vadd.f32 %v668, %v845
  %v869 = vadd.f32 %v669, %v850
  %v870 = vadd.f32 %v670, %v855
  %v871 = vld [vmem:[%s0 + $0x10] sm:$0xff]
  %v872 = vld [vmem:[%s0 + $0x18] sm:$0xff]
  %v873 = vld [vmem:[%s0 + $0x20] sm:$0xff]
  %v874 = vld [vmem:[%s0 + $0x28] sm:$0xff]
  %v875 = vld [vmem:[%s0 + $0x30] sm:$0xff]
  %v876 = vld [vmem:[%s0 + $0x38] sm:$0xff]
  %v877 = vld [vmem:[%s0 + $0x40] sm:$0xff]
  %v878 = vld [vmem:[%s0 + $0x48] sm:$0xff]
  %v879 = vld [vmem:[%s0 + $0x50] sm:$0xff]
  %v880 = vld [vmem:[%s0 + $0x58] sm:$0xff]
  %v881 = vld [vmem:[%s0 + $0x60] sm:$0xff]
  %v882 = vld [vmem:[%s0 + $0x68] sm:$0xff]
  %v883 = vld [vmem:[%s0 + $0x70] sm:$0x3]
  %s884 = scalar_lea.vmem %s2, 16
  %v885 = vld [vmem:[%s884] sm:$0x7]
  %v887 = vsel %vm125, %v871, 0
  %v890 = vsel %vm125, %v872, 0
  %v893 = vsel %vm125, %v873, 0
  %v896 = vsel %vm125, %v874, 0
  %v899 = vsel %vm125, %v875, 0
  %v902 = vsel %vm125, %v876, 0
  %v905 = vsel %vm125, %v877, 0
  %v908 = vsel %vm125, %v878, 0
  %v911 = vsel %vm125, %v879, 0
  %v914 = vsel %vm125, %v880, 0
  %v917 = vsel %vm125, %v881, 0
  %v920 = vsel %vm125, %v882, 0
  %v923 = vsel %vm125, %v883, 0
  %v926 = vsel %vm165, %v885, 0
  %928 = vmatprep.subr.mxu0 0.0
  %929 = vmatpush1.msra.mxu0 %v926
  %930 = vmatprep.subr.mxu0 0.0
  %931 = vmatpush1.msra.mxu0 0.0
  %932 = vmatprep.subr.mxu0 0.0
  %933 = vmatpush1.msra.mxu0 0.0
  %934 = vmatprep.subr.mxu0 0.0
  %935 = vmatpush1.msra.mxu0 0.0
  %936 = vmatprep.subr.mxu0 0.0
  %937 = vmatpush1.msra.mxu0 0.0
  %938 = vmatprep.subr.mxu0 0.0
  %939 = vmatpush1.msra.mxu0 0.0
  %940 = vmatprep.subr.mxu0 0.0
  %941 = vmatpush1.msra.mxu0 0.0
  %942 = vmatprep.subr.mxu0 0.0
  %943 = vmatpush1.msra.mxu0 0.0
  %944 = vmatprep.subr.mxu0 0.0
  %945 = vmatpush1.msra.mxu0 0.0
  %946 = vmatprep.subr.mxu0 0.0
  %947 = vmatpush1.msra.mxu0 0.0
  %948 = vmatprep.subr.mxu0 0.0
  %949 = vmatpush1.msra.mxu0 0.0
  %950 = vmatprep.subr.mxu0 0.0
  %951 = vmatpush1.msra.mxu0 0.0
  %952 = vmatprep.subr.mxu0 0.0
  %953 = vmatpush1.msra.mxu0 0.0
  %954 = vmatprep.subr.mxu0 0.0
  %955 = vmatpush1.msra.mxu0 0.0
  %956 = vmatprep.subr.mxu0 0.0
  %957 = vmatpush1.msra.mxu0 0.0
  %958 = vmatprep.subr.mxu0 0.0
  %959 = vmatpush1.msra.mxu0 0.0
  %960 = vmatprep.subr.mxu0 0.0
  %961 = vmatpush1.msra.mxu0 0.0
  %962 = vmatprep.subr.mxu0 0.0
  %963 = vmatpush1.msra.mxu0 0.0
  %964 = vmatprep.subr.mxu0 0.0
  %965 = vmatpush1.msra.mxu0 0.0
  %966 = vmatprep.subr.mxu0 0.0
  %967 = vmatpush1.msra.mxu0 0.0
  %968 = vmatprep.subr.mxu0 0.0
  %969 = vmatpush1.msra.mxu0 0.0
  %970 = vmatprep.subr.mxu0 0.0
  %971 = vmatpush1.msra.mxu0 0.0
  %972 = vmatprep.subr.mxu0 0.0
  %973 = vmatpush1.msra.mxu0 0.0
  %974 = vmatprep.subr.mxu0 0.0
  %975 = vmatpush1.msra.mxu0 0.0
  %976 = vmatprep.subr.mxu0 0.0
  %977 = vmatpush1.msra.mxu0 0.0
  %978 = vmatprep.subr.mxu0 0.0
  %979 = vmatpush1.msra.mxu0 0.0
  %980 = vmatprep.subr.mxu0 0.0
  %981 = vmatpush1.msra.mxu0 0.0
  %982 = vmatprep.subr.mxu0 0.0
  %983 = vmatpush1.msra.mxu0 0.0
  %984 = vmatprep.subr.mxu0 0.0
  %985 = vmatpush1.msra.mxu0 0.0
  %986 = vmatprep.subr.mxu0 0.0
  %987 = vmatpush1.msra.mxu0 0.0
  %988 = vmatprep.subr.mxu0 0.0
  %989 = vmatpush1.msra.mxu0 0.0
  %990 = vmatprep.subr.mxu0 0.0
  %991 = vmatpush1.msra.mxu0 0.0
  %992 = vmatprep.mubr.f32.mxu0 0.0
  %993 = vmatmul.mubr.f32.gmra.mrb[0].mxu0 %v887
  %v994 = vpop.f32.mrb[0].mxu0
  %v995 = vadd.f32 0.0, %v994
  %v996 = vpop.f32.mrb[0].mxu0
  %997 = vmatprep.mubr.f32.mxu0 0.0
  %998 = vmatmul.mubr.f32.gmra.mrb[0].mxu0 %v890
  %v999 = vpop.f32.mrb[0].mxu0
  %v1000 = vadd.f32 0.0, %v999
  %v1001 = vpop.f32.mrb[0].mxu0
  %1002 = vmatprep.mubr.f32.mxu0 0.0
  %1003 = vmatmul.mubr.f32.gmra.mrb[0].mxu0 %v893
  %v1004 = vpop.f32.mrb[0].mxu0
  %v1005 = vadd.f32 0.0, %v1004
  %v1006 = vpop.f32.mrb[0].mxu0
  %1007 = vmatprep.mubr.f32.mxu0 0.0
  %1008 = vmatmul.mubr.f32.gmra.mrb[0].mxu0 %v896
  %v1009 = vpop.f32.mrb[0].mxu0
  %v1010 = vadd.f32 0.0, %v1009
  %v1011 = vpop.f32.mrb[0].mxu0
  %1012 = vmatprep.mubr.f32.mxu0 0.0
  %1013 = vmatmul.mubr.f32.gmra.mrb[0].mxu0 %v899
  %v1014 = vpop.f32.mrb[0].mxu0
  %v1015 = vadd.f32 0.0, %v1014
  %v1016 = vpop.f32.mrb[0].mxu0
  %1017 = vmatprep.mubr.f32.mxu0 0.0
  %1018 = vmatmul.mubr.f32.gmra.mrb[0].mxu0 %v902
  %v1019 = vpop.f32.mrb[0].mxu0
  %v1020 = vadd.f32 0.0, %v1019
  %v1021 = vpop.f32.mrb[0].mxu0
  %1022 = vmatprep.mubr.f32.mxu0 0.0
  %1023 = vmatmul.mubr.f32.gmra.mrb[0].mxu0 %v905
  %v1024 = vpop.f32.mrb[0].mxu0
  %v1025 = vadd.f32 0.0, %v1024
  %v1026 = vpop.f32.mrb[0].mxu0
  %1027 = vmatprep.mubr.f32.mxu0 0.0
  %1028 = vmatmul.mubr.f32.gmra.mrb[0].mxu0 %v908
  %v1029 = vpop.f32.mrb[0].mxu0
  %v1030 = vadd.f32 0.0, %v1029
  %v1031 = vpop.f32.mrb[0].mxu0
  %1032 = vmatprep.mubr.f32.mxu0 0.0
  %1033 = vmatmul.mubr.f32.gmra.mrb[0].mxu0 %v911
  %v1034 = vpop.f32.mrb[0].mxu0
  %v1035 = vadd.f32 0.0, %v1034
  %v1036 = vpop.f32.mrb[0].mxu0
  %1037 = vmatprep.mubr.f32.mxu0 0.0
  %1038 = vmatmul.mubr.f32.gmra.mrb[0].mxu0 %v914
  %v1039 = vpop.f32.mrb[0].mxu0
  %v1040 = vadd.f32 0.0, %v1039
  %v1041 = vpop.f32.mrb[0].mxu0
  %1042 = vmatprep.mubr.f32.mxu0 0.0
  %1043 = vmatmul.mubr.f32.gmra.mrb[0].mxu0 %v917
  %v1044 = vpop.f32.mrb[0].mxu0
  %v1045 = vadd.f32 0.0, %v1044
  %v1046 = vpop.f32.mrb[0].mxu0
  %1047 = vmatprep.mubr.f32.mxu0 0.0
  %1048 = vmatmul.mubr.f32.gmra.mrb[0].mxu0 %v920
  %v1049 = vpop.f32.mrb[0].mxu0
  %v1050 = vadd.f32 0.0, %v1049
  %v1051 = vpop.f32.mrb[0].mxu0
  %1052 = vmatprep.mubr.f32.mxu0 0.0
  %1053 = vmatmul.mubr.f32.gmra.mrb[0].mxu0 %v923
  %v1054 = vpop.f32.mrb[0].mxu0
  %v1055 = vadd.f32 0.0, %v1054
  %v1056 = vpop.f32.mrb[0].mxu0
  %1057 = vdwg.mxu0
  %v1058 = vadd.f32 %v858, %v995
  %v1059 = vadd.f32 %v859, %v1000
  %v1060 = vadd.f32 %v860, %v1005
  %v1061 = vadd.f32 %v861, %v1010
  %v1062 = vadd.f32 %v862, %v1015
  %v1063 = vadd.f32 %v863, %v1020
  %v1064 = vadd.f32 %v864, %v1025
  %v1065 = vadd.f32 %v865, %v1030
  %v1066 = vadd.f32 %v866, %v1035
  %v1067 = vadd.f32 %v867, %v1040
  %v1068 = vadd.f32 %v868, %v1045
  %v1069 = vadd.f32 %v869, %v1050
  %v1070 = vadd.f32 %v870, %v1055
  %v1071 = vld [vmem:[%s0 + $0x12] sm:$0xff]
  %v1072 = vld [vmem:[%s0 + $0x1a] sm:$0xff]
  %v1073 = vld [vmem:[%s0 + $0x22] sm:$0xff]
  %v1074 = vld [vmem:[%s0 + $0x2a] sm:$0xff]
  %v1075 = vld [vmem:[%s0 + $0x32] sm:$0xff]
  %v1076 = vld [vmem:[%s0 + $0x3a] sm:$0xff]
  %v1077 = vld [vmem:[%s0 + $0x42] sm:$0xff]
  %v1078 = vld [vmem:[%s0 + $0x4a] sm:$0xff]
  %v1079 = vld [vmem:[%s0 + $0x52] sm:$0xff]
  %v1080 = vld [vmem:[%s0 + $0x5a] sm:$0xff]
  %v1081 = vld [vmem:[%s0 + $0x62] sm:$0xff]
  %v1082 = vld [vmem:[%s0 + $0x6a] sm:$0xff]
  %v1083 = vld [vmem:[%s0 + $0x72] sm:$0x3]
  %s1084 = scalar_lea.vmem %s2, 20
  %v1085 = vld [vmem:[%s1084] sm:$0x7]
  %v1087 = vsel %vm125, %v1071, 0
  %v1090 = vsel %vm125, %v1072, 0
  %v1093 = vsel %vm125, %v1073, 0
  %v1096 = vsel %vm125, %v1074, 0
  %v1099 = vsel %vm125, %v1075, 0
  %v1102 = vsel %vm125, %v1076, 0
  %v1105 = vsel %vm125, %v1077, 0
  %v1108 = vsel %vm125, %v1078, 0
  %v1111 = vsel %vm125, %v1079, 0
  %v1114 = vsel %vm125, %v1080, 0
  %v1117 = vsel %vm125, %v1081, 0
  %v1120 = vsel %vm125, %v1082, 0
  %v1123 = vsel %vm125, %v1083, 0
  %v1126 = vsel %vm165, %v1085, 0
  %1128 = vmatprep.subr.mxu0 0.0
  %1129 = vmatpush1.msra.mxu0 %v1126
  %1130 = vmatprep.subr.mxu0 0.0
  %1131 = vmatpush1.msra.mxu0 0.0
  %1132 = vmatprep.subr.mxu0 0.0
  %1133 = vmatpush1.msra.mxu0 0.0
  %1134 = vmatprep.subr.mxu0 0.0
  %1135 = vmatpush1.msra.mxu0 0.0
  %1136 = vmatprep.subr.mxu0 0.0
  %1137 = vmatpush1.msra.mxu0 0.0
  %1138 = vmatprep.subr.mxu0 0.0
  %1139 = vmatpush1.msra.mxu0 0.0
  %1140 = vmatprep.subr.mxu0 0.0
  %1141 = vmatpush1.msra.mxu0 0.0
  %1142 = vmatprep.subr.mxu0 0.0
  %1143 = vmatpush1.msra.mxu0 0.0
  %1144 = vmatprep.subr.mxu0 0.0
  %1145 = vmatpush1.msra.mxu0 0.0
  %1146 = vmatprep.subr.mxu0 0.0
  %1147 = vmatpush1.msra.mxu0 0.0
  %1148 = vmatprep.subr.mxu0 0.0
  %1149 = vmatpush1.msra.mxu0 0.0
  %1150 = vmatprep.subr.mxu0 0.0
  %1151 = vmatpush1.msra.mxu0 0.0
  %1152 = vmatprep.subr.mxu0 0.0
  %1153 = vmatpush1.msra.mxu0 0.0
  %1154 = vmatprep.subr.mxu0 0.0
  %1155 = vmatpush1.msra.mxu0 0.0
  %1156 = vmatprep.subr.mxu0 0.0
  %1157 = vmatpush1.msra.mxu0 0.0
  %1158 = vmatprep.subr.mxu0 0.0
  %1159 = vmatpush1.msra.mxu0 0.0
  %1160 = vmatprep.subr.mxu0 0.0
  %1161 = vmatpush1.msra.mxu0 0.0
  %1162 = vmatprep.subr.mxu0 0.0
  %1163 = vmatpush1.msra.mxu0 0.0
  %1164 = vmatprep.subr.mxu0 0.0
  %1165 = vmatpush1.msra.mxu0 0.0
  %1166 = vmatprep.subr.mxu0 0.0
  %1167 = vmatpush1.msra.mxu0 0.0
  %1168 = vmatprep.subr.mxu0 0.0
  %1169 = vmatpush1.msra.mxu0 0.0
  %1170 = vmatprep.subr.mxu0 0.0
  %1171 = vmatpush1.msra.mxu0 0.0
  %1172 = vmatprep.subr.mxu0 0.0
  %1173 = vmatpush1.msra.mxu0 0.0
  %1174 = vmatprep.subr.mxu0 0.0
  %1175 = vmatpush1.msra.mxu0 0.0
  %1176 = vmatprep.subr.mxu0 0.0
  %1177 = vmatpush1.msra.mxu0 0.0
  %1178 = vmatprep.subr.mxu0 0.0
  %1179 = vmatpush1.msra.mxu0 0.0
  %1180 = vmatprep.subr.mxu0 0.0
  %1181 = vmatpush1.msra.mxu0 0.0
  %1182 = vmatprep.subr.mxu0 0.0
  %1183 = vmatpush1.msra.mxu0 0.0
  %1184 = vmatprep.subr.mxu0 0.0
  %1185 = vmatpush1.msra.mxu0 0.0
  %1186 = vmatprep.subr.mxu0 0.0
  %1187 = vmatpush1.msra.mxu0 0.0
  %1188 = vmatprep.subr.mxu0 0.0
  %1189 = vmatpush1.msra.mxu0 0.0
  %1190 = vmatprep.subr.mxu0 0.0
  %1191 = vmatpush1.msra.mxu0 0.0
  %1192 = vmatprep.mubr.f32.mxu0 0.0
  %1193 = vmatmul.mubr.f32.gmra.mrb[0].mxu0 %v1087
  %v1194 = vpop.f32.mrb[0].mxu0
  %v1195 = vadd.f32 0.0, %v1194
  %v1196 = vpop.f32.mrb[0].mxu0
  %1197 = vmatprep.mubr.f32.mxu0 0.0
  %1198 = vmatmul.mubr.f32.gmra.mrb[0].mxu0 %v1090
  %v1199 = vpop.f32.mrb[0].mxu0
  %v1200 = vadd.f32 0.0, %v1199
  %v1201 = vpop.f32.mrb[0].mxu0
  %1202 = vmatprep.mubr.f32.mxu0 0.0
  %1203 = vmatmul.mubr.f32.gmra.mrb[0].mxu0 %v1093
  %v1204 = vpop.f32.mrb[0].mxu0
  %v1205 = vadd.f32 0.0, %v1204
  %v1206 = vpop.f32.mrb[0].mxu0
  %1207 = vmatprep.mubr.f32.mxu0 0.0
  %1208 = vmatmul.mubr.f32.gmra.mrb[0].mxu0 %v1096
  %v1209 = vpop.f32.mrb[0].mxu0
  %v1210 = vadd.f32 0.0, %v1209
  %v1211 = vpop.f32.mrb[0].mxu0
  %1212 = vmatprep.mubr.f32.mxu0 0.0
  %1213 = vmatmul.mubr.f32.gmra.mrb[0].mxu0 %v1099
  %v1214 = vpop.f32.mrb[0].mxu0
  %v1215 = vadd.f32 0.0, %v1214
  %v1216 = vpop.f32.mrb[0].mxu0
  %1217 = vmatprep.mubr.f32.mxu0 0.0
  %1218 = vmatmul.mubr.f32.gmra.mrb[0].mxu0 %v1102
  %v1219 = vpop.f32.mrb[0].mxu0
  %v1220 = vadd.f32 0.0, %v1219
  %v1221 = vpop.f32.mrb[0].mxu0
  %1222 = vmatprep.mubr.f32.mxu0 0.0
  %1223 = vmatmul.mubr.f32.gmra.mrb[0].mxu0 %v1105
  %v1224 = vpop.f32.mrb[0].mxu0
  %v1225 = vadd.f32 0.0, %v1224
  %v1226 = vpop.f32.mrb[0].mxu0
  %1227 = vmatprep.mubr.f32.mxu0 0.0
  %1228 = vmatmul.mubr.f32.gmra.mrb[0].mxu0 %v1108
  %v1229 = vpop.f32.mrb[0].mxu0
  %v1230 = vadd.f32 0.0, %v1229
  %v1231 = vpop.f32.mrb[0].mxu0
  %1232 = vmatprep.mubr.f32.mxu0 0.0
  %1233 = vmatmul.mubr.f32.gmra.mrb[0].mxu0 %v1111
  %v1234 = vpop.f32.mrb[0].mxu0
  %v1235 = vadd.f32 0.0, %v1234
  %v1236 = vpop.f32.mrb[0].mxu0
  %1237 = vmatprep.mubr.f32.mxu0 0.0
  %1238 = vmatmul.mubr.f32.gmra.mrb[0].mxu0 %v1114
  %v1239 = vpop.f32.mrb[0].mxu0
  %v1240 = vadd.f32 0.0, %v1239
  %v1241 = vpop.f32.mrb[0].mxu0
  %1242 = vmatprep.mubr.f32.mxu0 0.0
  %1243 = vmatmul.mubr.f32.gmra.mrb[0].mxu0 %v1117
  %v1244 = vpop.f32.mrb[0].mxu0
  %v1245 = vadd.f32 0.0, %v1244
  %v1246 = vpop.f32.mrb[0].mxu0
  %1247 = vmatprep.mubr.f32.mxu0 0.0
  %1248 = vmatmul.mubr.f32.gmra.mrb[0].mxu0 %v1120
  %v1249 = vpop.f32.mrb[0].mxu0
  %v1250 = vadd.f32 0.0, %v1249
  %v1251 = vpop.f32.mrb[0].mxu0
  %1252 = vmatprep.mubr.f32.mxu0 0.0
  %1253 = vmatmul.mubr.f32.gmra.mrb[0].mxu0 %v1123
  %v1254 = vpop.f32.mrb[0].mxu0
  %v1255 = vadd.f32 0.0, %v1254
  %v1256 = vpop.f32.mrb[0].mxu0
  %1257 = vdwg.mxu0
  %v1258 = vadd.f32 %v1058, %v1195
  %v1259 = vadd.f32 %v1059, %v1200
  %v1260 = vadd.f32 %v1060, %v1205
  %v1261 = vadd.f32 %v1061, %v1210
  %v1262 = vadd.f32 %v1062, %v1215
  %v1263 = vadd.f32 %v1063, %v1220
  %v1264 = vadd.f32 %v1064, %v1225
  %v1265 = vadd.f32 %v1065, %v1230
  %v1266 = vadd.f32 %v1066, %v1235
  %v1267 = vadd.f32 %v1067, %v1240
  %v1268 = vadd.f32 %v1068, %v1245
  %v1269 = vadd.f32 %v1069, %v1250
  %v1270 = vadd.f32 %v1070, %v1255
  %v1271 = vld [vmem:[%s0 + $0x1c] sm:$0xff]
  %v1272 = vld [vmem:[%s0 + $0x24] sm:$0xff]
  %v1273 = vld [vmem:[%s0 + $0x2c] sm:$0xff]
  %v1274 = vld [vmem:[%s0 + $0x34] sm:$0xff]
  %v1275 = vld [vmem:[%s0 + $0x3c] sm:$0xff]
  %v1276 = vld [vmem:[%s0 + $0x44] sm:$0xff]
  %v1277 = vld [vmem:[%s0 + $0x4c] sm:$0xff]
  %v1278 = vld [vmem:[%s0 + $0x54] sm:$0xff]
  %v1279 = vld [vmem:[%s0 + $0x5c] sm:$0xff]
  %v1280 = vld [vmem:[%s0 + $0x64] sm:$0xff]
  %v1281 = vld [vmem:[%s0 + $0x6c] sm:$0xff]
  %v1282 = vld [vmem:[%s0 + $0x74] sm:$0xff]
  %v1283 = vld [vmem:[%s0 + $0x7c] sm:$0x3]
  %s1284 = scalar_lea.vmem %s2, 24
  %v1285 = vld [vmem:[%s1284] sm:$0x7]
  %v1287 = vsel %vm125, %v1271, 0
  %v1290 = vsel %vm125, %v1272, 0
  %v1293 = vsel %vm125, %v1273, 0
  %v1296 = vsel %vm125, %v1274, 0
  %v1299 = vsel %vm125, %v1275, 0
  %v1302 = vsel %vm125, %v1276, 0
  %v1305 = vsel %vm125, %v1277, 0
  %v1308 = vsel %vm125, %v1278, 0
  %v1311 = vsel %vm125, %v1279, 0
  %v1314 = vsel %vm125, %v1280, 0
  %v1317 = vsel %vm125, %v1281, 0
  %v1320 = vsel %vm125, %v1282, 0
  %v1323 = vsel %vm125, %v1283, 0
  %v1326 = vsel %vm165, %v1285, 0
  %1328 = vmatprep.subr.mxu0 0.0
  %1329 = vmatpush1.msra.mxu0 %v1326
  %1330 = vmatprep.subr.mxu0 0.0
  %1331 = vmatpush1.msra.mxu0 0.0
  %1332 = vmatprep.subr.mxu0 0.0
  %1333 = vmatpush1.msra.mxu0 0.0
  %1334 = vmatprep.subr.mxu0 0.0
  %1335 = vmatpush1.msra.mxu0 0.0
  %1336 = vmatprep.subr.mxu0 0.0
  %1337 = vmatpush1.msra.mxu0 0.0
  %1338 = vmatprep.subr.mxu0 0.0
  %1339 = vmatpush1.msra.mxu0 0.0
  %1340 = vmatprep.subr.mxu0 0.0
  %1341 = vmatpush1.msra.mxu0 0.0
  %1342 = vmatprep.subr.mxu0 0.0
  %1343 = vmatpush1.msra.mxu0 0.0
  %1344 = vmatprep.subr.mxu0 0.0
  %1345 = vmatpush1.msra.mxu0 0.0
  %1346 = vmatprep.subr.mxu0 0.0
  %1347 = vmatpush1.msra.mxu0 0.0
  %1348 = vmatprep.subr.mxu0 0.0
  %1349 = vmatpush1.msra.mxu0 0.0
  %1350 = vmatprep.subr.mxu0 0.0
  %1351 = vmatpush1.msra.mxu0 0.0
  %1352 = vmatprep.subr.mxu0 0.0
  %1353 = vmatpush1.msra.mxu0 0.0
  %1354 = vmatprep.subr.mxu0 0.0
  %1355 = vmatpush1.msra.mxu0 0.0
  %1356 = vmatprep.subr.mxu0 0.0
  %1357 = vmatpush1.msra.mxu0 0.0
  %1358 = vmatprep.subr.mxu0 0.0
  %1359 = vmatpush1.msra.mxu0 0.0
  %1360 = vmatprep.subr.mxu0 0.0
  %1361 = vmatpush1.msra.mxu0 0.0
  %1362 = vmatprep.subr.mxu0 0.0
  %1363 = vmatpush1.msra.mxu0 0.0
  %1364 = vmatprep.subr.mxu0 0.0
  %1365 = vmatpush1.msra.mxu0 0.0
  %1366 = vmatprep.subr.mxu0 0.0
  %1367 = vmatpush1.msra.mxu0 0.0
  %1368 = vmatprep.subr.mxu0 0.0
  %1369 = vmatpush1.msra.mxu0 0.0
  %1370 = vmatprep.subr.mxu0 0.0
  %1371 = vmatpush1.msra.mxu0 0.0
  %1372 = vmatprep.subr.mxu0 0.0
  %1373 = vmatpush1.msra.mxu0 0.0
  %1374 = vmatprep.subr.mxu0 0.0
  %1375 = vmatpush1.msra.mxu0 0.0
  %1376 = vmatprep.subr.mxu0 0.0
  %1377 = vmatpush1.msra.mxu0 0.0
  %1378 = vmatprep.subr.mxu0 0.0
  %1379 = vmatpush1.msra.mxu0 0.0
  %1380 = vmatprep.subr.mxu0 0.0
  %1381 = vmatpush1.msra.mxu0 0.0
  %1382 = vmatprep.subr.mxu0 0.0
  %1383 = vmatpush1.msra.mxu0 0.0
  %1384 = vmatprep.subr.mxu0 0.0
  %1385 = vmatpush1.msra.mxu0 0.0
  %1386 = vmatprep.subr.mxu0 0.0
  %1387 = vmatpush1.msra.mxu0 0.0
  %1388 = vmatprep.subr.mxu0 0.0
  %1389 = vmatpush1.msra.mxu0 0.0
  %1390 = vmatprep.subr.mxu0 0.0
  %1391 = vmatpush1.msra.mxu0 0.0
  %1392 = vmatprep.mubr.f32.mxu0 0.0
  %1393 = vmatmul.mubr.f32.gmra.mrb[0].mxu0 %v1287
  %v1394 = vpop.f32.mrb[0].mxu0
  %v1395 = vadd.f32 0.0, %v1394
  %v1396 = vpop.f32.mrb[0].mxu0
  %1397 = vmatprep.mubr.f32.mxu0 0.0
  %1398 = vmatmul.mubr.f32.gmra.mrb[0].mxu0 %v1290
  %v1399 = vpop.f32.mrb[0].mxu0
  %v1400 = vadd.f32 0.0, %v1399
  %v1401 = vpop.f32.mrb[0].mxu0
  %1402 = vmatprep.mubr.f32.mxu0 0.0
  %1403 = vmatmul.mubr.f32.gmra.mrb[0].mxu0 %v1293
  %v1404 = vpop.f32.mrb[0].mxu0
  %v1405 = vadd.f32 0.0, %v1404
  %v1406 = vpop.f32.mrb[0].mxu0
  %1407 = vmatprep.mubr.f32.mxu0 0.0
  %1408 = vmatmul.mubr.f32.gmra.mrb[0].mxu0 %v1296
  %v1409 = vpop.f32.mrb[0].mxu0
  %v1410 = vadd.f32 0.0, %v1409
  %v1411 = vpop.f32.mrb[0].mxu0
  %1412 = vmatprep.mubr.f32.mxu0 0.0
  %1413 = vmatmul.mubr.f32.gmra.mrb[0].mxu0 %v1299
  %v1414 = vpop.f32.mrb[0].mxu0
  %v1415 = vadd.f32 0.0, %v1414
  %v1416 = vpop.f32.mrb[0].mxu0
  %1417 = vmatprep.mubr.f32.mxu0 0.0
  %1418 = vmatmul.mubr.f32.gmra.mrb[0].mxu0 %v1302
  %v1419 = vpop.f32.mrb[0].mxu0
  %v1420 = vadd.f32 0.0, %v1419
  %v1421 = vpop.f32.mrb[0].mxu0
  %1422 = vmatprep.mubr.f32.mxu0 0.0
  %1423 = vmatmul.mubr.f32.gmra.mrb[0].mxu0 %v1305
  %v1424 = vpop.f32.mrb[0].mxu0
  %v1425 = vadd.f32 0.0, %v1424
  %v1426 = vpop.f32.mrb[0].mxu0
  %1427 = vmatprep.mubr.f32.mxu0 0.0
  %1428 = vmatmul.mubr.f32.gmra.mrb[0].mxu0 %v1308
  %v1429 = vpop.f32.mrb[0].mxu0
  %v1430 = vadd.f32 0.0, %v1429
  %v1431 = vpop.f32.mrb[0].mxu0
  %1432 = vmatprep.mubr.f32.mxu0 0.0
  %1433 = vmatmul.mubr.f32.gmra.mrb[0].mxu0 %v1311
  %v1434 = vpop.f32.mrb[0].mxu0
  %v1435 = vadd.f32 0.0, %v1434
  %v1436 = vpop.f32.mrb[0].mxu0
  %1437 = vmatprep.mubr.f32.mxu0 0.0
  %1438 = vmatmul.mubr.f32.gmra.mrb[0].mxu0 %v1314
  %v1439 = vpop.f32.mrb[0].mxu0
  %v1440 = vadd.f32 0.0, %v1439
  %v1441 = vpop.f32.mrb[0].mxu0
  %1442 = vmatprep.mubr.f32.mxu0 0.0
  %1443 = vmatmul.mubr.f32.gmra.mrb[0].mxu0 %v1317
  %v1444 = vpop.f32.mrb[0].mxu0
  %v1445 = vadd.f32 0.0, %v1444
  %v1446 = vpop.f32.mrb[0].mxu0
  %1447 = vmatprep.mubr.f32.mxu0 0.0
  %1448 = vmatmul.mubr.f32.gmra.mrb[0].mxu0 %v1320
  %v1449 = vpop.f32.mrb[0].mxu0
  %v1450 = vadd.f32 0.0, %v1449
  %v1451 = vpop.f32.mrb[0].mxu0
  %1452 = vmatprep.mubr.f32.mxu0 0.0
  %1453 = vmatmul.mubr.f32.gmra.mrb[0].mxu0 %v1323
  %v1454 = vpop.f32.mrb[0].mxu0
  %v1455 = vadd.f32 0.0, %v1454
  %v1456 = vpop.f32.mrb[0].mxu0
  %1457 = vdwg.mxu0
  %v1458 = vadd.f32 %v1258, %v1395
  %v1459 = vadd.f32 %v1259, %v1400
  %v1460 = vadd.f32 %v1260, %v1405
  %v1461 = vadd.f32 %v1261, %v1410
  %v1462 = vadd.f32 %v1262, %v1415
  %v1463 = vadd.f32 %v1263, %v1420
  %v1464 = vadd.f32 %v1264, %v1425
  %v1465 = vadd.f32 %v1265, %v1430
  %v1466 = vadd.f32 %v1266, %v1435
  %v1467 = vadd.f32 %v1267, %v1440
  %v1468 = vadd.f32 %v1268, %v1445
  %v1469 = vadd.f32 %v1269, %v1450
  %v1470 = vadd.f32 %v1270, %v1455
  %v1471 = vld [vmem:[%s0 + $0x1e] sm:$0xff]
  %v1472 = vld [vmem:[%s0 + $0x26] sm:$0xff]
  %v1473 = vld [vmem:[%s0 + $0x2e] sm:$0xff]
  %v1474 = vld [vmem:[%s0 + $0x36] sm:$0xff]
  %v1475 = vld [vmem:[%s0 + $0x3e] sm:$0xff]
  %v1476 = vld [vmem:[%s0 + $0x46] sm:$0xff]
  %v1477 = vld [vmem:[%s0 + $0x4e] sm:$0xff]
  %v1478 = vld [vmem:[%s0 + $0x56] sm:$0xff]
  %v1479 = vld [vmem:[%s0 + $0x5e] sm:$0xff]
  %v1480 = vld [vmem:[%s0 + $0x66] sm:$0xff]
  %v1481 = vld [vmem:[%s0 + $0x6e] sm:$0xff]
  %v1482 = vld [vmem:[%s0 + $0x76] sm:$0xff]
  %v1483 = vld [vmem:[%s0 + $0x7e] sm:$0x3]
  %s1484 = scalar_lea.vmem %s2, 28
  %v1485 = vld [vmem:[%s1484] sm:$0x7]
  %v1487 = vsel %vm125, %v1471, 0
  %v1490 = vsel %vm125, %v1472, 0
  %v1493 = vsel %vm125, %v1473, 0
  %v1496 = vsel %vm125, %v1474, 0
  %v1499 = vsel %vm125, %v1475, 0
  %v1502 = vsel %vm125, %v1476, 0
  %v1505 = vsel %vm125, %v1477, 0
  %v1508 = vsel %vm125, %v1478, 0
  %v1511 = vsel %vm125, %v1479, 0
  %v1514 = vsel %vm125, %v1480, 0
  %v1517 = vsel %vm125, %v1481, 0
  %v1520 = vsel %vm125, %v1482, 0
  %v1523 = vsel %vm125, %v1483, 0
  %v1526 = vsel %vm165, %v1485, 0
  %1528 = vmatprep.subr.mxu0 0.0
  %1529 = vmatpush1.msra.mxu0 %v1526
  %1530 = vmatprep.subr.mxu0 0.0
  %1531 = vmatpush1.msra.mxu0 0.0
  %1532 = vmatprep.subr.mxu0 0.0
  %1533 = vmatpush1.msra.mxu0 0.0
  %1534 = vmatprep.subr.mxu0 0.0
  %1535 = vmatpush1.msra.mxu0 0.0
  %1536 = vmatprep.subr.mxu0 0.0
  %1537 = vmatpush1.msra.mxu0 0.0
  %1538 = vmatprep.subr.mxu0 0.0
  %1539 = vmatpush1.msra.mxu0 0.0
  %1540 = vmatprep.subr.mxu0 0.0
  %1541 = vmatpush1.msra.mxu0 0.0
  %1542 = vmatprep.subr.mxu0 0.0
  %1543 = vmatpush1.msra.mxu0 0.0
  %1544 = vmatprep.subr.mxu0 0.0
  %1545 = vmatpush1.msra.mxu0 0.0
  %1546 = vmatprep.subr.mxu0 0.0
  %1547 = vmatpush1.msra.mxu0 0.0
  %1548 = vmatprep.subr.mxu0 0.0
  %1549 = vmatpush1.msra.mxu0 0.0
  %1550 = vmatprep.subr.mxu0 0.0
  %1551 = vmatpush1.msra.mxu0 0.0
  %1552 = vmatprep.subr.mxu0 0.0
  %1553 = vmatpush1.msra.mxu0 0.0
  %1554 = vmatprep.subr.mxu0 0.0
  %1555 = vmatpush1.msra.mxu0 0.0
  %1556 = vmatprep.subr.mxu0 0.0
  %1557 = vmatpush1.msra.mxu0 0.0
  %1558 = vmatprep.subr.mxu0 0.0
  %1559 = vmatpush1.msra.mxu0 0.0
  %1560 = vmatprep.subr.mxu0 0.0
  %1561 = vmatpush1.msra.mxu0 0.0
  %1562 = vmatprep.subr.mxu0 0.0
  %1563 = vmatpush1.msra.mxu0 0.0
  %1564 = vmatprep.subr.mxu0 0.0
  %1565 = vmatpush1.msra.mxu0 0.0
  %1566 = vmatprep.subr.mxu0 0.0
  %1567 = vmatpush1.msra.mxu0 0.0
  %1568 = vmatprep.subr.mxu0 0.0
  %1569 = vmatpush1.msra.mxu0 0.0
  %1570 = vmatprep.subr.mxu0 0.0
  %1571 = vmatpush1.msra.mxu0 0.0
  %1572 = vmatprep.subr.mxu0 0.0
  %1573 = vmatpush1.msra.mxu0 0.0
  %1574 = vmatprep.subr.mxu0 0.0
  %1575 = vmatpush1.msra.mxu0 0.0
  %1576 = vmatprep.subr.mxu0 0.0
  %1577 = vmatpush1.msra.mxu0 0.0
  %1578 = vmatprep.subr.mxu0 0.0
  %1579 = vmatpush1.msra.mxu0 0.0
  %1580 = vmatprep.subr.mxu0 0.0
  %1581 = vmatpush1.msra.mxu0 0.0
  %1582 = vmatprep.subr.mxu0 0.0
  %1583 = vmatpush1.msra.mxu0 0.0
  %1584 = vmatprep.subr.mxu0 0.0
  %1585 = vmatpush1.msra.mxu0 0.0
  %1586 = vmatprep.subr.mxu0 0.0
  %1587 = vmatpush1.msra.mxu0 0.0
  %1588 = vmatprep.subr.mxu0 0.0
  %1589 = vmatpush1.msra.mxu0 0.0
  %1590 = vmatprep.subr.mxu0 0.0
  %1591 = vmatpush1.msra.mxu0 0.0
  %1592 = vmatprep.mubr.f32.mxu0 0.0
  %1593 = vmatmul.mubr.f32.gmra.mrb[0].mxu0 %v1487
  %v1594 = vpop.f32.mrb[0].mxu0
  %v1595 = vadd.f32 0.0, %v1594
  %v1596 = vpop.f32.mrb[0].mxu0
  %1597 = vmatprep.mubr.f32.mxu0 0.0
  %1598 = vmatmul.mubr.f32.gmra.mrb[0].mxu0 %v1490
  %v1599 = vpop.f32.mrb[0].mxu0
  %v1600 = vadd.f32 0.0, %v1599
  %v1601 = vpop.f32.mrb[0].mxu0
  %1602 = vmatprep.mubr.f32.mxu0 0.0
  %1603 = vmatmul.mubr.f32.gmra.mrb[0].mxu0 %v1493
  %v1604 = vpop.f32.mrb[0].mxu0
  %v1605 = vadd.f32 0.0, %v1604
  %v1606 = vpop.f32.mrb[0].mxu0
  %1607 = vmatprep.mubr.f32.mxu0 0.0
  %1608 = vmatmul.mubr.f32.gmra.mrb[0].mxu0 %v1496
  %v1609 = vpop.f32.mrb[0].mxu0
  %v1610 = vadd.f32 0.0, %v1609
  %v1611 = vpop.f32.mrb[0].mxu0
  %1612 = vmatprep.mubr.f32.mxu0 0.0
  %1613 = vmatmul.mubr.f32.gmra.mrb[0].mxu0 %v1499
  %v1614 = vpop.f32.mrb[0].mxu0
  %v1615 = vadd.f32 0.0, %v1614
  %v1616 = vpop.f32.mrb[0].mxu0
  %1617 = vmatprep.mubr.f32.mxu0 0.0
  %1618 = vmatmul.mubr.f32.gmra.mrb[0].mxu0 %v1502
  %v1619 = vpop.f32.mrb[0].mxu0
  %v1620 = vadd.f32 0.0, %v1619
  %v1621 = vpop.f32.mrb[0].mxu0
  %1622 = vmatprep.mubr.f32.mxu0 0.0
  %1623 = vmatmul.mubr.f32.gmra.mrb[0].mxu0 %v1505
  %v1624 = vpop.f32.mrb[0].mxu0
  %v1625 = vadd.f32 0.0, %v1624
  %v1626 = vpop.f32.mrb[0].mxu0
  %1627 = vmatprep.mubr.f32.mxu0 0.0
  %1628 = vmatmul.mubr.f32.gmra.mrb[0].mxu0 %v1508
  %v1629 = vpop.f32.mrb[0].mxu0
  %v1630 = vadd.f32 0.0, %v1629
  %v1631 = vpop.f32.mrb[0].mxu0
  %1632 = vmatprep.mubr.f32.mxu0 0.0
  %1633 = vmatmul.mubr.f32.gmra.mrb[0].mxu0 %v1511
  %v1634 = vpop.f32.mrb[0].mxu0
  %v1635 = vadd.f32 0.0, %v1634
  %v1636 = vpop.f32.mrb[0].mxu0
  %1637 = vmatprep.mubr.f32.mxu0 0.0
  %1638 = vmatmul.mubr.f32.gmra.mrb[0].mxu0 %v1514
  %v1639 = vpop.f32.mrb[0].mxu0
  %v1640 = vadd.f32 0.0, %v1639
  %v1641 = vpop.f32.mrb[0].mxu0
  %1642 = vmatprep.mubr.f32.mxu0 0.0
  %1643 = vmatmul.mubr.f32.gmra.mrb[0].mxu0 %v1517
  %v1644 = vpop.f32.mrb[0].mxu0
  %v1645 = vadd.f32 0.0, %v1644
  %v1646 = vpop.f32.mrb[0].mxu0
  %1647 = vmatprep.mubr.f32.mxu0 0.0
  %1648 = vmatmul.mubr.f32.gmra.mrb[0].mxu0 %v1520
  %v1649 = vpop.f32.mrb[0].mxu0
  %v1650 = vadd.f32 0.0, %v1649
  %v1651 = vpop.f32.mrb[0].mxu0
  %1652 = vmatprep.mubr.f32.mxu0 0.0
  %1653 = vmatmul.mubr.f32.gmra.mrb[0].mxu0 %v1523
  %v1654 = vpop.f32.mrb[0].mxu0
  %v1655 = vadd.f32 0.0, %v1654
  %v1656 = vpop.f32.mrb[0].mxu0
  %1657 = vdwg.mxu0
  %v1658 = vadd.f32 %v1458, %v1595
  %v1659 = vadd.f32 %v1459, %v1600
  %v1660 = vadd.f32 %v1460, %v1605
  %v1661 = vadd.f32 %v1461, %v1610
  %v1662 = vadd.f32 %v1462, %v1615
  %v1663 = vadd.f32 %v1463, %v1620
  %v1664 = vadd.f32 %v1464, %v1625
  %v1665 = vadd.f32 %v1465, %v1630
  %v1666 = vadd.f32 %v1466, %v1635
  %v1667 = vadd.f32 %v1467, %v1640
  %v1668 = vadd.f32 %v1468, %v1645
  %v1669 = vadd.f32 %v1469, %v1650
  %v1670 = vadd.f32 %v1470, %v1655
  %v1671 = vld [vmem:[%s0 + $0x20] sm:$0xff]
  %v1672 = vld [vmem:[%s0 + $0x28] sm:$0xff]
  %v1673 = vld [vmem:[%s0 + $0x30] sm:$0xff]
  %v1674 = vld [vmem:[%s0 + $0x38] sm:$0xff]
  %v1675 = vld [vmem:[%s0 + $0x40] sm:$0xff]
  %v1676 = vld [vmem:[%s0 + $0x48] sm:$0xff]
  %v1677 = vld [vmem:[%s0 + $0x50] sm:$0xff]
  %v1678 = vld [vmem:[%s0 + $0x58] sm:$0xff]
  %v1679 = vld [vmem:[%s0 + $0x60] sm:$0xff]
  %v1680 = vld [vmem:[%s0 + $0x68] sm:$0xff]
  %v1681 = vld [vmem:[%s0 + $0x70] sm:$0xff]
  %v1682 = vld [vmem:[%s0 + $0x78] sm:$0xff]
  %v1683 = vld [vmem:[%s0 + $0x80] sm:$0x3]
  %s1684 = scalar_lea.vmem %s2, 32
  %v1685 = vld [vmem:[%s1684] sm:$0x7]
  %v1687 = vsel %vm125, %v1671, 0
  %v1690 = vsel %vm125, %v1672, 0
  %v1693 = vsel %vm125, %v1673, 0
  %v1696 = vsel %vm125, %v1674, 0
  %v1699 = vsel %vm125, %v1675, 0
  %v1702 = vsel %vm125, %v1676, 0
  %v1705 = vsel %vm125, %v1677, 0
  %v1708 = vsel %vm125, %v1678, 0
  %v1711 = vsel %vm125, %v1679, 0
  %v1714 = vsel %vm125, %v1680, 0
  %v1717 = vsel %vm125, %v1681, 0
  %v1720 = vsel %vm125, %v1682, 0
  %v1723 = vsel %vm125, %v1683, 0
  %v1726 = vsel %vm165, %v1685, 0
  %1728 = vmatprep.subr.mxu0 0.0
  %1729 = vmatpush1.msra.mxu0 %v1726
  %1730 = vmatprep.subr.mxu0 0.0
  %1731 = vmatpush1.msra.mxu0 0.0
  %1732 = vmatprep.subr.mxu0 0.0
  %1733 = vmatpush1.msra.mxu0 0.0
  %1734 = vmatprep.subr.mxu0 0.0
  %1735 = vmatpush1.msra.mxu0 0.0
  %1736 = vmatprep.subr.mxu0 0.0
  %1737 = vmatpush1.msra.mxu0 0.0
  %1738 = vmatprep.subr.mxu0 0.0
  %1739 = vmatpush1.msra.mxu0 0.0
  %1740 = vmatprep.subr.mxu0 0.0
  %1741 = vmatpush1.msra.mxu0 0.0
  %1742 = vmatprep.subr.mxu0 0.0
  %1743 = vmatpush1.msra.mxu0 0.0
  %1744 = vmatprep.subr.mxu0 0.0
  %1745 = vmatpush1.msra.mxu0 0.0
  %1746 = vmatprep.subr.mxu0 0.0
  %1747 = vmatpush1.msra.mxu0 0.0
  %1748 = vmatprep.subr.mxu0 0.0
  %1749 = vmatpush1.msra.mxu0 0.0
  %1750 = vmatprep.subr.mxu0 0.0
  %1751 = vmatpush1.msra.mxu0 0.0
  %1752 = vmatprep.subr.mxu0 0.0
  %1753 = vmatpush1.msra.mxu0 0.0
  %1754 = vmatprep.subr.mxu0 0.0
  %1755 = vmatpush1.msra.mxu0 0.0
  %1756 = vmatprep.subr.mxu0 0.0
  %1757 = vmatpush1.msra.mxu0 0.0
  %1758 = vmatprep.subr.mxu0 0.0
  %1759 = vmatpush1.msra.mxu0 0.0
  %1760 = vmatprep.subr.mxu0 0.0
  %1761 = vmatpush1.msra.mxu0 0.0
  %1762 = vmatprep.subr.mxu0 0.0
  %1763 = vmatpush1.msra.mxu0 0.0
  %1764 = vmatprep.subr.mxu0 0.0
  %1765 = vmatpush1.msra.mxu0 0.0
  %1766 = vmatprep.subr.mxu0 0.0
  %1767 = vmatpush1.msra.mxu0 0.0
  %1768 = vmatprep.subr.mxu0 0.0
  %1769 = vmatpush1.msra.mxu0 0.0
  %1770 = vmatprep.subr.mxu0 0.0
  %1771 = vmatpush1.msra.mxu0 0.0
  %1772 = vmatprep.subr.mxu0 0.0
  %1773 = vmatpush1.msra.mxu0 0.0
  %1774 = vmatprep.subr.mxu0 0.0
  %1775 = vmatpush1.msra.mxu0 0.0
  %1776 = vmatprep.subr.mxu0 0.0
  %1777 = vmatpush1.msra.mxu0 0.0
  %1778 = vmatprep.subr.mxu0 0.0
  %1779 = vmatpush1.msra.mxu0 0.0
  %1780 = vmatprep.subr.mxu0 0.0
  %1781 = vmatpush1.msra.mxu0 0.0
  %1782 = vmatprep.subr.mxu0 0.0
  %1783 = vmatpush1.msra.mxu0 0.0
  %1784 = vmatprep.subr.mxu0 0.0
  %1785 = vmatpush1.msra.mxu0 0.0
  %1786 = vmatprep.subr.mxu0 0.0
  %1787 = vmatpush1.msra.mxu0 0.0
  %1788 = vmatprep.subr.mxu0 0.0
  %1789 = vmatpush1.msra.mxu0 0.0
  %1790 = vmatprep.subr.mxu0 0.0
  %1791 = vmatpush1.msra.mxu0 0.0
  %1792 = vmatprep.mubr.f32.mxu0 0.0
  %1793 = vmatmul.mubr.f32.gmra.mrb[0].mxu0 %v1687
  %v1794 = vpop.f32.mrb[0].mxu0
  %v1795 = vadd.f32 0.0, %v1794
  %v1796 = vpop.f32.mrb[0].mxu0
  %1797 = vmatprep.mubr.f32.mxu0 0.0
  %1798 = vmatmul.mubr.f32.gmra.mrb[0].mxu0 %v1690
  %v1799 = vpop.f32.mrb[0].mxu0
  %v1800 = vadd.f32 0.0, %v1799
  %v1801 = vpop.f32.mrb[0].mxu0
  %1802 = vmatprep.mubr.f32.mxu0 0.0
  %1803 = vmatmul.mubr.f32.gmra.mrb[0].mxu0 %v1693
  %v1804 = vpop.f32.mrb[0].mxu0
  %v1805 = vadd.f32 0.0, %v1804
  %v1806 = vpop.f32.mrb[0].mxu0
  %1807 = vmatprep.mubr.f32.mxu0 0.0
  %1808 = vmatmul.mubr.f32.gmra.mrb[0].mxu0 %v1696
  %v1809 = vpop.f32.mrb[0].mxu0
  %v1810 = vadd.f32 0.0, %v1809
  %v1811 = vpop.f32.mrb[0].mxu0
  %1812 = vmatprep.mubr.f32.mxu0 0.0
  %1813 = vmatmul.mubr.f32.gmra.mrb[0].mxu0 %v1699
  %v1814 = vpop.f32.mrb[0].mxu0
  %v1815 = vadd.f32 0.0, %v1814
  %v1816 = vpop.f32.mrb[0].mxu0
  %1817 = vmatprep.mubr.f32.mxu0 0.0
  %1818 = vmatmul.mubr.f32.gmra.mrb[0].mxu0 %v1702
  %v1819 = vpop.f32.mrb[0].mxu0
  %v1820 = vadd.f32 0.0, %v1819
  %v1821 = vpop.f32.mrb[0].mxu0
  %1822 = vmatprep.mubr.f32.mxu0 0.0
  %1823 = vmatmul.mubr.f32.gmra.mrb[0].mxu0 %v1705
  %v1824 = vpop.f32.mrb[0].mxu0
  %v1825 = vadd.f32 0.0, %v1824
  %v1826 = vpop.f32.mrb[0].mxu0
  %1827 = vmatprep.mubr.f32.mxu0 0.0
  %1828 = vmatmul.mubr.f32.gmra.mrb[0].mxu0 %v1708
  %v1829 = vpop.f32.mrb[0].mxu0
  %v1830 = vadd.f32 0.0, %v1829
  %v1831 = vpop.f32.mrb[0].mxu0
  %1832 = vmatprep.mubr.f32.mxu0 0.0
  %1833 = vmatmul.mubr.f32.gmra.mrb[0].mxu0 %v1711
  %v1834 = vpop.f32.mrb[0].mxu0
  %v1835 = vadd.f32 0.0, %v1834
  %v1836 = vpop.f32.mrb[0].mxu0
  %1837 = vmatprep.mubr.f32.mxu0 0.0
  %1838 = vmatmul.mubr.f32.gmra.mrb[0].mxu0 %v1714
  %v1839 = vpop.f32.mrb[0].mxu0
  %v1840 = vadd.f32 0.0, %v1839
  %v1841 = vpop.f32.mrb[0].mxu0
  %1842 = vmatprep.mubr.f32.mxu0 0.0
  %1843 = vmatmul.mubr.f32.gmra.mrb[0].mxu0 %v1717
  %v1844 = vpop.f32.mrb[0].mxu0
  %v1845 = vadd.f32 0.0, %v1844
  %v1846 = vpop.f32.mrb[0].mxu0
  %1847 = vmatprep.mubr.f32.mxu0 0.0
  %1848 = vmatmul.mubr.f32.gmra.mrb[0].mxu0 %v1720
  %v1849 = vpop.f32.mrb[0].mxu0
  %v1850 = vadd.f32 0.0, %v1849
  %v1851 = vpop.f32.mrb[0].mxu0
  %1852 = vmatprep.mubr.f32.mxu0 0.0
  %1853 = vmatmul.mubr.f32.gmra.mrb[0].mxu0 %v1723
  %v1854 = vpop.f32.mrb[0].mxu0
  %v1855 = vadd.f32 0.0, %v1854
  %v1856 = vpop.f32.mrb[0].mxu0
  %1857 = vdwg.mxu0
  %v1858 = vadd.f32 %v1658, %v1795
  %v1859 = vadd.f32 %v1659, %v1800
  %v1860 = vadd.f32 %v1660, %v1805
  %v1861 = vadd.f32 %v1661, %v1810
  %v1862 = vadd.f32 %v1662, %v1815
  %v1863 = vadd.f32 %v1663, %v1820
  %v1864 = vadd.f32 %v1664, %v1825
  %v1865 = vadd.f32 %v1665, %v1830
  %v1866 = vadd.f32 %v1666, %v1835
  %v1867 = vadd.f32 %v1667, %v1840
  %v1868 = vadd.f32 %v1668, %v1845
  %v1869 = vadd.f32 %v1669, %v1850
  %v1870 = vadd.f32 %v1670, %v1855
  %v1871 = vld [vmem:[%s3] sm:$0x1]
  %v1873 = vlaneseq
  %v1874 = vshrl.u32 %v1873, 7
  %v1875 = vsub.s32 0, %v1874
  %v1876 = vrot.slane %v1871, %v1875
  %v1878 = vadd.f32 %v1858, %v1876
  %v1879 = vadd.f32 %v1859, %v1876
  %v1880 = vadd.f32 %v1860, %v1876
  %v1881 = vadd.f32 %v1861, %v1876
  %v1882 = vadd.f32 %v1862, %v1876
  %v1883 = vadd.f32 %v1863, %v1876
  %v1884 = vadd.f32 %v1864, %v1876
  %v1885 = vadd.f32 %v1865, %v1876
  %v1886 = vadd.f32 %v1866, %v1876
  %v1887 = vadd.f32 %v1867, %v1876
  %v1888 = vadd.f32 %v1868, %v1876
  %v1889 = vadd.f32 %v1869, %v1876
  %v1890 = vadd.f32 %v1870, %v1876
  %v1891 = vmax.f32 %v1878, 0.0
  %v1892 = vmax.f32 %v1879, 0.0
  %v1893 = vmax.f32 %v1880, 0.0
  %v1894 = vmax.f32 %v1881, 0.0
  %v1895 = vmax.f32 %v1882, 0.0
  %v1896 = vmax.f32 %v1883, 0.0
  %v1897 = vmax.f32 %v1884, 0.0
  %v1898 = vmax.f32 %v1885, 0.0
  %v1899 = vmax.f32 %v1886, 0.0
  %v1900 = vmax.f32 %v1887, 0.0
  %v1901 = vmax.f32 %v1888, 0.0
  %v1902 = vmax.f32 %v1889, 0.0
  %v1903 = vmax.f32 %v1890, 0.0
  %1904 = vst.msk [vmem:[#allocation2] sm:$0xff] %vm77, %v1891
  %1905 = vst.msk [vmem:[#allocation2 + $0x8] sm:$0xff] %vm77, %v1892
  %1906 = vst.msk [vmem:[#allocation2 + $0x10] sm:$0xff] %vm77, %v1893
  %1907 = vst.msk [vmem:[#allocation2 + $0x18] sm:$0xff] %vm77, %v1894
  %1908 = vst.msk [vmem:[#allocation2 + $0x20] sm:$0xff] %vm77, %v1895
  %1909 = vst.msk [vmem:[#allocation2 + $0x28] sm:$0xff] %vm77, %v1896
  %1910 = vst.msk [vmem:[#allocation2 + $0x30] sm:$0xff] %vm77, %v1897
  %1911 = vst.msk [vmem:[#allocation2 + $0x38] sm:$0xff] %vm77, %v1898
  %1912 = vst.msk [vmem:[#allocation2 + $0x40] sm:$0xff] %vm77, %v1899
  %1913 = vst.msk [vmem:[#allocation2 + $0x48] sm:$0xff] %vm77, %v1900
  %1914 = vst.msk [vmem:[#allocation2 + $0x50] sm:$0xff] %vm77, %v1901
  %1915 = vst.msk [vmem:[#allocation2 + $0x58] sm:$0xff] %vm77, %v1902
  %1916 = vst.msk [vmem:[#allocation2 + $0x60] sm:$0x3] %vm94, %v1903
  %vm1917 = vcmask 261120
  %1918 = vst.msk [vmem:[#allocation3] sm:$0xff] %vm1917, 0.0
  %1919 = vst.msk [vmem:[#allocation3 + $0x8] sm:$0xff] %vm1917, 0.0
  %1920 = vst.msk [vmem:[#allocation3 + $0x10] sm:$0xff] %vm1917, 0.0
  %1921 = vst.msk [vmem:[#allocation3 + $0x18] sm:$0xff] %vm1917, 0.0
  %1922 = vst.msk [vmem:[#allocation3 + $0x20] sm:$0xff] %vm1917, 0.0
  %1923 = vst.msk [vmem:[#allocation3 + $0x28] sm:$0xff] %vm1917, 0.0
  %1924 = vst.msk [vmem:[#allocation3 + $0x30] sm:$0xff] %vm1917, 0.0
  %1925 = vst.msk [vmem:[#allocation3 + $0x38] sm:$0xff] %vm1917, 0.0
  %1926 = vst.msk [vmem:[#allocation3 + $0x40] sm:$0xff] %vm1917, 0.0
  %1927 = vst.msk [vmem:[#allocation3 + $0x48] sm:$0xff] %vm1917, 0.0
  %1928 = vst.msk [vmem:[#allocation3 + $0x50] sm:$0xff] %vm1917, 0.0
  %1929 = vst.msk [vmem:[#allocation3 + $0x58] sm:$0xff] %vm1917, 0.0
  %1930 = vst.msk [vmem:[#allocation3 + $0x60] sm:$0xff] %vm1917, 0.0
  %1931 = vst.msk [vmem:[#allocation3 + $0x68] sm:$0xff] %vm1917, 0.0
  %1932 = vst.msk [vmem:[#allocation3 + $0x70] sm:$0xff] %vm1917, 0.0
  %1933 = vst.msk [vmem:[#allocation3 + $0x78] sm:$0xff] %vm1917, 0.0
  %vm1934 = vcmask 254976
  %1935 = vst.msk [vmem:[#allocation3 + $0x80] sm:$0x3] %vm1934, 0.0
  %v1936 = vld [vmem:[#allocation2] sm:$0xff]
  %v1937 = vld [vmem:[#allocation2 + $0x8] sm:$0xff]
  %v1938 = vld [vmem:[#allocation2 + $0x10] sm:$0xff]
  %v1939 = vld [vmem:[#allocation2 + $0x18] sm:$0xff]
  %v1940 = vld [vmem:[#allocation2 + $0x20] sm:$0xff]
  %v1941 = vld [vmem:[#allocation2 + $0x28] sm:$0xff]
  %v1942 = vld [vmem:[#allocation2 + $0x30] sm:$0xff]
  %v1943 = vld [vmem:[#allocation2 + $0x38] sm:$0xff]
  %v1944 = vld [vmem:[#allocation2 + $0x40] sm:$0xff]
  %v1945 = vld [vmem:[#allocation2 + $0x48] sm:$0xff]
  %v1946 = vld [vmem:[#allocation2 + $0x50] sm:$0xff]
  %v1947 = vld [vmem:[#allocation2 + $0x58] sm:$0xff]
  %v1948 = vld [vmem:[#allocation2 + $0x60] sm:$0x3]
  %v1949 = vld [vmem:[%s4] sm:$0xff]
  %v1950 = vld [vmem:[%s4 + $0x8] sm:$0xff]
  %v1951 = vld [vmem:[#allocation2 + $0x2] sm:$0xff]
  %v1952 = vld [vmem:[#allocation2 + $0xa] sm:$0xff]
  %v1953 = vld [vmem:[#allocation2 + $0x12] sm:$0xff]
  %v1954 = vld [vmem:[#allocation2 + $0x1a] sm:$0xff]
  %v1955 = vld [vmem:[#allocation2 + $0x22] sm:$0xff]
  %v1956 = vld [vmem:[#allocation2 + $0x2a] sm:$0xff]
  %v1957 = vld [vmem:[#allocation2 + $0x32] sm:$0xff]
  %v1958 = vld [vmem:[#allocation2 + $0x3a] sm:$0xff]
  %v1959 = vld [vmem:[#allocation2 + $0x42] sm:$0xff]
  %v1960 = vld [vmem:[#allocation2 + $0x4a] sm:$0xff]
  %v1961 = vld [vmem:[#allocation2 + $0x52] sm:$0xff]
  %v1962 = vld [vmem:[#allocation2 + $0x5a] sm:$0xff]
  %v1963 = vld [vmem:[#allocation2 + $0x62] sm:$0x3]
  %s1964 = scalar_lea.vmem %s4, 16
  %v1965 = vld [vmem:[%s1964] sm:$0xff]
  %v1966 = vld [vmem:[%s1964 + $0x8] sm:$0xff]
  %v1968 = vsel %vm77, %v1951, 0
  %v1971 = vsel %vm77, %v1952, 0
  %v1974 = vsel %vm77, %v1953, 0
  %v1977 = vsel %vm77, %v1954, 0
  %v1980 = vsel %vm77, %v1955, 0
  %v1983 = vsel %vm77, %v1956, 0
  %v1986 = vsel %vm77, %v1957, 0
  %v1989 = vsel %vm77, %v1958, 0
  %v1992 = vsel %vm77, %v1959, 0
  %v1995 = vsel %vm77, %v1960, 0
  %v1998 = vsel %vm77, %v1961, 0
  %v2001 = vsel %vm77, %v1962, 0
  %v2004 = vsel %vm77, %v1963, 0
  %2006 = vmatprep.subr.mxu0 0.0
  %2007 = vmatpush1.msra.mxu0 %v1965
  %2008 = vmatprep.subr.mxu0 0.0
  %2009 = vmatpush1.msra.mxu0 %v1966
  %2010 = vmatprep.subr.mxu0 0.0
  %2011 = vmatpush1.msra.mxu0 0.0
  %2012 = vmatprep.subr.mxu0 0.0
  %2013 = vmatpush1.msra.mxu0 0.0
  %2014 = vmatprep.subr.mxu0 0.0
  %2015 = vmatpush1.msra.mxu0 0.0
  %2016 = vmatprep.subr.mxu0 0.0
  %2017 = vmatpush1.msra.mxu0 0.0
  %2018 = vmatprep.subr.mxu0 0.0
  %2019 = vmatpush1.msra.mxu0 0.0
  %2020 = vmatprep.subr.mxu0 0.0
  %2021 = vmatpush1.msra.mxu0 0.0
  %2022 = vmatprep.subr.mxu0 0.0
  %2023 = vmatpush1.msra.mxu0 0.0
  %2024 = vmatprep.subr.mxu0 0.0
  %2025 = vmatpush1.msra.mxu0 0.0
  %2026 = vmatprep.subr.mxu0 0.0
  %2027 = vmatpush1.msra.mxu0 0.0
  %2028 = vmatprep.subr.mxu0 0.0
  %2029 = vmatpush1.msra.mxu0 0.0
  %2030 = vmatprep.subr.mxu0 0.0
  %2031 = vmatpush1.msra.mxu0 0.0
  %2032 = vmatprep.subr.mxu0 0.0
  %2033 = vmatpush1.msra.mxu0 0.0
  %2034 = vmatprep.subr.mxu0 0.0
  %2035 = vmatpush1.msra.mxu0 0.0
  %2036 = vmatprep.subr.mxu0 0.0
  %2037 = vmatpush1.msra.mxu0 0.0
  %2038 = vmatprep.subr.mxu0 0.0
  %2039 = vmatpush1.msra.mxu0 0.0
  %2040 = vmatprep.subr.mxu0 0.0
  %2041 = vmatpush1.msra.mxu0 0.0
  %2042 = vmatprep.subr.mxu0 0.0
  %2043 = vmatpush1.msra.mxu0 0.0
  %2044 = vmatprep.subr.mxu0 0.0
  %2045 = vmatpush1.msra.mxu0 0.0
  %2046 = vmatprep.subr.mxu0 0.0
  %2047 = vmatpush1.msra.mxu0 0.0
  %2048 = vmatprep.subr.mxu0 0.0
  %2049 = vmatpush1.msra.mxu0 0.0
  %2050 = vmatprep.subr.mxu0 0.0
  %2051 = vmatpush1.msra.mxu0 0.0
  %2052 = vmatprep.subr.mxu0 0.0
  %2053 = vmatpush1.msra.mxu0 0.0
  %2054 = vmatprep.subr.mxu0 0.0
  %2055 = vmatpush1.msra.mxu0 0.0
  %2056 = vmatprep.subr.mxu0 0.0
  %2057 = vmatpush1.msra.mxu0 0.0
  %2058 = vmatprep.subr.mxu0 0.0
  %2059 = vmatpush1.msra.mxu0 0.0
  %2060 = vmatprep.subr.mxu0 0.0
  %2061 = vmatpush1.msra.mxu0 0.0
  %2062 = vmatprep.subr.mxu0 0.0
  %2063 = vmatpush1.msra.mxu0 0.0
  %2064 = vmatprep.subr.mxu0 0.0
  %2065 = vmatpush1.msra.mxu0 0.0
  %2066 = vmatprep.subr.mxu0 0.0
  %2067 = vmatpush1.msra.mxu0 0.0
  %2068 = vmatprep.subr.mxu0 0.0
  %2069 = vmatpush1.msra.mxu0 0.0
  %2070 = vmatprep.mubr.f32.mxu0 0.0
  %2071 = vmatmul.mubr.f32.gmra.mrb[0].mxu0 %v1968
  %v2072 = vpop.f32.mrb[0].mxu0
  %v2073 = vadd.f32 0.0, %v2072
  %v2074 = vpop.f32.mrb[0].mxu0
  %2075 = vmatprep.mubr.f32.mxu0 0.0
  %2076 = vmatmul.mubr.f32.gmra.mrb[0].mxu0 %v1971
  %v2077 = vpop.f32.mrb[0].mxu0
  %v2078 = vadd.f32 0.0, %v2077
  %v2079 = vpop.f32.mrb[0].mxu0
  %2080 = vmatprep.mubr.f32.mxu0 0.0
  %2081 = vmatmul.mubr.f32.gmra.mrb[0].mxu0 %v1974
  %v2082 = vpop.f32.mrb[0].mxu0
  %v2083 = vadd.f32 0.0, %v2082
  %v2084 = vpop.f32.mrb[0].mxu0
  %2085 = vmatprep.mubr.f32.mxu0 0.0
  %2086 = vmatmul.mubr.f32.gmra.mrb[0].mxu0 %v1977
  %v2087 = vpop.f32.mrb[0].mxu0
  %v2088 = vadd.f32 0.0, %v2087
  %v2089 = vpop.f32.mrb[0].mxu0
  %2090 = vmatprep.mubr.f32.mxu0 0.0
  %2091 = vmatmul.mubr.f32.gmra.mrb[0].mxu0 %v1980
  %v2092 = vpop.f32.mrb[0].mxu0
  %v2093 = vadd.f32 0.0, %v2092
  %v2094 = vpop.f32.mrb[0].mxu0
  %2095 = vmatprep.mubr.f32.mxu0 0.0
  %2096 = vmatmul.mubr.f32.gmra.mrb[0].mxu0 %v1983
  %v2097 = vpop.f32.mrb[0].mxu0
  %v2098 = vadd.f32 0.0, %v2097
  %v2099 = vpop.f32.mrb[0].mxu0
  %2100 = vmatprep.mubr.f32.mxu0 0.0
  %2101 = vmatmul.mubr.f32.gmra.mrb[0].mxu0 %v1986
  %v2102 = vpop.f32.mrb[0].mxu0
  %v2103 = vadd.f32 0.0, %v2102
  %v2104 = vpop.f32.mrb[0].mxu0
  %2105 = vmatprep.mubr.f32.mxu0 0.0
  %2106 = vmatmul.mubr.f32.gmra.mrb[0].mxu0 %v1989
  %v2107 = vpop.f32.mrb[0].mxu0
  %v2108 = vadd.f32 0.0, %v2107
  %v2109 = vpop.f32.mrb[0].mxu0
  %2110 = vmatprep.mubr.f32.mxu0 0.0
  %2111 = vmatmul.mubr.f32.gmra.mrb[0].mxu0 %v1992
  %v2112 = vpop.f32.mrb[0].mxu0
  %v2113 = vadd.f32 0.0, %v2112
  %v2114 = vpop.f32.mrb[0].mxu0
  %2115 = vmatprep.mubr.f32.mxu0 0.0
  %2116 = vmatmul.mubr.f32.gmra.mrb[0].mxu0 %v1995
  %v2117 = vpop.f32.mrb[0].mxu0
  %v2118 = vadd.f32 0.0, %v2117
  %v2119 = vpop.f32.mrb[0].mxu0
  %2120 = vmatprep.mubr.f32.mxu0 0.0
  %2121 = vmatmul.mubr.f32.gmra.mrb[0].mxu0 %v1998
  %v2122 = vpop.f32.mrb[0].mxu0
  %v2123 = vadd.f32 0.0, %v2122
  %v2124 = vpop.f32.mrb[0].mxu0
  %2125 = vmatprep.mubr.f32.mxu0 0.0
  %2126 = vmatmul.mubr.f32.gmra.mrb[0].mxu0 %v2001
  %v2127 = vpop.f32.mrb[0].mxu0
  %v2128 = vadd.f32 0.0, %v2127
  %v2129 = vpop.f32.mrb[0].mxu0
  %2130 = vmatprep.mubr.f32.mxu0 0.0
  %2131 = vmatmul.mubr.f32.gmra.mrb[0].mxu0 %v2004
  %v2132 = vpop.f32.mrb[0].mxu0
  %v2133 = vadd.f32 0.0, %v2132
  %v2134 = vpop.f32.mrb[0].mxu0
  %2135 = vdwg.mxu0
  %v2137 = vsel %vm77, %v1936, 0
  %v2140 = vsel %vm77, %v1937, 0
  %v2143 = vsel %vm77, %v1938, 0
  %v2146 = vsel %vm77, %v1939, 0
  %v2149 = vsel %vm77, %v1940, 0
  %v2152 = vsel %vm77, %v1941, 0
  %v2155 = vsel %vm77, %v1942, 0
  %v2158 = vsel %vm77, %v1943, 0
  %v2161 = vsel %vm77, %v1944, 0
  %v2164 = vsel %vm77, %v1945, 0
  %v2167 = vsel %vm77, %v1946, 0
  %v2170 = vsel %vm77, %v1947, 0
  %v2173 = vsel %vm77, %v1948, 0
  %2175 = vmatprep.subr.mxu0 0.0
  %2176 = vmatpush1.msra.mxu0 %v1949
  %2177 = vmatprep.subr.mxu0 0.0
  %2178 = vmatpush1.msra.mxu0 %v1950
  %2179 = vmatprep.subr.mxu0 0.0
  %2180 = vmatpush1.msra.mxu0 0.0
  %2181 = vmatprep.subr.mxu0 0.0
  %2182 = vmatpush1.msra.mxu0 0.0
  %2183 = vmatprep.subr.mxu0 0.0
  %2184 = vmatpush1.msra.mxu0 0.0
  %2185 = vmatprep.subr.mxu0 0.0
  %2186 = vmatpush1.msra.mxu0 0.0
  %2187 = vmatprep.subr.mxu0 0.0
  %2188 = vmatpush1.msra.mxu0 0.0
  %2189 = vmatprep.subr.mxu0 0.0
  %2190 = vmatpush1.msra.mxu0 0.0
  %2191 = vmatprep.subr.mxu0 0.0
  %2192 = vmatpush1.msra.mxu0 0.0
  %2193 = vmatprep.subr.mxu0 0.0
  %2194 = vmatpush1.msra.mxu0 0.0
  %2195 = vmatprep.subr.mxu0 0.0
  %2196 = vmatpush1.msra.mxu0 0.0
  %2197 = vmatprep.subr.mxu0 0.0
  %2198 = vmatpush1.msra.mxu0 0.0
  %2199 = vmatprep.subr.mxu0 0.0
  %2200 = vmatpush1.msra.mxu0 0.0
  %2201 = vmatprep.subr.mxu0 0.0
  %2202 = vmatpush1.msra.mxu0 0.0
  %2203 = vmatprep.subr.mxu0 0.0
  %2204 = vmatpush1.msra.mxu0 0.0
  %2205 = vmatprep.subr.mxu0 0.0
  %2206 = vmatpush1.msra.mxu0 0.0
  %2207 = vmatprep.subr.mxu0 0.0
  %2208 = vmatpush1.msra.mxu0 0.0
  %2209 = vmatprep.subr.mxu0 0.0
  %2210 = vmatpush1.msra.mxu0 0.0
  %2211 = vmatprep.subr.mxu0 0.0
  %2212 = vmatpush1.msra.mxu0 0.0
  %2213 = vmatprep.subr.mxu0 0.0
  %2214 = vmatpush1.msra.mxu0 0.0
  %2215 = vmatprep.subr.mxu0 0.0
  %2216 = vmatpush1.msra.mxu0 0.0
  %2217 = vmatprep.subr.mxu0 0.0
  %2218 = vmatpush1.msra.mxu0 0.0
  %2219 = vmatprep.subr.mxu0 0.0
  %2220 = vmatpush1.msra.mxu0 0.0
  %2221 = vmatprep.subr.mxu0 0.0
  %2222 = vmatpush1.msra.mxu0 0.0
  %2223 = vmatprep.subr.mxu0 0.0
  %2224 = vmatpush1.msra.mxu0 0.0
  %2225 = vmatprep.subr.mxu0 0.0
  %2226 = vmatpush1.msra.mxu0 0.0
  %2227 = vmatprep.subr.mxu0 0.0
  %2228 = vmatpush1.msra.mxu0 0.0
  %2229 = vmatprep.subr.mxu0 0.0
  %2230 = vmatpush1.msra.mxu0 0.0
  %2231 = vmatprep.subr.mxu0 0.0
  %2232 = vmatpush1.msra.mxu0 0.0
  %2233 = vmatprep.subr.mxu0 0.0
  %2234 = vmatpush1.msra.mxu0 0.0
  %2235 = vmatprep.subr.mxu0 0.0
  %2236 = vmatpush1.msra.mxu0 0.0
  %2237 = vmatprep.subr.mxu0 0.0
  %2238 = vmatpush1.msra.mxu0 0.0
  %2239 = vmatprep.mubr.f32.mxu0 0.0
  %2240 = vmatmul.mubr.f32.gmra.mrb[0].mxu0 %v2137
  %v2241 = vpop.f32.mrb[0].mxu0
  %v2242 = vadd.f32 %v2073, %v2241
  %v2243 = vpop.f32.mrb[0].mxu0
  %2244 = vmatprep.mubr.f32.mxu0 0.0
  %2245 = vmatmul.mubr.f32.gmra.mrb[0].mxu0 %v2140
  %v2246 = vpop.f32.mrb[0].mxu0
  %v2247 = vadd.f32 %v2078, %v2246
  %v2248 = vpop.f32.mrb[0].mxu0
  %2249 = vmatprep.mubr.f32.mxu0 0.0
  %2250 = vmatmul.mubr.f32.gmra.mrb[0].mxu0 %v2143
  %v2251 = vpop.f32.mrb[0].mxu0
  %v2252 = vadd.f32 %v2083, %v2251
  %v2253 = vpop.f32.mrb[0].mxu0
  %2254 = vmatprep.mubr.f32.mxu0 0.0
  %2255 = vmatmul.mubr.f32.gmra.mrb[0].mxu0 %v2146
  %v2256 = vpop.f32.mrb[0].mxu0
  %v2257 = vadd.f32 %v2088, %v2256
  %v2258 = vpop.f32.mrb[0].mxu0
  %2259 = vmatprep.mubr.f32.mxu0 0.0
  %2260 = vmatmul.mubr.f32.gmra.mrb[0].mxu0 %v2149
  %v2261 = vpop.f32.mrb[0].mxu0
  %v2262 = vadd.f32 %v2093, %v2261
  %v2263 = vpop.f32.mrb[0].mxu0
  %2264 = vmatprep.mubr.f32.mxu0 0.0
  %2265 = vmatmul.mubr.f32.gmra.mrb[0].mxu0 %v2152
  %v2266 = vpop.f32.mrb[0].mxu0
  %v2267 = vadd.f32 %v2098, %v2266
  %v2268 = vpop.f32.mrb[0].mxu0
  %2269 = vmatprep.mubr.f32.mxu0 0.0
  %2270 = vmatmul.mubr.f32.gmra.mrb[0].mxu0 %v2155
  %v2271 = vpop.f32.mrb[0].mxu0
  %v2272 = vadd.f32 %v2103, %v2271
  %v2273 = vpop.f32.mrb[0].mxu0
  %2274 = vmatprep.mubr.f32.mxu0 0.0
  %2275 = vmatmul.mubr.f32.gmra.mrb[0].mxu0 %v2158
  %v2276 = vpop.f32.mrb[0].mxu0
  %v2277 = vadd.f32 %v2108, %v2276
  %v2278 = vpop.f32.mrb[0].mxu0
  %2279 = vmatprep.mubr.f32.mxu0 0.0
  %2280 = vmatmul.mubr.f32.gmra.mrb[0].mxu0 %v2161
  %v2281 = vpop.f32.mrb[0].mxu0
  %v2282 = vadd.f32 %v2113, %v2281
  %v2283 = vpop.f32.mrb[0].mxu0
  %2284 = vmatprep.mubr.f32.mxu0 0.0
  %2285 = vmatmul.mubr.f32.gmra.mrb[0].mxu0 %v2164
  %v2286 = vpop.f32.mrb[0].mxu0
  %v2287 = vadd.f32 %v2118, %v2286
  %v2288 = vpop.f32.mrb[0].mxu0
  %2289 = vmatprep.mubr.f32.mxu0 0.0
  %2290 = vmatmul.mubr.f32.gmra.mrb[0].mxu0 %v2167
  %v2291 = vpop.f32.mrb[0].mxu0
  %v2292 = vadd.f32 %v2123, %v2291
  %v2293 = vpop.f32.mrb[0].mxu0
  %2294 = vmatprep.mubr.f32.mxu0 0.0
  %2295 = vmatmul.mubr.f32.gmra.mrb[0].mxu0 %v2170
  %v2296 = vpop.f32.mrb[0].mxu0
  %v2297 = vadd.f32 %v2128, %v2296
  %v2298 = vpop.f32.mrb[0].mxu0
  %2299 = vmatprep.mubr.f32.mxu0 0.0
  %2300 = vmatmul.mubr.f32.gmra.mrb[0].mxu0 %v2173
  %v2301 = vpop.f32.mrb[0].mxu0
  %v2302 = vadd.f32 %v2133, %v2301
  %v2303 = vpop.f32.mrb[0].mxu0
  %2304 = vdwg.mxu0
  %v2305 = vld [vmem:[#allocation2 + $0x4] sm:$0xff]
  %v2306 = vld [vmem:[#allocation2 + $0xc] sm:$0xff]
  %v2307 = vld [vmem:[#allocation2 + $0x14] sm:$0xff]
  %v2308 = vld [vmem:[#allocation2 + $0x1c] sm:$0xff]
  %v2309 = vld [vmem:[#allocation2 + $0x24] sm:$0xff]
  %v2310 = vld [vmem:[#allocation2 + $0x2c] sm:$0xff]
  %v2311 = vld [vmem:[#allocation2 + $0x34] sm:$0xff]
  %v2312 = vld [vmem:[#allocation2 + $0x3c] sm:$0xff]
  %v2313 = vld [vmem:[#allocation2 + $0x44] sm:$0xff]
  %v2314 = vld [vmem:[#allocation2 + $0x4c] sm:$0xff]
  %v2315 = vld [vmem:[#allocation2 + $0x54] sm:$0xff]
  %v2316 = vld [vmem:[#allocation2 + $0x5c] sm:$0xff]
  %v2317 = vld [vmem:[#allocation2 + $0x64] sm:$0x3]
  %s2318 = scalar_lea.vmem %s4, 32
  %v2319 = vld [vmem:[%s2318] sm:$0xff]
  %v2320 = vld [vmem:[%s2318 + $0x8] sm:$0xff]
  %v2322 = vsel %vm77, %v2305, 0
  %v2325 = vsel %vm77, %v2306, 0
  %v2328 = vsel %vm77, %v2307, 0
  %v2331 = vsel %vm77, %v2308, 0
  %v2334 = vsel %vm77, %v2309, 0
  %v2337 = vsel %vm77, %v2310, 0
  %v2340 = vsel %vm77, %v2311, 0
  %v2343 = vsel %vm77, %v2312, 0
  %v2346 = vsel %vm77, %v2313, 0
  %v2349 = vsel %vm77, %v2314, 0
  %v2352 = vsel %vm77, %v2315, 0
  %v2355 = vsel %vm77, %v2316, 0
  %v2358 = vsel %vm77, %v2317, 0
  %2360 = vmatprep.subr.mxu0 0.0
  %2361 = vmatpush1.msra.mxu0 %v2319
  %2362 = vmatprep.subr.mxu0 0.0
  %2363 = vmatpush1.msra.mxu0 %v2320
  %2364 = vmatprep.subr.mxu0 0.0
  %2365 = vmatpush1.msra.mxu0 0.0
  %2366 = vmatprep.subr.mxu0 0.0
  %2367 = vmatpush1.msra.mxu0 0.0
  %2368 = vmatprep.subr.mxu0 0.0
  %2369 = vmatpush1.msra.mxu0 0.0
  %2370 = vmatprep.subr.mxu0 0.0
  %2371 = vmatpush1.msra.mxu0 0.0
  %2372 = vmatprep.subr.mxu0 0.0
  %2373 = vmatpush1.msra.mxu0 0.0
  %2374 = vmatprep.subr.mxu0 0.0
  %2375 = vmatpush1.msra.mxu0 0.0
  %2376 = vmatprep.subr.mxu0 0.0
  %2377 = vmatpush1.msra.mxu0 0.0
  %2378 = vmatprep.subr.mxu0 0.0
  %2379 = vmatpush1.msra.mxu0 0.0
  %2380 = vmatprep.subr.mxu0 0.0
  %2381 = vmatpush1.msra.mxu0 0.0
  %2382 = vmatprep.subr.mxu0 0.0
  %2383 = vmatpush1.msra.mxu0 0.0
  %2384 = vmatprep.subr.mxu0 0.0
  %2385 = vmatpush1.msra.mxu0 0.0
  %2386 = vmatprep.subr.mxu0 0.0
  %2387 = vmatpush1.msra.mxu0 0.0
  %2388 = vmatprep.subr.mxu0 0.0
  %2389 = vmatpush1.msra.mxu0 0.0
  %2390 = vmatprep.subr.mxu0 0.0
  %2391 = vmatpush1.msra.mxu0 0.0
  %2392 = vmatprep.subr.mxu0 0.0
  %2393 = vmatpush1.msra.mxu0 0.0
  %2394 = vmatprep.subr.mxu0 0.0
  %2395 = vmatpush1.msra.mxu0 0.0
  %2396 = vmatprep.subr.mxu0 0.0
  %2397 = vmatpush1.msra.mxu0 0.0
  %2398 = vmatprep.subr.mxu0 0.0
  %2399 = vmatpush1.msra.mxu0 0.0
  %2400 = vmatprep.subr.mxu0 0.0
  %2401 = vmatpush1.msra.mxu0 0.0
  %2402 = vmatprep.subr.mxu0 0.0
  %2403 = vmatpush1.msra.mxu0 0.0
  %2404 = vmatprep.subr.mxu0 0.0
  %2405 = vmatpush1.msra.mxu0 0.0
  %2406 = vmatprep.subr.mxu0 0.0
  %2407 = vmatpush1.msra.mxu0 0.0
  %2408 = vmatprep.subr.mxu0 0.0
  %2409 = vmatpush1.msra.mxu0 0.0
  %2410 = vmatprep.subr.mxu0 0.0
  %2411 = vmatpush1.msra.mxu0 0.0
  %2412 = vmatprep.subr.mxu0 0.0
  %2413 = vmatpush1.msra.mxu0 0.0
  %2414 = vmatprep.subr.mxu0 0.0
  %2415 = vmatpush1.msra.mxu0 0.0
  %2416 = vmatprep.subr.mxu0 0.0
  %2417 = vmatpush1.msra.mxu0 0.0
  %2418 = vmatprep.subr.mxu0 0.0
  %2419 = vmatpush1.msra.mxu0 0.0
  %2420 = vmatprep.subr.mxu0 0.0
  %2421 = vmatpush1.msra.mxu0 0.0
  %2422 = vmatprep.subr.mxu0 0.0
  %2423 = vmatpush1.msra.mxu0 0.0
  %2424 = vmatprep.mubr.f32.mxu0 0.0
  %2425 = vmatmul.mubr.f32.gmra.mrb[0].mxu0 %v2322
  %v2426 = vpop.f32.mrb[0].mxu0
  %v2427 = vadd.f32 0.0, %v2426
  %v2428 = vpop.f32.mrb[0].mxu0
  %2429 = vmatprep.mubr.f32.mxu0 0.0
  %2430 = vmatmul.mubr.f32.gmra.mrb[0].mxu0 %v2325
  %v2431 = vpop.f32.mrb[0].mxu0
  %v2432 = vadd.f32 0.0, %v2431
  %v2433 = vpop.f32.mrb[0].mxu0
  %2434 = vmatprep.mubr.f32.mxu0 0.0
  %2435 = vmatmul.mubr.f32.gmra.mrb[0].mxu0 %v2328
  %v2436 = vpop.f32.mrb[0].mxu0
  %v2437 = vadd.f32 0.0, %v2436
  %v2438 = vpop.f32.mrb[0].mxu0
  %2439 = vmatprep.mubr.f32.mxu0 0.0
  %2440 = vmatmul.mubr.f32.gmra.mrb[0].mxu0 %v2331
  %v2441 = vpop.f32.mrb[0].mxu0
  %v2442 = vadd.f32 0.0, %v2441
  %v2443 = vpop.f32.mrb[0].mxu0
  %2444 = vmatprep.mubr.f32.mxu0 0.0
  %2445 = vmatmul.mubr.f32.gmra.mrb[0].mxu0 %v2334
  %v2446 = vpop.f32.mrb[0].mxu0
  %v2447 = vadd.f32 0.0, %v2446
  %v2448 = vpop.f32.mrb[0].mxu0
  %2449 = vmatprep.mubr.f32.mxu0 0.0
  %2450 = vmatmul.mubr.f32.gmra.mrb[0].mxu0 %v2337
  %v2451 = vpop.f32.mrb[0].mxu0
  %v2452 = vadd.f32 0.0, %v2451
  %v2453 = vpop.f32.mrb[0].mxu0
  %2454 = vmatprep.mubr.f32.mxu0 0.0
  %2455 = vmatmul.mubr.f32.gmra.mrb[0].mxu0 %v2340
  %v2456 = vpop.f32.mrb[0].mxu0
  %v2457 = vadd.f32 0.0, %v2456
  %v2458 = vpop.f32.mrb[0].mxu0
  %2459 = vmatprep.mubr.f32.mxu0 0.0
  %2460 = vmatmul.mubr.f32.gmra.mrb[0].mxu0 %v2343
  %v2461 = vpop.f32.mrb[0].mxu0
  %v2462 = vadd.f32 0.0, %v2461
  %v2463 = vpop.f32.mrb[0].mxu0
  %2464 = vmatprep.mubr.f32.mxu0 0.0
  %2465 = vmatmul.mubr.f32.gmra.mrb[0].mxu0 %v2346
  %v2466 = vpop.f32.mrb[0].mxu0
  %v2467 = vadd.f32 0.0, %v2466
  %v2468 = vpop.f32.mrb[0].mxu0
  %2469 = vmatprep.mubr.f32.mxu0 0.0
  %2470 = vmatmul.mubr.f32.gmra.mrb[0].mxu0 %v2349
  %v2471 = vpop.f32.mrb[0].mxu0
  %v2472 = vadd.f32 0.0, %v2471
  %v2473 = vpop.f32.mrb[0].mxu0
  %2474 = vmatprep.mubr.f32.mxu0 0.0
  %2475 = vmatmul.mubr.f32.gmra.mrb[0].mxu0 %v2352
  %v2476 = vpop.f32.mrb[0].mxu0
  %v2477 = vadd.f32 0.0, %v2476
  %v2478 = vpop.f32.mrb[0].mxu0
  %2479 = vmatprep.mubr.f32.mxu0 0.0
  %2480 = vmatmul.mubr.f32.gmra.mrb[0].mxu0 %v2355
  %v2481 = vpop.f32.mrb[0].mxu0
  %v2482 = vadd.f32 0.0, %v2481
  %v2483 = vpop.f32.mrb[0].mxu0
  %2484 = vmatprep.mubr.f32.mxu0 0.0
  %2485 = vmatmul.mubr.f32.gmra.mrb[0].mxu0 %v2358
  %v2486 = vpop.f32.mrb[0].mxu0
  %v2487 = vadd.f32 0.0, %v2486
  %v2488 = vpop.f32.mrb[0].mxu0
  %2489 = vdwg.mxu0
  %v2490 = vadd.f32 %v2242, %v2427
  %v2491 = vadd.f32 %v2247, %v2432
  %v2492 = vadd.f32 %v2252, %v2437
  %v2493 = vadd.f32 %v2257, %v2442
  %v2494 = vadd.f32 %v2262, %v2447
  %v2495 = vadd.f32 %v2267, %v2452
  %v2496 = vadd.f32 %v2272, %v2457
  %v2497 = vadd.f32 %v2277, %v2462
  %v2498 = vadd.f32 %v2282, %v2467
  %v2499 = vadd.f32 %v2287, %v2472
  %v2500 = vadd.f32 %v2292, %v2477
  %v2501 = vadd.f32 %v2297, %v2482
  %v2502 = vadd.f32 %v2302, %v2487
  %v2503 = vld [vmem:[#allocation2 + $0xe] sm:$0xff]
  %v2504 = vld [vmem:[#allocation2 + $0x16] sm:$0xff]
  %v2505 = vld [vmem:[#allocation2 + $0x1e] sm:$0xff]
  %v2506 = vld [vmem:[#allocation2 + $0x26] sm:$0xff]
  %v2507 = vld [vmem:[#allocation2 + $0x2e] sm:$0xff]
  %v2508 = vld [vmem:[#allocation2 + $0x36] sm:$0xff]
  %v2509 = vld [vmem:[#allocation2 + $0x3e] sm:$0xff]
  %v2510 = vld [vmem:[#allocation2 + $0x46] sm:$0xff]
  %v2511 = vld [vmem:[#allocation2 + $0x4e] sm:$0xff]
  %v2512 = vld [vmem:[#allocation2 + $0x56] sm:$0xff]
  %v2513 = vld [vmem:[#allocation2 + $0x5e] sm:$0xff]
  %v2514 = vld [vmem:[#allocation2 + $0x66] sm:$0xff]
  %v2515 = vld [vmem:[#allocation2 + $0x6e] sm:$0x3]
  %s2516 = scalar_lea.vmem %s4, 48
  %v2517 = vld [vmem:[%s2516] sm:$0xff]
  %v2518 = vld [vmem:[%s2516 + $0x8] sm:$0xff]
  %v2520 = vsel %vm77, %v2503, 0
  %v2523 = vsel %vm77, %v2504, 0
  %v2526 = vsel %vm77, %v2505, 0
  %v2529 = vsel %vm77, %v2506, 0
  %v2532 = vsel %vm77, %v2507, 0
  %v2535 = vsel %vm77, %v2508, 0
  %v2538 = vsel %vm77, %v2509, 0
  %v2541 = vsel %vm77, %v2510, 0
  %v2544 = vsel %vm77, %v2511, 0
  %v2547 = vsel %vm77, %v2512, 0
  %v2550 = vsel %vm77, %v2513, 0
  %v2553 = vsel %vm77, %v2514, 0
  %v2556 = vsel %vm77, %v2515, 0
  %2558 = vmatprep.subr.mxu0 0.0
  %2559 = vmatpush1.msra.mxu0 %v2517
  %2560 = vmatprep.subr.mxu0 0.0
  %2561 = vmatpush1.msra.mxu0 %v2518
  %2562 = vmatprep.subr.mxu0 0.0
  %2563 = vmatpush1.msra.mxu0 0.0
  %2564 = vmatprep.subr.mxu0 0.0
  %2565 = vmatpush1.msra.mxu0 0.0
  %2566 = vmatprep.subr.mxu0 0.0
  %2567 = vmatpush1.msra.mxu0 0.0
  %2568 = vmatprep.subr.mxu0 0.0
  %2569 = vmatpush1.msra.mxu0 0.0
  %2570 = vmatprep.subr.mxu0 0.0
  %2571 = vmatpush1.msra.mxu0 0.0
  %2572 = vmatprep.subr.mxu0 0.0
  %2573 = vmatpush1.msra.mxu0 0.0
  %2574 = vmatprep.subr.mxu0 0.0
  %2575 = vmatpush1.msra.mxu0 0.0
  %2576 = vmatprep.subr.mxu0 0.0
  %2577 = vmatpush1.msra.mxu0 0.0
  %2578 = vmatprep.subr.mxu0 0.0
  %2579 = vmatpush1.msra.mxu0 0.0
  %2580 = vmatprep.subr.mxu0 0.0
  %2581 = vmatpush1.msra.mxu0 0.0
  %2582 = vmatprep.subr.mxu0 0.0
  %2583 = vmatpush1.msra.mxu0 0.0
  %2584 = vmatprep.subr.mxu0 0.0
  %2585 = vmatpush1.msra.mxu0 0.0
  %2586 = vmatprep.subr.mxu0 0.0
  %2587 = vmatpush1.msra.mxu0 0.0
  %2588 = vmatprep.subr.mxu0 0.0
  %2589 = vmatpush1.msra.mxu0 0.0
  %2590 = vmatprep.subr.mxu0 0.0
  %2591 = vmatpush1.msra.mxu0 0.0
  %2592 = vmatprep.subr.mxu0 0.0
  %2593 = vmatpush1.msra.mxu0 0.0
  %2594 = vmatprep.subr.mxu0 0.0
  %2595 = vmatpush1.msra.mxu0 0.0
  %2596 = vmatprep.subr.mxu0 0.0
  %2597 = vmatpush1.msra.mxu0 0.0
  %2598 = vmatprep.subr.mxu0 0.0
  %2599 = vmatpush1.msra.mxu0 0.0
  %2600 = vmatprep.subr.mxu0 0.0
  %2601 = vmatpush1.msra.mxu0 0.0
  %2602 = vmatprep.subr.mxu0 0.0
  %2603 = vmatpush1.msra.mxu0 0.0
  %2604 = vmatprep.subr.mxu0 0.0
  %2605 = vmatpush1.msra.mxu0 0.0
  %2606 = vmatprep.subr.mxu0 0.0
  %2607 = vmatpush1.msra.mxu0 0.0
  %2608 = vmatprep.subr.mxu0 0.0
  %2609 = vmatpush1.msra.mxu0 0.0
  %2610 = vmatprep.subr.mxu0 0.0
  %2611 = vmatpush1.msra.mxu0 0.0
  %2612 = vmatprep.subr.mxu0 0.0
  %2613 = vmatpush1.msra.mxu0 0.0
  %2614 = vmatprep.subr.mxu0 0.0
  %2615 = vmatpush1.msra.mxu0 0.0
  %2616 = vmatprep.subr.mxu0 0.0
  %2617 = vmatpush1.msra.mxu0 0.0
  %2618 = vmatprep.subr.mxu0 0.0
  %2619 = vmatpush1.msra.mxu0 0.0
  %2620 = vmatprep.subr.mxu0 0.0
  %2621 = vmatpush1.msra.mxu0 0.0
  %2622 = vmatprep.mubr.f32.mxu0 0.0
  %2623 = vmatmul.mubr.f32.gmra.mrb[0].mxu0 %v2520
  %v2624 = vpop.f32.mrb[0].mxu0
  %v2625 = vadd.f32 0.0, %v2624
  %v2626 = vpop.f32.mrb[0].mxu0
  %2627 = vmatprep.mubr.f32.mxu0 0.0
  %2628 = vmatmul.mubr.f32.gmra.mrb[0].mxu0 %v2523
  %v2629 = vpop.f32.mrb[0].mxu0
  %v2630 = vadd.f32 0.0, %v2629
  %v2631 = vpop.f32.mrb[0].mxu0
  %2632 = vmatprep.mubr.f32.mxu0 0.0
  %2633 = vmatmul.mubr.f32.gmra.mrb[0].mxu0 %v2526
  %v2634 = vpop.f32.mrb[0].mxu0
  %v2635 = vadd.f32 0.0, %v2634
  %v2636 = vpop.f32.mrb[0].mxu0
  %2637 = vmatprep.mubr.f32.mxu0 0.0
  %2638 = vmatmul.mubr.f32.gmra.mrb[0].mxu0 %v2529
  %v2639 = vpop.f32.mrb[0].mxu0
  %v2640 = vadd.f32 0.0, %v2639
  %v2641 = vpop.f32.mrb[0].mxu0
  %2642 = vmatprep.mubr.f32.mxu0 0.0
  %2643 = vmatmul.mubr.f32.gmra.mrb[0].mxu0 %v2532
  %v2644 = vpop.f32.mrb[0].mxu0
  %v2645 = vadd.f32 0.0, %v2644
  %v2646 = vpop.f32.mrb[0].mxu0
  %2647 = vmatprep.mubr.f32.mxu0 0.0
  %2648 = vmatmul.mubr.f32.gmra.mrb[0].mxu0 %v2535
  %v2649 = vpop.f32.mrb[0].mxu0
  %v2650 = vadd.f32 0.0, %v2649
  %v2651 = vpop.f32.mrb[0].mxu0
  %2652 = vmatprep.mubr.f32.mxu0 0.0
  %2653 = vmatmul.mubr.f32.gmra.mrb[0].mxu0 %v2538
  %v2654 = vpop.f32.mrb[0].mxu0
  %v2655 = vadd.f32 0.0, %v2654
  %v2656 = vpop.f32.mrb[0].mxu0
  %2657 = vmatprep.mubr.f32.mxu0 0.0
  %2658 = vmatmul.mubr.f32.gmra.mrb[0].mxu0 %v2541
  %v2659 = vpop.f32.mrb[0].mxu0
  %v2660 = vadd.f32 0.0, %v2659
  %v2661 = vpop.f32.mrb[0].mxu0
  %2662 = vmatprep.mubr.f32.mxu0 0.0
  %2663 = vmatmul.mubr.f32.gmra.mrb[0].mxu0 %v2544
  %v2664 = vpop.f32.mrb[0].mxu0
  %v2665 = vadd.f32 0.0, %v2664
  %v2666 = vpop.f32.mrb[0].mxu0
  %2667 = vmatprep.mubr.f32.mxu0 0.0
  %2668 = vmatmul.mubr.f32.gmra.mrb[0].mxu0 %v2547
  %v2669 = vpop.f32.mrb[0].mxu0
  %v2670 = vadd.f32 0.0, %v2669
  %v2671 = vpop.f32.mrb[0].mxu0
  %2672 = vmatprep.mubr.f32.mxu0 0.0
  %2673 = vmatmul.mubr.f32.gmra.mrb[0].mxu0 %v2550
  %v2674 = vpop.f32.mrb[0].mxu0
  %v2675 = vadd.f32 0.0, %v2674
  %v2676 = vpop.f32.mrb[0].mxu0
  %2677 = vmatprep.mubr.f32.mxu0 0.0
  %2678 = vmatmul.mubr.f32.gmra.mrb[0].mxu0 %v2553
  %v2679 = vpop.f32.mrb[0].mxu0
  %v2680 = vadd.f32 0.0, %v2679
  %v2681 = vpop.f32.mrb[0].mxu0
  %2682 = vmatprep.mubr.f32.mxu0 0.0
  %2683 = vmatmul.mubr.f32.gmra.mrb[0].mxu0 %v2556
  %v2684 = vpop.f32.mrb[0].mxu0
  %v2685 = vadd.f32 0.0, %v2684
  %v2686 = vpop.f32.mrb[0].mxu0
  %2687 = vdwg.mxu0
  %v2688 = vadd.f32 %v2490, %v2625
  %v2689 = vadd.f32 %v2491, %v2630
  %v2690 = vadd.f32 %v2492, %v2635
  %v2691 = vadd.f32 %v2493, %v2640
  %v2692 = vadd.f32 %v2494, %v2645
  %v2693 = vadd.f32 %v2495, %v2650
  %v2694 = vadd.f32 %v2496, %v2655
  %v2695 = vadd.f32 %v2497, %v2660
  %v2696 = vadd.f32 %v2498, %v2665
  %v2697 = vadd.f32 %v2499, %v2670
  %v2698 = vadd.f32 %v2500, %v2675
  %v2699 = vadd.f32 %v2501, %v2680
  %v2700 = vadd.f32 %v2502, %v2685
  %v2701 = vld [vmem:[#allocation2 + $0x10] sm:$0xff]
  %v2702 = vld [vmem:[#allocation2 + $0x18] sm:$0xff]
  %v2703 = vld [vmem:[#allocation2 + $0x20] sm:$0xff]
  %v2704 = vld [vmem:[#allocation2 + $0x28] sm:$0xff]
  %v2705 = vld [vmem:[#allocation2 + $0x30] sm:$0xff]
  %v2706 = vld [vmem:[#allocation2 + $0x38] sm:$0xff]
  %v2707 = vld [vmem:[#allocation2 + $0x40] sm:$0xff]
  %v2708 = vld [vmem:[#allocation2 + $0x48] sm:$0xff]
  %v2709 = vld [vmem:[#allocation2 + $0x50] sm:$0xff]
  %v2710 = vld [vmem:[#allocation2 + $0x58] sm:$0xff]
  %v2711 = vld [vmem:[#allocation2 + $0x60] sm:$0xff]
  %v2712 = vld [vmem:[#allocation2 + $0x68] sm:$0xff]
  %v2713 = vld [vmem:[#allocation2 + $0x70] sm:$0x3]
  %s2714 = scalar_lea.vmem %s4, 64
  %v2715 = vld [vmem:[%s2714] sm:$0xff]
  %v2716 = vld [vmem:[%s2714 + $0x8] sm:$0xff]
  %v2718 = vsel %vm77, %v2701, 0
  %v2721 = vsel %vm77, %v2702, 0
  %v2724 = vsel %vm77, %v2703, 0
  %v2727 = vsel %vm77, %v2704, 0
  %v2730 = vsel %vm77, %v2705, 0
  %v2733 = vsel %vm77, %v2706, 0
  %v2736 = vsel %vm77, %v2707, 0
  %v2739 = vsel %vm77, %v2708, 0
  %v2742 = vsel %vm77, %v2709, 0
  %v2745 = vsel %vm77, %v2710, 0
  %v2748 = vsel %vm77, %v2711, 0
  %v2751 = vsel %vm77, %v2712, 0
  %v2754 = vsel %vm77, %v2713, 0
  %2756 = vmatprep.subr.mxu0 0.0
  %2757 = vmatpush1.msra.mxu0 %v2715
  %2758 = vmatprep.subr.mxu0 0.0
  %2759 = vmatpush1.msra.mxu0 %v2716
  %2760 = vmatprep.subr.mxu0 0.0
  %2761 = vmatpush1.msra.mxu0 0.0
  %2762 = vmatprep.subr.mxu0 0.0
  %2763 = vmatpush1.msra.mxu0 0.0
  %2764 = vmatprep.subr.mxu0 0.0
  %2765 = vmatpush1.msra.mxu0 0.0
  %2766 = vmatprep.subr.mxu0 0.0
  %2767 = vmatpush1.msra.mxu0 0.0
  %2768 = vmatprep.subr.mxu0 0.0
  %2769 = vmatpush1.msra.mxu0 0.0
  %2770 = vmatprep.subr.mxu0 0.0
  %2771 = vmatpush1.msra.mxu0 0.0
  %2772 = vmatprep.subr.mxu0 0.0
  %2773 = vmatpush1.msra.mxu0 0.0
  %2774 = vmatprep.subr.mxu0 0.0
  %2775 = vmatpush1.msra.mxu0 0.0
  %2776 = vmatprep.subr.mxu0 0.0
  %2777 = vmatpush1.msra.mxu0 0.0
  %2778 = vmatprep.subr.mxu0 0.0
  %2779 = vmatpush1.msra.mxu0 0.0
  %2780 = vmatprep.subr.mxu0 0.0
  %2781 = vmatpush1.msra.mxu0 0.0
  %2782 = vmatprep.subr.mxu0 0.0
  %2783 = vmatpush1.msra.mxu0 0.0
  %2784 = vmatprep.subr.mxu0 0.0
  %2785 = vmatpush1.msra.mxu0 0.0
  %2786 = vmatprep.subr.mxu0 0.0
  %2787 = vmatpush1.msra.mxu0 0.0
  %2788 = vmatprep.subr.mxu0 0.0
  %2789 = vmatpush1.msra.mxu0 0.0
  %2790 = vmatprep.subr.mxu0 0.0
  %2791 = vmatpush1.msra.mxu0 0.0
  %2792 = vmatprep.subr.mxu0 0.0
  %2793 = vmatpush1.msra.mxu0 0.0
  %2794 = vmatprep.subr.mxu0 0.0
  %2795 = vmatpush1.msra.mxu0 0.0
  %2796 = vmatprep.subr.mxu0 0.0
  %2797 = vmatpush1.msra.mxu0 0.0
  %2798 = vmatprep.subr.mxu0 0.0
  %2799 = vmatpush1.msra.mxu0 0.0
  %2800 = vmatprep.subr.mxu0 0.0
  %2801 = vmatpush1.msra.mxu0 0.0
  %2802 = vmatprep.subr.mxu0 0.0
  %2803 = vmatpush1.msra.mxu0 0.0
  %2804 = vmatprep.subr.mxu0 0.0
  %2805 = vmatpush1.msra.mxu0 0.0
  %2806 = vmatprep.subr.mxu0 0.0
  %2807 = vmatpush1.msra.mxu0 0.0
  %2808 = vmatprep.subr.mxu0 0.0
  %2809 = vmatpush1.msra.mxu0 0.0
  %2810 = vmatprep.subr.mxu0 0.0
  %2811 = vmatpush1.msra.mxu0 0.0
  %2812 = vmatprep.subr.mxu0 0.0
  %2813 = vmatpush1.msra.mxu0 0.0
  %2814 = vmatprep.subr.mxu0 0.0
  %2815 = vmatpush1.msra.mxu0 0.0
  %2816 = vmatprep.subr.mxu0 0.0
  %2817 = vmatpush1.msra.mxu0 0.0
  %2818 = vmatprep.subr.mxu0 0.0
  %2819 = vmatpush1.msra.mxu0 0.0
  %2820 = vmatprep.mubr.f32.mxu0 0.0
  %2821 = vmatmul.mubr.f32.gmra.mrb[0].mxu0 %v2718
  %v2822 = vpop.f32.mrb[0].mxu0
  %v2823 = vadd.f32 0.0, %v2822
  %v2824 = vpop.f32.mrb[0].mxu0
  %2825 = vmatprep.mubr.f32.mxu0 0.0
  %2826 = vmatmul.mubr.f32.gmra.mrb[0].mxu0 %v2721
  %v2827 = vpop.f32.mrb[0].mxu0
  %v2828 = vadd.f32 0.0, %v2827
  %v2829 = vpop.f32.mrb[0].mxu0
  %2830 = vmatprep.mubr.f32.mxu0 0.0
  %2831 = vmatmul.mubr.f32.gmra.mrb[0].mxu0 %v2724
  %v2832 = vpop.f32.mrb[0].mxu0
  %v2833 = vadd.f32 0.0, %v2832
  %v2834 = vpop.f32.mrb[0].mxu0
  %2835 = vmatprep.mubr.f32.mxu0 0.0
  %2836 = vmatmul.mubr.f32.gmra.mrb[0].mxu0 %v2727
  %v2837 = vpop.f32.mrb[0].mxu0
  %v2838 = vadd.f32 0.0, %v2837
  %v2839 = vpop.f32.mrb[0].mxu0
  %2840 = vmatprep.mubr.f32.mxu0 0.0
  %2841 = vmatmul.mubr.f32.gmra.mrb[0].mxu0 %v2730
  %v2842 = vpop.f32.mrb[0].mxu0
  %v2843 = vadd.f32 0.0, %v2842
  %v2844 = vpop.f32.mrb[0].mxu0
  %2845 = vmatprep.mubr.f32.mxu0 0.0
  %2846 = vmatmul.mubr.f32.gmra.mrb[0].mxu0 %v2733
  %v2847 = vpop.f32.mrb[0].mxu0
  %v2848 = vadd.f32 0.0, %v2847
  %v2849 = vpop.f32.mrb[0].mxu0
  %2850 = vmatprep.mubr.f32.mxu0 0.0
  %2851 = vmatmul.mubr.f32.gmra.mrb[0].mxu0 %v2736
  %v2852 = vpop.f32.mrb[0].mxu0
  %v2853 = vadd.f32 0.0, %v2852
  %v2854 = vpop.f32.mrb[0].mxu0
  %2855 = vmatprep.mubr.f32.mxu0 0.0
  %2856 = vmatmul.mubr.f32.gmra.mrb[0].mxu0 %v2739
  %v2857 = vpop.f32.mrb[0].mxu0
  %v2858 = vadd.f32 0.0, %v2857
  %v2859 = vpop.f32.mrb[0].mxu0
  %2860 = vmatprep.mubr.f32.mxu0 0.0
  %2861 = vmatmul.mubr.f32.gmra.mrb[0].mxu0 %v2742
  %v2862 = vpop.f32.mrb[0].mxu0
  %v2863 = vadd.f32 0.0, %v2862
  %v2864 = vpop.f32.mrb[0].mxu0
  %2865 = vmatprep.mubr.f32.mxu0 0.0
  %2866 = vmatmul.mubr.f32.gmra.mrb[0].mxu0 %v2745
  %v2867 = vpop.f32.mrb[0].mxu0
  %v2868 = vadd.f32 0.0, %v2867
  %v2869 = vpop.f32.mrb[0].mxu0
  %2870 = vmatprep.mubr.f32.mxu0 0.0
  %2871 = vmatmul.mubr.f32.gmra.mrb[0].mxu0 %v2748
  %v2872 = vpop.f32.mrb[0].mxu0
  %v2873 = vadd.f32 0.0, %v2872
  %v2874 = vpop.f32.mrb[0].mxu0
  %2875 = vmatprep.mubr.f32.mxu0 0.0
  %2876 = vmatmul.mubr.f32.gmra.mrb[0].mxu0 %v2751
  %v2877 = vpop.f32.mrb[0].mxu0
  %v2878 = vadd.f32 0.0, %v2877
  %v2879 = vpop.f32.mrb[0].mxu0
  %2880 = vmatprep.mubr.f32.mxu0 0.0
  %2881 = vmatmul.mubr.f32.gmra.mrb[0].mxu0 %v2754
  %v2882 = vpop.f32.mrb[0].mxu0
  %v2883 = vadd.f32 0.0, %v2882
  %v2884 = vpop.f32.mrb[0].mxu0
  %2885 = vdwg.mxu0
  %v2886 = vadd.f32 %v2688, %v2823
  %v2887 = vadd.f32 %v2689, %v2828
  %v2888 = vadd.f32 %v2690, %v2833
  %v2889 = vadd.f32 %v2691, %v2838
  %v2890 = vadd.f32 %v2692, %v2843
  %v2891 = vadd.f32 %v2693, %v2848
  %v2892 = vadd.f32 %v2694, %v2853
  %v2893 = vadd.f32 %v2695, %v2858
  %v2894 = vadd.f32 %v2696, %v2863
  %v2895 = vadd.f32 %v2697, %v2868
  %v2896 = vadd.f32 %v2698, %v2873
  %v2897 = vadd.f32 %v2699, %v2878
  %v2898 = vadd.f32 %v2700, %v2883
  %v2899 = vld [vmem:[#allocation2 + $0x12] sm:$0xff]
  %v2900 = vld [vmem:[#allocation2 + $0x1a] sm:$0xff]
  %v2901 = vld [vmem:[#allocation2 + $0x22] sm:$0xff]
  %v2902 = vld [vmem:[#allocation2 + $0x2a] sm:$0xff]
  %v2903 = vld [vmem:[#allocation2 + $0x32] sm:$0xff]
  %v2904 = vld [vmem:[#allocation2 + $0x3a] sm:$0xff]
  %v2905 = vld [vmem:[#allocation2 + $0x42] sm:$0xff]
  %v2906 = vld [vmem:[#allocation2 + $0x4a] sm:$0xff]
  %v2907 = vld [vmem:[#allocation2 + $0x52] sm:$0xff]
  %v2908 = vld [vmem:[#allocation2 + $0x5a] sm:$0xff]
  %v2909 = vld [vmem:[#allocation2 + $0x62] sm:$0xff]
  %v2910 = vld [vmem:[#allocation2 + $0x6a] sm:$0xff]
  %v2911 = vld [vmem:[#allocation2 + $0x72] sm:$0x3]
  %s2912 = scalar_lea.vmem %s4, 80
  %v2913 = vld [vmem:[%s2912] sm:$0xff]
  %v2914 = vld [vmem:[%s2912 + $0x8] sm:$0xff]
  %v2916 = vsel %vm77, %v2899, 0
  %v2919 = vsel %vm77, %v2900, 0
  %v2922 = vsel %vm77, %v2901, 0
  %v2925 = vsel %vm77, %v2902, 0
  %v2928 = vsel %vm77, %v2903, 0
  %v2931 = vsel %vm77, %v2904, 0
  %v2934 = vsel %vm77, %v2905, 0
  %v2937 = vsel %vm77, %v2906, 0
  %v2940 = vsel %vm77, %v2907, 0
  %v2943 = vsel %vm77, %v2908, 0
  %v2946 = vsel %vm77, %v2909, 0
  %v2949 = vsel %vm77, %v2910, 0
  %v2952 = vsel %vm77, %v2911, 0
  %2954 = vmatprep.subr.mxu0 0.0
  %2955 = vmatpush1.msra.mxu0 %v2913
  %2956 = vmatprep.subr.mxu0 0.0
  %2957 = vmatpush1.msra.mxu0 %v2914
  %2958 = vmatprep.subr.mxu0 0.0
  %2959 = vmatpush1.msra.mxu0 0.0
  %2960 = vmatprep.subr.mxu0 0.0
  %2961 = vmatpush1.msra.mxu0 0.0
  %2962 = vmatprep.subr.mxu0 0.0
  %2963 = vmatpush1.msra.mxu0 0.0
  %2964 = vmatprep.subr.mxu0 0.0
  %2965 = vmatpush1.msra.mxu0 0.0
  %2966 = vmatprep.subr.mxu0 0.0
  %2967 = vmatpush1.msra.mxu0 0.0
  %2968 = vmatprep.subr.mxu0 0.0
  %2969 = vmatpush1.msra.mxu0 0.0
  %2970 = vmatprep.subr.mxu0 0.0
  %2971 = vmatpush1.msra.mxu0 0.0
  %2972 = vmatprep.subr.mxu0 0.0
  %2973 = vmatpush1.msra.mxu0 0.0
  %2974 = vmatprep.subr.mxu0 0.0
  %2975 = vmatpush1.msra.mxu0 0.0
  %2976 = vmatprep.subr.mxu0 0.0
  %2977 = vmatpush1.msra.mxu0 0.0
  %2978 = vmatprep.subr.mxu0 0.0
  %2979 = vmatpush1.msra.mxu0 0.0
  %2980 = vmatprep.subr.mxu0 0.0
  %2981 = vmatpush1.msra.mxu0 0.0
  %2982 = vmatprep.subr.mxu0 0.0
  %2983 = vmatpush1.msra.mxu0 0.0
  %2984 = vmatprep.subr.mxu0 0.0
  %2985 = vmatpush1.msra.mxu0 0.0
  %2986 = vmatprep.subr.mxu0 0.0
  %2987 = vmatpush1.msra.mxu0 0.0
  %2988 = vmatprep.subr.mxu0 0.0
  %2989 = vmatpush1.msra.mxu0 0.0
  %2990 = vmatprep.subr.mxu0 0.0
  %2991 = vmatpush1.msra.mxu0 0.0
  %2992 = vmatprep.subr.mxu0 0.0
  %2993 = vmatpush1.msra.mxu0 0.0
  %2994 = vmatprep.subr.mxu0 0.0
  %2995 = vmatpush1.msra.mxu0 0.0
  %2996 = vmatprep.subr.mxu0 0.0
  %2997 = vmatpush1.msra.mxu0 0.0
  %2998 = vmatprep.subr.mxu0 0.0
  %2999 = vmatpush1.msra.mxu0 0.0
  %3000 = vmatprep.subr.mxu0 0.0
  %3001 = vmatpush1.msra.mxu0 0.0
  %3002 = vmatprep.subr.mxu0 0.0
  %3003 = vmatpush1.msra.mxu0 0.0
  %3004 = vmatprep.subr.mxu0 0.0
  %3005 = vmatpush1.msra.mxu0 0.0
  %3006 = vmatprep.subr.mxu0 0.0
  %3007 = vmatpush1.msra.mxu0 0.0
  %3008 = vmatprep.subr.mxu0 0.0
  %3009 = vmatpush1.msra.mxu0 0.0
  %3010 = vmatprep.subr.mxu0 0.0
  %3011 = vmatpush1.msra.mxu0 0.0
  %3012 = vmatprep.subr.mxu0 0.0
  %3013 = vmatpush1.msra.mxu0 0.0
  %3014 = vmatprep.subr.mxu0 0.0
  %3015 = vmatpush1.msra.mxu0 0.0
  %3016 = vmatprep.subr.mxu0 0.0
  %3017 = vmatpush1.msra.mxu0 0.0
  %3018 = vmatprep.mubr.f32.mxu0 0.0
  %3019 = vmatmul.mubr.f32.gmra.mrb[0].mxu0 %v2916
  %v3020 = vpop.f32.mrb[0].mxu0
  %v3021 = vadd.f32 0.0, %v3020
  %v3022 = vpop.f32.mrb[0].mxu0
  %3023 = vmatprep.mubr.f32.mxu0 0.0
  %3024 = vmatmul.mubr.f32.gmra.mrb[0].mxu0 %v2919
  %v3025 = vpop.f32.mrb[0].mxu0
  %v3026 = vadd.f32 0.0, %v3025
  %v3027 = vpop.f32.mrb[0].mxu0
  %3028 = vmatprep.mubr.f32.mxu0 0.0
  %3029 = vmatmul.mubr.f32.gmra.mrb[0].mxu0 %v2922
  %v3030 = vpop.f32.mrb[0].mxu0
  %v3031 = vadd.f32 0.0, %v3030
  %v3032 = vpop.f32.mrb[0].mxu0
  %3033 = vmatprep.mubr.f32.mxu0 0.0
  %3034 = vmatmul.mubr.f32.gmra.mrb[0].mxu0 %v2925
  %v3035 = vpop.f32.mrb[0].mxu0
  %v3036 = vadd.f32 0.0, %v3035
  %v3037 = vpop.f32.mrb[0].mxu0
  %3038 = vmatprep.mubr.f32.mxu0 0.0
  %3039 = vmatmul.mubr.f32.gmra.mrb[0].mxu0 %v2928
  %v3040 = vpop.f32.mrb[0].mxu0
  %v3041 = vadd.f32 0.0, %v3040
  %v3042 = vpop.f32.mrb[0].mxu0
  %3043 = vmatprep.mubr.f32.mxu0 0.0
  %3044 = vmatmul.mubr.f32.gmra.mrb[0].mxu0 %v2931
  %v3045 = vpop.f32.mrb[0].mxu0
  %v3046 = vadd.f32 0.0, %v3045
  %v3047 = vpop.f32.mrb[0].mxu0
  %3048 = vmatprep.mubr.f32.mxu0 0.0
  %3049 = vmatmul.mubr.f32.gmra.mrb[0].mxu0 %v2934
  %v3050 = vpop.f32.mrb[0].mxu0
  %v3051 = vadd.f32 0.0, %v3050
  %v3052 = vpop.f32.mrb[0].mxu0
  %3053 = vmatprep.mubr.f32.mxu0 0.0
  %3054 = vmatmul.mubr.f32.gmra.mrb[0].mxu0 %v2937
  %v3055 = vpop.f32.mrb[0].mxu0
  %v3056 = vadd.f32 0.0, %v3055
  %v3057 = vpop.f32.mrb[0].mxu0
  %3058 = vmatprep.mubr.f32.mxu0 0.0
  %3059 = vmatmul.mubr.f32.gmra.mrb[0].mxu0 %v2940
  %v3060 = vpop.f32.mrb[0].mxu0
  %v3061 = vadd.f32 0.0, %v3060
  %v3062 = vpop.f32.mrb[0].mxu0
  %3063 = vmatprep.mubr.f32.mxu0 0.0
  %3064 = vmatmul.mubr.f32.gmra.mrb[0].mxu0 %v2943
  %v3065 = vpop.f32.mrb[0].mxu0
  %v3066 = vadd.f32 0.0, %v3065
  %v3067 = vpop.f32.mrb[0].mxu0
  %3068 = vmatprep.mubr.f32.mxu0 0.0
  %3069 = vmatmul.mubr.f32.gmra.mrb[0].mxu0 %v2946
  %v3070 = vpop.f32.mrb[0].mxu0
  %v3071 = vadd.f32 0.0, %v3070
  %v3072 = vpop.f32.mrb[0].mxu0
  %3073 = vmatprep.mubr.f32.mxu0 0.0
  %3074 = vmatmul.mubr.f32.gmra.mrb[0].mxu0 %v2949
  %v3075 = vpop.f32.mrb[0].mxu0
  %v3076 = vadd.f32 0.0, %v3075
  %v3077 = vpop.f32.mrb[0].mxu0
  %3078 = vmatprep.mubr.f32.mxu0 0.0
  %3079 = vmatmul.mubr.f32.gmra.mrb[0].mxu0 %v2952
  %v3080 = vpop.f32.mrb[0].mxu0
  %v3081 = vadd.f32 0.0, %v3080
  %v3082 = vpop.f32.mrb[0].mxu0
  %3083 = vdwg.mxu0
  %v3084 = vadd.f32 %v2886, %v3021
  %v3085 = vadd.f32 %v2887, %v3026
  %v3086 = vadd.f32 %v2888, %v3031
  %v3087 = vadd.f32 %v2889, %v3036
  %v3088 = vadd.f32 %v2890, %v3041
  %v3089 = vadd.f32 %v2891, %v3046
  %v3090 = vadd.f32 %v2892, %v3051
  %v3091 = vadd.f32 %v2893, %v3056
  %v3092 = vadd.f32 %v2894, %v3061
  %v3093 = vadd.f32 %v2895, %v3066
  %v3094 = vadd.f32 %v2896, %v3071
  %v3095 = vadd.f32 %v2897, %v3076
  %v3096 = vadd.f32 %v2898, %v3081
  %v3097 = vld [vmem:[#allocation2 + $0x1c] sm:$0xff]
  %v3098 = vld [vmem:[#allocation2 + $0x24] sm:$0xff]
  %v3099 = vld [vmem:[#allocation2 + $0x2c] sm:$0xff]
  %v3100 = vld [vmem:[#allocation2 + $0x34] sm:$0xff]
  %v3101 = vld [vmem:[#allocation2 + $0x3c] sm:$0xff]
  %v3102 = vld [vmem:[#allocation2 + $0x44] sm:$0xff]
  %v3103 = vld [vmem:[#allocation2 + $0x4c] sm:$0xff]
  %v3104 = vld [vmem:[#allocation2 + $0x54] sm:$0xff]
  %v3105 = vld [vmem:[#allocation2 + $0x5c] sm:$0xff]
  %v3106 = vld [vmem:[#allocation2 + $0x64] sm:$0xff]
  %v3107 = vld [vmem:[#allocation2 + $0x6c] sm:$0xff]
  %v3108 = vld [vmem:[#allocation2 + $0x74] sm:$0xff]
  %v3109 = vld [vmem:[#allocation2 + $0x7c] sm:$0x3]
  %s3110 = scalar_lea.vmem %s4, 96
  %v3111 = vld [vmem:[%s3110] sm:$0xff]
  %v3112 = vld [vmem:[%s3110 + $0x8] sm:$0xff]
  %v3114 = vsel %vm77, %v3097, 0
  %v3117 = vsel %vm77, %v3098, 0
  %v3120 = vsel %vm77, %v3099, 0
  %v3123 = vsel %vm77, %v3100, 0
  %v3126 = vsel %vm77, %v3101, 0
  %v3129 = vsel %vm77, %v3102, 0
  %v3132 = vsel %vm77, %v3103, 0
  %v3135 = vsel %vm77, %v3104, 0
  %v3138 = vsel %vm77, %v3105, 0
  %v3141 = vsel %vm77, %v3106, 0
  %v3144 = vsel %vm77, %v3107, 0
  %v3147 = vsel %vm77, %v3108, 0
  %v3150 = vsel %vm77, %v3109, 0
  %3152 = vmatprep.subr.mxu0 0.0
  %3153 = vmatpush1.msra.mxu0 %v3111
  %3154 = vmatprep.subr.mxu0 0.0
  %3155 = vmatpush1.msra.mxu0 %v3112
  %3156 = vmatprep.subr.mxu0 0.0
  %3157 = vmatpush1.msra.mxu0 0.0
  %3158 = vmatprep.subr.mxu0 0.0
  %3159 = vmatpush1.msra.mxu0 0.0
  %3160 = vmatprep.subr.mxu0 0.0
  %3161 = vmatpush1.msra.mxu0 0.0
  %3162 = vmatprep.subr.mxu0 0.0
  %3163 = vmatpush1.msra.mxu0 0.0
  %3164 = vmatprep.subr.mxu0 0.0
  %3165 = vmatpush1.msra.mxu0 0.0
  %3166 = vmatprep.subr.mxu0 0.0
  %3167 = vmatpush1.msra.mxu0 0.0
  %3168 = vmatprep.subr.mxu0 0.0
  %3169 = vmatpush1.msra.mxu0 0.0
  %3170 = vmatprep.subr.mxu0 0.0
  %3171 = vmatpush1.msra.mxu0 0.0
  %3172 = vmatprep.subr.mxu0 0.0
  %3173 = vmatpush1.msra.mxu0 0.0
  %3174 = vmatprep.subr.mxu0 0.0
  %3175 = vmatpush1.msra.mxu0 0.0
  %3176 = vmatprep.subr.mxu0 0.0
  %3177 = vmatpush1.msra.mxu0 0.0
  %3178 = vmatprep.subr.mxu0 0.0
  %3179 = vmatpush1.msra.mxu0 0.0
  %3180 = vmatprep.subr.mxu0 0.0
  %3181 = vmatpush1.msra.mxu0 0.0
  %3182 = vmatprep.subr.mxu0 0.0
  %3183 = vmatpush1.msra.mxu0 0.0
  %3184 = vmatprep.subr.mxu0 0.0
  %3185 = vmatpush1.msra.mxu0 0.0
  %3186 = vmatprep.subr.mxu0 0.0
  %3187 = vmatpush1.msra.mxu0 0.0
  %3188 = vmatprep.subr.mxu0 0.0
  %3189 = vmatpush1.msra.mxu0 0.0
  %3190 = vmatprep.subr.mxu0 0.0
  %3191 = vmatpush1.msra.mxu0 0.0
  %3192 = vmatprep.subr.mxu0 0.0
  %3193 = vmatpush1.msra.mxu0 0.0
  %3194 = vmatprep.subr.mxu0 0.0
  %3195 = vmatpush1.msra.mxu0 0.0
  %3196 = vmatprep.subr.mxu0 0.0
  %3197 = vmatpush1.msra.mxu0 0.0
  %3198 = vmatprep.subr.mxu0 0.0
  %3199 = vmatpush1.msra.mxu0 0.0
  %3200 = vmatprep.subr.mxu0 0.0
  %3201 = vmatpush1.msra.mxu0 0.0
  %3202 = vmatprep.subr.mxu0 0.0
  %3203 = vmatpush1.msra.mxu0 0.0
  %3204 = vmatprep.subr.mxu0 0.0
  %3205 = vmatpush1.msra.mxu0 0.0
  %3206 = vmatprep.subr.mxu0 0.0
  %3207 = vmatpush1.msra.mxu0 0.0
  %3208 = vmatprep.subr.mxu0 0.0
  %3209 = vmatpush1.msra.mxu0 0.0
  %3210 = vmatprep.subr.mxu0 0.0
  %3211 = vmatpush1.msra.mxu0 0.0
  %3212 = vmatprep.subr.mxu0 0.0
  %3213 = vmatpush1.msra.mxu0 0.0
  %3214 = vmatprep.subr.mxu0 0.0
  %3215 = vmatpush1.msra.mxu0 0.0
  %3216 = vmatprep.mubr.f32.mxu0 0.0
  %3217 = vmatmul.mubr.f32.gmra.mrb[0].mxu0 %v3114
  %v3218 = vpop.f32.mrb[0].mxu0
  %v3219 = vadd.f32 0.0, %v3218
  %v3220 = vpop.f32.mrb[0].mxu0
  %3221 = vmatprep.mubr.f32.mxu0 0.0
  %3222 = vmatmul.mubr.f32.gmra.mrb[0].mxu0 %v3117
  %v3223 = vpop.f32.mrb[0].mxu0
  %v3224 = vadd.f32 0.0, %v3223
  %v3225 = vpop.f32.mrb[0].mxu0
  %3226 = vmatprep.mubr.f32.mxu0 0.0
  %3227 = vmatmul.mubr.f32.gmra.mrb[0].mxu0 %v3120
  %v3228 = vpop.f32.mrb[0].mxu0
  %v3229 = vadd.f32 0.0, %v3228
  %v3230 = vpop.f32.mrb[0].mxu0
  %3231 = vmatprep.mubr.f32.mxu0 0.0
  %3232 = vmatmul.mubr.f32.gmra.mrb[0].mxu0 %v3123
  %v3233 = vpop.f32.mrb[0].mxu0
  %v3234 = vadd.f32 0.0, %v3233
  %v3235 = vpop.f32.mrb[0].mxu0
  %3236 = vmatprep.mubr.f32.mxu0 0.0
  %3237 = vmatmul.mubr.f32.gmra.mrb[0].mxu0 %v3126
  %v3238 = vpop.f32.mrb[0].mxu0
  %v3239 = vadd.f32 0.0, %v3238
  %v3240 = vpop.f32.mrb[0].mxu0
  %3241 = vmatprep.mubr.f32.mxu0 0.0
  %3242 = vmatmul.mubr.f32.gmra.mrb[0].mxu0 %v3129
  %v3243 = vpop.f32.mrb[0].mxu0
  %v3244 = vadd.f32 0.0, %v3243
  %v3245 = vpop.f32.mrb[0].mxu0
  %3246 = vmatprep.mubr.f32.mxu0 0.0
  %3247 = vmatmul.mubr.f32.gmra.mrb[0].mxu0 %v3132
  %v3248 = vpop.f32.mrb[0].mxu0
  %v3249 = vadd.f32 0.0, %v3248
  %v3250 = vpop.f32.mrb[0].mxu0
  %3251 = vmatprep.mubr.f32.mxu0 0.0
  %3252 = vmatmul.mubr.f32.gmra.mrb[0].mxu0 %v3135
  %v3253 = vpop.f32.mrb[0].mxu0
  %v3254 = vadd.f32 0.0, %v3253
  %v3255 = vpop.f32.mrb[0].mxu0
  %3256 = vmatprep.mubr.f32.mxu0 0.0
  %3257 = vmatmul.mubr.f32.gmra.mrb[0].mxu0 %v3138
  %v3258 = vpop.f32.mrb[0].mxu0
  %v3259 = vadd.f32 0.0, %v3258
  %v3260 = vpop.f32.mrb[0].mxu0
  %3261 = vmatprep.mubr.f32.mxu0 0.0
  %3262 = vmatmul.mubr.f32.gmra.mrb[0].mxu0 %v3141
  %v3263 = vpop.f32.mrb[0].mxu0
  %v3264 = vadd.f32 0.0, %v3263
  %v3265 = vpop.f32.mrb[0].mxu0
  %3266 = vmatprep.mubr.f32.mxu0 0.0
  %3267 = vmatmul.mubr.f32.gmra.mrb[0].mxu0 %v3144
  %v3268 = vpop.f32.mrb[0].mxu0
  %v3269 = vadd.f32 0.0, %v3268
  %v3270 = vpop.f32.mrb[0].mxu0
  %3271 = vmatprep.mubr.f32.mxu0 0.0
  %3272 = vmatmul.mubr.f32.gmra.mrb[0].mxu0 %v3147
  %v3273 = vpop.f32.mrb[0].mxu0
  %v3274 = vadd.f32 0.0, %v3273
  %v3275 = vpop.f32.mrb[0].mxu0
  %3276 = vmatprep.mubr.f32.mxu0 0.0
  %3277 = vmatmul.mubr.f32.gmra.mrb[0].mxu0 %v3150
  %v3278 = vpop.f32.mrb[0].mxu0
  %v3279 = vadd.f32 0.0, %v3278
  %v3280 = vpop.f32.mrb[0].mxu0
  %3281 = vdwg.mxu0
  %v3282 = vadd.f32 %v3084, %v3219
  %v3283 = vadd.f32 %v3085, %v3224
  %v3284 = vadd.f32 %v3086, %v3229
  %v3285 = vadd.f32 %v3087, %v3234
  %v3286 = vadd.f32 %v3088, %v3239
  %v3287 = vadd.f32 %v3089, %v3244
  %v3288 = vadd.f32 %v3090, %v3249
  %v3289 = vadd.f32 %v3091, %v3254
  %v3290 = vadd.f32 %v3092, %v3259
  %v3291 = vadd.f32 %v3093, %v3264
  %v3292 = vadd.f32 %v3094, %v3269
  %v3293 = vadd.f32 %v3095, %v3274
  %v3294 = vadd.f32 %v3096, %v3279
  %v3295 = vld [vmem:[#allocation2 + $0x1e] sm:$0xff]
  %v3296 = vld [vmem:[#allocation2 + $0x26] sm:$0xff]
  %v3297 = vld [vmem:[#allocation2 + $0x2e] sm:$0xff]
  %v3298 = vld [vmem:[#allocation2 + $0x36] sm:$0xff]
  %v3299 = vld [vmem:[#allocation2 + $0x3e] sm:$0xff]
  %v3300 = vld [vmem:[#allocation2 + $0x46] sm:$0xff]
  %v3301 = vld [vmem:[#allocation2 + $0x4e] sm:$0xff]
  %v3302 = vld [vmem:[#allocation2 + $0x56] sm:$0xff]
  %v3303 = vld [vmem:[#allocation2 + $0x5e] sm:$0xff]
  %v3304 = vld [vmem:[#allocation2 + $0x66] sm:$0xff]
  %v3305 = vld [vmem:[#allocation2 + $0x6e] sm:$0xff]
  %v3306 = vld [vmem:[#allocation2 + $0x76] sm:$0xff]
  %v3307 = vld [vmem:[#allocation2 + $0x7e] sm:$0x3]
  %s3308 = scalar_lea.vmem %s4, 112
  %v3309 = vld [vmem:[%s3308] sm:$0xff]
  %v3310 = vld [vmem:[%s3308 + $0x8] sm:$0xff]
  %v3312 = vsel %vm77, %v3295, 0
  %v3315 = vsel %vm77, %v3296, 0
  %v3318 = vsel %vm77, %v3297, 0
  %v3321 = vsel %vm77, %v3298, 0
  %v3324 = vsel %vm77, %v3299, 0
  %v3327 = vsel %vm77, %v3300, 0
  %v3330 = vsel %vm77, %v3301, 0
  %v3333 = vsel %vm77, %v3302, 0
  %v3336 = vsel %vm77, %v3303, 0
  %v3339 = vsel %vm77, %v3304, 0
  %v3342 = vsel %vm77, %v3305, 0
  %v3345 = vsel %vm77, %v3306, 0
  %v3348 = vsel %vm77, %v3307, 0
  %3350 = vmatprep.subr.mxu0 0.0
  %3351 = vmatpush1.msra.mxu0 %v3309
  %3352 = vmatprep.subr.mxu0 0.0
  %3353 = vmatpush1.msra.mxu0 %v3310
  %3354 = vmatprep.subr.mxu0 0.0
  %3355 = vmatpush1.msra.mxu0 0.0
  %3356 = vmatprep.subr.mxu0 0.0
  %3357 = vmatpush1.msra.mxu0 0.0
  %3358 = vmatprep.subr.mxu0 0.0
  %3359 = vmatpush1.msra.mxu0 0.0
  %3360 = vmatprep.subr.mxu0 0.0
  %3361 = vmatpush1.msra.mxu0 0.0
  %3362 = vmatprep.subr.mxu0 0.0
  %3363 = vmatpush1.msra.mxu0 0.0
  %3364 = vmatprep.subr.mxu0 0.0
  %3365 = vmatpush1.msra.mxu0 0.0
  %3366 = vmatprep.subr.mxu0 0.0
  %3367 = vmatpush1.msra.mxu0 0.0
  %3368 = vmatprep.subr.mxu0 0.0
  %3369 = vmatpush1.msra.mxu0 0.0
  %3370 = vmatprep.subr.mxu0 0.0
  %3371 = vmatpush1.msra.mxu0 0.0
  %3372 = vmatprep.subr.mxu0 0.0
  %3373 = vmatpush1.msra.mxu0 0.0
  %3374 = vmatprep.subr.mxu0 0.0
  %3375 = vmatpush1.msra.mxu0 0.0
  %3376 = vmatprep.subr.mxu0 0.0
  %3377 = vmatpush1.msra.mxu0 0.0
  %3378 = vmatprep.subr.mxu0 0.0
  %3379 = vmatpush1.msra.mxu0 0.0
  %3380 = vmatprep.subr.mxu0 0.0
  %3381 = vmatpush1.msra.mxu0 0.0
  %3382 = vmatprep.subr.mxu0 0.0
  %3383 = vmatpush1.msra.mxu0 0.0
  %3384 = vmatprep.subr.mxu0 0.0
  %3385 = vmatpush1.msra.mxu0 0.0
  %3386 = vmatprep.subr.mxu0 0.0
  %3387 = vmatpush1.msra.mxu0 0.0
  %3388 = vmatprep.subr.mxu0 0.0
  %3389 = vmatpush1.msra.mxu0 0.0
  %3390 = vmatprep.subr.mxu0 0.0
  %3391 = vmatpush1.msra.mxu0 0.0
  %3392 = vmatprep.subr.mxu0 0.0
  %3393 = vmatpush1.msra.mxu0 0.0
  %3394 = vmatprep.subr.mxu0 0.0
  %3395 = vmatpush1.msra.mxu0 0.0
  %3396 = vmatprep.subr.mxu0 0.0
  %3397 = vmatpush1.msra.mxu0 0.0
  %3398 = vmatprep.subr.mxu0 0.0
  %3399 = vmatpush1.msra.mxu0 0.0
  %3400 = vmatprep.subr.mxu0 0.0
  %3401 = vmatpush1.msra.mxu0 0.0
  %3402 = vmatprep.subr.mxu0 0.0
  %3403 = vmatpush1.msra.mxu0 0.0
  %3404 = vmatprep.subr.mxu0 0.0
  %3405 = vmatpush1.msra.mxu0 0.0
  %3406 = vmatprep.subr.mxu0 0.0
  %3407 = vmatpush1.msra.mxu0 0.0
  %3408 = vmatprep.subr.mxu0 0.0
  %3409 = vmatpush1.msra.mxu0 0.0
  %3410 = vmatprep.subr.mxu0 0.0
  %3411 = vmatpush1.msra.mxu0 0.0
  %3412 = vmatprep.subr.mxu0 0.0
  %3413 = vmatpush1.msra.mxu0 0.0
  %3414 = vmatprep.mubr.f32.mxu0 0.0
  %3415 = vmatmul.mubr.f32.gmra.mrb[0].mxu0 %v3312
  %v3416 = vpop.f32.mrb[0].mxu0
  %v3417 = vadd.f32 0.0, %v3416
  %v3418 = vpop.f32.mrb[0].mxu0
  %3419 = vmatprep.mubr.f32.mxu0 0.0
  %3420 = vmatmul.mubr.f32.gmra.mrb[0].mxu0 %v3315
  %v3421 = vpop.f32.mrb[0].mxu0
  %v3422 = vadd.f32 0.0, %v3421
  %v3423 = vpop.f32.mrb[0].mxu0
  %3424 = vmatprep.mubr.f32.mxu0 0.0
  %3425 = vmatmul.mubr.f32.gmra.mrb[0].mxu0 %v3318
  %v3426 = vpop.f32.mrb[0].mxu0
  %v3427 = vadd.f32 0.0, %v3426
  %v3428 = vpop.f32.mrb[0].mxu0
  %3429 = vmatprep.mubr.f32.mxu0 0.0
  %3430 = vmatmul.mubr.f32.gmra.mrb[0].mxu0 %v3321
  %v3431 = vpop.f32.mrb[0].mxu0
  %v3432 = vadd.f32 0.0, %v3431
  %v3433 = vpop.f32.mrb[0].mxu0
  %3434 = vmatprep.mubr.f32.mxu0 0.0
  %3435 = vmatmul.mubr.f32.gmra.mrb[0].mxu0 %v3324
  %v3436 = vpop.f32.mrb[0].mxu0
  %v3437 = vadd.f32 0.0, %v3436
  %v3438 = vpop.f32.mrb[0].mxu0
  %3439 = vmatprep.mubr.f32.mxu0 0.0
  %3440 = vmatmul.mubr.f32.gmra.mrb[0].mxu0 %v3327
  %v3441 = vpop.f32.mrb[0].mxu0
  %v3442 = vadd.f32 0.0, %v3441
  %v3443 = vpop.f32.mrb[0].mxu0
  %3444 = vmatprep.mubr.f32.mxu0 0.0
  %3445 = vmatmul.mubr.f32.gmra.mrb[0].mxu0 %v3330
  %v3446 = vpop.f32.mrb[0].mxu0
  %v3447 = vadd.f32 0.0, %v3446
  %v3448 = vpop.f32.mrb[0].mxu0
  %3449 = vmatprep.mubr.f32.mxu0 0.0
  %3450 = vmatmul.mubr.f32.gmra.mrb[0].mxu0 %v3333
  %v3451 = vpop.f32.mrb[0].mxu0
  %v3452 = vadd.f32 0.0, %v3451
  %v3453 = vpop.f32.mrb[0].mxu0
  %3454 = vmatprep.mubr.f32.mxu0 0.0
  %3455 = vmatmul.mubr.f32.gmra.mrb[0].mxu0 %v3336
  %v3456 = vpop.f32.mrb[0].mxu0
  %v3457 = vadd.f32 0.0, %v3456
  %v3458 = vpop.f32.mrb[0].mxu0
  %3459 = vmatprep.mubr.f32.mxu0 0.0
  %3460 = vmatmul.mubr.f32.gmra.mrb[0].mxu0 %v3339
  %v3461 = vpop.f32.mrb[0].mxu0
  %v3462 = vadd.f32 0.0, %v3461
  %v3463 = vpop.f32.mrb[0].mxu0
  %3464 = vmatprep.mubr.f32.mxu0 0.0
  %3465 = vmatmul.mubr.f32.gmra.mrb[0].mxu0 %v3342
  %v3466 = vpop.f32.mrb[0].mxu0
  %v3467 = vadd.f32 0.0, %v3466
  %v3468 = vpop.f32.mrb[0].mxu0
  %3469 = vmatprep.mubr.f32.mxu0 0.0
  %3470 = vmatmul.mubr.f32.gmra.mrb[0].mxu0 %v3345
  %v3471 = vpop.f32.mrb[0].mxu0
  %v3472 = vadd.f32 0.0, %v3471
  %v3473 = vpop.f32.mrb[0].mxu0
  %3474 = vmatprep.mubr.f32.mxu0 0.0
  %3475 = vmatmul.mubr.f32.gmra.mrb[0].mxu0 %v3348
  %v3476 = vpop.f32.mrb[0].mxu0
  %v3477 = vadd.f32 0.0, %v3476
  %v3478 = vpop.f32.mrb[0].mxu0
  %3479 = vdwg.mxu0
  %v3480 = vadd.f32 %v3282, %v3417
  %v3481 = vadd.f32 %v3283, %v3422
  %v3482 = vadd.f32 %v3284, %v3427
  %v3483 = vadd.f32 %v3285, %v3432
  %v3484 = vadd.f32 %v3286, %v3437
  %v3485 = vadd.f32 %v3287, %v3442
  %v3486 = vadd.f32 %v3288, %v3447
  %v3487 = vadd.f32 %v3289, %v3452
  %v3488 = vadd.f32 %v3290, %v3457
  %v3489 = vadd.f32 %v3291, %v3462
  %v3490 = vadd.f32 %v3292, %v3467
  %v3491 = vadd.f32 %v3293, %v3472
  %v3492 = vadd.f32 %v3294, %v3477
  %v3493 = vld [vmem:[#allocation2 + $0x20] sm:$0xff]
  %v3494 = vld [vmem:[#allocation2 + $0x28] sm:$0xff]
  %v3495 = vld [vmem:[#allocation2 + $0x30] sm:$0xff]
  %v3496 = vld [vmem:[#allocation2 + $0x38] sm:$0xff]
  %v3497 = vld [vmem:[#allocation2 + $0x40] sm:$0xff]
  %v3498 = vld [vmem:[#allocation2 + $0x48] sm:$0xff]
  %v3499 = vld [vmem:[#allocation2 + $0x50] sm:$0xff]
  %v3500 = vld [vmem:[#allocation2 + $0x58] sm:$0xff]
  %v3501 = vld [vmem:[#allocation2 + $0x60] sm:$0xff]
  %v3502 = vld [vmem:[#allocation2 + $0x68] sm:$0xff]
  %v3503 = vld [vmem:[#allocation2 + $0x70] sm:$0xff]
  %v3504 = vld [vmem:[#allocation2 + $0x78] sm:$0xff]
  %v3505 = vld [vmem:[#allocation2 + $0x80] sm:$0x3]
  %s3506 = scalar_lea.vmem %s4, 128
  %v3507 = vld [vmem:[%s3506] sm:$0xff]
  %v3508 = vld [vmem:[%s3506 + $0x8] sm:$0xff]
  %v3510 = vsel %vm77, %v3493, 0
  %v3513 = vsel %vm77, %v3494, 0
  %v3516 = vsel %vm77, %v3495, 0
  %v3519 = vsel %vm77, %v3496, 0
  %v3522 = vsel %vm77, %v3497, 0
  %v3525 = vsel %vm77, %v3498, 0
  %v3528 = vsel %vm77, %v3499, 0
  %v3531 = vsel %vm77, %v3500, 0
  %v3534 = vsel %vm77, %v3501, 0
  %v3537 = vsel %vm77, %v3502, 0
  %v3540 = vsel %vm77, %v3503, 0
  %v3543 = vsel %vm77, %v3504, 0
  %v3546 = vsel %vm77, %v3505, 0
  %3548 = vmatprep.subr.mxu0 0.0
  %3549 = vmatpush1.msra.mxu0 %v3507
  %3550 = vmatprep.subr.mxu0 0.0
  %3551 = vmatpush1.msra.mxu0 %v3508
  %3552 = vmatprep.subr.mxu0 0.0
  %3553 = vmatpush1.msra.mxu0 0.0
  %3554 = vmatprep.subr.mxu0 0.0
  %3555 = vmatpush1.msra.mxu0 0.0
  %3556 = vmatprep.subr.mxu0 0.0
  %3557 = vmatpush1.msra.mxu0 0.0
  %3558 = vmatprep.subr.mxu0 0.0
  %3559 = vmatpush1.msra.mxu0 0.0
  %3560 = vmatprep.subr.mxu0 0.0
  %3561 = vmatpush1.msra.mxu0 0.0
  %3562 = vmatprep.subr.mxu0 0.0
  %3563 = vmatpush1.msra.mxu0 0.0
  %3564 = vmatprep.subr.mxu0 0.0
  %3565 = vmatpush1.msra.mxu0 0.0
  %3566 = vmatprep.subr.mxu0 0.0
  %3567 = vmatpush1.msra.mxu0 0.0
  %3568 = vmatprep.subr.mxu0 0.0
  %3569 = vmatpush1.msra.mxu0 0.0
  %3570 = vmatprep.subr.mxu0 0.0
  %3571 = vmatpush1.msra.mxu0 0.0
  %3572 = vmatprep.subr.mxu0 0.0
  %3573 = vmatpush1.msra.mxu0 0.0
  %3574 = vmatprep.subr.mxu0 0.0
  %3575 = vmatpush1.msra.mxu0 0.0
  %3576 = vmatprep.subr.mxu0 0.0
  %3577 = vmatpush1.msra.mxu0 0.0
  %3578 = vmatprep.subr.mxu0 0.0
  %3579 = vmatpush1.msra.mxu0 0.0
  %3580 = vmatprep.subr.mxu0 0.0
  %3581 = vmatpush1.msra.mxu0 0.0
  %3582 = vmatprep.subr.mxu0 0.0
  %3583 = vmatpush1.msra.mxu0 0.0
  %3584 = vmatprep.subr.mxu0 0.0
  %3585 = vmatpush1.msra.mxu0 0.0
  %3586 = vmatprep.subr.mxu0 0.0
  %3587 = vmatpush1.msra.mxu0 0.0
  %3588 = vmatprep.subr.mxu0 0.0
  %3589 = vmatpush1.msra.mxu0 0.0
  %3590 = vmatprep.subr.mxu0 0.0
  %3591 = vmatpush1.msra.mxu0 0.0
  %3592 = vmatprep.subr.mxu0 0.0
  %3593 = vmatpush1.msra.mxu0 0.0
  %3594 = vmatprep.subr.mxu0 0.0
  %3595 = vmatpush1.msra.mxu0 0.0
  %3596 = vmatprep.subr.mxu0 0.0
  %3597 = vmatpush1.msra.mxu0 0.0
  %3598 = vmatprep.subr.mxu0 0.0
  %3599 = vmatpush1.msra.mxu0 0.0
  %3600 = vmatprep.subr.mxu0 0.0
  %3601 = vmatpush1.msra.mxu0 0.0
  %3602 = vmatprep.subr.mxu0 0.0
  %3603 = vmatpush1.msra.mxu0 0.0
  %3604 = vmatprep.subr.mxu0 0.0
  %3605 = vmatpush1.msra.mxu0 0.0
  %3606 = vmatprep.subr.mxu0 0.0
  %3607 = vmatpush1.msra.mxu0 0.0
  %3608 = vmatprep.subr.mxu0 0.0
  %3609 = vmatpush1.msra.mxu0 0.0
  %3610 = vmatprep.subr.mxu0 0.0
  %3611 = vmatpush1.msra.mxu0 0.0
  %3612 = vmatprep.mubr.f32.mxu0 0.0
  %3613 = vmatmul.mubr.f32.gmra.mrb[0].mxu0 %v3510
  %v3614 = vpop.f32.mrb[0].mxu0
  %v3615 = vadd.f32 0.0, %v3614
  %v3616 = vpop.f32.mrb[0].mxu0
  %3617 = vmatprep.mubr.f32.mxu0 0.0
  %3618 = vmatmul.mubr.f32.gmra.mrb[0].mxu0 %v3513
  %v3619 = vpop.f32.mrb[0].mxu0
  %v3620 = vadd.f32 0.0, %v3619
  %v3621 = vpop.f32.mrb[0].mxu0
  %3622 = vmatprep.mubr.f32.mxu0 0.0
  %3623 = vmatmul.mubr.f32.gmra.mrb[0].mxu0 %v3516
  %v3624 = vpop.f32.mrb[0].mxu0
  %v3625 = vadd.f32 0.0, %v3624
  %v3626 = vpop.f32.mrb[0].mxu0
  %3627 = vmatprep.mubr.f32.mxu0 0.0
  %3628 = vmatmul.mubr.f32.gmra.mrb[0].mxu0 %v3519
  %v3629 = vpop.f32.mrb[0].mxu0
  %v3630 = vadd.f32 0.0, %v3629
  %v3631 = vpop.f32.mrb[0].mxu0
  %3632 = vmatprep.mubr.f32.mxu0 0.0
  %3633 = vmatmul.mubr.f32.gmra.mrb[0].mxu0 %v3522
  %v3634 = vpop.f32.mrb[0].mxu0
  %v3635 = vadd.f32 0.0, %v3634
  %v3636 = vpop.f32.mrb[0].mxu0
  %3637 = vmatprep.mubr.f32.mxu0 0.0
  %3638 = vmatmul.mubr.f32.gmra.mrb[0].mxu0 %v3525
  %v3639 = vpop.f32.mrb[0].mxu0
  %v3640 = vadd.f32 0.0, %v3639
  %v3641 = vpop.f32.mrb[0].mxu0
  %3642 = vmatprep.mubr.f32.mxu0 0.0
  %3643 = vmatmul.mubr.f32.gmra.mrb[0].mxu0 %v3528
  %v3644 = vpop.f32.mrb[0].mxu0
  %v3645 = vadd.f32 0.0, %v3644
  %v3646 = vpop.f32.mrb[0].mxu0
  %3647 = vmatprep.mubr.f32.mxu0 0.0
  %3648 = vmatmul.mubr.f32.gmra.mrb[0].mxu0 %v3531
  %v3649 = vpop.f32.mrb[0].mxu0
  %v3650 = vadd.f32 0.0, %v3649
  %v3651 = vpop.f32.mrb[0].mxu0
  %3652 = vmatprep.mubr.f32.mxu0 0.0
  %3653 = vmatmul.mubr.f32.gmra.mrb[0].mxu0 %v3534
  %v3654 = vpop.f32.mrb[0].mxu0
  %v3655 = vadd.f32 0.0, %v3654
  %v3656 = vpop.f32.mrb[0].mxu0
  %3657 = vmatprep.mubr.f32.mxu0 0.0
  %3658 = vmatmul.mubr.f32.gmra.mrb[0].mxu0 %v3537
  %v3659 = vpop.f32.mrb[0].mxu0
  %v3660 = vadd.f32 0.0, %v3659
  %v3661 = vpop.f32.mrb[0].mxu0
  %3662 = vmatprep.mubr.f32.mxu0 0.0
  %3663 = vmatmul.mubr.f32.gmra.mrb[0].mxu0 %v3540
  %v3664 = vpop.f32.mrb[0].mxu0
  %v3665 = vadd.f32 0.0, %v3664
  %v3666 = vpop.f32.mrb[0].mxu0
  %3667 = vmatprep.mubr.f32.mxu0 0.0
  %3668 = vmatmul.mubr.f32.gmra.mrb[0].mxu0 %v3543
  %v3669 = vpop.f32.mrb[0].mxu0
  %v3670 = vadd.f32 0.0, %v3669
  %v3671 = vpop.f32.mrb[0].mxu0
  %3672 = vmatprep.mubr.f32.mxu0 0.0
  %3673 = vmatmul.mubr.f32.gmra.mrb[0].mxu0 %v3546
  %v3674 = vpop.f32.mrb[0].mxu0
  %v3675 = vadd.f32 0.0, %v3674
  %v3676 = vpop.f32.mrb[0].mxu0
  %3677 = vdwg.mxu0
  %v3678 = vadd.f32 %v3480, %v3615
  %v3679 = vadd.f32 %v3481, %v3620
  %v3680 = vadd.f32 %v3482, %v3625
  %v3681 = vadd.f32 %v3483, %v3630
  %v3682 = vadd.f32 %v3484, %v3635
  %v3683 = vadd.f32 %v3485, %v3640
  %v3684 = vadd.f32 %v3486, %v3645
  %v3685 = vadd.f32 %v3487, %v3650
  %v3686 = vadd.f32 %v3488, %v3655
  %v3687 = vadd.f32 %v3489, %v3660
  %v3688 = vadd.f32 %v3490, %v3665
  %v3689 = vadd.f32 %v3491, %v3670
  %v3690 = vadd.f32 %v3492, %v3675
  %v3691 = vld [vmem:[%s5] sm:$0x1]
  %v3693 = vlaneseq
  %v3694 = vshrl.u32 %v3693, 7
  %v3695 = vsub.s32 0, %v3694
  %v3696 = vrot.slane %v3691, %v3695
  %v3698 = vadd.f32 %v3678, %v3696
  %v3699 = vadd.f32 %v3679, %v3696
  %v3700 = vadd.f32 %v3680, %v3696
  %v3701 = vadd.f32 %v3681, %v3696
  %v3702 = vadd.f32 %v3682, %v3696
  %v3703 = vadd.f32 %v3683, %v3696
  %v3704 = vadd.f32 %v3684, %v3696
  %v3705 = vadd.f32 %v3685, %v3696
  %v3706 = vadd.f32 %v3686, %v3696
  %v3707 = vadd.f32 %v3687, %v3696
  %v3708 = vadd.f32 %v3688, %v3696
  %v3709 = vadd.f32 %v3689, %v3696
  %v3710 = vadd.f32 %v3690, %v3696
  %v3711 = vmax.f32 %v3698, 0.0
  %v3712 = vmax.f32 %v3699, 0.0
  %v3713 = vmax.f32 %v3700, 0.0
  %v3714 = vmax.f32 %v3701, 0.0
  %v3715 = vmax.f32 %v3702, 0.0
  %v3716 = vmax.f32 %v3703, 0.0
  %v3717 = vmax.f32 %v3704, 0.0
  %v3718 = vmax.f32 %v3705, 0.0
  %v3719 = vmax.f32 %v3706, 0.0
  %v3720 = vmax.f32 %v3707, 0.0
  %v3721 = vmax.f32 %v3708, 0.0
  %v3722 = vmax.f32 %v3709, 0.0
  %v3723 = vmax.f32 %v3710, 0.0
  %3724 = vst.msk [vmem:[#allocation3] sm:$0xff] %vm1917, %v3711
  %3725 = vst.msk [vmem:[#allocation3 + $0x8] sm:$0xff] %vm1917, %v3712
  %3726 = vst.msk [vmem:[#allocation3 + $0x10] sm:$0xff] %vm1917, %v3713
  %3727 = vst.msk [vmem:[#allocation3 + $0x18] sm:$0xff] %vm1917, %v3714
  %3728 = vst.msk [vmem:[#allocation3 + $0x20] sm:$0xff] %vm1917, %v3715
  %3729 = vst.msk [vmem:[#allocation3 + $0x28] sm:$0xff] %vm1917, %v3716
  %3730 = vst.msk [vmem:[#allocation3 + $0x30] sm:$0xff] %vm1917, %v3717
  %3731 = vst.msk [vmem:[#allocation3 + $0x38] sm:$0xff] %vm1917, %v3718
  %3732 = vst.msk [vmem:[#allocation3 + $0x40] sm:$0xff] %vm1917, %v3719
  %3733 = vst.msk [vmem:[#allocation3 + $0x48] sm:$0xff] %vm1917, %v3720
  %3734 = vst.msk [vmem:[#allocation3 + $0x50] sm:$0xff] %vm1917, %v3721
  %3735 = vst.msk [vmem:[#allocation3 + $0x58] sm:$0xff] %vm1917, %v3722
  %3736 = vst.msk [vmem:[#allocation3 + $0x60] sm:$0x3] %vm1934, %v3723
  %v3737 = vld [vmem:[#allocation3] sm:$0xff]
  %v3738 = vld [vmem:[#allocation3 + $0x8] sm:$0xff]
  %v3739 = vld [vmem:[#allocation3 + $0x10] sm:$0xff]
  %v3740 = vld [vmem:[#allocation3 + $0x18] sm:$0xff]
  %v3741 = vld [vmem:[#allocation3 + $0x20] sm:$0xff]
  %v3742 = vld [vmem:[#allocation3 + $0x28] sm:$0xff]
  %v3743 = vld [vmem:[#allocation3 + $0x30] sm:$0xff]
  %v3744 = vld [vmem:[#allocation3 + $0x38] sm:$0xff]
  %v3745 = vld [vmem:[#allocation3 + $0x40] sm:$0xff]
  %v3746 = vld [vmem:[#allocation3 + $0x48] sm:$0xff]
  %v3747 = vld [vmem:[#allocation3 + $0x50] sm:$0xff]
  %v3748 = vld [vmem:[#allocation3 + $0x58] sm:$0xff]
  %v3749 = vld [vmem:[#allocation3 + $0x60] sm:$0x3]
  %v3750 = vld [vmem:[%s6] sm:$0xff]
  %v3751 = vld [vmem:[%s6 + $0x8] sm:$0xff]
  %v3752 = vld [vmem:[%s6 + $0x10] sm:$0xff]
  %v3753 = vld [vmem:[%s6 + $0x18] sm:$0xff]
  %v3754 = vld [vmem:[#allocation3 + $0x2] sm:$0xff]
  %v3755 = vld [vmem:[#allocation3 + $0xa] sm:$0xff]
  %v3756 = vld [vmem:[#allocation3 + $0x12] sm:$0xff]
  %v3757 = vld [vmem:[#allocation3 + $0x1a] sm:$0xff]
  %v3758 = vld [vmem:[#allocation3 + $0x22] sm:$0xff]
  %v3759 = vld [vmem:[#allocation3 + $0x2a] sm:$0xff]
  %v3760 = vld [vmem:[#allocation3 + $0x32] sm:$0xff]
  %v3761 = vld [vmem:[#allocation3 + $0x3a] sm:$0xff]
  %v3762 = vld [vmem:[#allocation3 + $0x42] sm:$0xff]
  %v3763 = vld [vmem:[#allocation3 + $0x4a] sm:$0xff]
  %v3764 = vld [vmem:[#allocation3 + $0x52] sm:$0xff]
  %v3765 = vld [vmem:[#allocation3 + $0x5a] sm:$0xff]
  %v3766 = vld [vmem:[#allocation3 + $0x62] sm:$0x3]
  %s3767 = scalar_lea.vmem %s6, 32
  %v3768 = vld [vmem:[%s3767] sm:$0xff]
  %v3769 = vld [vmem:[%s3767 + $0x8] sm:$0xff]
  %v3770 = vld [vmem:[%s3767 + $0x10] sm:$0xff]
  %v3771 = vld [vmem:[%s3767 + $0x18] sm:$0xff]
  %v3773 = vsel %vm1917, %v3754, 0
  %v3776 = vsel %vm1917, %v3755, 0
  %v3779 = vsel %vm1917, %v3756, 0
  %v3782 = vsel %vm1917, %v3757, 0
  %v3785 = vsel %vm1917, %v3758, 0
  %v3788 = vsel %vm1917, %v3759, 0
  %v3791 = vsel %vm1917, %v3760, 0
  %v3794 = vsel %vm1917, %v3761, 0
  %v3797 = vsel %vm1917, %v3762, 0
  %v3800 = vsel %vm1917, %v3763, 0
  %v3803 = vsel %vm1917, %v3764, 0
  %v3806 = vsel %vm1917, %v3765, 0
  %v3809 = vsel %vm1917, %v3766, 0
  %3811 = vmatprep.subr.mxu0 0.0
  %3812 = vmatpush1.msra.mxu0 %v3768
  %3813 = vmatprep.subr.mxu0 0.0
  %3814 = vmatpush1.msra.mxu0 %v3769
  %3815 = vmatprep.subr.mxu0 0.0
  %3816 = vmatpush1.msra.mxu0 %v3770
  %3817 = vmatprep.subr.mxu0 0.0
  %3818 = vmatpush1.msra.mxu0 %v3771
  %3819 = vmatprep.subr.mxu0 0.0
  %3820 = vmatpush1.msra.mxu0 0.0
  %3821 = vmatprep.subr.mxu0 0.0
  %3822 = vmatpush1.msra.mxu0 0.0
  %3823 = vmatprep.subr.mxu0 0.0
  %3824 = vmatpush1.msra.mxu0 0.0
  %3825 = vmatprep.subr.mxu0 0.0
  %3826 = vmatpush1.msra.mxu0 0.0
  %3827 = vmatprep.subr.mxu0 0.0
  %3828 = vmatpush1.msra.mxu0 0.0
  %3829 = vmatprep.subr.mxu0 0.0
  %3830 = vmatpush1.msra.mxu0 0.0
  %3831 = vmatprep.subr.mxu0 0.0
  %3832 = vmatpush1.msra.mxu0 0.0
  %3833 = vmatprep.subr.mxu0 0.0
  %3834 = vmatpush1.msra.mxu0 0.0
  %3835 = vmatprep.subr.mxu0 0.0
  %3836 = vmatpush1.msra.mxu0 0.0
  %3837 = vmatprep.subr.mxu0 0.0
  %3838 = vmatpush1.msra.mxu0 0.0
  %3839 = vmatprep.subr.mxu0 0.0
  %3840 = vmatpush1.msra.mxu0 0.0
  %3841 = vmatprep.subr.mxu0 0.0
  %3842 = vmatpush1.msra.mxu0 0.0
  %3843 = vmatprep.subr.mxu0 0.0
  %3844 = vmatpush1.msra.mxu0 0.0
  %3845 = vmatprep.subr.mxu0 0.0
  %3846 = vmatpush1.msra.mxu0 0.0
  %3847 = vmatprep.subr.mxu0 0.0
  %3848 = vmatpush1.msra.mxu0 0.0
  %3849 = vmatprep.subr.mxu0 0.0
  %3850 = vmatpush1.msra.mxu0 0.0
  %3851 = vmatprep.subr.mxu0 0.0
  %3852 = vmatpush1.msra.mxu0 0.0
  %3853 = vmatprep.subr.mxu0 0.0
  %3854 = vmatpush1.msra.mxu0 0.0
  %3855 = vmatprep.subr.mxu0 0.0
  %3856 = vmatpush1.msra.mxu0 0.0
  %3857 = vmatprep.subr.mxu0 0.0
  %3858 = vmatpush1.msra.mxu0 0.0
  %3859 = vmatprep.subr.mxu0 0.0
  %3860 = vmatpush1.msra.mxu0 0.0
  %3861 = vmatprep.subr.mxu0 0.0
  %3862 = vmatpush1.msra.mxu0 0.0
  %3863 = vmatprep.subr.mxu0 0.0
  %3864 = vmatpush1.msra.mxu0 0.0
  %3865 = vmatprep.subr.mxu0 0.0
  %3866 = vmatpush1.msra.mxu0 0.0
  %3867 = vmatprep.subr.mxu0 0.0
  %3868 = vmatpush1.msra.mxu0 0.0
  %3869 = vmatprep.subr.mxu0 0.0
  %3870 = vmatpush1.msra.mxu0 0.0
  %3871 = vmatprep.subr.mxu0 0.0
  %3872 = vmatpush1.msra.mxu0 0.0
  %3873 = vmatprep.subr.mxu0 0.0
  %3874 = vmatpush1.msra.mxu0 0.0
  %3875 = vmatprep.mubr.f32.mxu0 0.0
  %3876 = vmatmul.mubr.f32.gmra.mrb[0].mxu0 %v3773
  %v3877 = vpop.f32.mrb[0].mxu0
  %v3878 = vadd.f32 0.0, %v3877
  %v3879 = vpop.f32.mrb[0].mxu0
  %3880 = vmatprep.mubr.f32.mxu0 0.0
  %3881 = vmatmul.mubr.f32.gmra.mrb[0].mxu0 %v3776
  %v3882 = vpop.f32.mrb[0].mxu0
  %v3883 = vadd.f32 0.0, %v3882
  %v3884 = vpop.f32.mrb[0].mxu0
  %3885 = vmatprep.mubr.f32.mxu0 0.0
  %3886 = vmatmul.mubr.f32.gmra.mrb[0].mxu0 %v3779
  %v3887 = vpop.f32.mrb[0].mxu0
  %v3888 = vadd.f32 0.0, %v3887
  %v3889 = vpop.f32.mrb[0].mxu0
  %3890 = vmatprep.mubr.f32.mxu0 0.0
  %3891 = vmatmul.mubr.f32.gmra.mrb[0].mxu0 %v3782
  %v3892 = vpop.f32.mrb[0].mxu0
  %v3893 = vadd.f32 0.0, %v3892
  %v3894 = vpop.f32.mrb[0].mxu0
  %3895 = vmatprep.mubr.f32.mxu0 0.0
  %3896 = vmatmul.mubr.f32.gmra.mrb[0].mxu0 %v3785
  %v3897 = vpop.f32.mrb[0].mxu0
  %v3898 = vadd.f32 0.0, %v3897
  %v3899 = vpop.f32.mrb[0].mxu0
  %3900 = vmatprep.mubr.f32.mxu0 0.0
  %3901 = vmatmul.mubr.f32.gmra.mrb[0].mxu0 %v3788
  %v3902 = vpop.f32.mrb[0].mxu0
  %v3903 = vadd.f32 0.0, %v3902
  %v3904 = vpop.f32.mrb[0].mxu0
  %3905 = vmatprep.mubr.f32.mxu0 0.0
  %3906 = vmatmul.mubr.f32.gmra.mrb[0].mxu0 %v3791
  %v3907 = vpop.f32.mrb[0].mxu0
  %v3908 = vadd.f32 0.0, %v3907
  %v3909 = vpop.f32.mrb[0].mxu0
  %3910 = vmatprep.mubr.f32.mxu0 0.0
  %3911 = vmatmul.mubr.f32.gmra.mrb[0].mxu0 %v3794
  %v3912 = vpop.f32.mrb[0].mxu0
  %v3913 = vadd.f32 0.0, %v3912
  %v3914 = vpop.f32.mrb[0].mxu0
  %3915 = vmatprep.mubr.f32.mxu0 0.0
  %3916 = vmatmul.mubr.f32.gmra.mrb[0].mxu0 %v3797
  %v3917 = vpop.f32.mrb[0].mxu0
  %v3918 = vadd.f32 0.0, %v3917
  %v3919 = vpop.f32.mrb[0].mxu0
  %3920 = vmatprep.mubr.f32.mxu0 0.0
  %3921 = vmatmul.mubr.f32.gmra.mrb[0].mxu0 %v3800
  %v3922 = vpop.f32.mrb[0].mxu0
  %v3923 = vadd.f32 0.0, %v3922
  %v3924 = vpop.f32.mrb[0].mxu0
  %3925 = vmatprep.mubr.f32.mxu0 0.0
  %3926 = vmatmul.mubr.f32.gmra.mrb[0].mxu0 %v3803
  %v3927 = vpop.f32.mrb[0].mxu0
  %v3928 = vadd.f32 0.0, %v3927
  %v3929 = vpop.f32.mrb[0].mxu0
  %3930 = vmatprep.mubr.f32.mxu0 0.0
  %3931 = vmatmul.mubr.f32.gmra.mrb[0].mxu0 %v3806
  %v3932 = vpop.f32.mrb[0].mxu0
  %v3933 = vadd.f32 0.0, %v3932
  %v3934 = vpop.f32.mrb[0].mxu0
  %3935 = vmatprep.mubr.f32.mxu0 0.0
  %3936 = vmatmul.mubr.f32.gmra.mrb[0].mxu0 %v3809
  %v3937 = vpop.f32.mrb[0].mxu0
  %v3938 = vadd.f32 0.0, %v3937
  %v3939 = vpop.f32.mrb[0].mxu0
  %3940 = vdwg.mxu0
  %v3942 = vsel %vm1917, %v3737, 0
  %v3945 = vsel %vm1917, %v3738, 0
  %v3948 = vsel %vm1917, %v3739, 0
  %v3951 = vsel %vm1917, %v3740, 0
  %v3954 = vsel %vm1917, %v3741, 0
  %v3957 = vsel %vm1917, %v3742, 0
  %v3960 = vsel %vm1917, %v3743, 0
  %v3963 = vsel %vm1917, %v3744, 0
  %v3966 = vsel %vm1917, %v3745, 0
  %v3969 = vsel %vm1917, %v3746, 0
  %v3972 = vsel %vm1917, %v3747, 0
  %v3975 = vsel %vm1917, %v3748, 0
  %v3978 = vsel %vm1917, %v3749, 0
  %3980 = vmatprep.subr.mxu0 0.0
  %3981 = vmatpush1.msra.mxu0 %v3750
  %3982 = vmatprep.subr.mxu0 0.0
  %3983 = vmatpush1.msra.mxu0 %v3751
  %3984 = vmatprep.subr.mxu0 0.0
  %3985 = vmatpush1.msra.mxu0 %v3752
  %3986 = vmatprep.subr.mxu0 0.0
  %3987 = vmatpush1.msra.mxu0 %v3753
  %3988 = vmatprep.subr.mxu0 0.0
  %3989 = vmatpush1.msra.mxu0 0.0
  %3990 = vmatprep.subr.mxu0 0.0
  %3991 = vmatpush1.msra.mxu0 0.0
  %3992 = vmatprep.subr.mxu0 0.0
  %3993 = vmatpush1.msra.mxu0 0.0
  %3994 = vmatprep.subr.mxu0 0.0
  %3995 = vmatpush1.msra.mxu0 0.0
  %3996 = vmatprep.subr.mxu0 0.0
  %3997 = vmatpush1.msra.mxu0 0.0
  %3998 = vmatprep.subr.mxu0 0.0
  %3999 = vmatpush1.msra.mxu0 0.0
  %4000 = vmatprep.subr.mxu0 0.0
  %4001 = vmatpush1.msra.mxu0 0.0
  %4002 = vmatprep.subr.mxu0 0.0
  %4003 = vmatpush1.msra.mxu0 0.0
  %4004 = vmatprep.subr.mxu0 0.0
  %4005 = vmatpush1.msra.mxu0 0.0
  %4006 = vmatprep.subr.mxu0 0.0
  %4007 = vmatpush1.msra.mxu0 0.0
  %4008 = vmatprep.subr.mxu0 0.0
  %4009 = vmatpush1.msra.mxu0 0.0
  %4010 = vmatprep.subr.mxu0 0.0
  %4011 = vmatpush1.msra.mxu0 0.0
  %4012 = vmatprep.subr.mxu0 0.0
  %4013 = vmatpush1.msra.mxu0 0.0
  %4014 = vmatprep.subr.mxu0 0.0
  %4015 = vmatpush1.msra.mxu0 0.0
  %4016 = vmatprep.subr.mxu0 0.0
  %4017 = vmatpush1.msra.mxu0 0.0
  %4018 = vmatprep.subr.mxu0 0.0
  %4019 = vmatpush1.msra.mxu0 0.0
  %4020 = vmatprep.subr.mxu0 0.0
  %4021 = vmatpush1.msra.mxu0 0.0
  %4022 = vmatprep.subr.mxu0 0.0
  %4023 = vmatpush1.msra.mxu0 0.0
  %4024 = vmatprep.subr.mxu0 0.0
  %4025 = vmatpush1.msra.mxu0 0.0
  %4026 = vmatprep.subr.mxu0 0.0
  %4027 = vmatpush1.msra.mxu0 0.0
  %4028 = vmatprep.subr.mxu0 0.0
  %4029 = vmatpush1.msra.mxu0 0.0
  %4030 = vmatprep.subr.mxu0 0.0
  %4031 = vmatpush1.msra.mxu0 0.0
  %4032 = vmatprep.subr.mxu0 0.0
  %4033 = vmatpush1.msra.mxu0 0.0
  %4034 = vmatprep.subr.mxu0 0.0
  %4035 = vmatpush1.msra.mxu0 0.0
  %4036 = vmatprep.subr.mxu0 0.0
  %4037 = vmatpush1.msra.mxu0 0.0
  %4038 = vmatprep.subr.mxu0 0.0
  %4039 = vmatpush1.msra.mxu0 0.0
  %4040 = vmatprep.subr.mxu0 0.0
  %4041 = vmatpush1.msra.mxu0 0.0
  %4042 = vmatprep.subr.mxu0 0.0
  %4043 = vmatpush1.msra.mxu0 0.0
  %4044 = vmatprep.mubr.f32.mxu0 0.0
  %4045 = vmatmul.mubr.f32.gmra.mrb[0].mxu0 %v3942
  %v4046 = vpop.f32.mrb[0].mxu0
  %v4047 = vadd.f32 %v3878, %v4046
  %v4048 = vpop.f32.mrb[0].mxu0
  %4049 = vmatprep.mubr.f32.mxu0 0.0
  %4050 = vmatmul.mubr.f32.gmra.mrb[0].mxu0 %v3945
  %v4051 = vpop.f32.mrb[0].mxu0
  %v4052 = vadd.f32 %v3883, %v4051
  %v4053 = vpop.f32.mrb[0].mxu0
  %4054 = vmatprep.mubr.f32.mxu0 0.0
  %4055 = vmatmul.mubr.f32.gmra.mrb[0].mxu0 %v3948
  %v4056 = vpop.f32.mrb[0].mxu0
  %v4057 = vadd.f32 %v3888, %v4056
  %v4058 = vpop.f32.mrb[0].mxu0
  %4059 = vmatprep.mubr.f32.mxu0 0.0
  %4060 = vmatmul.mubr.f32.gmra.mrb[0].mxu0 %v3951
  %v4061 = vpop.f32.mrb[0].mxu0
  %v4062 = vadd.f32 %v3893, %v4061
  %v4063 = vpop.f32.mrb[0].mxu0
  %4064 = vmatprep.mubr.f32.mxu0 0.0
  %4065 = vmatmul.mubr.f32.gmra.mrb[0].mxu0 %v3954
  %v4066 = vpop.f32.mrb[0].mxu0
  %v4067 = vadd.f32 %v3898, %v4066
  %v4068 = vpop.f32.mrb[0].mxu0
  %4069 = vmatprep.mubr.f32.mxu0 0.0
  %4070 = vmatmul.mubr.f32.gmra.mrb[0].mxu0 %v3957
  %v4071 = vpop.f32.mrb[0].mxu0
  %v4072 = vadd.f32 %v3903, %v4071
  %v4073 = vpop.f32.mrb[0].mxu0
  %4074 = vmatprep.mubr.f32.mxu0 0.0
  %4075 = vmatmul.mubr.f32.gmra.mrb[0].mxu0 %v3960
  %v4076 = vpop.f32.mrb[0].mxu0
  %v4077 = vadd.f32 %v3908, %v4076
  %v4078 = vpop.f32.mrb[0].mxu0
  %4079 = vmatprep.mubr.f32.mxu0 0.0
  %4080 = vmatmul.mubr.f32.gmra.mrb[0].mxu0 %v3963
  %v4081 = vpop.f32.mrb[0].mxu0
  %v4082 = vadd.f32 %v3913, %v4081
  %v4083 = vpop.f32.mrb[0].mxu0
  %4084 = vmatprep.mubr.f32.mxu0 0.0
  %4085 = vmatmul.mubr.f32.gmra.mrb[0].mxu0 %v3966
  %v4086 = vpop.f32.mrb[0].mxu0
  %v4087 = vadd.f32 %v3918, %v4086
  %v4088 = vpop.f32.mrb[0].mxu0
  %4089 = vmatprep.mubr.f32.mxu0 0.0
  %4090 = vmatmul.mubr.f32.gmra.mrb[0].mxu0 %v3969
  %v4091 = vpop.f32.mrb[0].mxu0
  %v4092 = vadd.f32 %v3923, %v4091
  %v4093 = vpop.f32.mrb[0].mxu0
  %4094 = vmatprep.mubr.f32.mxu0 0.0
  %4095 = vmatmul.mubr.f32.gmra.mrb[0].mxu0 %v3972
  %v4096 = vpop.f32.mrb[0].mxu0
  %v4097 = vadd.f32 %v3928, %v4096
  %v4098 = vpop.f32.mrb[0].mxu0
  %4099 = vmatprep.mubr.f32.mxu0 0.0
  %4100 = vmatmul.mubr.f32.gmra.mrb[0].mxu0 %v3975
  %v4101 = vpop.f32.mrb[0].mxu0
  %v4102 = vadd.f32 %v3933, %v4101
  %v4103 = vpop.f32.mrb[0].mxu0
  %4104 = vmatprep.mubr.f32.mxu0 0.0
  %4105 = vmatmul.mubr.f32.gmra.mrb[0].mxu0 %v3978
  %v4106 = vpop.f32.mrb[0].mxu0
  %v4107 = vadd.f32 %v3938, %v4106
  %v4108 = vpop.f32.mrb[0].mxu0
  %4109 = vdwg.mxu0
  %v4110 = vld [vmem:[#allocation3 + $0xe] sm:$0xff]
  %v4111 = vld [vmem:[#allocation3 + $0x16] sm:$0xff]
  %v4112 = vld [vmem:[#allocation3 + $0x1e] sm:$0xff]
  %v4113 = vld [vmem:[#allocation3 + $0x26] sm:$0xff]
  %v4114 = vld [vmem:[#allocation3 + $0x2e] sm:$0xff]
  %v4115 = vld [vmem:[#allocation3 + $0x36] sm:$0xff]
  %v4116 = vld [vmem:[#allocation3 + $0x3e] sm:$0xff]
  %v4117 = vld [vmem:[#allocation3 + $0x46] sm:$0xff]
  %v4118 = vld [vmem:[#allocation3 + $0x4e] sm:$0xff]
  %v4119 = vld [vmem:[#allocation3 + $0x56] sm:$0xff]
  %v4120 = vld [vmem:[#allocation3 + $0x5e] sm:$0xff]
  %v4121 = vld [vmem:[#allocation3 + $0x66] sm:$0xff]
  %v4122 = vld [vmem:[#allocation3 + $0x6e] sm:$0x3]
  %s4123 = scalar_lea.vmem %s6, 64
  %v4124 = vld [vmem:[%s4123] sm:$0xff]
  %v4125 = vld [vmem:[%s4123 + $0x8] sm:$0xff]
  %v4126 = vld [vmem:[%s4123 + $0x10] sm:$0xff]
  %v4127 = vld [vmem:[%s4123 + $0x18] sm:$0xff]
  %v4129 = vsel %vm1917, %v4110, 0
  %v4132 = vsel %vm1917, %v4111, 0
  %v4135 = vsel %vm1917, %v4112, 0
  %v4138 = vsel %vm1917, %v4113, 0
  %v4141 = vsel %vm1917, %v4114, 0
  %v4144 = vsel %vm1917, %v4115, 0
  %v4147 = vsel %vm1917, %v4116, 0
  %v4150 = vsel %vm1917, %v4117, 0
  %v4153 = vsel %vm1917, %v4118, 0
  %v4156 = vsel %vm1917, %v4119, 0
  %v4159 = vsel %vm1917, %v4120, 0
  %v4162 = vsel %vm1917, %v4121, 0
  %v4165 = vsel %vm1917, %v4122, 0
  %4167 = vmatprep.subr.mxu0 0.0
  %4168 = vmatpush1.msra.mxu0 %v4124
  %4169 = vmatprep.subr.mxu0 0.0
  %4170 = vmatpush1.msra.mxu0 %v4125
  %4171 = vmatprep.subr.mxu0 0.0
  %4172 = vmatpush1.msra.mxu0 %v4126
  %4173 = vmatprep.subr.mxu0 0.0
  %4174 = vmatpush1.msra.mxu0 %v4127
  %4175 = vmatprep.subr.mxu0 0.0
  %4176 = vmatpush1.msra.mxu0 0.0
  %4177 = vmatprep.subr.mxu0 0.0
  %4178 = vmatpush1.msra.mxu0 0.0
  %4179 = vmatprep.subr.mxu0 0.0
  %4180 = vmatpush1.msra.mxu0 0.0
  %4181 = vmatprep.subr.mxu0 0.0
  %4182 = vmatpush1.msra.mxu0 0.0
  %4183 = vmatprep.subr.mxu0 0.0
  %4184 = vmatpush1.msra.mxu0 0.0
  %4185 = vmatprep.subr.mxu0 0.0
  %4186 = vmatpush1.msra.mxu0 0.0
  %4187 = vmatprep.subr.mxu0 0.0
  %4188 = vmatpush1.msra.mxu0 0.0
  %4189 = vmatprep.subr.mxu0 0.0
  %4190 = vmatpush1.msra.mxu0 0.0
  %4191 = vmatprep.subr.mxu0 0.0
  %4192 = vmatpush1.msra.mxu0 0.0
  %4193 = vmatprep.subr.mxu0 0.0
  %4194 = vmatpush1.msra.mxu0 0.0
  %4195 = vmatprep.subr.mxu0 0.0
  %4196 = vmatpush1.msra.mxu0 0.0
  %4197 = vmatprep.subr.mxu0 0.0
  %4198 = vmatpush1.msra.mxu0 0.0
  %4199 = vmatprep.subr.mxu0 0.0
  %4200 = vmatpush1.msra.mxu0 0.0
  %4201 = vmatprep.subr.mxu0 0.0
  %4202 = vmatpush1.msra.mxu0 0.0
  %4203 = vmatprep.subr.mxu0 0.0
  %4204 = vmatpush1.msra.mxu0 0.0
  %4205 = vmatprep.subr.mxu0 0.0
  %4206 = vmatpush1.msra.mxu0 0.0
  %4207 = vmatprep.subr.mxu0 0.0
  %4208 = vmatpush1.msra.mxu0 0.0
  %4209 = vmatprep.subr.mxu0 0.0
  %4210 = vmatpush1.msra.mxu0 0.0
  %4211 = vmatprep.subr.mxu0 0.0
  %4212 = vmatpush1.msra.mxu0 0.0
  %4213 = vmatprep.subr.mxu0 0.0
  %4214 = vmatpush1.msra.mxu0 0.0
  %4215 = vmatprep.subr.mxu0 0.0
  %4216 = vmatpush1.msra.mxu0 0.0
  %4217 = vmatprep.subr.mxu0 0.0
  %4218 = vmatpush1.msra.mxu0 0.0
  %4219 = vmatprep.subr.mxu0 0.0
  %4220 = vmatpush1.msra.mxu0 0.0
  %4221 = vmatprep.subr.mxu0 0.0
  %4222 = vmatpush1.msra.mxu0 0.0
  %4223 = vmatprep.subr.mxu0 0.0
  %4224 = vmatpush1.msra.mxu0 0.0
  %4225 = vmatprep.subr.mxu0 0.0
  %4226 = vmatpush1.msra.mxu0 0.0
  %4227 = vmatprep.subr.mxu0 0.0
  %4228 = vmatpush1.msra.mxu0 0.0
  %4229 = vmatprep.subr.mxu0 0.0
  %4230 = vmatpush1.msra.mxu0 0.0
  %4231 = vmatprep.mubr.f32.mxu0 0.0
  %4232 = vmatmul.mubr.f32.gmra.mrb[0].mxu0 %v4129
  %v4233 = vpop.f32.mrb[0].mxu0
  %v4234 = vadd.f32 0.0, %v4233
  %v4235 = vpop.f32.mrb[0].mxu0
  %4236 = vmatprep.mubr.f32.mxu0 0.0
  %4237 = vmatmul.mubr.f32.gmra.mrb[0].mxu0 %v4132
  %v4238 = vpop.f32.mrb[0].mxu0
  %v4239 = vadd.f32 0.0, %v4238
  %v4240 = vpop.f32.mrb[0].mxu0
  %4241 = vmatprep.mubr.f32.mxu0 0.0
  %4242 = vmatmul.mubr.f32.gmra.mrb[0].mxu0 %v4135
  %v4243 = vpop.f32.mrb[0].mxu0
  %v4244 = vadd.f32 0.0, %v4243
  %v4245 = vpop.f32.mrb[0].mxu0
  %4246 = vmatprep.mubr.f32.mxu0 0.0
  %4247 = vmatmul.mubr.f32.gmra.mrb[0].mxu0 %v4138
  %v4248 = vpop.f32.mrb[0].mxu0
  %v4249 = vadd.f32 0.0, %v4248
  %v4250 = vpop.f32.mrb[0].mxu0
  %4251 = vmatprep.mubr.f32.mxu0 0.0
  %4252 = vmatmul.mubr.f32.gmra.mrb[0].mxu0 %v4141
  %v4253 = vpop.f32.mrb[0].mxu0
  %v4254 = vadd.f32 0.0, %v4253
  %v4255 = vpop.f32.mrb[0].mxu0
  %4256 = vmatprep.mubr.f32.mxu0 0.0
  %4257 = vmatmul.mubr.f32.gmra.mrb[0].mxu0 %v4144
  %v4258 = vpop.f32.mrb[0].mxu0
  %v4259 = vadd.f32 0.0, %v4258
  %v4260 = vpop.f32.mrb[0].mxu0
  %4261 = vmatprep.mubr.f32.mxu0 0.0
  %4262 = vmatmul.mubr.f32.gmra.mrb[0].mxu0 %v4147
  %v4263 = vpop.f32.mrb[0].mxu0
  %v4264 = vadd.f32 0.0, %v4263
  %v4265 = vpop.f32.mrb[0].mxu0
  %4266 = vmatprep.mubr.f32.mxu0 0.0
  %4267 = vmatmul.mubr.f32.gmra.mrb[0].mxu0 %v4150
  %v4268 = vpop.f32.mrb[0].mxu0
  %v4269 = vadd.f32 0.0, %v4268
  %v4270 = vpop.f32.mrb[0].mxu0
  %4271 = vmatprep.mubr.f32.mxu0 0.0
  %4272 = vmatmul.mubr.f32.gmra.mrb[0].mxu0 %v4153
  %v4273 = vpop.f32.mrb[0].mxu0
  %v4274 = vadd.f32 0.0, %v4273
  %v4275 = vpop.f32.mrb[0].mxu0
  %4276 = vmatprep.mubr.f32.mxu0 0.0
  %4277 = vmatmul.mubr.f32.gmra.mrb[0].mxu0 %v4156
  %v4278 = vpop.f32.mrb[0].mxu0
  %v4279 = vadd.f32 0.0, %v4278
  %v4280 = vpop.f32.mrb[0].mxu0
  %4281 = vmatprep.mubr.f32.mxu0 0.0
  %4282 = vmatmul.mubr.f32.gmra.mrb[0].mxu0 %v4159
  %v4283 = vpop.f32.mrb[0].mxu0
  %v4284 = vadd.f32 0.0, %v4283
  %v4285 = vpop.f32.mrb[0].mxu0
  %4286 = vmatprep.mubr.f32.mxu0 0.0
  %4287 = vmatmul.mubr.f32.gmra.mrb[0].mxu0 %v4162
  %v4288 = vpop.f32.mrb[0].mxu0
  %v4289 = vadd.f32 0.0, %v4288
  %v4290 = vpop.f32.mrb[0].mxu0
  %4291 = vmatprep.mubr.f32.mxu0 0.0
  %4292 = vmatmul.mubr.f32.gmra.mrb[0].mxu0 %v4165
  %v4293 = vpop.f32.mrb[0].mxu0
  %v4294 = vadd.f32 0.0, %v4293
  %v4295 = vpop.f32.mrb[0].mxu0
  %4296 = vdwg.mxu0
  %v4297 = vadd.f32 %v4047, %v4234
  %v4298 = vadd.f32 %v4052, %v4239
  %v4299 = vadd.f32 %v4057, %v4244
  %v4300 = vadd.f32 %v4062, %v4249
  %v4301 = vadd.f32 %v4067, %v4254
  %v4302 = vadd.f32 %v4072, %v4259
  %v4303 = vadd.f32 %v4077, %v4264
  %v4304 = vadd.f32 %v4082, %v4269
  %v4305 = vadd.f32 %v4087, %v4274
  %v4306 = vadd.f32 %v4092, %v4279
  %v4307 = vadd.f32 %v4097, %v4284
  %v4308 = vadd.f32 %v4102, %v4289
  %v4309 = vadd.f32 %v4107, %v4294
  %v4310 = vld [vmem:[#allocation3 + $0x10] sm:$0xff]
  %v4311 = vld [vmem:[#allocation3 + $0x18] sm:$0xff]
  %v4312 = vld [vmem:[#allocation3 + $0x20] sm:$0xff]
  %v4313 = vld [vmem:[#allocation3 + $0x28] sm:$0xff]
  %v4314 = vld [vmem:[#allocation3 + $0x30] sm:$0xff]
  %v4315 = vld [vmem:[#allocation3 + $0x38] sm:$0xff]
  %v4316 = vld [vmem:[#allocation3 + $0x40] sm:$0xff]
  %v4317 = vld [vmem:[#allocation3 + $0x48] sm:$0xff]
  %v4318 = vld [vmem:[#allocation3 + $0x50] sm:$0xff]
  %v4319 = vld [vmem:[#allocation3 + $0x58] sm:$0xff]
  %v4320 = vld [vmem:[#allocation3 + $0x60] sm:$0xff]
  %v4321 = vld [vmem:[#allocation3 + $0x68] sm:$0xff]
  %v4322 = vld [vmem:[#allocation3 + $0x70] sm:$0x3]
  %s4323 = scalar_lea.vmem %s6, 96
  %v4324 = vld [vmem:[%s4323] sm:$0xff]
  %v4325 = vld [vmem:[%s4323 + $0x8] sm:$0xff]
  %v4326 = vld [vmem:[%s4323 + $0x10] sm:$0xff]
  %v4327 = vld [vmem:[%s4323 + $0x18] sm:$0xff]
  %v4329 = vsel %vm1917, %v4310, 0
  %v4332 = vsel %vm1917, %v4311, 0
  %v4335 = vsel %vm1917, %v4312, 0
  %v4338 = vsel %vm1917, %v4313, 0
  %v4341 = vsel %vm1917, %v4314, 0
  %v4344 = vsel %vm1917, %v4315, 0
  %v4347 = vsel %vm1917, %v4316, 0
  %v4350 = vsel %vm1917, %v4317, 0
  %v4353 = vsel %vm1917, %v4318, 0
  %v4356 = vsel %vm1917, %v4319, 0
  %v4359 = vsel %vm1917, %v4320, 0
  %v4362 = vsel %vm1917, %v4321, 0
  %v4365 = vsel %vm1917, %v4322, 0
  %4367 = vmatprep.subr.mxu0 0.0
  %4368 = vmatpush1.msra.mxu0 %v4324
  %4369 = vmatprep.subr.mxu0 0.0
  %4370 = vmatpush1.msra.mxu0 %v4325
  %4371 = vmatprep.subr.mxu0 0.0
  %4372 = vmatpush1.msra.mxu0 %v4326
  %4373 = vmatprep.subr.mxu0 0.0
  %4374 = vmatpush1.msra.mxu0 %v4327
  %4375 = vmatprep.subr.mxu0 0.0
  %4376 = vmatpush1.msra.mxu0 0.0
  %4377 = vmatprep.subr.mxu0 0.0
  %4378 = vmatpush1.msra.mxu0 0.0
  %4379 = vmatprep.subr.mxu0 0.0
  %4380 = vmatpush1.msra.mxu0 0.0
  %4381 = vmatprep.subr.mxu0 0.0
  %4382 = vmatpush1.msra.mxu0 0.0
  %4383 = vmatprep.subr.mxu0 0.0
  %4384 = vmatpush1.msra.mxu0 0.0
  %4385 = vmatprep.subr.mxu0 0.0
  %4386 = vmatpush1.msra.mxu0 0.0
  %4387 = vmatprep.subr.mxu0 0.0
  %4388 = vmatpush1.msra.mxu0 0.0
  %4389 = vmatprep.subr.mxu0 0.0
  %4390 = vmatpush1.msra.mxu0 0.0
  %4391 = vmatprep.subr.mxu0 0.0
  %4392 = vmatpush1.msra.mxu0 0.0
  %4393 = vmatprep.subr.mxu0 0.0
  %4394 = vmatpush1.msra.mxu0 0.0
  %4395 = vmatprep.subr.mxu0 0.0
  %4396 = vmatpush1.msra.mxu0 0.0
  %4397 = vmatprep.subr.mxu0 0.0
  %4398 = vmatpush1.msra.mxu0 0.0
  %4399 = vmatprep.subr.mxu0 0.0
  %4400 = vmatpush1.msra.mxu0 0.0
  %4401 = vmatprep.subr.mxu0 0.0
  %4402 = vmatpush1.msra.mxu0 0.0
  %4403 = vmatprep.subr.mxu0 0.0
  %4404 = vmatpush1.msra.mxu0 0.0
  %4405 = vmatprep.subr.mxu0 0.0
  %4406 = vmatpush1.msra.mxu0 0.0
  %4407 = vmatprep.subr.mxu0 0.0
  %4408 = vmatpush1.msra.mxu0 0.0
  %4409 = vmatprep.subr.mxu0 0.0
  %4410 = vmatpush1.msra.mxu0 0.0
  %4411 = vmatprep.subr.mxu0 0.0
  %4412 = vmatpush1.msra.mxu0 0.0
  %4413 = vmatprep.subr.mxu0 0.0
  %4414 = vmatpush1.msra.mxu0 0.0
  %4415 = vmatprep.subr.mxu0 0.0
  %4416 = vmatpush1.msra.mxu0 0.0
  %4417 = vmatprep.subr.mxu0 0.0
  %4418 = vmatpush1.msra.mxu0 0.0
  %4419 = vmatprep.subr.mxu0 0.0
  %4420 = vmatpush1.msra.mxu0 0.0
  %4421 = vmatprep.subr.mxu0 0.0
  %4422 = vmatpush1.msra.mxu0 0.0
  %4423 = vmatprep.subr.mxu0 0.0
  %4424 = vmatpush1.msra.mxu0 0.0
  %4425 = vmatprep.subr.mxu0 0.0
  %4426 = vmatpush1.msra.mxu0 0.0
  %4427 = vmatprep.subr.mxu0 0.0
  %4428 = vmatpush1.msra.mxu0 0.0
  %4429 = vmatprep.subr.mxu0 0.0
  %4430 = vmatpush1.msra.mxu0 0.0
  %4431 = vmatprep.mubr.f32.mxu0 0.0
  %4432 = vmatmul.mubr.f32.gmra.mrb[0].mxu0 %v4329
  %v4433 = vpop.f32.mrb[0].mxu0
  %v4434 = vadd.f32 0.0, %v4433
  %v4435 = vpop.f32.mrb[0].mxu0
  %4436 = vmatprep.mubr.f32.mxu0 0.0
  %4437 = vmatmul.mubr.f32.gmra.mrb[0].mxu0 %v4332
  %v4438 = vpop.f32.mrb[0].mxu0
  %v4439 = vadd.f32 0.0, %v4438
  %v4440 = vpop.f32.mrb[0].mxu0
  %4441 = vmatprep.mubr.f32.mxu0 0.0
  %4442 = vmatmul.mubr.f32.gmra.mrb[0].mxu0 %v4335
  %v4443 = vpop.f32.mrb[0].mxu0
  %v4444 = vadd.f32 0.0, %v4443
  %v4445 = vpop.f32.mrb[0].mxu0
  %4446 = vmatprep.mubr.f32.mxu0 0.0
  %4447 = vmatmul.mubr.f32.gmra.mrb[0].mxu0 %v4338
  %v4448 = vpop.f32.mrb[0].mxu0
  %v4449 = vadd.f32 0.0, %v4448
  %v4450 = vpop.f32.mrb[0].mxu0
  %4451 = vmatprep.mubr.f32.mxu0 0.0
  %4452 = vmatmul.mubr.f32.gmra.mrb[0].mxu0 %v4341
  %v4453 = vpop.f32.mrb[0].mxu0
  %v4454 = vadd.f32 0.0, %v4453
  %v4455 = vpop.f32.mrb[0].mxu0
  %4456 = vmatprep.mubr.f32.mxu0 0.0
  %4457 = vmatmul.mubr.f32.gmra.mrb[0].mxu0 %v4344
  %v4458 = vpop.f32.mrb[0].mxu0
  %v4459 = vadd.f32 0.0, %v4458
  %v4460 = vpop.f32.mrb[0].mxu0
  %4461 = vmatprep.mubr.f32.mxu0 0.0
  %4462 = vmatmul.mubr.f32.gmra.mrb[0].mxu0 %v4347
  %v4463 = vpop.f32.mrb[0].mxu0
  %v4464 = vadd.f32 0.0, %v4463
  %v4465 = vpop.f32.mrb[0].mxu0
  %4466 = vmatprep.mubr.f32.mxu0 0.0
  %4467 = vmatmul.mubr.f32.gmra.mrb[0].mxu0 %v4350
  %v4468 = vpop.f32.mrb[0].mxu0
  %v4469 = vadd.f32 0.0, %v4468
  %v4470 = vpop.f32.mrb[0].mxu0
  %4471 = vmatprep.mubr.f32.mxu0 0.0
  %4472 = vmatmul.mubr.f32.gmra.mrb[0].mxu0 %v4353
  %v4473 = vpop.f32.mrb[0].mxu0
  %v4474 = vadd.f32 0.0, %v4473
  %v4475 = vpop.f32.mrb[0].mxu0
  %4476 = vmatprep.mubr.f32.mxu0 0.0
  %4477 = vmatmul.mubr.f32.gmra.mrb[0].mxu0 %v4356
  %v4478 = vpop.f32.mrb[0].mxu0
  %v4479 = vadd.f32 0.0, %v4478
  %v4480 = vpop.f32.mrb[0].mxu0
  %4481 = vmatprep.mubr.f32.mxu0 0.0
  %4482 = vmatmul.mubr.f32.gmra.mrb[0].mxu0 %v4359
  %v4483 = vpop.f32.mrb[0].mxu0
  %v4484 = vadd.f32 0.0, %v4483
  %v4485 = vpop.f32.mrb[0].mxu0
  %4486 = vmatprep.mubr.f32.mxu0 0.0
  %4487 = vmatmul.mubr.f32.gmra.mrb[0].mxu0 %v4362
  %v4488 = vpop.f32.mrb[0].mxu0
  %v4489 = vadd.f32 0.0, %v4488
  %v4490 = vpop.f32.mrb[0].mxu0
  %4491 = vmatprep.mubr.f32.mxu0 0.0
  %4492 = vmatmul.mubr.f32.gmra.mrb[0].mxu0 %v4365
  %v4493 = vpop.f32.mrb[0].mxu0
  %v4494 = vadd.f32 0.0, %v4493
  %v4495 = vpop.f32.mrb[0].mxu0
  %4496 = vdwg.mxu0
  %v4497 = vadd.f32 %v4297, %v4434
  %v4498 = vadd.f32 %v4298, %v4439
  %v4499 = vadd.f32 %v4299, %v4444
  %v4500 = vadd.f32 %v4300, %v4449
  %v4501 = vadd.f32 %v4301, %v4454
  %v4502 = vadd.f32 %v4302, %v4459
  %v4503 = vadd.f32 %v4303, %v4464
  %v4504 = vadd.f32 %v4304, %v4469
  %v4505 = vadd.f32 %v4305, %v4474
  %v4506 = vadd.f32 %v4306, %v4479
  %v4507 = vadd.f32 %v4307, %v4484
  %v4508 = vadd.f32 %v4308, %v4489
  %v4509 = vadd.f32 %v4309, %v4494
  %v4510 = vld [vmem:[%s7] sm:$0x1]
  %v4512 = vlaneseq
  %v4513 = vshrl.u32 %v4512, 7
  %v4514 = vsub.s32 0, %v4513
  %v4515 = vrot.slane %v4510, %v4514
  %v4517 = vadd.f32 %v4497, %v4515
  %v4518 = vadd.f32 %v4498, %v4515
  %v4519 = vadd.f32 %v4499, %v4515
  %v4520 = vadd.f32 %v4500, %v4515
  %v4521 = vadd.f32 %v4501, %v4515
  %v4522 = vadd.f32 %v4502, %v4515
  %v4523 = vadd.f32 %v4503, %v4515
  %v4524 = vadd.f32 %v4504, %v4515
  %v4525 = vadd.f32 %v4505, %v4515
  %v4526 = vadd.f32 %v4506, %v4515
  %v4527 = vadd.f32 %v4507, %v4515
  %v4528 = vadd.f32 %v4508, %v4515
  %v4529 = vadd.f32 %v4509, %v4515
  %v4530 = vmax.f32 %v4517, 0.0
  %v4531 = vmax.f32 %v4518, 0.0
  %v4532 = vmax.f32 %v4519, 0.0
  %v4533 = vmax.f32 %v4520, 0.0
  %v4534 = vmax.f32 %v4521, 0.0
  %v4535 = vmax.f32 %v4522, 0.0
  %v4536 = vmax.f32 %v4523, 0.0
  %v4537 = vmax.f32 %v4524, 0.0
  %v4538 = vmax.f32 %v4525, 0.0
  %v4539 = vmax.f32 %v4526, 0.0
  %v4540 = vmax.f32 %v4527, 0.0
  %v4541 = vmax.f32 %v4528, 0.0
  %v4542 = vmax.f32 %v4529, 0.0
  %4543 = vst.msk [vmem:[#allocation4] sm:$0xff] %vm1917, %v4530
  %4544 = vst.msk [vmem:[#allocation4 + $0x8] sm:$0xff] %vm1917, %v4531
  %4545 = vst.msk [vmem:[#allocation4 + $0x10] sm:$0xff] %vm1917, %v4532
  %4546 = vst.msk [vmem:[#allocation4 + $0x18] sm:$0xff] %vm1917, %v4533
  %4547 = vst.msk [vmem:[#allocation4 + $0x20] sm:$0xff] %vm1917, %v4534
  %4548 = vst.msk [vmem:[#allocation4 + $0x28] sm:$0xff] %vm1917, %v4535
  %4549 = vst.msk [vmem:[#allocation4 + $0x30] sm:$0xff] %vm1917, %v4536
  %4550 = vst.msk [vmem:[#allocation4 + $0x38] sm:$0xff] %vm1917, %v4537
  %4551 = vst.msk [vmem:[#allocation4 + $0x40] sm:$0xff] %vm1917, %v4538
  %4552 = vst.msk [vmem:[#allocation4 + $0x48] sm:$0xff] %vm1917, %v4539
  %4553 = vst.msk [vmem:[#allocation4 + $0x50] sm:$0xff] %vm1917, %v4540
  %4554 = vst.msk [vmem:[#allocation4 + $0x58] sm:$0xff] %vm1917, %v4541
  %4555 = vst.msk [vmem:[#allocation4 + $0x60] sm:$0x3] %vm1934, %v4542
  %v4556 = vld [vmem:[%s1] sm:$0xff]
  %v4557 = vld [vmem:[%s1 + $0x8] sm:$0xff]
  %v4558 = vlaneseq
  %v4559 = vand.u32 %v4558, 127
  %4560 = vset.pattern.permute.xlu0 0
  %4561 = vperm.xlu0 %4560, %v4556
  %v4562 = vpop.permute.xlu0 %4561
  %4563 = vset.pattern.permute.xlu0 0
  %4564 = vperm.xlu0 %4563, %v4557
  %v4565 = vpop.permute.xlu0 %4564
  %vm4566 = vcmp.eq.s32.totalorder %v4562, %v4559
  %vm4567 = vcmp.eq.s32.totalorder %v4565, %v4559
  %v4568 = vsel %vm4566, 1, 0
  %v4569 = vsel %vm4567, 1, 0
  %v4570 = vcvt.s32.f32 %v4568
  %v4571 = vcvt.s32.f32 %v4569
  %v4572 = vld [vmem:[%s8] sm:$0xff]
  %v4573 = vld [vmem:[%s8 + $0x8] sm:$0x1f]
  %vm4574 = vcmask 105472
  %v4576 = vsel %vm4574, %v4570, 0
  %v4579 = vsel %vm4574, %v4571, 0
  %vm4581 = vcmask 1044480
  %v4583 = vsel %vm4581, %v4573, 0
  %4585 = vmatprep.subr.mxu0 0.0
  %4586 = vmatpush1.msra.mxu0 %v4572
  %4587 = vmatprep.subr.mxu0 0.0
  %4588 = vmatpush1.msra.mxu0 %v4583
  %4589 = vmatprep.subr.mxu0 0.0
  %4590 = vmatpush1.msra.mxu0 0.0
  %4591 = vmatprep.subr.mxu0 0.0
  %4592 = vmatpush1.msra.mxu0 0.0
  %4593 = vmatprep.subr.mxu0 0.0
  %4594 = vmatpush1.msra.mxu0 0.0
  %4595 = vmatprep.subr.mxu0 0.0
  %4596 = vmatpush1.msra.mxu0 0.0
  %4597 = vmatprep.subr.mxu0 0.0
  %4598 = vmatpush1.msra.mxu0 0.0
  %4599 = vmatprep.subr.mxu0 0.0
  %4600 = vmatpush1.msra.mxu0 0.0
  %4601 = vmatprep.subr.mxu0 0.0
  %4602 = vmatpush1.msra.mxu0 0.0
  %4603 = vmatprep.subr.mxu0 0.0
  %4604 = vmatpush1.msra.mxu0 0.0
  %4605 = vmatprep.subr.mxu0 0.0
  %4606 = vmatpush1.msra.mxu0 0.0
  %4607 = vmatprep.subr.mxu0 0.0
  %4608 = vmatpush1.msra.mxu0 0.0
  %4609 = vmatprep.subr.mxu0 0.0
  %4610 = vmatpush1.msra.mxu0 0.0
  %4611 = vmatprep.subr.mxu0 0.0
  %4612 = vmatpush1.msra.mxu0 0.0
  %4613 = vmatprep.subr.mxu0 0.0
  %4614 = vmatpush1.msra.mxu0 0.0
  %4615 = vmatprep.subr.mxu0 0.0
  %4616 = vmatpush1.msra.mxu0 0.0
  %4617 = vmatprep.subr.mxu0 0.0
  %4618 = vmatpush1.msra.mxu0 0.0
  %4619 = vmatprep.subr.mxu0 0.0
  %4620 = vmatpush1.msra.mxu0 0.0
  %4621 = vmatprep.subr.mxu0 0.0
  %4622 = vmatpush1.msra.mxu0 0.0
  %4623 = vmatprep.subr.mxu0 0.0
  %4624 = vmatpush1.msra.mxu0 0.0
  %4625 = vmatprep.subr.mxu0 0.0
  %4626 = vmatpush1.msra.mxu0 0.0
  %4627 = vmatprep.subr.mxu0 0.0
  %4628 = vmatpush1.msra.mxu0 0.0
  %4629 = vmatprep.subr.mxu0 0.0
  %4630 = vmatpush1.msra.mxu0 0.0
  %4631 = vmatprep.subr.mxu0 0.0
  %4632 = vmatpush1.msra.mxu0 0.0
  %4633 = vmatprep.subr.mxu0 0.0
  %4634 = vmatpush1.msra.mxu0 0.0
  %4635 = vmatprep.subr.mxu0 0.0
  %4636 = vmatpush1.msra.mxu0 0.0
  %4637 = vmatprep.subr.mxu0 0.0
  %4638 = vmatpush1.msra.mxu0 0.0
  %4639 = vmatprep.subr.mxu0 0.0
  %4640 = vmatpush1.msra.mxu0 0.0
  %4641 = vmatprep.subr.mxu0 0.0
  %4642 = vmatpush1.msra.mxu0 0.0
  %4643 = vmatprep.subr.mxu0 0.0
  %4644 = vmatpush1.msra.mxu0 0.0
  %4645 = vmatprep.subr.mxu0 0.0
  %4646 = vmatpush1.msra.mxu0 0.0
  %4647 = vmatprep.subr.mxu0 0.0
  %4648 = vmatpush1.msra.mxu0 0.0
  %4649 = vmatprep.mubr.f32.mxu0 0.0
  %4650 = vmatmul.mubr.f32.gmra.mrb[0].mxu0 %v4576
  %v4651 = vpop.f32.mrb[0].mxu0
  %v4652 = vadd.f32 0.0, %v4651
  %v4653 = vpop.f32.mrb[0].mxu0
  %4654 = vmatprep.mubr.f32.mxu0 0.0
  %4655 = vmatmul.mubr.f32.gmra.mrb[0].mxu0 %v4579
  %v4656 = vpop.f32.mrb[0].mxu0
  %v4657 = vadd.f32 0.0, %v4656
  %v4658 = vpop.f32.mrb[0].mxu0
  %4659 = vdwg.mxu0
  %v4660 = vld [vmem:[%s9] sm:$0xff]
  %v4661 = vld [vmem:[%s11] sm:$0x1]
  %v4663 = vlaneseq
  %v4664 = vshrl.u32 %v4663, 7
  %v4665 = vsub.s32 0, %v4664
  %v4666 = vrot.slane %v4661, %v4665
  %vm4668 = vcmask 64512
  %v4670 = vsel %vm4668, %v4652, 0
  %v4673 = vsel %vm4668, %v4657, 0
  %4675 = vmatprep.subr.mxu0 0.0
  %4676 = vmatpush1.msra.mxu0 %v4660
  %4677 = vmatprep.subr.mxu0 0.0
  %4678 = vmatpush1.msra.mxu0 0.0
  %4679 = vmatprep.subr.mxu0 0.0
  %4680 = vmatpush1.msra.mxu0 0.0
  %4681 = vmatprep.subr.mxu0 0.0
  %4682 = vmatpush1.msra.mxu0 0.0
  %4683 = vmatprep.subr.mxu0 0.0
  %4684 = vmatpush1.msra.mxu0 0.0
  %4685 = vmatprep.subr.mxu0 0.0
  %4686 = vmatpush1.msra.mxu0 0.0
  %4687 = vmatprep.subr.mxu0 0.0
  %4688 = vmatpush1.msra.mxu0 0.0
  %4689 = vmatprep.subr.mxu0 0.0
  %4690 = vmatpush1.msra.mxu0 0.0
  %4691 = vmatprep.subr.mxu0 0.0
  %4692 = vmatpush1.msra.mxu0 0.0
  %4693 = vmatprep.subr.mxu0 0.0
  %4694 = vmatpush1.msra.mxu0 0.0
  %4695 = vmatprep.subr.mxu0 0.0
  %4696 = vmatpush1.msra.mxu0 0.0
  %4697 = vmatprep.subr.mxu0 0.0
  %4698 = vmatpush1.msra.mxu0 0.0
  %4699 = vmatprep.subr.mxu0 0.0
  %4700 = vmatpush1.msra.mxu0 0.0
  %4701 = vmatprep.subr.mxu0 0.0
  %4702 = vmatpush1.msra.mxu0 0.0
  %4703 = vmatprep.subr.mxu0 0.0
  %4704 = vmatpush1.msra.mxu0 0.0
  %4705 = vmatprep.subr.mxu0 0.0
  %4706 = vmatpush1.msra.mxu0 0.0
  %4707 = vmatprep.subr.mxu0 0.0
  %4708 = vmatpush1.msra.mxu0 0.0
  %4709 = vmatprep.subr.mxu0 0.0
  %4710 = vmatpush1.msra.mxu0 0.0
  %4711 = vmatprep.subr.mxu0 0.0
  %4712 = vmatpush1.msra.mxu0 0.0
  %4713 = vmatprep.subr.mxu0 0.0
  %4714 = vmatpush1.msra.mxu0 0.0
  %4715 = vmatprep.subr.mxu0 0.0
  %4716 = vmatpush1.msra.mxu0 0.0
  %4717 = vmatprep.subr.mxu0 0.0
  %4718 = vmatpush1.msra.mxu0 0.0
  %4719 = vmatprep.subr.mxu0 0.0
  %4720 = vmatpush1.msra.mxu0 0.0
  %4721 = vmatprep.subr.mxu0 0.0
  %4722 = vmatpush1.msra.mxu0 0.0
  %4723 = vmatprep.subr.mxu0 0.0
  %4724 = vmatpush1.msra.mxu0 0.0
  %4725 = vmatprep.subr.mxu0 0.0
  %4726 = vmatpush1.msra.mxu0 0.0
  %4727 = vmatprep.subr.mxu0 0.0
  %4728 = vmatpush1.msra.mxu0 0.0
  %4729 = vmatprep.subr.mxu0 0.0
  %4730 = vmatpush1.msra.mxu0 0.0
  %4731 = vmatprep.subr.mxu0 0.0
  %4732 = vmatpush1.msra.mxu0 0.0
  %4733 = vmatprep.subr.mxu0 0.0
  %4734 = vmatpush1.msra.mxu0 0.0
  %4735 = vmatprep.subr.mxu0 0.0
  %4736 = vmatpush1.msra.mxu0 0.0
  %4737 = vmatprep.subr.mxu0 0.0
  %4738 = vmatpush1.msra.mxu0 0.0
  %4739 = vmatprep.mubr.f32.mxu0 0.0
  %4740 = vmatmul.mubr.f32.gmra.mrb[0].mxu0 %v4670
  %v4741 = vpop.f32.mrb[0].mxu0
  %v4742 = vadd.f32 %v4666, %v4741
  %v4743 = vpop.f32.mrb[0].mxu0
  %4744 = vmatprep.mubr.f32.mxu0 0.0
  %4745 = vmatmul.mubr.f32.gmra.mrb[0].mxu0 %v4673
  %v4746 = vpop.f32.mrb[0].mxu0
  %v4747 = vadd.f32 %v4666, %v4746
  %v4748 = vpop.f32.mrb[0].mxu0
  %4749 = vdwg.mxu0
  %vm4750 = vcmask 785408
  %4751 = vst.msk [vmem:[#allocation5] sm:$0xff] %vm4750, %v4742
  %4752 = vst.msk [vmem:[#allocation5 + $0x8] sm:$0xff] %vm4750, %v4747
  %v4753 = vld [vmem:[%s10] sm:$0xff]
  %v4754 = vld [vmem:[%s12] sm:$0x1]
  %v4756 = vlaneseq
  %v4757 = vshrl.u32 %v4756, 7
  %v4758 = vsub.s32 0, %v4757
  %v4759 = vrot.slane %v4754, %v4758
  %4761 = vmatprep.subr.mxu0 0.0
  %4762 = vmatpush1.msra.mxu0 %v4753
  %4763 = vmatprep.subr.mxu0 0.0
  %4764 = vmatpush1.msra.mxu0 0.0
  %4765 = vmatprep.subr.mxu0 0.0
  %4766 = vmatpush1.msra.mxu0 0.0
  %4767 = vmatprep.subr.mxu0 0.0
  %4768 = vmatpush1.msra.mxu0 0.0
  %4769 = vmatprep.subr.mxu0 0.0
  %4770 = vmatpush1.msra.mxu0 0.0
  %4771 = vmatprep.subr.mxu0 0.0
  %4772 = vmatpush1.msra.mxu0 0.0
  %4773 = vmatprep.subr.mxu0 0.0
  %4774 = vmatpush1.msra.mxu0 0.0
  %4775 = vmatprep.subr.mxu0 0.0
  %4776 = vmatpush1.msra.mxu0 0.0
  %4777 = vmatprep.subr.mxu0 0.0
  %4778 = vmatpush1.msra.mxu0 0.0
  %4779 = vmatprep.subr.mxu0 0.0
  %4780 = vmatpush1.msra.mxu0 0.0
  %4781 = vmatprep.subr.mxu0 0.0
  %4782 = vmatpush1.msra.mxu0 0.0
  %4783 = vmatprep.subr.mxu0 0.0
  %4784 = vmatpush1.msra.mxu0 0.0
  %4785 = vmatprep.subr.mxu0 0.0
  %4786 = vmatpush1.msra.mxu0 0.0
  %4787 = vmatprep.subr.mxu0 0.0
  %4788 = vmatpush1.msra.mxu0 0.0
  %4789 = vmatprep.subr.mxu0 0.0
  %4790 = vmatpush1.msra.mxu0 0.0
  %4791 = vmatprep.subr.mxu0 0.0
  %4792 = vmatpush1.msra.mxu0 0.0
  %4793 = vmatprep.subr.mxu0 0.0
  %4794 = vmatpush1.msra.mxu0 0.0
  %4795 = vmatprep.subr.mxu0 0.0
  %4796 = vmatpush1.msra.mxu0 0.0
  %4797 = vmatprep.subr.mxu0 0.0
  %4798 = vmatpush1.msra.mxu0 0.0
  %4799 = vmatprep.subr.mxu0 0.0
  %4800 = vmatpush1.msra.mxu0 0.0
  %4801 = vmatprep.subr.mxu0 0.0
  %4802 = vmatpush1.msra.mxu0 0.0
  %4803 = vmatprep.subr.mxu0 0.0
  %4804 = vmatpush1.msra.mxu0 0.0
  %4805 = vmatprep.subr.mxu0 0.0
  %4806 = vmatpush1.msra.mxu0 0.0
  %4807 = vmatprep.subr.mxu0 0.0
  %4808 = vmatpush1.msra.mxu0 0.0
  %4809 = vmatprep.subr.mxu0 0.0
  %4810 = vmatpush1.msra.mxu0 0.0
  %4811 = vmatprep.subr.mxu0 0.0
  %4812 = vmatpush1.msra.mxu0 0.0
  %4813 = vmatprep.subr.mxu0 0.0
  %4814 = vmatpush1.msra.mxu0 0.0
  %4815 = vmatprep.subr.mxu0 0.0
  %4816 = vmatpush1.msra.mxu0 0.0
  %4817 = vmatprep.subr.mxu0 0.0
  %4818 = vmatpush1.msra.mxu0 0.0
  %4819 = vmatprep.subr.mxu0 0.0
  %4820 = vmatpush1.msra.mxu0 0.0
  %4821 = vmatprep.subr.mxu0 0.0
  %4822 = vmatpush1.msra.mxu0 0.0
  %4823 = vmatprep.subr.mxu0 0.0
  %4824 = vmatpush1.msra.mxu0 0.0
  %4825 = vmatprep.mubr.f32.mxu0 0.0
  %4826 = vmatmul.mubr.f32.gmra.mrb[0].mxu0 %v4670
  %v4827 = vpop.f32.mrb[0].mxu0
  %v4828 = vadd.f32 %v4759, %v4827
  %v4829 = vpop.f32.mrb[0].mxu0
  %4830 = vmatprep.mubr.f32.mxu0 0.0
  %4831 = vmatmul.mubr.f32.gmra.mrb[0].mxu0 %v4673
  %v4832 = vpop.f32.mrb[0].mxu0
  %v4833 = vadd.f32 %v4759, %v4832
  %v4834 = vpop.f32.mrb[0].mxu0
  %4835 = vdwg.mxu0
  %4836 = vst.msk [vmem:[#allocation6] sm:$0xff] %vm4750, %v4828
  %4837 = vst.msk [vmem:[#allocation6 + $0x8] sm:$0xff] %vm4750, %v4833
  %v4838 = vld [vmem:[%s13] sm:$0xff]
  %v4839 = vld [vmem:[%s13 + $0x8] sm:$0xff]
  %v4840 = vld [vmem:[%s13 + $0x10] sm:$0xff]
  %v4841 = vld [vmem:[%s13 + $0x18] sm:$0xff]
  %v4842 = vld [vmem:[%s14] sm:$0xff]
  %v4843 = vld [vmem:[%s14 + $0x8] sm:$0xff]
  %v4844 = vld [vmem:[%s14 + $0x10] sm:$0xff]
  %v4845 = vld [vmem:[%s14 + $0x18] sm:$0xff]
  %v4846 = vld [vmem:[%s15] sm:$0x1]
  %v4847 = vld [vmem:[%s16] sm:$0x1]
  %v4848 = vld [vmem:[#allocation5] sm:$0x3]
  %v4850 = vsel %vm1917, 0.0, 0
  %4852 = vmatprep.subr.mxu0 0.0
  %4853 = vmatpush1.msra.mxu0 %v4838
  %4854 = vmatprep.subr.mxu0 0.0
  %4855 = vmatpush1.msra.mxu0 %v4839
  %4856 = vmatprep.subr.mxu0 0.0
  %4857 = vmatpush1.msra.mxu0 %v4840
  %4858 = vmatprep.subr.mxu0 0.0
  %4859 = vmatpush1.msra.mxu0 %v4841
  %4860 = vmatprep.subr.mxu0 0.0
  %4861 = vmatpush1.msra.mxu0 0.0
  %4862 = vmatprep.subr.mxu0 0.0
  %4863 = vmatpush1.msra.mxu0 0.0
  %4864 = vmatprep.subr.mxu0 0.0
  %4865 = vmatpush1.msra.mxu0 0.0
  %4866 = vmatprep.subr.mxu0 0.0
  %4867 = vmatpush1.msra.mxu0 0.0
  %4868 = vmatprep.subr.mxu0 0.0
  %4869 = vmatpush1.msra.mxu0 0.0
  %4870 = vmatprep.subr.mxu0 0.0
  %4871 = vmatpush1.msra.mxu0 0.0
  %4872 = vmatprep.subr.mxu0 0.0
  %4873 = vmatpush1.msra.mxu0 0.0
  %4874 = vmatprep.subr.mxu0 0.0
  %4875 = vmatpush1.msra.mxu0 0.0
  %4876 = vmatprep.subr.mxu0 0.0
  %4877 = vmatpush1.msra.mxu0 0.0
  %4878 = vmatprep.subr.mxu0 0.0
  %4879 = vmatpush1.msra.mxu0 0.0
  %4880 = vmatprep.subr.mxu0 0.0
  %4881 = vmatpush1.msra.mxu0 0.0
  %4882 = vmatprep.subr.mxu0 0.0
  %4883 = vmatpush1.msra.mxu0 0.0
  %4884 = vmatprep.subr.mxu0 0.0
  %4885 = vmatpush1.msra.mxu0 0.0
  %4886 = vmatprep.subr.mxu0 0.0
  %4887 = vmatpush1.msra.mxu0 0.0
  %4888 = vmatprep.subr.mxu0 0.0
  %4889 = vmatpush1.msra.mxu0 0.0
  %4890 = vmatprep.subr.mxu0 0.0
  %4891 = vmatpush1.msra.mxu0 0.0
  %4892 = vmatprep.subr.mxu0 0.0
  %4893 = vmatpush1.msra.mxu0 0.0
  %4894 = vmatprep.subr.mxu0 0.0
  %4895 = vmatpush1.msra.mxu0 0.0
  %4896 = vmatprep.subr.mxu0 0.0
  %4897 = vmatpush1.msra.mxu0 0.0
  %4898 = vmatprep.subr.mxu0 0.0
  %4899 = vmatpush1.msra.mxu0 0.0
  %4900 = vmatprep.subr.mxu0 0.0
  %4901 = vmatpush1.msra.mxu0 0.0
  %4902 = vmatprep.subr.mxu0 0.0
  %4903 = vmatpush1.msra.mxu0 0.0
  %4904 = vmatprep.subr.mxu0 0.0
  %4905 = vmatpush1.msra.mxu0 0.0
  %4906 = vmatprep.subr.mxu0 0.0
  %4907 = vmatpush1.msra.mxu0 0.0
  %4908 = vmatprep.subr.mxu0 0.0
  %4909 = vmatpush1.msra.mxu0 0.0
  %4910 = vmatprep.subr.mxu0 0.0
  %4911 = vmatpush1.msra.mxu0 0.0
  %4912 = vmatprep.subr.mxu0 0.0
  %4913 = vmatpush1.msra.mxu0 0.0
  %4914 = vmatprep.subr.mxu0 0.0
  %4915 = vmatpush1.msra.mxu0 0.0
  %4916 = vmatprep.mubr.f32.mxu0 0.0
  %4917 = vmatmul.mubr.f32.gmra.mrb[0].mxu0 %v4850
  %v4918 = vpop.f32.mrb[0].mxu0
  %v4919 = vadd.f32 0.0, %v4918
  %v4920 = vpop.f32.mrb[0].mxu0
  %4921 = vdwg.mxu0
  %v4922 = vadd.f32 %v4848, %v4919
  %v4923 = vxor.u32 %v4922, 2147483648
  %v4924 = vmul.f32 %v4923, 1.442695
  %v4925 = vpow.pop %v4924
  %v4926 = vadd.f32 %v4925, 1.0
  %v4927 = vrcp.pop %v4926
  %v4928 = vmul.f32 1.0, %v4927
  %v4930 = vlaneseq
  %v4931 = vshrl.u32 %v4930, 7
  %v4932 = vsub.s32 0, %v4931
  %v4933 = vrot.slane %v4846, %v4932
  %4934 = vrot.lane.b32.xlu0 %v4933, 64
  %v4935 = vpop.permute.xlu0 %4934
  %v4937 = vadd.f32 %v4919, %v4935
  %4939 = vrot.lane.b32.xlu0 %v4937, 64
  %v4940 = vpop.permute.xlu0 %4939
  %v4942 = vmul.f32 %v4928, %v4940
  %4944 = vrot.lane.b32.xlu0 %v4942, 64
  %v4945 = vpop.permute.xlu0 %4944
  %v4947 = vadd.f32 %v4848, %v4945
  %v4948 = vtanh.pop %v4947
  %v4949 = vsub.f32 1.0, %v4928
  %4951 = vrot.lane.b32.xlu0 %v4948, 96
  %v4952 = vpop.permute.xlu0 %4951
  %v4954 = vmul.f32 %v4949, %v4952
  %v4955 = vmul.f32 %v4928, 0.0
  %v4956 = vadd.f32 %v4954, %v4955
  %v4957 = vld [vmem:[#allocation5 + $0x2] sm:$0x3]
  %4959 = vrot.lane.b32.xlu0 %v4956, 96
  %v4960 = vpop.permute.xlu0 %4959
  %v4961 = vsel %vm1917, %v4960, 0
  %4963 = vmatprep.subr.mxu0 0.0
  %4964 = vmatpush1.msra.mxu0 %v4838
  %4965 = vmatprep.subr.mxu0 0.0
  %4966 = vmatpush1.msra.mxu0 %v4839
  %4967 = vmatprep.subr.mxu0 0.0
  %4968 = vmatpush1.msra.mxu0 %v4840
  %4969 = vmatprep.subr.mxu0 0.0
  %4970 = vmatpush1.msra.mxu0 %v4841
  %4971 = vmatprep.subr.mxu0 0.0
  %4972 = vmatpush1.msra.mxu0 0.0
  %4973 = vmatprep.subr.mxu0 0.0
  %4974 = vmatpush1.msra.mxu0 0.0
  %4975 = vmatprep.subr.mxu0 0.0
  %4976 = vmatpush1.msra.mxu0 0.0
  %4977 = vmatprep.subr.mxu0 0.0
  %4978 = vmatpush1.msra.mxu0 0.0
  %4979 = vmatprep.subr.mxu0 0.0
  %4980 = vmatpush1.msra.mxu0 0.0
  %4981 = vmatprep.subr.mxu0 0.0
  %4982 = vmatpush1.msra.mxu0 0.0
  %4983 = vmatprep.subr.mxu0 0.0
  %4984 = vmatpush1.msra.mxu0 0.0
  %4985 = vmatprep.subr.mxu0 0.0
  %4986 = vmatpush1.msra.mxu0 0.0
  %4987 = vmatprep.subr.mxu0 0.0
  %4988 = vmatpush1.msra.mxu0 0.0
  %4989 = vmatprep.subr.mxu0 0.0
  %4990 = vmatpush1.msra.mxu0 0.0
  %4991 = vmatprep.subr.mxu0 0.0
  %4992 = vmatpush1.msra.mxu0 0.0
  %4993 = vmatprep.subr.mxu0 0.0
  %4994 = vmatpush1.msra.mxu0 0.0
  %4995 = vmatprep.subr.mxu0 0.0
  %4996 = vmatpush1.msra.mxu0 0.0
  %4997 = vmatprep.subr.mxu0 0.0
  %4998 = vmatpush1.msra.mxu0 0.0
  %4999 = vmatprep.subr.mxu0 0.0
  %5000 = vmatpush1.msra.mxu0 0.0
  %5001 = vmatprep.subr.mxu0 0.0
  %5002 = vmatpush1.msra.mxu0 0.0
  %5003 = vmatprep.subr.mxu0 0.0
  %5004 = vmatpush1.msra.mxu0 0.0
  %5005 = vmatprep.subr.mxu0 0.0
  %5006 = vmatpush1.msra.mxu0 0.0
  %5007 = vmatprep.subr.mxu0 0.0
  %5008 = vmatpush1.msra.mxu0 0.0
  %5009 = vmatprep.subr.mxu0 0.0
  %5010 = vmatpush1.msra.mxu0 0.0
  %5011 = vmatprep.subr.mxu0 0.0
  %5012 = vmatpush1.msra.mxu0 0.0
  %5013 = vmatprep.subr.mxu0 0.0
  %5014 = vmatpush1.msra.mxu0 0.0
  %5015 = vmatprep.subr.mxu0 0.0
  %5016 = vmatpush1.msra.mxu0 0.0
  %5017 = vmatprep.subr.mxu0 0.0
  %5018 = vmatpush1.msra.mxu0 0.0
  %5019 = vmatprep.subr.mxu0 0.0
  %5020 = vmatpush1.msra.mxu0 0.0
  %5021 = vmatprep.subr.mxu0 0.0
  %5022 = vmatpush1.msra.mxu0 0.0
  %5023 = vmatprep.subr.mxu0 0.0
  %5024 = vmatpush1.msra.mxu0 0.0
  %5025 = vmatprep.subr.mxu0 0.0
  %5026 = vmatpush1.msra.mxu0 0.0
  %5027 = vmatprep.mubr.f32.mxu0 0.0
  %5028 = vmatmul.mubr.f32.gmra.mrb[0].mxu0 %v4961
  %v5029 = vpop.f32.mrb[0].mxu0
  %v5030 = vadd.f32 0.0, %v5029
  %v5031 = vpop.f32.mrb[0].mxu0
  %5032 = vdwg.mxu0
  %v5033 = vadd.f32 %v4957, %v5030
  %v5034 = vxor.u32 %v5033, 2147483648
  %v5035 = vmul.f32 %v5034, 1.442695
  %v5036 = vpow.pop %v5035
  %v5037 = vadd.f32 %v5036, 1.0
  %v5038 = vrcp.pop %v5037
  %v5039 = vmul.f32 1.0, %v5038
  %v5040 = vadd.f32 %v5030, %v4935
  %5042 = vrot.lane.b32.xlu0 %v5040, 64
  %v5043 = vpop.permute.xlu0 %5042
  %v5045 = vmul.f32 %v5039, %v5043
  %5047 = vrot.lane.b32.xlu0 %v5045, 64
  %v5048 = vpop.permute.xlu0 %5047
  %v5050 = vadd.f32 %v4957, %v5048
  %v5051 = vtanh.pop %v5050
  %v5052 = vsub.f32 1.0, %v5039
  %5054 = vrot.lane.b32.xlu0 %v5051, 96
  %v5055 = vpop.permute.xlu0 %5054
  %v5057 = vmul.f32 %v5052, %v5055
  %v5058 = vmul.f32 %v5039, %v4956
  %v5059 = vadd.f32 %v5057, %v5058
  %v5060 = vld [vmem:[#allocation5 + $0x4] sm:$0x3]
  %5062 = vrot.lane.b32.xlu0 %v5059, 96
  %v5063 = vpop.permute.xlu0 %5062
  %v5064 = vsel %vm1917, %v5063, 0
  %5066 = vmatprep.subr.mxu0 0.0
  %5067 = vmatpush1.msra.mxu0 %v4838
  %5068 = vmatprep.subr.mxu0 0.0
  %5069 = vmatpush1.msra.mxu0 %v4839
  %5070 = vmatprep.subr.mxu0 0.0
  %5071 = vmatpush1.msra.mxu0 %v4840
  %5072 = vmatprep.subr.mxu0 0.0
  %5073 = vmatpush1.msra.mxu0 %v4841
  %5074 = vmatprep.subr.mxu0 0.0
  %5075 = vmatpush1.msra.mxu0 0.0
  %5076 = vmatprep.subr.mxu0 0.0
  %5077 = vmatpush1.msra.mxu0 0.0
  %5078 = vmatprep.subr.mxu0 0.0
  %5079 = vmatpush1.msra.mxu0 0.0
  %5080 = vmatprep.subr.mxu0 0.0
  %5081 = vmatpush1.msra.mxu0 0.0
  %5082 = vmatprep.subr.mxu0 0.0
  %5083 = vmatpush1.msra.mxu0 0.0
  %5084 = vmatprep.subr.mxu0 0.0
  %5085 = vmatpush1.msra.mxu0 0.0
  %5086 = vmatprep.subr.mxu0 0.0
  %5087 = vmatpush1.msra.mxu0 0.0
  %5088 = vmatprep.subr.mxu0 0.0
  %5089 = vmatpush1.msra.mxu0 0.0
  %5090 = vmatprep.subr.mxu0 0.0
  %5091 = vmatpush1.msra.mxu0 0.0
  %5092 = vmatprep.subr.mxu0 0.0
  %5093 = vmatpush1.msra.mxu0 0.0
  %5094 = vmatprep.subr.mxu0 0.0
  %5095 = vmatpush1.msra.mxu0 0.0
  %5096 = vmatprep.subr.mxu0 0.0
  %5097 = vmatpush1.msra.mxu0 0.0
  %5098 = vmatprep.subr.mxu0 0.0
  %5099 = vmatpush1.msra.mxu0 0.0
  %5100 = vmatprep.subr.mxu0 0.0
  %5101 = vmatpush1.msra.mxu0 0.0
  %5102 = vmatprep.subr.mxu0 0.0
  %5103 = vmatpush1.msra.mxu0 0.0
  %5104 = vmatprep.subr.mxu0 0.0
  %5105 = vmatpush1.msra.mxu0 0.0
  %5106 = vmatprep.subr.mxu0 0.0
  %5107 = vmatpush1.msra.mxu0 0.0
  %5108 = vmatprep.subr.mxu0 0.0
  %5109 = vmatpush1.msra.mxu0 0.0
  %5110 = vmatprep.subr.mxu0 0.0
  %5111 = vmatpush1.msra.mxu0 0.0
  %5112 = vmatprep.subr.mxu0 0.0
  %5113 = vmatpush1.msra.mxu0 0.0
  %5114 = vmatprep.subr.mxu0 0.0
  %5115 = vmatpush1.msra.mxu0 0.0
  %5116 = vmatprep.subr.mxu0 0.0
  %5117 = vmatpush1.msra.mxu0 0.0
  %5118 = vmatprep.subr.mxu0 0.0
  %5119 = vmatpush1.msra.mxu0 0.0
  %5120 = vmatprep.subr.mxu0 0.0
  %5121 = vmatpush1.msra.mxu0 0.0
  %5122 = vmatprep.subr.mxu0 0.0
  %5123 = vmatpush1.msra.mxu0 0.0
  %5124 = vmatprep.subr.mxu0 0.0
  %5125 = vmatpush1.msra.mxu0 0.0
  %5126 = vmatprep.subr.mxu0 0.0
  %5127 = vmatpush1.msra.mxu0 0.0
  %5128 = vmatprep.subr.mxu0 0.0
  %5129 = vmatpush1.msra.mxu0 0.0
  %5130 = vmatprep.mubr.f32.mxu0 0.0
  %5131 = vmatmul.mubr.f32.gmra.mrb[0].mxu0 %v5064
  %v5132 = vpop.f32.mrb[0].mxu0
  %v5133 = vadd.f32 0.0, %v5132
  %v5134 = vpop.f32.mrb[0].mxu0
  %5135 = vdwg.mxu0
  %v5136 = vadd.f32 %v5060, %v5133
  %v5137 = vxor.u32 %v5136, 2147483648
  %v5138 = vmul.f32 %v5137, 1.442695
  %v5139 = vpow.pop %v5138
  %v5140 = vadd.f32 %v5139, 1.0
  %v5141 = vrcp.pop %v5140
  %v5142 = vmul.f32 1.0, %v5141
  %v5143 = vadd.f32 %v5133, %v4935
  %5145 = vrot.lane.b32.xlu0 %v5143, 64
  %v5146 = vpop.permute.xlu0 %5145
  %v5148 = vmul.f32 %v5142, %v5146
  %5150 = vrot.lane.b32.xlu0 %v5148, 64
  %v5151 = vpop.permute.xlu0 %5150
  %v5153 = vadd.f32 %v5060, %v5151
  %v5154 = vtanh.pop %v5153
  %v5155 = vsub.f32 1.0, %v5142
  %5157 = vrot.lane.b32.xlu0 %v5154, 96
  %v5158 = vpop.permute.xlu0 %5157
  %v5160 = vmul.f32 %v5155, %v5158
  %v5161 = vmul.f32 %v5142, %v5059
  %v5162 = vadd.f32 %v5160, %v5161
  %v5163 = vld [vmem:[#allocation5 + $0x6] sm:$0x3]
  %5165 = vrot.lane.b32.xlu0 %v5162, 96
  %v5166 = vpop.permute.xlu0 %5165
  %v5167 = vsel %vm1917, %v5166, 0
  %5169 = vmatprep.subr.mxu0 0.0
  %5170 = vmatpush1.msra.mxu0 %v4838
  %5171 = vmatprep.subr.mxu0 0.0
  %5172 = vmatpush1.msra.mxu0 %v4839
  %5173 = vmatprep.subr.mxu0 0.0
  %5174 = vmatpush1.msra.mxu0 %v4840
  %5175 = vmatprep.subr.mxu0 0.0
  %5176 = vmatpush1.msra.mxu0 %v4841
  %5177 = vmatprep.subr.mxu0 0.0
  %5178 = vmatpush1.msra.mxu0 0.0
  %5179 = vmatprep.subr.mxu0 0.0
  %5180 = vmatpush1.msra.mxu0 0.0
  %5181 = vmatprep.subr.mxu0 0.0
  %5182 = vmatpush1.msra.mxu0 0.0
  %5183 = vmatprep.subr.mxu0 0.0
  %5184 = vmatpush1.msra.mxu0 0.0
  %5185 = vmatprep.subr.mxu0 0.0
  %5186 = vmatpush1.msra.mxu0 0.0
  %5187 = vmatprep.subr.mxu0 0.0
  %5188 = vmatpush1.msra.mxu0 0.0
  %5189 = vmatprep.subr.mxu0 0.0
  %5190 = vmatpush1.msra.mxu0 0.0
  %5191 = vmatprep.subr.mxu0 0.0
  %5192 = vmatpush1.msra.mxu0 0.0
  %5193 = vmatprep.subr.mxu0 0.0
  %5194 = vmatpush1.msra.mxu0 0.0
  %5195 = vmatprep.subr.mxu0 0.0
  %5196 = vmatpush1.msra.mxu0 0.0
  %5197 = vmatprep.subr.mxu0 0.0
  %5198 = vmatpush1.msra.mxu0 0.0
  %5199 = vmatprep.subr.mxu0 0.0
  %5200 = vmatpush1.msra.mxu0 0.0
  %5201 = vmatprep.subr.mxu0 0.0
  %5202 = vmatpush1.msra.mxu0 0.0
  %5203 = vmatprep.subr.mxu0 0.0
  %5204 = vmatpush1.msra.mxu0 0.0
  %5205 = vmatprep.subr.mxu0 0.0
  %5206 = vmatpush1.msra.mxu0 0.0
  %5207 = vmatprep.subr.mxu0 0.0
  %5208 = vmatpush1.msra.mxu0 0.0
  %5209 = vmatprep.subr.mxu0 0.0
  %5210 = vmatpush1.msra.mxu0 0.0
  %5211 = vmatprep.subr.mxu0 0.0
  %5212 = vmatpush1.msra.mxu0 0.0
  %5213 = vmatprep.subr.mxu0 0.0
  %5214 = vmatpush1.msra.mxu0 0.0
  %5215 = vmatprep.subr.mxu0 0.0
  %5216 = vmatpush1.msra.mxu0 0.0
  %5217 = vmatprep.subr.mxu0 0.0
  %5218 = vmatpush1.msra.mxu0 0.0
  %5219 = vmatprep.subr.mxu0 0.0
  %5220 = vmatpush1.msra.mxu0 0.0
  %5221 = vmatprep.subr.mxu0 0.0
  %5222 = vmatpush1.msra.mxu0 0.0
  %5223 = vmatprep.subr.mxu0 0.0
  %5224 = vmatpush1.msra.mxu0 0.0
  %5225 = vmatprep.subr.mxu0 0.0
  %5226 = vmatpush1.msra.mxu0 0.0
  %5227 = vmatprep.subr.mxu0 0.0
  %5228 = vmatpush1.msra.mxu0 0.0
  %5229 = vmatprep.subr.mxu0 0.0
  %5230 = vmatpush1.msra.mxu0 0.0
  %5231 = vmatprep.subr.mxu0 0.0
  %5232 = vmatpush1.msra.mxu0 0.0
  %5233 = vmatprep.mubr.f32.mxu0 0.0
  %5234 = vmatmul.mubr.f32.gmra.mrb[0].mxu0 %v5167
  %v5235 = vpop.f32.mrb[0].mxu0
  %v5236 = vadd.f32 0.0, %v5235
  %v5237 = vpop.f32.mrb[0].mxu0
  %5238 = vdwg.mxu0
  %v5239 = vadd.f32 %v5163, %v5236
  %v5240 = vxor.u32 %v5239, 2147483648
  %v5241 = vmul.f32 %v5240, 1.442695
  %v5242 = vpow.pop %v5241
  %v5243 = vadd.f32 %v5242, 1.0
  %v5244 = vrcp.pop %v5243
  %v5245 = vmul.f32 1.0, %v5244
  %v5246 = vadd.f32 %v5236, %v4935
  %5248 = vrot.lane.b32.xlu0 %v5246, 64
  %v5249 = vpop.permute.xlu0 %5248
  %v5251 = vmul.f32 %v5245, %v5249
  %5253 = vrot.lane.b32.xlu0 %v5251, 64
  %v5254 = vpop.permute.xlu0 %5253
  %v5256 = vadd.f32 %v5163, %v5254
  %v5257 = vtanh.pop %v5256
  %v5258 = vsub.f32 1.0, %v5245
  %5260 = vrot.lane.b32.xlu0 %v5257, 96
  %v5261 = vpop.permute.xlu0 %5260
  %v5263 = vmul.f32 %v5258, %v5261
  %v5264 = vmul.f32 %v5245, %v5162
  %v5265 = vadd.f32 %v5263, %v5264
  %v5266 = vld [vmem:[#allocation5 + $0x8] sm:$0x3]
  %5268 = vrot.lane.b32.xlu0 %v5265, 96
  %v5269 = vpop.permute.xlu0 %5268
  %v5270 = vsel %vm1917, %v5269, 0
  %5272 = vmatprep.subr.mxu0 0.0
  %5273 = vmatpush1.msra.mxu0 %v4838
  %5274 = vmatprep.subr.mxu0 0.0
  %5275 = vmatpush1.msra.mxu0 %v4839
  %5276 = vmatprep.subr.mxu0 0.0
  %5277 = vmatpush1.msra.mxu0 %v4840
  %5278 = vmatprep.subr.mxu0 0.0
  %5279 = vmatpush1.msra.mxu0 %v4841
  %5280 = vmatprep.subr.mxu0 0.0
  %5281 = vmatpush1.msra.mxu0 0.0
  %5282 = vmatprep.subr.mxu0 0.0
  %5283 = vmatpush1.msra.mxu0 0.0
  %5284 = vmatprep.subr.mxu0 0.0
  %5285 = vmatpush1.msra.mxu0 0.0
  %5286 = vmatprep.subr.mxu0 0.0
  %5287 = vmatpush1.msra.mxu0 0.0
  %5288 = vmatprep.subr.mxu0 0.0
  %5289 = vmatpush1.msra.mxu0 0.0
  %5290 = vmatprep.subr.mxu0 0.0
  %5291 = vmatpush1.msra.mxu0 0.0
  %5292 = vmatprep.subr.mxu0 0.0
  %5293 = vmatpush1.msra.mxu0 0.0
  %5294 = vmatprep.subr.mxu0 0.0
  %5295 = vmatpush1.msra.mxu0 0.0
  %5296 = vmatprep.subr.mxu0 0.0
  %5297 = vmatpush1.msra.mxu0 0.0
  %5298 = vmatprep.subr.mxu0 0.0
  %5299 = vmatpush1.msra.mxu0 0.0
  %5300 = vmatprep.subr.mxu0 0.0
  %5301 = vmatpush1.msra.mxu0 0.0
  %5302 = vmatprep.subr.mxu0 0.0
  %5303 = vmatpush1.msra.mxu0 0.0
  %5304 = vmatprep.subr.mxu0 0.0
  %5305 = vmatpush1.msra.mxu0 0.0
  %5306 = vmatprep.subr.mxu0 0.0
  %5307 = vmatpush1.msra.mxu0 0.0
  %5308 = vmatprep.subr.mxu0 0.0
  %5309 = vmatpush1.msra.mxu0 0.0
  %5310 = vmatprep.subr.mxu0 0.0
  %5311 = vmatpush1.msra.mxu0 0.0
  %5312 = vmatprep.subr.mxu0 0.0
  %5313 = vmatpush1.msra.mxu0 0.0
  %5314 = vmatprep.subr.mxu0 0.0
  %5315 = vmatpush1.msra.mxu0 0.0
  %5316 = vmatprep.subr.mxu0 0.0
  %5317 = vmatpush1.msra.mxu0 0.0
  %5318 = vmatprep.subr.mxu0 0.0
  %5319 = vmatpush1.msra.mxu0 0.0
  %5320 = vmatprep.subr.mxu0 0.0
  %5321 = vmatpush1.msra.mxu0 0.0
  %5322 = vmatprep.subr.mxu0 0.0
  %5323 = vmatpush1.msra.mxu0 0.0
  %5324 = vmatprep.subr.mxu0 0.0
  %5325 = vmatpush1.msra.mxu0 0.0
  %5326 = vmatprep.subr.mxu0 0.0
  %5327 = vmatpush1.msra.mxu0 0.0
  %5328 = vmatprep.subr.mxu0 0.0
  %5329 = vmatpush1.msra.mxu0 0.0
  %5330 = vmatprep.subr.mxu0 0.0
  %5331 = vmatpush1.msra.mxu0 0.0
  %5332 = vmatprep.subr.mxu0 0.0
  %5333 = vmatpush1.msra.mxu0 0.0
  %5334 = vmatprep.subr.mxu0 0.0
  %5335 = vmatpush1.msra.mxu0 0.0
  %5336 = vmatprep.mubr.f32.mxu0 0.0
  %5337 = vmatmul.mubr.f32.gmra.mrb[0].mxu0 %v5270
  %v5338 = vpop.f32.mrb[0].mxu0
  %v5339 = vadd.f32 0.0, %v5338
  %v5340 = vpop.f32.mrb[0].mxu0
  %5341 = vdwg.mxu0
  %v5342 = vadd.f32 %v5266, %v5339
  %v5343 = vxor.u32 %v5342, 2147483648
  %v5344 = vmul.f32 %v5343, 1.442695
  %v5345 = vpow.pop %v5344
  %v5346 = vadd.f32 %v5345, 1.0
  %v5347 = vrcp.pop %v5346
  %v5348 = vmul.f32 1.0, %v5347
  %v5349 = vadd.f32 %v5339, %v4935
  %5351 = vrot.lane.b32.xlu0 %v5349, 64
  %v5352 = vpop.permute.xlu0 %5351
  %v5354 = vmul.f32 %v5348, %v5352
  %5356 = vrot.lane.b32.xlu0 %v5354, 64
  %v5357 = vpop.permute.xlu0 %5356
  %v5359 = vadd.f32 %v5266, %v5357
  %v5360 = vtanh.pop %v5359
  %v5361 = vsub.f32 1.0, %v5348
  %5363 = vrot.lane.b32.xlu0 %v5360, 96
  %v5364 = vpop.permute.xlu0 %5363
  %v5366 = vmul.f32 %v5361, %v5364
  %v5367 = vmul.f32 %v5348, %v5265
  %v5368 = vadd.f32 %v5366, %v5367
  %v5369 = vld [vmem:[#allocation5 + $0xa] sm:$0x3]
  %5371 = vrot.lane.b32.xlu0 %v5368, 96
  %v5372 = vpop.permute.xlu0 %5371
  %v5373 = vsel %vm1917, %v5372, 0
  %5375 = vmatprep.subr.mxu0 0.0
  %5376 = vmatpush1.msra.mxu0 %v4838
  %5377 = vmatprep.subr.mxu0 0.0
  %5378 = vmatpush1.msra.mxu0 %v4839
  %5379 = vmatprep.subr.mxu0 0.0
  %5380 = vmatpush1.msra.mxu0 %v4840
  %5381 = vmatprep.subr.mxu0 0.0
  %5382 = vmatpush1.msra.mxu0 %v4841
  %5383 = vmatprep.subr.mxu0 0.0
  %5384 = vmatpush1.msra.mxu0 0.0
  %5385 = vmatprep.subr.mxu0 0.0
  %5386 = vmatpush1.msra.mxu0 0.0
  %5387 = vmatprep.subr.mxu0 0.0
  %5388 = vmatpush1.msra.mxu0 0.0
  %5389 = vmatprep.subr.mxu0 0.0
  %5390 = vmatpush1.msra.mxu0 0.0
  %5391 = vmatprep.subr.mxu0 0.0
  %5392 = vmatpush1.msra.mxu0 0.0
  %5393 = vmatprep.subr.mxu0 0.0
  %5394 = vmatpush1.msra.mxu0 0.0
  %5395 = vmatprep.subr.mxu0 0.0
  %5396 = vmatpush1.msra.mxu0 0.0
  %5397 = vmatprep.subr.mxu0 0.0
  %5398 = vmatpush1.msra.mxu0 0.0
  %5399 = vmatprep.subr.mxu0 0.0
  %5400 = vmatpush1.msra.mxu0 0.0
  %5401 = vmatprep.subr.mxu0 0.0
  %5402 = vmatpush1.msra.mxu0 0.0
  %5403 = vmatprep.subr.mxu0 0.0
  %5404 = vmatpush1.msra.mxu0 0.0
  %5405 = vmatprep.subr.mxu0 0.0
  %5406 = vmatpush1.msra.mxu0 0.0
  %5407 = vmatprep.subr.mxu0 0.0
  %5408 = vmatpush1.msra.mxu0 0.0
  %5409 = vmatprep.subr.mxu0 0.0
  %5410 = vmatpush1.msra.mxu0 0.0
  %5411 = vmatprep.subr.mxu0 0.0
  %5412 = vmatpush1.msra.mxu0 0.0
  %5413 = vmatprep.subr.mxu0 0.0
  %5414 = vmatpush1.msra.mxu0 0.0
  %5415 = vmatprep.subr.mxu0 0.0
  %5416 = vmatpush1.msra.mxu0 0.0
  %5417 = vmatprep.subr.mxu0 0.0
  %5418 = vmatpush1.msra.mxu0 0.0
  %5419 = vmatprep.subr.mxu0 0.0
  %5420 = vmatpush1.msra.mxu0 0.0
  %5421 = vmatprep.subr.mxu0 0.0
  %5422 = vmatpush1.msra.mxu0 0.0
  %5423 = vmatprep.subr.mxu0 0.0
  %5424 = vmatpush1.msra.mxu0 0.0
  %5425 = vmatprep.subr.mxu0 0.0
  %5426 = vmatpush1.msra.mxu0 0.0
  %5427 = vmatprep.subr.mxu0 0.0
  %5428 = vmatpush1.msra.mxu0 0.0
  %5429 = vmatprep.subr.mxu0 0.0
  %5430 = vmatpush1.msra.mxu0 0.0
  %5431 = vmatprep.subr.mxu0 0.0
  %5432 = vmatpush1.msra.mxu0 0.0
  %5433 = vmatprep.subr.mxu0 0.0
  %5434 = vmatpush1.msra.mxu0 0.0
  %5435 = vmatprep.subr.mxu0 0.0
  %5436 = vmatpush1.msra.mxu0 0.0
  %5437 = vmatprep.subr.mxu0 0.0
  %5438 = vmatpush1.msra.mxu0 0.0
  %5439 = vmatprep.mubr.f32.mxu0 0.0
  %5440 = vmatmul.mubr.f32.gmra.mrb[0].mxu0 %v5373
  %v5441 = vpop.f32.mrb[0].mxu0
  %v5442 = vadd.f32 0.0, %v5441
  %v5443 = vpop.f32.mrb[0].mxu0
  %5444 = vdwg.mxu0
  %v5445 = vadd.f32 %v5369, %v5442
  %v5446 = vxor.u32 %v5445, 2147483648
  %v5447 = vmul.f32 %v5446, 1.442695
  %v5448 = vpow.pop %v5447
  %v5449 = vadd.f32 %v5448, 1.0
  %v5450 = vrcp.pop %v5449
  %v5451 = vmul.f32 1.0, %v5450
  %v5452 = vadd.f32 %v5442, %v4935
  %5454 = vrot.lane.b32.xlu0 %v5452, 64
  %v5455 = vpop.permute.xlu0 %5454
  %v5457 = vmul.f32 %v5451, %v5455
  %5459 = vrot.lane.b32.xlu0 %v5457, 64
  %v5460 = vpop.permute.xlu0 %5459
  %v5462 = vadd.f32 %v5369, %v5460
  %v5463 = vtanh.pop %v5462
  %v5464 = vsub.f32 1.0, %v5451
  %5466 = vrot.lane.b32.xlu0 %v5463, 96
  %v5467 = vpop.permute.xlu0 %5466
  %v5469 = vmul.f32 %v5464, %v5467
  %v5470 = vmul.f32 %v5451, %v5368
  %v5471 = vadd.f32 %v5469, %v5470
  %v5472 = vld [vmem:[#allocation5 + $0xc] sm:$0x3]
  %5474 = vrot.lane.b32.xlu0 %v5471, 96
  %v5475 = vpop.permute.xlu0 %5474
  %v5476 = vsel %vm1917, %v5475, 0
  %5478 = vmatprep.subr.mxu0 0.0
  %5479 = vmatpush1.msra.mxu0 %v4838
  %5480 = vmatprep.subr.mxu0 0.0
  %5481 = vmatpush1.msra.mxu0 %v4839
  %5482 = vmatprep.subr.mxu0 0.0
  %5483 = vmatpush1.msra.mxu0 %v4840
  %5484 = vmatprep.subr.mxu0 0.0
  %5485 = vmatpush1.msra.mxu0 %v4841
  %5486 = vmatprep.subr.mxu0 0.0
  %5487 = vmatpush1.msra.mxu0 0.0
  %5488 = vmatprep.subr.mxu0 0.0
  %5489 = vmatpush1.msra.mxu0 0.0
  %5490 = vmatprep.subr.mxu0 0.0
  %5491 = vmatpush1.msra.mxu0 0.0
  %5492 = vmatprep.subr.mxu0 0.0
  %5493 = vmatpush1.msra.mxu0 0.0
  %5494 = vmatprep.subr.mxu0 0.0
  %5495 = vmatpush1.msra.mxu0 0.0
  %5496 = vmatprep.subr.mxu0 0.0
  %5497 = vmatpush1.msra.mxu0 0.0
  %5498 = vmatprep.subr.mxu0 0.0
  %5499 = vmatpush1.msra.mxu0 0.0
  %5500 = vmatprep.subr.mxu0 0.0
  %5501 = vmatpush1.msra.mxu0 0.0
  %5502 = vmatprep.subr.mxu0 0.0
  %5503 = vmatpush1.msra.mxu0 0.0
  %5504 = vmatprep.subr.mxu0 0.0
  %5505 = vmatpush1.msra.mxu0 0.0
  %5506 = vmatprep.subr.mxu0 0.0
  %5507 = vmatpush1.msra.mxu0 0.0
  %5508 = vmatprep.subr.mxu0 0.0
  %5509 = vmatpush1.msra.mxu0 0.0
  %5510 = vmatprep.subr.mxu0 0.0
  %5511 = vmatpush1.msra.mxu0 0.0
  %5512 = vmatprep.subr.mxu0 0.0
  %5513 = vmatpush1.msra.mxu0 0.0
  %5514 = vmatprep.subr.mxu0 0.0
  %5515 = vmatpush1.msra.mxu0 0.0
  %5516 = vmatprep.subr.mxu0 0.0
  %5517 = vmatpush1.msra.mxu0 0.0
  %5518 = vmatprep.subr.mxu0 0.0
  %5519 = vmatpush1.msra.mxu0 0.0
  %5520 = vmatprep.subr.mxu0 0.0
  %5521 = vmatpush1.msra.mxu0 0.0
  %5522 = vmatprep.subr.mxu0 0.0
  %5523 = vmatpush1.msra.mxu0 0.0
  %5524 = vmatprep.subr.mxu0 0.0
  %5525 = vmatpush1.msra.mxu0 0.0
  %5526 = vmatprep.subr.mxu0 0.0
  %5527 = vmatpush1.msra.mxu0 0.0
  %5528 = vmatprep.subr.mxu0 0.0
  %5529 = vmatpush1.msra.mxu0 0.0
  %5530 = vmatprep.subr.mxu0 0.0
  %5531 = vmatpush1.msra.mxu0 0.0
  %5532 = vmatprep.subr.mxu0 0.0
  %5533 = vmatpush1.msra.mxu0 0.0
  %5534 = vmatprep.subr.mxu0 0.0
  %5535 = vmatpush1.msra.mxu0 0.0
  %5536 = vmatprep.subr.mxu0 0.0
  %5537 = vmatpush1.msra.mxu0 0.0
  %5538 = vmatprep.subr.mxu0 0.0
  %5539 = vmatpush1.msra.mxu0 0.0
  %5540 = vmatprep.subr.mxu0 0.0
  %5541 = vmatpush1.msra.mxu0 0.0
  %5542 = vmatprep.mubr.f32.mxu0 0.0
  %5543 = vmatmul.mubr.f32.gmra.mrb[0].mxu0 %v5476
  %v5544 = vpop.f32.mrb[0].mxu0
  %v5545 = vadd.f32 0.0, %v5544
  %v5546 = vpop.f32.mrb[0].mxu0
  %5547 = vdwg.mxu0
  %v5548 = vadd.f32 %v5472, %v5545
  %v5549 = vxor.u32 %v5548, 2147483648
  %v5550 = vmul.f32 %v5549, 1.442695
  %v5551 = vpow.pop %v5550
  %v5552 = vadd.f32 %v5551, 1.0
  %v5553 = vrcp.pop %v5552
  %v5554 = vmul.f32 1.0, %v5553
  %v5555 = vadd.f32 %v5545, %v4935
  %5557 = vrot.lane.b32.xlu0 %v5555, 64
  %v5558 = vpop.permute.xlu0 %5557
  %v5560 = vmul.f32 %v5554, %v5558
  %5562 = vrot.lane.b32.xlu0 %v5560, 64
  %v5563 = vpop.permute.xlu0 %5562
  %v5565 = vadd.f32 %v5472, %v5563
  %v5566 = vtanh.pop %v5565
  %v5567 = vsub.f32 1.0, %v5554
  %5569 = vrot.lane.b32.xlu0 %v5566, 96
  %v5570 = vpop.permute.xlu0 %5569
  %v5572 = vmul.f32 %v5567, %v5570
  %v5573 = vmul.f32 %v5554, %v5471
  %v5574 = vadd.f32 %v5572, %v5573
  %v5575 = vld [vmem:[#allocation5 + $0xe] sm:$0x3]
  %5577 = vrot.lane.b32.xlu0 %v5574, 96
  %v5578 = vpop.permute.xlu0 %5577
  %v5579 = vsel %vm1917, %v5578, 0
  %5581 = vmatprep.subr.mxu0 0.0
  %5582 = vmatpush1.msra.mxu0 %v4838
  %5583 = vmatprep.subr.mxu0 0.0
  %5584 = vmatpush1.msra.mxu0 %v4839
  %5585 = vmatprep.subr.mxu0 0.0
  %5586 = vmatpush1.msra.mxu0 %v4840
  %5587 = vmatprep.subr.mxu0 0.0
  %5588 = vmatpush1.msra.mxu0 %v4841
  %5589 = vmatprep.subr.mxu0 0.0
  %5590 = vmatpush1.msra.mxu0 0.0
  %5591 = vmatprep.subr.mxu0 0.0
  %5592 = vmatpush1.msra.mxu0 0.0
  %5593 = vmatprep.subr.mxu0 0.0
  %5594 = vmatpush1.msra.mxu0 0.0
  %5595 = vmatprep.subr.mxu0 0.0
  %5596 = vmatpush1.msra.mxu0 0.0
  %5597 = vmatprep.subr.mxu0 0.0
  %5598 = vmatpush1.msra.mxu0 0.0
  %5599 = vmatprep.subr.mxu0 0.0
  %5600 = vmatpush1.msra.mxu0 0.0
  %5601 = vmatprep.subr.mxu0 0.0
  %5602 = vmatpush1.msra.mxu0 0.0
  %5603 = vmatprep.subr.mxu0 0.0
  %5604 = vmatpush1.msra.mxu0 0.0
  %5605 = vmatprep.subr.mxu0 0.0
  %5606 = vmatpush1.msra.mxu0 0.0
  %5607 = vmatprep.subr.mxu0 0.0
  %5608 = vmatpush1.msra.mxu0 0.0
  %5609 = vmatprep.subr.mxu0 0.0
  %5610 = vmatpush1.msra.mxu0 0.0
  %5611 = vmatprep.subr.mxu0 0.0
  %5612 = vmatpush1.msra.mxu0 0.0
  %5613 = vmatprep.subr.mxu0 0.0
  %5614 = vmatpush1.msra.mxu0 0.0
  %5615 = vmatprep.subr.mxu0 0.0
  %5616 = vmatpush1.msra.mxu0 0.0
  %5617 = vmatprep.subr.mxu0 0.0
  %5618 = vmatpush1.msra.mxu0 0.0
  %5619 = vmatprep.subr.mxu0 0.0
  %5620 = vmatpush1.msra.mxu0 0.0
  %5621 = vmatprep.subr.mxu0 0.0
  %5622 = vmatpush1.msra.mxu0 0.0
  %5623 = vmatprep.subr.mxu0 0.0
  %5624 = vmatpush1.msra.mxu0 0.0
  %5625 = vmatprep.subr.mxu0 0.0
  %5626 = vmatpush1.msra.mxu0 0.0
  %5627 = vmatprep.subr.mxu0 0.0
  %5628 = vmatpush1.msra.mxu0 0.0
  %5629 = vmatprep.subr.mxu0 0.0
  %5630 = vmatpush1.msra.mxu0 0.0
  %5631 = vmatprep.subr.mxu0 0.0
  %5632 = vmatpush1.msra.mxu0 0.0
  %5633 = vmatprep.subr.mxu0 0.0
  %5634 = vmatpush1.msra.mxu0 0.0
  %5635 = vmatprep.subr.mxu0 0.0
  %5636 = vmatpush1.msra.mxu0 0.0
  %5637 = vmatprep.subr.mxu0 0.0
  %5638 = vmatpush1.msra.mxu0 0.0
  %5639 = vmatprep.subr.mxu0 0.0
  %5640 = vmatpush1.msra.mxu0 0.0
  %5641 = vmatprep.subr.mxu0 0.0
  %5642 = vmatpush1.msra.mxu0 0.0
  %5643 = vmatprep.subr.mxu0 0.0
  %5644 = vmatpush1.msra.mxu0 0.0
  %5645 = vmatprep.mubr.f32.mxu0 0.0
  %5646 = vmatmul.mubr.f32.gmra.mrb[0].mxu0 %v5579
  %v5647 = vpop.f32.mrb[0].mxu0
  %v5648 = vadd.f32 0.0, %v5647
  %v5649 = vpop.f32.mrb[0].mxu0
  %5650 = vdwg.mxu0
  %v5651 = vadd.f32 %v5575, %v5648
  %v5652 = vxor.u32 %v5651, 2147483648
  %v5653 = vmul.f32 %v5652, 1.442695
  %v5654 = vpow.pop %v5653
  %v5655 = vadd.f32 %v5654, 1.0
  %v5656 = vrcp.pop %v5655
  %v5657 = vmul.f32 1.0, %v5656
  %v5658 = vadd.f32 %v5648, %v4935
  %5660 = vrot.lane.b32.xlu0 %v5658, 64
  %v5661 = vpop.permute.xlu0 %5660
  %v5663 = vmul.f32 %v5657, %v5661
  %5665 = vrot.lane.b32.xlu0 %v5663, 64
  %v5666 = vpop.permute.xlu0 %5665
  %v5668 = vadd.f32 %v5575, %v5666
  %v5669 = vtanh.pop %v5668
  %v5670 = vsub.f32 1.0, %v5657
  %5672 = vrot.lane.b32.xlu0 %v5669, 96
  %v5673 = vpop.permute.xlu0 %5672
  %v5675 = vmul.f32 %v5670, %v5673
  %v5676 = vmul.f32 %v5657, %v5574
  %v5677 = vadd.f32 %v5675, %v5676
  %v5678 = vld [vmem:[#allocation6 + $0xe] sm:$0x3]
  %5679 = vmatprep.subr.mxu0 0.0
  %5680 = vmatpush1.msra.mxu0 %v4842
  %5681 = vmatprep.subr.mxu0 0.0
  %5682 = vmatpush1.msra.mxu0 %v4843
  %5683 = vmatprep.subr.mxu0 0.0
  %5684 = vmatpush1.msra.mxu0 %v4844
  %5685 = vmatprep.subr.mxu0 0.0
  %5686 = vmatpush1.msra.mxu0 %v4845
  %5687 = vmatprep.subr.mxu0 0.0
  %5688 = vmatpush1.msra.mxu0 0.0
  %5689 = vmatprep.subr.mxu0 0.0
  %5690 = vmatpush1.msra.mxu0 0.0
  %5691 = vmatprep.subr.mxu0 0.0
  %5692 = vmatpush1.msra.mxu0 0.0
  %5693 = vmatprep.subr.mxu0 0.0
  %5694 = vmatpush1.msra.mxu0 0.0
  %5695 = vmatprep.subr.mxu0 0.0
  %5696 = vmatpush1.msra.mxu0 0.0
  %5697 = vmatprep.subr.mxu0 0.0
  %5698 = vmatpush1.msra.mxu0 0.0
  %5699 = vmatprep.subr.mxu0 0.0
  %5700 = vmatpush1.msra.mxu0 0.0
  %5701 = vmatprep.subr.mxu0 0.0
  %5702 = vmatpush1.msra.mxu0 0.0
  %5703 = vmatprep.subr.mxu0 0.0
  %5704 = vmatpush1.msra.mxu0 0.0
  %5705 = vmatprep.subr.mxu0 0.0
  %5706 = vmatpush1.msra.mxu0 0.0
  %5707 = vmatprep.subr.mxu0 0.0
  %5708 = vmatpush1.msra.mxu0 0.0
  %5709 = vmatprep.subr.mxu0 0.0
  %5710 = vmatpush1.msra.mxu0 0.0
  %5711 = vmatprep.subr.mxu0 0.0
  %5712 = vmatpush1.msra.mxu0 0.0
  %5713 = vmatprep.subr.mxu0 0.0
  %5714 = vmatpush1.msra.mxu0 0.0
  %5715 = vmatprep.subr.mxu0 0.0
  %5716 = vmatpush1.msra.mxu0 0.0
  %5717 = vmatprep.subr.mxu0 0.0
  %5718 = vmatpush1.msra.mxu0 0.0
  %5719 = vmatprep.subr.mxu0 0.0
  %5720 = vmatpush1.msra.mxu0 0.0
  %5721 = vmatprep.subr.mxu0 0.0
  %5722 = vmatpush1.msra.mxu0 0.0
  %5723 = vmatprep.subr.mxu0 0.0
  %5724 = vmatpush1.msra.mxu0 0.0
  %5725 = vmatprep.subr.mxu0 0.0
  %5726 = vmatpush1.msra.mxu0 0.0
  %5727 = vmatprep.subr.mxu0 0.0
  %5728 = vmatpush1.msra.mxu0 0.0
  %5729 = vmatprep.subr.mxu0 0.0
  %5730 = vmatpush1.msra.mxu0 0.0
  %5731 = vmatprep.subr.mxu0 0.0
  %5732 = vmatpush1.msra.mxu0 0.0
  %5733 = vmatprep.subr.mxu0 0.0
  %5734 = vmatpush1.msra.mxu0 0.0
  %5735 = vmatprep.subr.mxu0 0.0
  %5736 = vmatpush1.msra.mxu0 0.0
  %5737 = vmatprep.subr.mxu0 0.0
  %5738 = vmatpush1.msra.mxu0 0.0
  %5739 = vmatprep.subr.mxu0 0.0
  %5740 = vmatpush1.msra.mxu0 0.0
  %5741 = vmatprep.subr.mxu0 0.0
  %5742 = vmatpush1.msra.mxu0 0.0
  %5743 = vmatprep.mubr.f32.mxu0 0.0
  %5744 = vmatmul.mubr.f32.gmra.mrb[0].mxu0 %v4850
  %v5745 = vpop.f32.mrb[0].mxu0
  %v5746 = vadd.f32 0.0, %v5745
  %v5747 = vpop.f32.mrb[0].mxu0
  %5748 = vdwg.mxu0
  %v5749 = vadd.f32 %v5678, %v5746
  %v5750 = vxor.u32 %v5749, 2147483648
  %v5751 = vmul.f32 %v5750, 1.442695
  %v5752 = vpow.pop %v5751
  %v5753 = vadd.f32 %v5752, 1.0
  %v5754 = vrcp.pop %v5753
  %v5755 = vmul.f32 1.0, %v5754
  %v5757 = vlaneseq
  %v5758 = vshrl.u32 %v5757, 7
  %v5759 = vsub.s32 0, %v5758
  %v5760 = vrot.slane %v4847, %v5759
  %5761 = vrot.lane.b32.xlu0 %v5760, 64
  %v5762 = vpop.permute.xlu0 %5761
  %v5764 = vadd.f32 %v5746, %v5762
  %5766 = vrot.lane.b32.xlu0 %v5764, 64
  %v5767 = vpop.permute.xlu0 %5766
  %v5769 = vmul.f32 %v5755, %v5767
  %5771 = vrot.lane.b32.xlu0 %v5769, 64
  %v5772 = vpop.permute.xlu0 %5771
  %v5774 = vadd.f32 %v5678, %v5772
  %v5775 = vtanh.pop %v5774
  %v5776 = vsub.f32 1.0, %v5755
  %5778 = vrot.lane.b32.xlu0 %v5775, 96
  %v5779 = vpop.permute.xlu0 %5778
  %v5781 = vmul.f32 %v5776, %v5779
  %v5782 = vmul.f32 %v5755, 0.0
  %v5783 = vadd.f32 %v5781, %v5782
  %v5784 = vld [vmem:[#allocation6 + $0xc] sm:$0x3]
  %5786 = vrot.lane.b32.xlu0 %v5783, 96
  %v5787 = vpop.permute.xlu0 %5786
  %v5788 = vsel %vm1917, %v5787, 0
  %5790 = vmatprep.subr.mxu0 0.0
  %5791 = vmatpush1.msra.mxu0 %v4842
  %5792 = vmatprep.subr.mxu0 0.0
  %5793 = vmatpush1.msra.mxu0 %v4843
  %5794 = vmatprep.subr.mxu0 0.0
  %5795 = vmatpush1.msra.mxu0 %v4844
  %5796 = vmatprep.subr.mxu0 0.0
  %5797 = vmatpush1.msra.mxu0 %v4845
  %5798 = vmatprep.subr.mxu0 0.0
  %5799 = vmatpush1.msra.mxu0 0.0
  %5800 = vmatprep.subr.mxu0 0.0
  %5801 = vmatpush1.msra.mxu0 0.0
  %5802 = vmatprep.subr.mxu0 0.0
  %5803 = vmatpush1.msra.mxu0 0.0
  %5804 = vmatprep.subr.mxu0 0.0
  %5805 = vmatpush1.msra.mxu0 0.0
  %5806 = vmatprep.subr.mxu0 0.0
  %5807 = vmatpush1.msra.mxu0 0.0
  %5808 = vmatprep.subr.mxu0 0.0
  %5809 = vmatpush1.msra.mxu0 0.0
  %5810 = vmatprep.subr.mxu0 0.0
  %5811 = vmatpush1.msra.mxu0 0.0
  %5812 = vmatprep.subr.mxu0 0.0
  %5813 = vmatpush1.msra.mxu0 0.0
  %5814 = vmatprep.subr.mxu0 0.0
  %5815 = vmatpush1.msra.mxu0 0.0
  %5816 = vmatprep.subr.mxu0 0.0
  %5817 = vmatpush1.msra.mxu0 0.0
  %5818 = vmatprep.subr.mxu0 0.0
  %5819 = vmatpush1.msra.mxu0 0.0
  %5820 = vmatprep.subr.mxu0 0.0
  %5821 = vmatpush1.msra.mxu0 0.0
  %5822 = vmatprep.subr.mxu0 0.0
  %5823 = vmatpush1.msra.mxu0 0.0
  %5824 = vmatprep.subr.mxu0 0.0
  %5825 = vmatpush1.msra.mxu0 0.0
  %5826 = vmatprep.subr.mxu0 0.0
  %5827 = vmatpush1.msra.mxu0 0.0
  %5828 = vmatprep.subr.mxu0 0.0
  %5829 = vmatpush1.msra.mxu0 0.0
  %5830 = vmatprep.subr.mxu0 0.0
  %5831 = vmatpush1.msra.mxu0 0.0
  %5832 = vmatprep.subr.mxu0 0.0
  %5833 = vmatpush1.msra.mxu0 0.0
  %5834 = vmatprep.subr.mxu0 0.0
  %5835 = vmatpush1.msra.mxu0 0.0
  %5836 = vmatprep.subr.mxu0 0.0
  %5837 = vmatpush1.msra.mxu0 0.0
  %5838 = vmatprep.subr.mxu0 0.0
  %5839 = vmatpush1.msra.mxu0 0.0
  %5840 = vmatprep.subr.mxu0 0.0
  %5841 = vmatpush1.msra.mxu0 0.0
  %5842 = vmatprep.subr.mxu0 0.0
  %5843 = vmatpush1.msra.mxu0 0.0
  %5844 = vmatprep.subr.mxu0 0.0
  %5845 = vmatpush1.msra.mxu0 0.0
  %5846 = vmatprep.subr.mxu0 0.0
  %5847 = vmatpush1.msra.mxu0 0.0
  %5848 = vmatprep.subr.mxu0 0.0
  %5849 = vmatpush1.msra.mxu0 0.0
  %5850 = vmatprep.subr.mxu0 0.0
  %5851 = vmatpush1.msra.mxu0 0.0
  %5852 = vmatprep.subr.mxu0 0.0
  %5853 = vmatpush1.msra.mxu0 0.0
  %5854 = vmatprep.mubr.f32.mxu0 0.0
  %5855 = vmatmul.mubr.f32.gmra.mrb[0].mxu0 %v5788
  %v5856 = vpop.f32.mrb[0].mxu0
  %v5857 = vadd.f32 0.0, %v5856
  %v5858 = vpop.f32.mrb[0].mxu0
  %5859 = vdwg.mxu0
  %v5860 = vadd.f32 %v5784, %v5857
  %v5861 = vxor.u32 %v5860, 2147483648
  %v5862 = vmul.f32 %v5861, 1.442695
  %v5863 = vpow.pop %v5862
  %v5864 = vadd.f32 %v5863, 1.0
  %v5865 = vrcp.pop %v5864
  %v5866 = vmul.f32 1.0, %v5865
  %v5867 = vadd.f32 %v5857, %v5762
  %5869 = vrot.lane.b32.xlu0 %v5867, 64
  %v5870 = vpop.permute.xlu0 %5869
  %v5872 = vmul.f32 %v5866, %v5870
  %5874 = vrot.lane.b32.xlu0 %v5872, 64
  %v5875 = vpop.permute.xlu0 %5874
  %v5877 = vadd.f32 %v5784, %v5875
  %v5878 = vtanh.pop %v5877
  %v5879 = vsub.f32 1.0, %v5866
  %5881 = vrot.lane.b32.xlu0 %v5878, 96
  %v5882 = vpop.permute.xlu0 %5881
  %v5884 = vmul.f32 %v5879, %v5882
  %v5885 = vmul.f32 %v5866, %v5783
  %v5886 = vadd.f32 %v5884, %v5885
  %v5887 = vld [vmem:[#allocation6 + $0xa] sm:$0x3]
  %5889 = vrot.lane.b32.xlu0 %v5886, 96
  %v5890 = vpop.permute.xlu0 %5889
  %v5891 = vsel %vm1917, %v5890, 0
  %5893 = vmatprep.subr.mxu0 0.0
  %5894 = vmatpush1.msra.mxu0 %v4842
  %5895 = vmatprep.subr.mxu0 0.0
  %5896 = vmatpush1.msra.mxu0 %v4843
  %5897 = vmatprep.subr.mxu0 0.0
  %5898 = vmatpush1.msra.mxu0 %v4844
  %5899 = vmatprep.subr.mxu0 0.0
  %5900 = vmatpush1.msra.mxu0 %v4845
  %5901 = vmatprep.subr.mxu0 0.0
  %5902 = vmatpush1.msra.mxu0 0.0
  %5903 = vmatprep.subr.mxu0 0.0
  %5904 = vmatpush1.msra.mxu0 0.0
  %5905 = vmatprep.subr.mxu0 0.0
  %5906 = vmatpush1.msra.mxu0 0.0
  %5907 = vmatprep.subr.mxu0 0.0
  %5908 = vmatpush1.msra.mxu0 0.0
  %5909 = vmatprep.subr.mxu0 0.0
  %5910 = vmatpush1.msra.mxu0 0.0
  %5911 = vmatprep.subr.mxu0 0.0
  %5912 = vmatpush1.msra.mxu0 0.0
  %5913 = vmatprep.subr.mxu0 0.0
  %5914 = vmatpush1.msra.mxu0 0.0
  %5915 = vmatprep.subr.mxu0 0.0
  %5916 = vmatpush1.msra.mxu0 0.0
  %5917 = vmatprep.subr.mxu0 0.0
  %5918 = vmatpush1.msra.mxu0 0.0
  %5919 = vmatprep.subr.mxu0 0.0
  %5920 = vmatpush1.msra.mxu0 0.0
  %5921 = vmatprep.subr.mxu0 0.0
  %5922 = vmatpush1.msra.mxu0 0.0
  %5923 = vmatprep.subr.mxu0 0.0
  %5924 = vmatpush1.msra.mxu0 0.0
  %5925 = vmatprep.subr.mxu0 0.0
  %5926 = vmatpush1.msra.mxu0 0.0
  %5927 = vmatprep.subr.mxu0 0.0
  %5928 = vmatpush1.msra.mxu0 0.0
  %5929 = vmatprep.subr.mxu0 0.0
  %5930 = vmatpush1.msra.mxu0 0.0
  %5931 = vmatprep.subr.mxu0 0.0
  %5932 = vmatpush1.msra.mxu0 0.0
  %5933 = vmatprep.subr.mxu0 0.0
  %5934 = vmatpush1.msra.mxu0 0.0
  %5935 = vmatprep.subr.mxu0 0.0
  %5936 = vmatpush1.msra.mxu0 0.0
  %5937 = vmatprep.subr.mxu0 0.0
  %5938 = vmatpush1.msra.mxu0 0.0
  %5939 = vmatprep.subr.mxu0 0.0
  %5940 = vmatpush1.msra.mxu0 0.0
  %5941 = vmatprep.subr.mxu0 0.0
  %5942 = vmatpush1.msra.mxu0 0.0
  %5943 = vmatprep.subr.mxu0 0.0
  %5944 = vmatpush1.msra.mxu0 0.0
  %5945 = vmatprep.subr.mxu0 0.0
  %5946 = vmatpush1.msra.mxu0 0.0
  %5947 = vmatprep.subr.mxu0 0.0
  %5948 = vmatpush1.msra.mxu0 0.0
  %5949 = vmatprep.subr.mxu0 0.0
  %5950 = vmatpush1.msra.mxu0 0.0
  %5951 = vmatprep.subr.mxu0 0.0
  %5952 = vmatpush1.msra.mxu0 0.0
  %5953 = vmatprep.subr.mxu0 0.0
  %5954 = vmatpush1.msra.mxu0 0.0
  %5955 = vmatprep.subr.mxu0 0.0
  %5956 = vmatpush1.msra.mxu0 0.0
  %5957 = vmatprep.mubr.f32.mxu0 0.0
  %5958 = vmatmul.mubr.f32.gmra.mrb[0].mxu0 %v5891
  %v5959 = vpop.f32.mrb[0].mxu0
  %v5960 = vadd.f32 0.0, %v5959
  %v5961 = vpop.f32.mrb[0].mxu0
  %5962 = vdwg.mxu0
  %v5963 = vadd.f32 %v5887, %v5960
  %v5964 = vxor.u32 %v5963, 2147483648
  %v5965 = vmul.f32 %v5964, 1.442695
  %v5966 = vpow.pop %v5965
  %v5967 = vadd.f32 %v5966, 1.0
  %v5968 = vrcp.pop %v5967
  %v5969 = vmul.f32 1.0, %v5968
  %v5970 = vadd.f32 %v5960, %v5762
  %5972 = vrot.lane.b32.xlu0 %v5970, 64
  %v5973 = vpop.permute.xlu0 %5972
  %v5975 = vmul.f32 %v5969, %v5973
  %5977 = vrot.lane.b32.xlu0 %v5975, 64
  %v5978 = vpop.permute.xlu0 %5977
  %v5980 = vadd.f32 %v5887, %v5978
  %v5981 = vtanh.pop %v5980
  %v5982 = vsub.f32 1.0, %v5969
  %5984 = vrot.lane.b32.xlu0 %v5981, 96
  %v5985 = vpop.permute.xlu0 %5984
  %v5987 = vmul.f32 %v5982, %v5985
  %v5988 = vmul.f32 %v5969, %v5886
  %v5989 = vadd.f32 %v5987, %v5988
  %v5990 = vld [vmem:[#allocation6 + $0x8] sm:$0x3]
  %5992 = vrot.lane.b32.xlu0 %v5989, 96
  %v5993 = vpop.permute.xlu0 %5992
  %v5994 = vsel %vm1917, %v5993, 0
  %5996 = vmatprep.subr.mxu0 0.0
  %5997 = vmatpush1.msra.mxu0 %v4842
  %5998 = vmatprep.subr.mxu0 0.0
  %5999 = vmatpush1.msra.mxu0 %v4843
  %6000 = vmatprep.subr.mxu0 0.0
  %6001 = vmatpush1.msra.mxu0 %v4844
  %6002 = vmatprep.subr.mxu0 0.0
  %6003 = vmatpush1.msra.mxu0 %v4845
  %6004 = vmatprep.subr.mxu0 0.0
  %6005 = vmatpush1.msra.mxu0 0.0
  %6006 = vmatprep.subr.mxu0 0.0
  %6007 = vmatpush1.msra.mxu0 0.0
  %6008 = vmatprep.subr.mxu0 0.0
  %6009 = vmatpush1.msra.mxu0 0.0
  %6010 = vmatprep.subr.mxu0 0.0
  %6011 = vmatpush1.msra.mxu0 0.0
  %6012 = vmatprep.subr.mxu0 0.0
  %6013 = vmatpush1.msra.mxu0 0.0
  %6014 = vmatprep.subr.mxu0 0.0
  %6015 = vmatpush1.msra.mxu0 0.0
  %6016 = vmatprep.subr.mxu0 0.0
  %6017 = vmatpush1.msra.mxu0 0.0
  %6018 = vmatprep.subr.mxu0 0.0
  %6019 = vmatpush1.msra.mxu0 0.0
  %6020 = vmatprep.subr.mxu0 0.0
  %6021 = vmatpush1.msra.mxu0 0.0
  %6022 = vmatprep.subr.mxu0 0.0
  %6023 = vmatpush1.msra.mxu0 0.0
  %6024 = vmatprep.subr.mxu0 0.0
  %6025 = vmatpush1.msra.mxu0 0.0
  %6026 = vmatprep.subr.mxu0 0.0
  %6027 = vmatpush1.msra.mxu0 0.0
  %6028 = vmatprep.subr.mxu0 0.0
  %6029 = vmatpush1.msra.mxu0 0.0
  %6030 = vmatprep.subr.mxu0 0.0
  %6031 = vmatpush1.msra.mxu0 0.0
  %6032 = vmatprep.subr.mxu0 0.0
  %6033 = vmatpush1.msra.mxu0 0.0
  %6034 = vmatprep.subr.mxu0 0.0
  %6035 = vmatpush1.msra.mxu0 0.0
  %6036 = vmatprep.subr.mxu0 0.0
  %6037 = vmatpush1.msra.mxu0 0.0
  %6038 = vmatprep.subr.mxu0 0.0
  %6039 = vmatpush1.msra.mxu0 0.0
  %6040 = vmatprep.subr.mxu0 0.0
  %6041 = vmatpush1.msra.mxu0 0.0
  %6042 = vmatprep.subr.mxu0 0.0
  %6043 = vmatpush1.msra.mxu0 0.0
  %6044 = vmatprep.subr.mxu0 0.0
  %6045 = vmatpush1.msra.mxu0 0.0
  %6046 = vmatprep.subr.mxu0 0.0
  %6047 = vmatpush1.msra.mxu0 0.0
  %6048 = vmatprep.subr.mxu0 0.0
  %6049 = vmatpush1.msra.mxu0 0.0
  %6050 = vmatprep.subr.mxu0 0.0
  %6051 = vmatpush1.msra.mxu0 0.0
  %6052 = vmatprep.subr.mxu0 0.0
  %6053 = vmatpush1.msra.mxu0 0.0
  %6054 = vmatprep.subr.mxu0 0.0
  %6055 = vmatpush1.msra.mxu0 0.0
  %6056 = vmatprep.subr.mxu0 0.0
  %6057 = vmatpush1.msra.mxu0 0.0
  %6058 = vmatprep.subr.mxu0 0.0
  %6059 = vmatpush1.msra.mxu0 0.0
  %6060 = vmatprep.mubr.f32.mxu0 0.0
  %6061 = vmatmul.mubr.f32.gmra.mrb[0].mxu0 %v5994
  %v6062 = vpop.f32.mrb[0].mxu0
  %v6063 = vadd.f32 0.0, %v6062
  %v6064 = vpop.f32.mrb[0].mxu0
  %6065 = vdwg.mxu0
  %v6066 = vadd.f32 %v5990, %v6063
  %v6067 = vxor.u32 %v6066, 2147483648
  %v6068 = vmul.f32 %v6067, 1.442695
  %v6069 = vpow.pop %v6068
  %v6070 = vadd.f32 %v6069, 1.0
  %v6071 = vrcp.pop %v6070
  %v6072 = vmul.f32 1.0, %v6071
  %v6073 = vadd.f32 %v6063, %v5762
  %6075 = vrot.lane.b32.xlu0 %v6073, 64
  %v6076 = vpop.permute.xlu0 %6075
  %v6078 = vmul.f32 %v6072, %v6076
  %6080 = vrot.lane.b32.xlu0 %v6078, 64
  %v6081 = vpop.permute.xlu0 %6080
  %v6083 = vadd.f32 %v5990, %v6081
  %v6084 = vtanh.pop %v6083
  %v6085 = vsub.f32 1.0, %v6072
  %6087 = vrot.lane.b32.xlu0 %v6084, 96
  %v6088 = vpop.permute.xlu0 %6087
  %v6090 = vmul.f32 %v6085, %v6088
  %v6091 = vmul.f32 %v6072, %v5989
  %v6092 = vadd.f32 %v6090, %v6091
  %v6093 = vld [vmem:[#allocation6 + $0x6] sm:$0x3]
  %6095 = vrot.lane.b32.xlu0 %v6092, 96
  %v6096 = vpop.permute.xlu0 %6095
  %v6097 = vsel %vm1917, %v6096, 0
  %6099 = vmatprep.subr.mxu0 0.0
  %6100 = vmatpush1.msra.mxu0 %v4842
  %6101 = vmatprep.subr.mxu0 0.0
  %6102 = vmatpush1.msra.mxu0 %v4843
  %6103 = vmatprep.subr.mxu0 0.0
  %6104 = vmatpush1.msra.mxu0 %v4844
  %6105 = vmatprep.subr.mxu0 0.0
  %6106 = vmatpush1.msra.mxu0 %v4845
  %6107 = vmatprep.subr.mxu0 0.0
  %6108 = vmatpush1.msra.mxu0 0.0
  %6109 = vmatprep.subr.mxu0 0.0
  %6110 = vmatpush1.msra.mxu0 0.0
  %6111 = vmatprep.subr.mxu0 0.0
  %6112 = vmatpush1.msra.mxu0 0.0
  %6113 = vmatprep.subr.mxu0 0.0
  %6114 = vmatpush1.msra.mxu0 0.0
  %6115 = vmatprep.subr.mxu0 0.0
  %6116 = vmatpush1.msra.mxu0 0.0
  %6117 = vmatprep.subr.mxu0 0.0
  %6118 = vmatpush1.msra.mxu0 0.0
  %6119 = vmatprep.subr.mxu0 0.0
  %6120 = vmatpush1.msra.mxu0 0.0
  %6121 = vmatprep.subr.mxu0 0.0
  %6122 = vmatpush1.msra.mxu0 0.0
  %6123 = vmatprep.subr.mxu0 0.0
  %6124 = vmatpush1.msra.mxu0 0.0
  %6125 = vmatprep.subr.mxu0 0.0
  %6126 = vmatpush1.msra.mxu0 0.0
  %6127 = vmatprep.subr.mxu0 0.0
  %6128 = vmatpush1.msra.mxu0 0.0
  %6129 = vmatprep.subr.mxu0 0.0
  %6130 = vmatpush1.msra.mxu0 0.0
  %6131 = vmatprep.subr.mxu0 0.0
  %6132 = vmatpush1.msra.mxu0 0.0
  %6133 = vmatprep.subr.mxu0 0.0
  %6134 = vmatpush1.msra.mxu0 0.0
  %6135 = vmatprep.subr.mxu0 0.0
  %6136 = vmatpush1.msra.mxu0 0.0
  %6137 = vmatprep.subr.mxu0 0.0
  %6138 = vmatpush1.msra.mxu0 0.0
  %6139 = vmatprep.subr.mxu0 0.0
  %6140 = vmatpush1.msra.mxu0 0.0
  %6141 = vmatprep.subr.mxu0 0.0
  %6142 = vmatpush1.msra.mxu0 0.0
  %6143 = vmatprep.subr.mxu0 0.0
  %6144 = vmatpush1.msra.mxu0 0.0
  %6145 = vmatprep.subr.mxu0 0.0
  %6146 = vmatpush1.msra.mxu0 0.0
  %6147 = vmatprep.subr.mxu0 0.0
  %6148 = vmatpush1.msra.mxu0 0.0
  %6149 = vmatprep.subr.mxu0 0.0
  %6150 = vmatpush1.msra.mxu0 0.0
  %6151 = vmatprep.subr.mxu0 0.0
  %6152 = vmatpush1.msra.mxu0 0.0
  %6153 = vmatprep.subr.mxu0 0.0
  %6154 = vmatpush1.msra.mxu0 0.0
  %6155 = vmatprep.subr.mxu0 0.0
  %6156 = vmatpush1.msra.mxu0 0.0
  %6157 = vmatprep.subr.mxu0 0.0
  %6158 = vmatpush1.msra.mxu0 0.0
  %6159 = vmatprep.subr.mxu0 0.0
  %6160 = vmatpush1.msra.mxu0 0.0
  %6161 = vmatprep.subr.mxu0 0.0
  %6162 = vmatpush1.msra.mxu0 0.0
  %6163 = vmatprep.mubr.f32.mxu0 0.0
  %6164 = vmatmul.mubr.f32.gmra.mrb[0].mxu0 %v6097
  %v6165 = vpop.f32.mrb[0].mxu0
  %v6166 = vadd.f32 0.0, %v6165
  %v6167 = vpop.f32.mrb[0].mxu0
  %6168 = vdwg.mxu0
  %v6169 = vadd.f32 %v6093, %v6166
  %v6170 = vxor.u32 %v6169, 2147483648
  %v6171 = vmul.f32 %v6170, 1.442695
  %v6172 = vpow.pop %v6171
  %v6173 = vadd.f32 %v6172, 1.0
  %v6174 = vrcp.pop %v6173
  %v6175 = vmul.f32 1.0, %v6174
  %v6176 = vadd.f32 %v6166, %v5762
  %6178 = vrot.lane.b32.xlu0 %v6176, 64
  %v6179 = vpop.permute.xlu0 %6178
  %v6181 = vmul.f32 %v6175, %v6179
  %6183 = vrot.lane.b32.xlu0 %v6181, 64
  %v6184 = vpop.permute.xlu0 %6183
  %v6186 = vadd.f32 %v6093, %v6184
  %v6187 = vtanh.pop %v6186
  %v6188 = vsub.f32 1.0, %v6175
  %6190 = vrot.lane.b32.xlu0 %v6187, 96
  %v6191 = vpop.permute.xlu0 %6190
  %v6193 = vmul.f32 %v6188, %v6191
  %v6194 = vmul.f32 %v6175, %v6092
  %v6195 = vadd.f32 %v6193, %v6194
  %v6196 = vld [vmem:[#allocation6 + $0x4] sm:$0x3]
  %6198 = vrot.lane.b32.xlu0 %v6195, 96
  %v6199 = vpop.permute.xlu0 %6198
  %v6200 = vsel %vm1917, %v6199, 0
  %6202 = vmatprep.subr.mxu0 0.0
  %6203 = vmatpush1.msra.mxu0 %v4842
  %6204 = vmatprep.subr.mxu0 0.0
  %6205 = vmatpush1.msra.mxu0 %v4843
  %6206 = vmatprep.subr.mxu0 0.0
  %6207 = vmatpush1.msra.mxu0 %v4844
  %6208 = vmatprep.subr.mxu0 0.0
  %6209 = vmatpush1.msra.mxu0 %v4845
  %6210 = vmatprep.subr.mxu0 0.0
  %6211 = vmatpush1.msra.mxu0 0.0
  %6212 = vmatprep.subr.mxu0 0.0
  %6213 = vmatpush1.msra.mxu0 0.0
  %6214 = vmatprep.subr.mxu0 0.0
  %6215 = vmatpush1.msra.mxu0 0.0
  %6216 = vmatprep.subr.mxu0 0.0
  %6217 = vmatpush1.msra.mxu0 0.0
  %6218 = vmatprep.subr.mxu0 0.0
  %6219 = vmatpush1.msra.mxu0 0.0
  %6220 = vmatprep.subr.mxu0 0.0
  %6221 = vmatpush1.msra.mxu0 0.0
  %6222 = vmatprep.subr.mxu0 0.0
  %6223 = vmatpush1.msra.mxu0 0.0
  %6224 = vmatprep.subr.mxu0 0.0
  %6225 = vmatpush1.msra.mxu0 0.0
  %6226 = vmatprep.subr.mxu0 0.0
  %6227 = vmatpush1.msra.mxu0 0.0
  %6228 = vmatprep.subr.mxu0 0.0
  %6229 = vmatpush1.msra.mxu0 0.0
  %6230 = vmatprep.subr.mxu0 0.0
  %6231 = vmatpush1.msra.mxu0 0.0
  %6232 = vmatprep.subr.mxu0 0.0
  %6233 = vmatpush1.msra.mxu0 0.0
  %6234 = vmatprep.subr.mxu0 0.0
  %6235 = vmatpush1.msra.mxu0 0.0
  %6236 = vmatprep.subr.mxu0 0.0
  %6237 = vmatpush1.msra.mxu0 0.0
  %6238 = vmatprep.subr.mxu0 0.0
  %6239 = vmatpush1.msra.mxu0 0.0
  %6240 = vmatprep.subr.mxu0 0.0
  %6241 = vmatpush1.msra.mxu0 0.0
  %6242 = vmatprep.subr.mxu0 0.0
  %6243 = vmatpush1.msra.mxu0 0.0
  %6244 = vmatprep.subr.mxu0 0.0
  %6245 = vmatpush1.msra.mxu0 0.0
  %6246 = vmatprep.subr.mxu0 0.0
  %6247 = vmatpush1.msra.mxu0 0.0
  %6248 = vmatprep.subr.mxu0 0.0
  %6249 = vmatpush1.msra.mxu0 0.0
  %6250 = vmatprep.subr.mxu0 0.0
  %6251 = vmatpush1.msra.mxu0 0.0
  %6252 = vmatprep.subr.mxu0 0.0
  %6253 = vmatpush1.msra.mxu0 0.0
  %6254 = vmatprep.subr.mxu0 0.0
  %6255 = vmatpush1.msra.mxu0 0.0
  %6256 = vmatprep.subr.mxu0 0.0
  %6257 = vmatpush1.msra.mxu0 0.0
  %6258 = vmatprep.subr.mxu0 0.0
  %6259 = vmatpush1.msra.mxu0 0.0
  %6260 = vmatprep.subr.mxu0 0.0
  %6261 = vmatpush1.msra.mxu0 0.0
  %6262 = vmatprep.subr.mxu0 0.0
  %6263 = vmatpush1.msra.mxu0 0.0
  %6264 = vmatprep.subr.mxu0 0.0
  %6265 = vmatpush1.msra.mxu0 0.0
  %6266 = vmatprep.mubr.f32.mxu0 0.0
  %6267 = vmatmul.mubr.f32.gmra.mrb[0].mxu0 %v6200
  %v6268 = vpop.f32.mrb[0].mxu0
  %v6269 = vadd.f32 0.0, %v6268
  %v6270 = vpop.f32.mrb[0].mxu0
  %6271 = vdwg.mxu0
  %v6272 = vadd.f32 %v6196, %v6269
  %v6273 = vxor.u32 %v6272, 2147483648
  %v6274 = vmul.f32 %v6273, 1.442695
  %v6275 = vpow.pop %v6274
  %v6276 = vadd.f32 %v6275, 1.0
  %v6277 = vrcp.pop %v6276
  %v6278 = vmul.f32 1.0, %v6277
  %v6279 = vadd.f32 %v6269, %v5762
  %6281 = vrot.lane.b32.xlu0 %v6279, 64
  %v6282 = vpop.permute.xlu0 %6281
  %v6284 = vmul.f32 %v6278, %v6282
  %6286 = vrot.lane.b32.xlu0 %v6284, 64
  %v6287 = vpop.permute.xlu0 %6286
  %v6289 = vadd.f32 %v6196, %v6287
  %v6290 = vtanh.pop %v6289
  %v6291 = vsub.f32 1.0, %v6278
  %6293 = vrot.lane.b32.xlu0 %v6290, 96
  %v6294 = vpop.permute.xlu0 %6293
  %v6296 = vmul.f32 %v6291, %v6294
  %v6297 = vmul.f32 %v6278, %v6195
  %v6298 = vadd.f32 %v6296, %v6297
  %v6299 = vld [vmem:[#allocation6 + $0x2] sm:$0x3]
  %6301 = vrot.lane.b32.xlu0 %v6298, 96
  %v6302 = vpop.permute.xlu0 %6301
  %v6303 = vsel %vm1917, %v6302, 0
  %6305 = vmatprep.subr.mxu0 0.0
  %6306 = vmatpush1.msra.mxu0 %v4842
  %6307 = vmatprep.subr.mxu0 0.0
  %6308 = vmatpush1.msra.mxu0 %v4843
  %6309 = vmatprep.subr.mxu0 0.0
  %6310 = vmatpush1.msra.mxu0 %v4844
  %6311 = vmatprep.subr.mxu0 0.0
  %6312 = vmatpush1.msra.mxu0 %v4845
  %6313 = vmatprep.subr.mxu0 0.0
  %6314 = vmatpush1.msra.mxu0 0.0
  %6315 = vmatprep.subr.mxu0 0.0
  %6316 = vmatpush1.msra.mxu0 0.0
  %6317 = vmatprep.subr.mxu0 0.0
  %6318 = vmatpush1.msra.mxu0 0.0
  %6319 = vmatprep.subr.mxu0 0.0
  %6320 = vmatpush1.msra.mxu0 0.0
  %6321 = vmatprep.subr.mxu0 0.0
  %6322 = vmatpush1.msra.mxu0 0.0
  %6323 = vmatprep.subr.mxu0 0.0
  %6324 = vmatpush1.msra.mxu0 0.0
  %6325 = vmatprep.subr.mxu0 0.0
  %6326 = vmatpush1.msra.mxu0 0.0
  %6327 = vmatprep.subr.mxu0 0.0
  %6328 = vmatpush1.msra.mxu0 0.0
  %6329 = vmatprep.subr.mxu0 0.0
  %6330 = vmatpush1.msra.mxu0 0.0
  %6331 = vmatprep.subr.mxu0 0.0
  %6332 = vmatpush1.msra.mxu0 0.0
  %6333 = vmatprep.subr.mxu0 0.0
  %6334 = vmatpush1.msra.mxu0 0.0
  %6335 = vmatprep.subr.mxu0 0.0
  %6336 = vmatpush1.msra.mxu0 0.0
  %6337 = vmatprep.subr.mxu0 0.0
  %6338 = vmatpush1.msra.mxu0 0.0
  %6339 = vmatprep.subr.mxu0 0.0
  %6340 = vmatpush1.msra.mxu0 0.0
  %6341 = vmatprep.subr.mxu0 0.0
  %6342 = vmatpush1.msra.mxu0 0.0
  %6343 = vmatprep.subr.mxu0 0.0
  %6344 = vmatpush1.msra.mxu0 0.0
  %6345 = vmatprep.subr.mxu0 0.0
  %6346 = vmatpush1.msra.mxu0 0.0
  %6347 = vmatprep.subr.mxu0 0.0
  %6348 = vmatpush1.msra.mxu0 0.0
  %6349 = vmatprep.subr.mxu0 0.0
  %6350 = vmatpush1.msra.mxu0 0.0
  %6351 = vmatprep.subr.mxu0 0.0
  %6352 = vmatpush1.msra.mxu0 0.0
  %6353 = vmatprep.subr.mxu0 0.0
  %6354 = vmatpush1.msra.mxu0 0.0
  %6355 = vmatprep.subr.mxu0 0.0
  %6356 = vmatpush1.msra.mxu0 0.0
  %6357 = vmatprep.subr.mxu0 0.0
  %6358 = vmatpush1.msra.mxu0 0.0
  %6359 = vmatprep.subr.mxu0 0.0
  %6360 = vmatpush1.msra.mxu0 0.0
  %6361 = vmatprep.subr.mxu0 0.0
  %6362 = vmatpush1.msra.mxu0 0.0
  %6363 = vmatprep.subr.mxu0 0.0
  %6364 = vmatpush1.msra.mxu0 0.0
  %6365 = vmatprep.subr.mxu0 0.0
  %6366 = vmatpush1.msra.mxu0 0.0
  %6367 = vmatprep.subr.mxu0 0.0
  %6368 = vmatpush1.msra.mxu0 0.0
  %6369 = vmatprep.mubr.f32.mxu0 0.0
  %6370 = vmatmul.mubr.f32.gmra.mrb[0].mxu0 %v6303
  %v6371 = vpop.f32.mrb[0].mxu0
  %v6372 = vadd.f32 0.0, %v6371
  %v6373 = vpop.f32.mrb[0].mxu0
  %6374 = vdwg.mxu0
  %v6375 = vadd.f32 %v6299, %v6372
  %v6376 = vxor.u32 %v6375, 2147483648
  %v6377 = vmul.f32 %v6376, 1.442695
  %v6378 = vpow.pop %v6377
  %v6379 = vadd.f32 %v6378, 1.0
  %v6380 = vrcp.pop %v6379
  %v6381 = vmul.f32 1.0, %v6380
  %v6382 = vadd.f32 %v6372, %v5762
  %6384 = vrot.lane.b32.xlu0 %v6382, 64
  %v6385 = vpop.permute.xlu0 %6384
  %v6387 = vmul.f32 %v6381, %v6385
  %6389 = vrot.lane.b32.xlu0 %v6387, 64
  %v6390 = vpop.permute.xlu0 %6389
  %v6392 = vadd.f32 %v6299, %v6390
  %v6393 = vtanh.pop %v6392
  %v6394 = vsub.f32 1.0, %v6381
  %6396 = vrot.lane.b32.xlu0 %v6393, 96
  %v6397 = vpop.permute.xlu0 %6396
  %v6399 = vmul.f32 %v6394, %v6397
  %v6400 = vmul.f32 %v6381, %v6298
  %v6401 = vadd.f32 %v6399, %v6400
  %v6402 = vld [vmem:[#allocation6] sm:$0x3]
  %6404 = vrot.lane.b32.xlu0 %v6401, 96
  %v6405 = vpop.permute.xlu0 %6404
  %v6406 = vsel %vm1917, %v6405, 0
  %6408 = vmatprep.subr.mxu0 0.0
  %6409 = vmatpush1.msra.mxu0 %v4842
  %6410 = vmatprep.subr.mxu0 0.0
  %6411 = vmatpush1.msra.mxu0 %v4843
  %6412 = vmatprep.subr.mxu0 0.0
  %6413 = vmatpush1.msra.mxu0 %v4844
  %6414 = vmatprep.subr.mxu0 0.0
  %6415 = vmatpush1.msra.mxu0 %v4845
  %6416 = vmatprep.subr.mxu0 0.0
  %6417 = vmatpush1.msra.mxu0 0.0
  %6418 = vmatprep.subr.mxu0 0.0
  %6419 = vmatpush1.msra.mxu0 0.0
  %6420 = vmatprep.subr.mxu0 0.0
  %6421 = vmatpush1.msra.mxu0 0.0
  %6422 = vmatprep.subr.mxu0 0.0
  %6423 = vmatpush1.msra.mxu0 0.0
  %6424 = vmatprep.subr.mxu0 0.0
  %6425 = vmatpush1.msra.mxu0 0.0
  %6426 = vmatprep.subr.mxu0 0.0
  %6427 = vmatpush1.msra.mxu0 0.0
  %6428 = vmatprep.subr.mxu0 0.0
  %6429 = vmatpush1.msra.mxu0 0.0
  %6430 = vmatprep.subr.mxu0 0.0
  %6431 = vmatpush1.msra.mxu0 0.0
  %6432 = vmatprep.subr.mxu0 0.0
  %6433 = vmatpush1.msra.mxu0 0.0
  %6434 = vmatprep.subr.mxu0 0.0
  %6435 = vmatpush1.msra.mxu0 0.0
  %6436 = vmatprep.subr.mxu0 0.0
  %6437 = vmatpush1.msra.mxu0 0.0
  %6438 = vmatprep.subr.mxu0 0.0
  %6439 = vmatpush1.msra.mxu0 0.0
  %6440 = vmatprep.subr.mxu0 0.0
  %6441 = vmatpush1.msra.mxu0 0.0
  %6442 = vmatprep.subr.mxu0 0.0
  %6443 = vmatpush1.msra.mxu0 0.0
  %6444 = vmatprep.subr.mxu0 0.0
  %6445 = vmatpush1.msra.mxu0 0.0
  %6446 = vmatprep.subr.mxu0 0.0
  %6447 = vmatpush1.msra.mxu0 0.0
  %6448 = vmatprep.subr.mxu0 0.0
  %6449 = vmatpush1.msra.mxu0 0.0
  %6450 = vmatprep.subr.mxu0 0.0
  %6451 = vmatpush1.msra.mxu0 0.0
  %6452 = vmatprep.subr.mxu0 0.0
  %6453 = vmatpush1.msra.mxu0 0.0
  %6454 = vmatprep.subr.mxu0 0.0
  %6455 = vmatpush1.msra.mxu0 0.0
  %6456 = vmatprep.subr.mxu0 0.0
  %6457 = vmatpush1.msra.mxu0 0.0
  %6458 = vmatprep.subr.mxu0 0.0
  %6459 = vmatpush1.msra.mxu0 0.0
  %6460 = vmatprep.subr.mxu0 0.0
  %6461 = vmatpush1.msra.mxu0 0.0
  %6462 = vmatprep.subr.mxu0 0.0
  %6463 = vmatpush1.msra.mxu0 0.0
  %6464 = vmatprep.subr.mxu0 0.0
  %6465 = vmatpush1.msra.mxu0 0.0
  %6466 = vmatprep.subr.mxu0 0.0
  %6467 = vmatpush1.msra.mxu0 0.0
  %6468 = vmatprep.subr.mxu0 0.0
  %6469 = vmatpush1.msra.mxu0 0.0
  %6470 = vmatprep.subr.mxu0 0.0
  %6471 = vmatpush1.msra.mxu0 0.0
  %6472 = vmatprep.mubr.f32.mxu0 0.0
  %6473 = vmatmul.mubr.f32.gmra.mrb[0].mxu0 %v6406
  %v6474 = vpop.f32.mrb[0].mxu0
  %v6475 = vadd.f32 0.0, %v6474
  %v6476 = vpop.f32.mrb[0].mxu0
  %6477 = vdwg.mxu0
  %v6478 = vadd.f32 %v6402, %v6475
  %v6479 = vxor.u32 %v6478, 2147483648
  %v6480 = vmul.f32 %v6479, 1.442695
  %v6481 = vpow.pop %v6480
  %v6482 = vadd.f32 %v6481, 1.0
  %v6483 = vrcp.pop %v6482
  %v6484 = vmul.f32 1.0, %v6483
  %v6485 = vadd.f32 %v6475, %v5762
  %6487 = vrot.lane.b32.xlu0 %v6485, 64
  %v6488 = vpop.permute.xlu0 %6487
  %v6490 = vmul.f32 %v6484, %v6488
  %6492 = vrot.lane.b32.xlu0 %v6490, 64
  %v6493 = vpop.permute.xlu0 %6492
  %v6495 = vadd.f32 %v6402, %v6493
  %v6496 = vtanh.pop %v6495
  %v6497 = vsub.f32 1.0, %v6484
  %6499 = vrot.lane.b32.xlu0 %v6496, 96
  %v6500 = vpop.permute.xlu0 %6499
  %v6502 = vmul.f32 %v6497, %v6500
  %v6503 = vmul.f32 %v6484, %v6401
  %v6504 = vadd.f32 %v6502, %v6503
  %v6505 = vld [vmem:[%s18] sm:$0xff]
  %v6506 = vld [vmem:[%s18 + $0x8] sm:$0xff]
  %v6507 = vld [vmem:[%s18 + $0x10] sm:$0xff]
  %v6508 = vld [vmem:[%s18 + $0x18] sm:$0xff]
  %v6509 = vld [vmem:[%s18 + $0x20] sm:$0xff]
  %v6510 = vld [vmem:[%s18 + $0x28] sm:$0xff]
  %v6511 = vld [vmem:[%s18 + $0x30] sm:$0xff]
  %v6512 = vld [vmem:[%s18 + $0x38] sm:$0xff]
  %6514 = vrot.lane.b32.xlu0 %v6504, 96
  %v6515 = vpop.permute.xlu0 %6514
  %v6516 = vsel %vm1917, %v6515, 0
  %6518 = vmatprep.subr.mxu0 0.0
  %6519 = vmatpush1.msra.mxu0 %v6509
  %6520 = vmatprep.subr.mxu0 0.0
  %6521 = vmatpush1.msra.mxu0 %v6510
  %6522 = vmatprep.subr.mxu0 0.0
  %6523 = vmatpush1.msra.mxu0 %v6511
  %6524 = vmatprep.subr.mxu0 0.0
  %6525 = vmatpush1.msra.mxu0 %v6512
  %6526 = vmatprep.subr.mxu0 0.0
  %6527 = vmatpush1.msra.mxu0 0.0
  %6528 = vmatprep.subr.mxu0 0.0
  %6529 = vmatpush1.msra.mxu0 0.0
  %6530 = vmatprep.subr.mxu0 0.0
  %6531 = vmatpush1.msra.mxu0 0.0
  %6532 = vmatprep.subr.mxu0 0.0
  %6533 = vmatpush1.msra.mxu0 0.0
  %6534 = vmatprep.subr.mxu0 0.0
  %6535 = vmatpush1.msra.mxu0 0.0
  %6536 = vmatprep.subr.mxu0 0.0
  %6537 = vmatpush1.msra.mxu0 0.0
  %6538 = vmatprep.subr.mxu0 0.0
  %6539 = vmatpush1.msra.mxu0 0.0
  %6540 = vmatprep.subr.mxu0 0.0
  %6541 = vmatpush1.msra.mxu0 0.0
  %6542 = vmatprep.subr.mxu0 0.0
  %6543 = vmatpush1.msra.mxu0 0.0
  %6544 = vmatprep.subr.mxu0 0.0
  %6545 = vmatpush1.msra.mxu0 0.0
  %6546 = vmatprep.subr.mxu0 0.0
  %6547 = vmatpush1.msra.mxu0 0.0
  %6548 = vmatprep.subr.mxu0 0.0
  %6549 = vmatpush1.msra.mxu0 0.0
  %6550 = vmatprep.subr.mxu0 0.0
  %6551 = vmatpush1.msra.mxu0 0.0
  %6552 = vmatprep.subr.mxu0 0.0
  %6553 = vmatpush1.msra.mxu0 0.0
  %6554 = vmatprep.subr.mxu0 0.0
  %6555 = vmatpush1.msra.mxu0 0.0
  %6556 = vmatprep.subr.mxu0 0.0
  %6557 = vmatpush1.msra.mxu0 0.0
  %6558 = vmatprep.subr.mxu0 0.0
  %6559 = vmatpush1.msra.mxu0 0.0
  %6560 = vmatprep.subr.mxu0 0.0
  %6561 = vmatpush1.msra.mxu0 0.0
  %6562 = vmatprep.subr.mxu0 0.0
  %6563 = vmatpush1.msra.mxu0 0.0
  %6564 = vmatprep.subr.mxu0 0.0
  %6565 = vmatpush1.msra.mxu0 0.0
  %6566 = vmatprep.subr.mxu0 0.0
  %6567 = vmatpush1.msra.mxu0 0.0
  %6568 = vmatprep.subr.mxu0 0.0
  %6569 = vmatpush1.msra.mxu0 0.0
  %6570 = vmatprep.subr.mxu0 0.0
  %6571 = vmatpush1.msra.mxu0 0.0
  %6572 = vmatprep.subr.mxu0 0.0
  %6573 = vmatpush1.msra.mxu0 0.0
  %6574 = vmatprep.subr.mxu0 0.0
  %6575 = vmatpush1.msra.mxu0 0.0
  %6576 = vmatprep.subr.mxu0 0.0
  %6577 = vmatpush1.msra.mxu0 0.0
  %6578 = vmatprep.subr.mxu0 0.0
  %6579 = vmatpush1.msra.mxu0 0.0
  %6580 = vmatprep.subr.mxu0 0.0
  %6581 = vmatpush1.msra.mxu0 0.0
  %6582 = vmatprep.mubr.f32.mxu0 0.0
  %6583 = vmatmul.mubr.f32.gmra.mrb[0].mxu0 %v6516
  %v6584 = vpop.f32.mrb[0].mxu0
  %v6585 = vadd.f32 0.0, %v6584
  %v6586 = vpop.f32.mrb[0].mxu0
  %6587 = vdwg.mxu0
  %6589 = vrot.lane.b32.xlu0 %v5677, 96
  %v6590 = vpop.permute.xlu0 %6589
  %v6591 = vsel %vm1917, %v6590, 0
  %6593 = vmatprep.subr.mxu0 0.0
  %6594 = vmatpush1.msra.mxu0 %v6505
  %6595 = vmatprep.subr.mxu0 0.0
  %6596 = vmatpush1.msra.mxu0 %v6506
  %6597 = vmatprep.subr.mxu0 0.0
  %6598 = vmatpush1.msra.mxu0 %v6507
  %6599 = vmatprep.subr.mxu0 0.0
  %6600 = vmatpush1.msra.mxu0 %v6508
  %6601 = vmatprep.subr.mxu0 0.0
  %6602 = vmatpush1.msra.mxu0 0.0
  %6603 = vmatprep.subr.mxu0 0.0
  %6604 = vmatpush1.msra.mxu0 0.0
  %6605 = vmatprep.subr.mxu0 0.0
  %6606 = vmatpush1.msra.mxu0 0.0
  %6607 = vmatprep.subr.mxu0 0.0
  %6608 = vmatpush1.msra.mxu0 0.0
  %6609 = vmatprep.subr.mxu0 0.0
  %6610 = vmatpush1.msra.mxu0 0.0
  %6611 = vmatprep.subr.mxu0 0.0
  %6612 = vmatpush1.msra.mxu0 0.0
  %6613 = vmatprep.subr.mxu0 0.0
  %6614 = vmatpush1.msra.mxu0 0.0
  %6615 = vmatprep.subr.mxu0 0.0
  %6616 = vmatpush1.msra.mxu0 0.0
  %6617 = vmatprep.subr.mxu0 0.0
  %6618 = vmatpush1.msra.mxu0 0.0
  %6619 = vmatprep.subr.mxu0 0.0
  %6620 = vmatpush1.msra.mxu0 0.0
  %6621 = vmatprep.subr.mxu0 0.0
  %6622 = vmatpush1.msra.mxu0 0.0
  %6623 = vmatprep.subr.mxu0 0.0
  %6624 = vmatpush1.msra.mxu0 0.0
  %6625 = vmatprep.subr.mxu0 0.0
  %6626 = vmatpush1.msra.mxu0 0.0
  %6627 = vmatprep.subr.mxu0 0.0
  %6628 = vmatpush1.msra.mxu0 0.0
  %6629 = vmatprep.subr.mxu0 0.0
  %6630 = vmatpush1.msra.mxu0 0.0
  %6631 = vmatprep.subr.mxu0 0.0
  %6632 = vmatpush1.msra.mxu0 0.0
  %6633 = vmatprep.subr.mxu0 0.0
  %6634 = vmatpush1.msra.mxu0 0.0
  %6635 = vmatprep.subr.mxu0 0.0
  %6636 = vmatpush1.msra.mxu0 0.0
  %6637 = vmatprep.subr.mxu0 0.0
  %6638 = vmatpush1.msra.mxu0 0.0
  %6639 = vmatprep.subr.mxu0 0.0
  %6640 = vmatpush1.msra.mxu0 0.0
  %6641 = vmatprep.subr.mxu0 0.0
  %6642 = vmatpush1.msra.mxu0 0.0
  %6643 = vmatprep.subr.mxu0 0.0
  %6644 = vmatpush1.msra.mxu0 0.0
  %6645 = vmatprep.subr.mxu0 0.0
  %6646 = vmatpush1.msra.mxu0 0.0
  %6647 = vmatprep.subr.mxu0 0.0
  %6648 = vmatpush1.msra.mxu0 0.0
  %6649 = vmatprep.subr.mxu0 0.0
  %6650 = vmatpush1.msra.mxu0 0.0
  %6651 = vmatprep.subr.mxu0 0.0
  %6652 = vmatpush1.msra.mxu0 0.0
  %6653 = vmatprep.subr.mxu0 0.0
  %6654 = vmatpush1.msra.mxu0 0.0
  %6655 = vmatprep.subr.mxu0 0.0
  %6656 = vmatpush1.msra.mxu0 0.0
  %6657 = vmatprep.mubr.f32.mxu0 0.0
  %6658 = vmatmul.mubr.f32.gmra.mrb[0].mxu0 %v6591
  %v6659 = vpop.f32.mrb[0].mxu0
  %v6660 = vadd.f32 %v6585, %v6659
  %v6661 = vpop.f32.mrb[0].mxu0
  %6662 = vdwg.mxu0
  %v6663 = vld [vmem:[#allocation4] sm:$0x3]
  %v6664 = vld [vmem:[%s17] sm:$0xff]
  %v6665 = vld [vmem:[%s17 + $0x8] sm:$0xff]
  %v6666 = vld [vmem:[%s17 + $0x10] sm:$0xff]
  %v6667 = vld [vmem:[%s17 + $0x18] sm:$0xff]
  %v6669 = vsel %vm1917, %v6663, 0
  %6671 = vmatprep.subr.mxu0 0.0
  %6672 = vmatpush1.msra.mxu0 %v6664
  %6673 = vmatprep.subr.mxu0 0.0
  %6674 = vmatpush1.msra.mxu0 %v6665
  %6675 = vmatprep.subr.mxu0 0.0
  %6676 = vmatpush1.msra.mxu0 %v6666
  %6677 = vmatprep.subr.mxu0 0.0
  %6678 = vmatpush1.msra.mxu0 %v6667
  %6679 = vmatprep.subr.mxu0 0.0
  %6680 = vmatpush1.msra.mxu0 0.0
  %6681 = vmatprep.subr.mxu0 0.0
  %6682 = vmatpush1.msra.mxu0 0.0
  %6683 = vmatprep.subr.mxu0 0.0
  %6684 = vmatpush1.msra.mxu0 0.0
  %6685 = vmatprep.subr.mxu0 0.0
  %6686 = vmatpush1.msra.mxu0 0.0
  %6687 = vmatprep.subr.mxu0 0.0
  %6688 = vmatpush1.msra.mxu0 0.0
  %6689 = vmatprep.subr.mxu0 0.0
  %6690 = vmatpush1.msra.mxu0 0.0
  %6691 = vmatprep.subr.mxu0 0.0
  %6692 = vmatpush1.msra.mxu0 0.0
  %6693 = vmatprep.subr.mxu0 0.0
  %6694 = vmatpush1.msra.mxu0 0.0
  %6695 = vmatprep.subr.mxu0 0.0
  %6696 = vmatpush1.msra.mxu0 0.0
  %6697 = vmatprep.subr.mxu0 0.0
  %6698 = vmatpush1.msra.mxu0 0.0
  %6699 = vmatprep.subr.mxu0 0.0
  %6700 = vmatpush1.msra.mxu0 0.0
  %6701 = vmatprep.subr.mxu0 0.0
  %6702 = vmatpush1.msra.mxu0 0.0
  %6703 = vmatprep.subr.mxu0 0.0
  %6704 = vmatpush1.msra.mxu0 0.0
  %6705 = vmatprep.subr.mxu0 0.0
  %6706 = vmatpush1.msra.mxu0 0.0
  %6707 = vmatprep.subr.mxu0 0.0
  %6708 = vmatpush1.msra.mxu0 0.0
  %6709 = vmatprep.subr.mxu0 0.0
  %6710 = vmatpush1.msra.mxu0 0.0
  %6711 = vmatprep.subr.mxu0 0.0
  %6712 = vmatpush1.msra.mxu0 0.0
  %6713 = vmatprep.subr.mxu0 0.0
  %6714 = vmatpush1.msra.mxu0 0.0
  %6715 = vmatprep.subr.mxu0 0.0
  %6716 = vmatpush1.msra.mxu0 0.0
  %6717 = vmatprep.subr.mxu0 0.0
  %6718 = vmatpush1.msra.mxu0 0.0
  %6719 = vmatprep.subr.mxu0 0.0
  %6720 = vmatpush1.msra.mxu0 0.0
  %6721 = vmatprep.subr.mxu0 0.0
  %6722 = vmatpush1.msra.mxu0 0.0
  %6723 = vmatprep.subr.mxu0 0.0
  %6724 = vmatpush1.msra.mxu0 0.0
  %6725 = vmatprep.subr.mxu0 0.0
  %6726 = vmatpush1.msra.mxu0 0.0
  %6727 = vmatprep.subr.mxu0 0.0
  %6728 = vmatpush1.msra.mxu0 0.0
  %6729 = vmatprep.subr.mxu0 0.0
  %6730 = vmatpush1.msra.mxu0 0.0
  %6731 = vmatprep.subr.mxu0 0.0
  %6732 = vmatpush1.msra.mxu0 0.0
  %6733 = vmatprep.subr.mxu0 0.0
  %6734 = vmatpush1.msra.mxu0 0.0
  %6735 = vmatprep.mubr.f32.mxu0 0.0
  %6736 = vmatmul.mubr.f32.gmra.mrb[0].mxu0 %v6669
  %v6737 = vpop.f32.mrb[0].mxu0
  %v6738 = vadd.f32 0.0, %v6737
  %v6739 = vpop.f32.mrb[0].mxu0
  %6740 = vdwg.mxu0
  %v6741 = vadd.f32 %v6660, %v6738
  %v6742 = vld [vmem:[#allocation4 + $0x2] sm:$0x3]
  %s6743 = scalar_lea.vmem %s17, 32
  %v6744 = vld [vmem:[%s6743] sm:$0xff]
  %v6745 = vld [vmem:[%s6743 + $0x8] sm:$0xff]
  %v6746 = vld [vmem:[%s6743 + $0x10] sm:$0xff]
  %v6747 = vld [vmem:[%s6743 + $0x18] sm:$0xff]
  %v6749 = vsel %vm1917, %v6742, 0
  %6751 = vmatprep.subr.mxu0 0.0
  %6752 = vmatpush1.msra.mxu0 %v6744
  %6753 = vmatprep.subr.mxu0 0.0
  %6754 = vmatpush1.msra.mxu0 %v6745
  %6755 = vmatprep.subr.mxu0 0.0
  %6756 = vmatpush1.msra.mxu0 %v6746
  %6757 = vmatprep.subr.mxu0 0.0
  %6758 = vmatpush1.msra.mxu0 %v6747
  %6759 = vmatprep.subr.mxu0 0.0
  %6760 = vmatpush1.msra.mxu0 0.0
  %6761 = vmatprep.subr.mxu0 0.0
  %6762 = vmatpush1.msra.mxu0 0.0
  %6763 = vmatprep.subr.mxu0 0.0
  %6764 = vmatpush1.msra.mxu0 0.0
  %6765 = vmatprep.subr.mxu0 0.0
  %6766 = vmatpush1.msra.mxu0 0.0
  %6767 = vmatprep.subr.mxu0 0.0
  %6768 = vmatpush1.msra.mxu0 0.0
  %6769 = vmatprep.subr.mxu0 0.0
  %6770 = vmatpush1.msra.mxu0 0.0
  %6771 = vmatprep.subr.mxu0 0.0
  %6772 = vmatpush1.msra.mxu0 0.0
  %6773 = vmatprep.subr.mxu0 0.0
  %6774 = vmatpush1.msra.mxu0 0.0
  %6775 = vmatprep.subr.mxu0 0.0
  %6776 = vmatpush1.msra.mxu0 0.0
  %6777 = vmatprep.subr.mxu0 0.0
  %6778 = vmatpush1.msra.mxu0 0.0
  %6779 = vmatprep.subr.mxu0 0.0
  %6780 = vmatpush1.msra.mxu0 0.0
  %6781 = vmatprep.subr.mxu0 0.0
  %6782 = vmatpush1.msra.mxu0 0.0
  %6783 = vmatprep.subr.mxu0 0.0
  %6784 = vmatpush1.msra.mxu0 0.0
  %6785 = vmatprep.subr.mxu0 0.0
  %6786 = vmatpush1.msra.mxu0 0.0
  %6787 = vmatprep.subr.mxu0 0.0
  %6788 = vmatpush1.msra.mxu0 0.0
  %6789 = vmatprep.subr.mxu0 0.0
  %6790 = vmatpush1.msra.mxu0 0.0
  %6791 = vmatprep.subr.mxu0 0.0
  %6792 = vmatpush1.msra.mxu0 0.0
  %6793 = vmatprep.subr.mxu0 0.0
  %6794 = vmatpush1.msra.mxu0 0.0
  %6795 = vmatprep.subr.mxu0 0.0
  %6796 = vmatpush1.msra.mxu0 0.0
  %6797 = vmatprep.subr.mxu0 0.0
  %6798 = vmatpush1.msra.mxu0 0.0
  %6799 = vmatprep.subr.mxu0 0.0
  %6800 = vmatpush1.msra.mxu0 0.0
  %6801 = vmatprep.subr.mxu0 0.0
  %6802 = vmatpush1.msra.mxu0 0.0
  %6803 = vmatprep.subr.mxu0 0.0
  %6804 = vmatpush1.msra.mxu0 0.0
  %6805 = vmatprep.subr.mxu0 0.0
  %6806 = vmatpush1.msra.mxu0 0.0
  %6807 = vmatprep.subr.mxu0 0.0
  %6808 = vmatpush1.msra.mxu0 0.0
  %6809 = vmatprep.subr.mxu0 0.0
  %6810 = vmatpush1.msra.mxu0 0.0
  %6811 = vmatprep.subr.mxu0 0.0
  %6812 = vmatpush1.msra.mxu0 0.0
  %6813 = vmatprep.subr.mxu0 0.0
  %6814 = vmatpush1.msra.mxu0 0.0
  %6815 = vmatprep.mubr.f32.mxu0 0.0
  %6816 = vmatmul.mubr.f32.gmra.mrb[0].mxu0 %v6749
  %v6817 = vpop.f32.mrb[0].mxu0
  %v6818 = vadd.f32 0.0, %v6817
  %v6819 = vpop.f32.mrb[0].mxu0
  %6820 = vdwg.mxu0
  %v6821 = vadd.f32 %v6741, %v6818
  %v6822 = vld [vmem:[#allocation4 + $0xe] sm:$0x3]
  %s6823 = scalar_lea.vmem %s17, 64
  %v6824 = vld [vmem:[%s6823] sm:$0xff]
  %v6825 = vld [vmem:[%s6823 + $0x8] sm:$0xff]
  %v6826 = vld [vmem:[%s6823 + $0x10] sm:$0xff]
  %v6827 = vld [vmem:[%s6823 + $0x18] sm:$0xff]
  %v6829 = vsel %vm1917, %v6822, 0
  %6831 = vmatprep.subr.mxu0 0.0
  %6832 = vmatpush1.msra.mxu0 %v6824
  %6833 = vmatprep.subr.mxu0 0.0
  %6834 = vmatpush1.msra.mxu0 %v6825
  %6835 = vmatprep.subr.mxu0 0.0
  %6836 = vmatpush1.msra.mxu0 %v6826
  %6837 = vmatprep.subr.mxu0 0.0
  %6838 = vmatpush1.msra.mxu0 %v6827
  %6839 = vmatprep.subr.mxu0 0.0
  %6840 = vmatpush1.msra.mxu0 0.0
  %6841 = vmatprep.subr.mxu0 0.0
  %6842 = vmatpush1.msra.mxu0 0.0
  %6843 = vmatprep.subr.mxu0 0.0
  %6844 = vmatpush1.msra.mxu0 0.0
  %6845 = vmatprep.subr.mxu0 0.0
  %6846 = vmatpush1.msra.mxu0 0.0
  %6847 = vmatprep.subr.mxu0 0.0
  %6848 = vmatpush1.msra.mxu0 0.0
  %6849 = vmatprep.subr.mxu0 0.0
  %6850 = vmatpush1.msra.mxu0 0.0
  %6851 = vmatprep.subr.mxu0 0.0
  %6852 = vmatpush1.msra.mxu0 0.0
  %6853 = vmatprep.subr.mxu0 0.0
  %6854 = vmatpush1.msra.mxu0 0.0
  %6855 = vmatprep.subr.mxu0 0.0
  %6856 = vmatpush1.msra.mxu0 0.0
  %6857 = vmatprep.subr.mxu0 0.0
  %6858 = vmatpush1.msra.mxu0 0.0
  %6859 = vmatprep.subr.mxu0 0.0
  %6860 = vmatpush1.msra.mxu0 0.0
  %6861 = vmatprep.subr.mxu0 0.0
  %6862 = vmatpush1.msra.mxu0 0.0
  %6863 = vmatprep.subr.mxu0 0.0
  %6864 = vmatpush1.msra.mxu0 0.0
  %6865 = vmatprep.subr.mxu0 0.0
  %6866 = vmatpush1.msra.mxu0 0.0
  %6867 = vmatprep.subr.mxu0 0.0
  %6868 = vmatpush1.msra.mxu0 0.0
  %6869 = vmatprep.subr.mxu0 0.0
  %6870 = vmatpush1.msra.mxu0 0.0
  %6871 = vmatprep.subr.mxu0 0.0
  %6872 = vmatpush1.msra.mxu0 0.0
  %6873 = vmatprep.subr.mxu0 0.0
  %6874 = vmatpush1.msra.mxu0 0.0
  %6875 = vmatprep.subr.mxu0 0.0
  %6876 = vmatpush1.msra.mxu0 0.0
  %6877 = vmatprep.subr.mxu0 0.0
  %6878 = vmatpush1.msra.mxu0 0.0
  %6879 = vmatprep.subr.mxu0 0.0
  %6880 = vmatpush1.msra.mxu0 0.0
  %6881 = vmatprep.subr.mxu0 0.0
  %6882 = vmatpush1.msra.mxu0 0.0
  %6883 = vmatprep.subr.mxu0 0.0
  %6884 = vmatpush1.msra.mxu0 0.0
  %6885 = vmatprep.subr.mxu0 0.0
  %6886 = vmatpush1.msra.mxu0 0.0
  %6887 = vmatprep.subr.mxu0 0.0
  %6888 = vmatpush1.msra.mxu0 0.0
  %6889 = vmatprep.subr.mxu0 0.0
  %6890 = vmatpush1.msra.mxu0 0.0
  %6891 = vmatprep.subr.mxu0 0.0
  %6892 = vmatpush1.msra.mxu0 0.0
  %6893 = vmatprep.subr.mxu0 0.0
  %6894 = vmatpush1.msra.mxu0 0.0
  %6895 = vmatprep.mubr.f32.mxu0 0.0
  %6896 = vmatmul.mubr.f32.gmra.mrb[0].mxu0 %v6829
  %v6897 = vpop.f32.mrb[0].mxu0
  %v6898 = vadd.f32 0.0, %v6897
  %v6899 = vpop.f32.mrb[0].mxu0
  %6900 = vdwg.mxu0
  %v6901 = vadd.f32 %v6821, %v6898
  %v6902 = vld [vmem:[#allocation4 + $0x10] sm:$0x3]
  %s6903 = scalar_lea.vmem %s17, 96
  %v6904 = vld [vmem:[%s6903] sm:$0xff]
  %v6905 = vld [vmem:[%s6903 + $0x8] sm:$0xff]
  %v6906 = vld [vmem:[%s6903 + $0x10] sm:$0xff]
  %v6907 = vld [vmem:[%s6903 + $0x18] sm:$0xff]
  %v6909 = vsel %vm1917, %v6902, 0
  %6911 = vmatprep.subr.mxu0 0.0
  %6912 = vmatpush1.msra.mxu0 %v6904
  %6913 = vmatprep.subr.mxu0 0.0
  %6914 = vmatpush1.msra.mxu0 %v6905
  %6915 = vmatprep.subr.mxu0 0.0
  %6916 = vmatpush1.msra.mxu0 %v6906
  %6917 = vmatprep.subr.mxu0 0.0
  %6918 = vmatpush1.msra.mxu0 %v6907
  %6919 = vmatprep.subr.mxu0 0.0
  %6920 = vmatpush1.msra.mxu0 0.0
  %6921 = vmatprep.subr.mxu0 0.0
  %6922 = vmatpush1.msra.mxu0 0.0
  %6923 = vmatprep.subr.mxu0 0.0
  %6924 = vmatpush1.msra.mxu0 0.0
  %6925 = vmatprep.subr.mxu0 0.0
  %6926 = vmatpush1.msra.mxu0 0.0
  %6927 = vmatprep.subr.mxu0 0.0
  %6928 = vmatpush1.msra.mxu0 0.0
  %6929 = vmatprep.subr.mxu0 0.0
  %6930 = vmatpush1.msra.mxu0 0.0
  %6931 = vmatprep.subr.mxu0 0.0
  %6932 = vmatpush1.msra.mxu0 0.0
  %6933 = vmatprep.subr.mxu0 0.0
  %6934 = vmatpush1.msra.mxu0 0.0
  %6935 = vmatprep.subr.mxu0 0.0
  %6936 = vmatpush1.msra.mxu0 0.0
  %6937 = vmatprep.subr.mxu0 0.0
  %6938 = vmatpush1.msra.mxu0 0.0
  %6939 = vmatprep.subr.mxu0 0.0
  %6940 = vmatpush1.msra.mxu0 0.0
  %6941 = vmatprep.subr.mxu0 0.0
  %6942 = vmatpush1.msra.mxu0 0.0
  %6943 = vmatprep.subr.mxu0 0.0
  %6944 = vmatpush1.msra.mxu0 0.0
  %6945 = vmatprep.subr.mxu0 0.0
  %6946 = vmatpush1.msra.mxu0 0.0
  %6947 = vmatprep.subr.mxu0 0.0
  %6948 = vmatpush1.msra.mxu0 0.0
  %6949 = vmatprep.subr.mxu0 0.0
  %6950 = vmatpush1.msra.mxu0 0.0
  %6951 = vmatprep.subr.mxu0 0.0
  %6952 = vmatpush1.msra.mxu0 0.0
  %6953 = vmatprep.subr.mxu0 0.0
  %6954 = vmatpush1.msra.mxu0 0.0
  %6955 = vmatprep.subr.mxu0 0.0
  %6956 = vmatpush1.msra.mxu0 0.0
  %6957 = vmatprep.subr.mxu0 0.0
  %6958 = vmatpush1.msra.mxu0 0.0
  %6959 = vmatprep.subr.mxu0 0.0
  %6960 = vmatpush1.msra.mxu0 0.0
  %6961 = vmatprep.subr.mxu0 0.0
  %6962 = vmatpush1.msra.mxu0 0.0
  %6963 = vmatprep.subr.mxu0 0.0
  %6964 = vmatpush1.msra.mxu0 0.0
  %6965 = vmatprep.subr.mxu0 0.0
  %6966 = vmatpush1.msra.mxu0 0.0
  %6967 = vmatprep.subr.mxu0 0.0
  %6968 = vmatpush1.msra.mxu0 0.0
  %6969 = vmatprep.subr.mxu0 0.0
  %6970 = vmatpush1.msra.mxu0 0.0
  %6971 = vmatprep.subr.mxu0 0.0
  %6972 = vmatpush1.msra.mxu0 0.0
  %6973 = vmatprep.subr.mxu0 0.0
  %6974 = vmatpush1.msra.mxu0 0.0
  %6975 = vmatprep.mubr.f32.mxu0 0.0
  %6976 = vmatmul.mubr.f32.gmra.mrb[0].mxu0 %v6909
  %v6977 = vpop.f32.mrb[0].mxu0
  %v6978 = vadd.f32 0.0, %v6977
  %v6979 = vpop.f32.mrb[0].mxu0
  %6980 = vdwg.mxu0
  %v6981 = vadd.f32 %v6901, %v6978
  %v6982 = vld [vmem:[%s19] sm:$0x1]
  %v6984 = vlaneseq
  %v6985 = vshrl.u32 %v6984, 7
  %v6986 = vsub.s32 0, %v6985
  %v6987 = vrot.slane %v6982, %v6986
  %v6989 = vadd.f32 %v6981, %v6987
  %v6990 = vmax.f32 %v6989, 0.0
  %v6991 = vld [vmem:[%s20] sm:$0xff]
  %v6992 = vld [vmem:[%s20 + $0x8] sm:$0xff]
  %v6993 = vld [vmem:[%s20 + $0x10] sm:$0xff]
  %v6994 = vld [vmem:[%s20 + $0x18] sm:$0xff]
  %v6995 = vld [vmem:[%s20 + $0x20] sm:$0xff]
  %v6996 = vld [vmem:[%s20 + $0x28] sm:$0xff]
  %v6997 = vld [vmem:[%s20 + $0x30] sm:$0xff]
  %v6998 = vld [vmem:[%s20 + $0x38] sm:$0xff]
  %v6999 = vld [vmem:[%s20 + $0x40] sm:$0xff]
  %v7000 = vld [vmem:[%s20 + $0x48] sm:$0xff]
  %v7001 = vld [vmem:[%s20 + $0x50] sm:$0xff]
  %v7002 = vld [vmem:[%s20 + $0x58] sm:$0xff]
  %v7003 = vld [vmem:[%s20 + $0x60] sm:$0xff]
  %v7004 = vld [vmem:[%s20 + $0x68] sm:$0xff]
  %v7005 = vld [vmem:[%s20 + $0x70] sm:$0xff]
  %v7006 = vld [vmem:[%s20 + $0x78] sm:$0xff]
  %v7007 = vld [vmem:[%s21] sm:$0x1]
  %v7009 = vlaneseq
  %v7010 = vshrl.u32 %v7009, 7
  %v7011 = vsub.s32 0, %v7010
  %v7012 = vrot.slane %v7007, %v7011
  %7014 = vmatprep.subr.mxu0 0.0
  %7015 = vmatpush1.msra.mxu0 %v6991
  %7016 = vmatprep.subr.mxu0 0.0
  %7017 = vmatpush1.msra.mxu0 %v6992
  %7018 = vmatprep.subr.mxu0 0.0
  %7019 = vmatpush1.msra.mxu0 %v6993
  %7020 = vmatprep.subr.mxu0 0.0
  %7021 = vmatpush1.msra.mxu0 %v6994
  %7022 = vmatprep.subr.mxu0 0.0
  %7023 = vmatpush1.msra.mxu0 %v6995
  %7024 = vmatprep.subr.mxu0 0.0
  %7025 = vmatpush1.msra.mxu0 %v6996
  %7026 = vmatprep.subr.mxu0 0.0
  %7027 = vmatpush1.msra.mxu0 %v6997
  %7028 = vmatprep.subr.mxu0 0.0
  %7029 = vmatpush1.msra.mxu0 %v6998
  %7030 = vmatprep.subr.mxu0 0.0
  %7031 = vmatpush1.msra.mxu0 %v6999
  %7032 = vmatprep.subr.mxu0 0.0
  %7033 = vmatpush1.msra.mxu0 %v7000
  %7034 = vmatprep.subr.mxu0 0.0
  %7035 = vmatpush1.msra.mxu0 %v7001
  %7036 = vmatprep.subr.mxu0 0.0
  %7037 = vmatpush1.msra.mxu0 %v7002
  %7038 = vmatprep.subr.mxu0 0.0
  %7039 = vmatpush1.msra.mxu0 %v7003
  %7040 = vmatprep.subr.mxu0 0.0
  %7041 = vmatpush1.msra.mxu0 %v7004
  %7042 = vmatprep.subr.mxu0 0.0
  %7043 = vmatpush1.msra.mxu0 %v7005
  %7044 = vmatprep.subr.mxu0 0.0
  %7045 = vmatpush1.msra.mxu0 %v7006
  %7046 = vmatprep.subr.mxu0 0.0
  %7047 = vmatpush1.msra.mxu0 0.0
  %7048 = vmatprep.subr.mxu0 0.0
  %7049 = vmatpush1.msra.mxu0 0.0
  %7050 = vmatprep.subr.mxu0 0.0
  %7051 = vmatpush1.msra.mxu0 0.0
  %7052 = vmatprep.subr.mxu0 0.0
  %7053 = vmatpush1.msra.mxu0 0.0
  %7054 = vmatprep.subr.mxu0 0.0
  %7055 = vmatpush1.msra.mxu0 0.0
  %7056 = vmatprep.subr.mxu0 0.0
  %7057 = vmatpush1.msra.mxu0 0.0
  %7058 = vmatprep.subr.mxu0 0.0
  %7059 = vmatpush1.msra.mxu0 0.0
  %7060 = vmatprep.subr.mxu0 0.0
  %7061 = vmatpush1.msra.mxu0 0.0
  %7062 = vmatprep.subr.mxu0 0.0
  %7063 = vmatpush1.msra.mxu0 0.0
  %7064 = vmatprep.subr.mxu0 0.0
  %7065 = vmatpush1.msra.mxu0 0.0
  %7066 = vmatprep.subr.mxu0 0.0
  %7067 = vmatpush1.msra.mxu0 0.0
  %7068 = vmatprep.subr.mxu0 0.0
  %7069 = vmatpush1.msra.mxu0 0.0
  %7070 = vmatprep.subr.mxu0 0.0
  %7071 = vmatpush1.msra.mxu0 0.0
  %7072 = vmatprep.subr.mxu0 0.0
  %7073 = vmatpush1.msra.mxu0 0.0
  %7074 = vmatprep.subr.mxu0 0.0
  %7075 = vmatpush1.msra.mxu0 0.0
  %7076 = vmatprep.subr.mxu0 0.0
  %7077 = vmatpush1.msra.mxu0 0.0
  %7078 = vmatprep.mubr.f32.mxu0 0.0
  %7079 = vmatmul.mubr.f32.gmra.mrb[0].mxu0 %v6990
  %v7080 = vpop.f32.mrb[0].mxu0
  %v7081 = vadd.f32 %v7012, %v7080
  %v7082 = vpop.f32.mrb[0].mxu0
  %7083 = vdwg.mxu0
  %v7084 = vmax.f32 %v7081, 0.0
  %v7085 = vld [vmem:[%s22] sm:$0xff]
  %v7086 = vld [vmem:[%s22 + $0x8] sm:$0xff]
  %v7087 = vld [vmem:[%s22 + $0x10] sm:$0xff]
  %v7088 = vld [vmem:[%s22 + $0x18] sm:$0xff]
  %v7089 = vld [vmem:[%s22 + $0x20] sm:$0xff]
  %v7090 = vld [vmem:[%s22 + $0x28] sm:$0xff]
  %v7091 = vld [vmem:[%s22 + $0x30] sm:$0xff]
  %v7092 = vld [vmem:[%s22 + $0x38] sm:$0xff]
  %v7093 = vld [vmem:[%s22 + $0x40] sm:$0xff]
  %v7094 = vld [vmem:[%s22 + $0x48] sm:$0xff]
  %v7095 = vld [vmem:[%s22 + $0x50] sm:$0xff]
  %v7096 = vld [vmem:[%s22 + $0x58] sm:$0xff]
  %v7097 = vld [vmem:[%s22 + $0x60] sm:$0xff]
  %v7098 = vld [vmem:[%s22 + $0x68] sm:$0xff]
  %v7099 = vld [vmem:[%s22 + $0x70] sm:$0xff]
  %v7100 = vld [vmem:[%s22 + $0x78] sm:$0xff]
  %v7101 = vld [vmem:[%s23] sm:$0x1]
  %v7103 = vlaneseq
  %v7104 = vshrl.u32 %v7103, 7
  %v7105 = vsub.s32 0, %v7104
  %v7106 = vrot.slane %v7101, %v7105
  %7108 = vmatprep.subr.mxu0 0.0
  %7109 = vmatpush1.msra.mxu0 %v7085
  %7110 = vmatprep.subr.mxu0 0.0
  %7111 = vmatpush1.msra.mxu0 %v7086
  %7112 = vmatprep.subr.mxu0 0.0
  %7113 = vmatpush1.msra.mxu0 %v7087
  %7114 = vmatprep.subr.mxu0 0.0
  %7115 = vmatpush1.msra.mxu0 %v7088
  %7116 = vmatprep.subr.mxu0 0.0
  %7117 = vmatpush1.msra.mxu0 %v7089
  %7118 = vmatprep.subr.mxu0 0.0
  %7119 = vmatpush1.msra.mxu0 %v7090
  %7120 = vmatprep.subr.mxu0 0.0
  %7121 = vmatpush1.msra.mxu0 %v7091
  %7122 = vmatprep.subr.mxu0 0.0
  %7123 = vmatpush1.msra.mxu0 %v7092
  %7124 = vmatprep.subr.mxu0 0.0
  %7125 = vmatpush1.msra.mxu0 %v7093
  %7126 = vmatprep.subr.mxu0 0.0
  %7127 = vmatpush1.msra.mxu0 %v7094
  %7128 = vmatprep.subr.mxu0 0.0
  %7129 = vmatpush1.msra.mxu0 %v7095
  %7130 = vmatprep.subr.mxu0 0.0
  %7131 = vmatpush1.msra.mxu0 %v7096
  %7132 = vmatprep.subr.mxu0 0.0
  %7133 = vmatpush1.msra.mxu0 %v7097
  %7134 = vmatprep.subr.mxu0 0.0
  %7135 = vmatpush1.msra.mxu0 %v7098
  %7136 = vmatprep.subr.mxu0 0.0
  %7137 = vmatpush1.msra.mxu0 %v7099
  %7138 = vmatprep.subr.mxu0 0.0
  %7139 = vmatpush1.msra.mxu0 %v7100
  %7140 = vmatprep.subr.mxu0 0.0
  %7141 = vmatpush1.msra.mxu0 0.0
  %7142 = vmatprep.subr.mxu0 0.0
  %7143 = vmatpush1.msra.mxu0 0.0
  %7144 = vmatprep.subr.mxu0 0.0
  %7145 = vmatpush1.msra.mxu0 0.0
  %7146 = vmatprep.subr.mxu0 0.0
  %7147 = vmatpush1.msra.mxu0 0.0
  %7148 = vmatprep.subr.mxu0 0.0
  %7149 = vmatpush1.msra.mxu0 0.0
  %7150 = vmatprep.subr.mxu0 0.0
  %7151 = vmatpush1.msra.mxu0 0.0
  %7152 = vmatprep.subr.mxu0 0.0
  %7153 = vmatpush1.msra.mxu0 0.0
  %7154 = vmatprep.subr.mxu0 0.0
  %7155 = vmatpush1.msra.mxu0 0.0
  %7156 = vmatprep.subr.mxu0 0.0
  %7157 = vmatpush1.msra.mxu0 0.0
  %7158 = vmatprep.subr.mxu0 0.0
  %7159 = vmatpush1.msra.mxu0 0.0
  %7160 = vmatprep.subr.mxu0 0.0
  %7161 = vmatpush1.msra.mxu0 0.0
  %7162 = vmatprep.subr.mxu0 0.0
  %7163 = vmatpush1.msra.mxu0 0.0
  %7164 = vmatprep.subr.mxu0 0.0
  %7165 = vmatpush1.msra.mxu0 0.0
  %7166 = vmatprep.subr.mxu0 0.0
  %7167 = vmatpush1.msra.mxu0 0.0
  %7168 = vmatprep.subr.mxu0 0.0
  %7169 = vmatpush1.msra.mxu0 0.0
  %7170 = vmatprep.subr.mxu0 0.0
  %7171 = vmatpush1.msra.mxu0 0.0
  %7172 = vmatprep.mubr.f32.mxu0 0.0
  %7173 = vmatmul.mubr.f32.gmra.mrb[0].mxu0 %v7084
  %v7174 = vpop.f32.mrb[0].mxu0
  %v7175 = vadd.f32 %v7106, %v7174
  %v7176 = vpop.f32.mrb[0].mxu0
  %7177 = vdwg.mxu0
  %7178 = vst [vmem:[%s24] sm:$0x3] %v7175
  // Predicated region
  $region98: #{custom_network_forward.1} parent=0 // pred_check
    _
  $region99: #{custom_network_forward.1} parent=0 // pred_check_branch
    %7180 = sbr.rel (0) target = $region101
  $region100: #{custom_network_forward.1} parent=0 // pred_region
    _
  $region101: #{custom_network_forward.1} parent=0 // pred_fallthru
    _
  // Predicated region
  $region102: #{custom_network_forward.1} parent=0 // pred_check
    _
  $region103: #{custom_network_forward.1} parent=0 // pred_check_branch
    %7182 = sbr.rel (0) target = $region105
  $region104: #{custom_network_forward.1} parent=0 // pred_region
    _
  $region105: #{custom_network_forward.1} parent=0 // pred_fallthru
    _

</llo_original>
